<compile_context>
chip_gen: v7x
topology: tpu7x:2x2x1
jax: 0.10.0
libtpu: 0.0.40
codegen_flags: <defaults>
</compile_context>

<pallas_src>
import math
import numpy as np
import jax
import jax.numpy as jnp
from jax.experimental import pallas as pl
from jax.experimental.pallas import tpu as pltpu

EVENT_LSTM_HL = 128
TRADES_LSTM_HL = 128
CANDLES_LSTM_HL = 64


# ---------------------------------------------------------------------------
# Fused forward kernel
# ---------------------------------------------------------------------------
def _dqn_fused_kernel(
        lob_ref, sup_ref, ap_ref, ev_ref, tr_ref, cd_ref,
        lw1, lb1, lw2, lb2, lw3, lb3,
        sw1, sb1, sw2, sb2,
        aw1, ab1, aw2, ab2,
        wx_ev, wh_ev, b_ev,
        wx_tr, wh_tr, b_tr,
        wx_cd, wh_cd, b_cd,
        w1_lob, w1_sup, w1_ap, w1_seq,
        b1, w2v, b2v, w2a, b2a,
        o_ref, *scratch):
    hid_scrs = scratch[:-1]          # one (N_steps, 448) hidden-state buffer per batch row
    acc_scr = scratch[-1]            # (B, 1024) dueling-head hidden accumulator

    n = pl.program_id(0)
    B = lob_ref.shape[0]
    Ne, Nt, Nc = ev_ref.shape[1], tr_ref.shape[1], cd_ref.shape[2]
    He, Ht, Hc3 = wh_ev.shape[0], wh_tr.shape[0], wh_cd.shape[0]
    H1 = w2v.shape[0]

    def dot(a, w):
        return jnp.dot(a, w, preferred_element_type=jnp.float32)

    def hdot(a, w_ref):              # bf16 weights on the bandwidth-bound head layer
        return jnp.dot(a.astype(jnp.bfloat16), w_ref[...],
                       preferred_element_type=jnp.float32)

    # ----------------------------------------------------------------- step 0:
    # run every branch network once; the streamed head-weight DMAs for later
    # steps overlap with this compute.
    @pl.when(n == 0)
    def _branches():
        if min(Ne, Nt, Nc) < max(Ne, Nt, Nc):   # static: only if branch lens differ
            for s in hid_scrs:
                s[...] = jnp.zeros_like(s)

        # --- small MLP branches ---
        h = jnp.maximum(dot(lob_ref[...], lw1[...]) + lb1[...], 0.0)
        h = jnp.maximum(dot(h, lw2[...]) + lb2[...], 0.0)
        lob_out = dot(h, lw3[...]) + lb3[...]
        h = jnp.maximum(dot(sup_ref[...], sw1[...]) + sb1[...], 0.0)
        sup_out = dot(h, sw2[...]) + sb2[...]
        h = jnp.maximum(dot(ap_ref[...], aw1[...]) + ab1[...], 0.0)
        ap_out = dot(h, aw2[...]) + ab2[...]
        acc_scr[...] = (hdot(lob_out, w1_lob) + hdot(sup_out, w1_sup)
                        + hdot(ap_out, w1_ap))

        # --- LSTM branches: fused i|f|g|o gates; the three candle LSTMs are
        #     merged into one 192-wide cell.  Recurrence over the model batch
        #     dim (PyTorch batch_first=False semantics).
        ev_x, tr_x, cd_x = ev_ref[...], tr_ref[...], cd_ref[...]

        def cell(xpre, h, c, wh_ref, bias_ref, H):
            pre = xpre + dot(h, wh_ref[...]) + bias_ref[...]
            i = jax.nn.sigmoid(pre[:, 0:H])
            f = jax.nn.sigmoid(pre[:, H:2 * H])
            g = jnp.tanh(pre[:, 2 * H:3 * H])
            o = jax.nn.sigmoid(pre[:, 3 * H:4 * H])
            c2 = f * c + i * g
            return o * jnp.tanh(c2), c2

        h_ev = jnp.zeros((Ne, He), jnp.float32); c_ev = h_ev
        h_tr = jnp.zeros((Nt, Ht), jnp.float32); c_tr = h_tr
        h_cd = jnp.zeros((Nc, Hc3), jnp.float32); c_cd = h_cd

        # TODO(synk): unrolled over the (small) model batch; for large batches
        # switch to lax.fori_loop with dynamic scratch stores.
        for b in range(B):
            h_ev, c_ev = cell(dot(ev_x[b], wx_ev[...]), h_ev, c_ev, wh_ev, b_ev, He)
            h_tr, c_tr = cell(dot(tr_x[b], wx_tr[...]), h_tr, c_tr, wh_tr, b_tr, Ht)
            xc = (dot(cd_x[b, 0], wx_cd[0]) + dot(cd_x[b, 1], wx_cd[1])
                  + dot(cd_x[b, 2], wx_cd[2]))
            h_cd, c_cd = cell(xc, h_cd, c_cd, wh_cd, b_cd, Hc3)
            hid_scrs[b][0:Ne, 0:He] = h_ev
            hid_scrs[b][0:Nt, He:He + Ht] = h_tr
            hid_scrs[b][0:Nc, He + Ht:He + Ht + Hc3] = h_cd

    # ---- head first layer: one streamed 448-row slab of [w1_val | w1_adv] per step
    hid_n = jnp.concatenate([hid_scrs[i][pl.ds(n, 1), :] for i in range(B)], axis=0)
    acc_scr[...] += hdot(hid_n, w1_seq)

    # ---- last step: bias/ReLU, val & adv heads, dueling combine
    @pl.when(n == pl.num_programs(0) - 1)
    def _dueling():
        pre = acc_scr[...] + b1[...]
        hv = jnp.maximum(pre[:, 0:H1], 0.0)
        ha = jnp.maximum(pre[:, H1:2 * H1], 0.0)
        val = dot(hv, w2v[...]) + b2v[...]
        adv = dot(ha, w2a[...]) + b2a[...]
        o_ref[...] = (val + adv - jnp.mean(adv, axis=1, keepdims=True)).astype(o_ref.dtype)


def dqn_forward(x, K, cfg):
    """x: (B, 8, L, W) float32.  K: packed kernel params (see pack_params)."""
    B = x.shape[0]
    ew, tw, cw = cfg["event_width"], cfg["trade_width"], cfg["candle_width"]
    Nt, Nc = cfg["trade_len"], cfg["candle_len"]
    A = cfg["actions_n"]
    Hstep = EVENT_LSTM_HL + TRADES_LSTM_HL + 3 * CANDLES_LSTM_HL   # 448
    Hhead = K["w1_seq"].shape[1]                                   # 1024
    N = K["w1_seq"].shape[0] // Hstep
    assert x.shape[2] == cfg["event_len"]

    # Tiny input slicing stays in JAX; all heavy work runs inside one kernel.
    lob_in = x[:, 0, 0, :]
    sup_in = x[:, 6, 0, :cfg["supres_width"]]
    ap_in = x[:, 7, 0, :cfg["ap_width"]]
    ev_in = x[:, 1, :, :ew]
    tr_in = x[:, 2, :Nt, :tw]
    cd_in = x[:, 3:6, :Nc, :cw]            # (B, 3, Nc, cw): min15 | min1 | sec1

    def c(a):                               # constant (fetched-once) operand
        zeros = (0,) * a.ndim
        return a, pl.BlockSpec(a.shape, lambda n, _z=zeros: _z)

    operands = [
        c(lob_in), c(sup_in), c(ap_in), c(ev_in), c(tr_in), c(cd_in),
        c(K["lw1"]), c(K["lb1"]), c(K["lw2"]), c(K["lb2"]), c(K["lw3"]), c(K["lb3"]),
        c(K["sw1"]), c(K["sb1"]), c(K["sw2"]), c(K["sb2"]),
        c(K["aw1"]), c(K["ab1"]), c(K["aw2"]), c(K["ab2"]),
        c(K["wx_ev"]), c(K["wh_ev"]), c(K["b_ev"]),
        c(K["wx_tr"]), c(K["wh_tr"]), c(K["b_tr"]),
        c(K["wx_cd"]), c(K["wh_cd"]), c(K["b_cd"]),
        c(K["w1_lob"]), c(K["w1_sup"]), c(K["w1_ap"]),
        # streamed bf16 head weight: one (448, 1024) slab per grid step
        (K["w1_seq"], pl.BlockSpec((Hstep, Hhead), lambda n: (n, 0))),
        c(K["b1"]), c(K["w2v"]), c(K["b2v"]), c(K["w2a"]), c(K["b2a"]),
    ]
    args = [a for a, _ in operands]
    in_specs = [s for _, s in operands]

    return pl.pallas_call(
        _dqn_fused_kernel,
        out_shape=jax.ShapeDtypeStruct((B, A), jnp.float32),
        grid_spec=pltpu.PrefetchScalarGridSpec(
            num_scalar_prefetch=0,
            grid=(N,),
            in_specs=in_specs,
            out_specs=pl.BlockSpec((B, A), lambda n: (0, 0)),
            scratch_shapes=[pltpu.VMEM((N, Hstep), jnp.float32) for _ in range(B)]
                           + [pltpu.VMEM((B, Hhead), jnp.float32)]),
        compiler_params=pltpu.CompilerParams(
            dimension_semantics=("arbitrary",),
            vmem_limit_bytes=32 * 1024 * 1024),
    )(*args)


# ---------------------------------------------------------------------------
# Parameter init (deterministic, PyTorch-style uniform ranges) + kernel packing
# ---------------------------------------------------------------------------
def init_linear(key, fan_in, fan_out):
    k1, k2 = jax.random.split(key)
    s = 1.0 / math.sqrt(fan_in)
    w = jax.random.uniform(k1, (fan_in, fan_out), jnp.float32, -s, s)
    b = jax.random.uniform(k2, (1, fan_out), jnp.float32, -s, s)
    return w, b


def init_lstm(key, in_dim, hidden):
    s = 1.0 / math.sqrt(hidden)
    ks = jax.random.split(key, 12)
    p = {}
    for idx, g in enumerate("ifgo"):
        p["wx" + g] = jax.random.uniform(ks[3 * idx], (in_dim, hidden), jnp.float32, -s, s)
        p["wh" + g] = jax.random.uniform(ks[3 * idx + 1], (hidden, hidden), jnp.float32, -s, s)
        p["b" + g] = jax.random.uniform(ks[3 * idx + 2], (1, hidden), jnp.float32, -s, s)
    return p


def init_params(key, cfg):
    ks = jax.random.split(key, 9)
    P = {}
    lob_in = 4 * cfg["lob_level_num"]
    P["lob"] = [init_linear(k, i, o) for k, (i, o) in
                zip(jax.random.split(ks[0], 3), [(lob_in, 64), (64, 64), (64, 10)])]
    P["supres"] = [init_linear(k, i, o) for k, (i, o) in
                   zip(jax.random.split(ks[1], 2), [(cfg["supres_width"], 64), (64, 10)])]
    P["ap"] = [init_linear(k, i, o) for k, (i, o) in
               zip(jax.random.split(ks[2], 2), [(cfg["ap_width"], 64), (64, 10)])]
    P["events"] = init_lstm(ks[3], cfg["event_width"], EVENT_LSTM_HL)
    P["trades"] = init_lstm(ks[4], cfg["trade_width"], TRADES_LSTM_HL)
    P["min15"] = init_lstm(ks[5], cfg["candle_width"], CANDLES_LSTM_HL)
    P["min1"] = init_lstm(ks[6], cfg["candle_width"], CANDLES_LSTM_HL)
    P["sec1"] = init_lstm(ks[7], cfg["candle_width"], CANDLES_LSTM_HL)
    out_size = (10 + cfg["event_len"] * EVENT_LSTM_HL + cfg["trade_len"] * TRADES_LSTM_HL
                + 3 * cfg["candle_len"] * CANDLES_LSTM_HL + 10 + 10)
    kh = jax.random.split(ks[8], 4)
    w1v, b1v = init_linear(kh[0], out_size, 512)
    w2v, b2v = init_linear(kh[1], 512, 1)
    w1a, b1a = init_linear(kh[2], out_size, 512)
    w2a, b2a = init_linear(kh[3], 512, cfg["actions_n"])
    # keep the big head weight at bf16-representable values so the bf16 kernel and
    # the f32 reference use identical weights (kernel error = activation rounding only)
    w1v = w1v.astype(jnp.bfloat16).astype(jnp.float32)
    w1a = w1a.astype(jnp.bfloat16).astype(jnp.float32)
    P["head"] = dict(w1v=w1v, b1v=b1v, w2v=w2v, b2v=b2v,
                     w1a=w1a, b1a=b1a, w2a=w2a, b2a=b2a)
    return P


def pack_params(P, cfg):
    """One-time packing of reference params into the fused-kernel layout."""
    K = {}
    (K["lw1"], K["lb1"]), (K["lw2"], K["lb2"]), (K["lw3"], K["lb3"]) = P["lob"]
    (K["sw1"], K["sb1"]), (K["sw2"], K["sb2"]) = P["supres"]
    (K["aw1"], K["ab1"]), (K["aw2"], K["ab2"]) = P["ap"]

    def fuse_lstm(p):
        wx = jnp.concatenate([p["wxi"], p["wxf"], p["wxg"], p["wxo"]], axis=1)
        wh = jnp.concatenate([p["whi"], p["whf"], p["whg"], p["who"]], axis=1)
        b = jnp.concatenate([p["bi"], p["bf"], p["bg"], p["bo"]], axis=1)
        return wx, wh, b

    K["wx_ev"], K["wh_ev"], K["b_ev"] = fuse_lstm(P["events"])
    K["wx_tr"], K["wh_tr"], K["b_tr"] = fuse_lstm(P["trades"])

    # merged candle LSTM: gate-major / branch-minor block-structured weights
    cw = cfg["candle_width"]
    Hc, Hc3 = CANDLES_LSTM_HL, 3 * CANDLES_LSTM_HL
    wx = np.zeros((3, cw, 4 * Hc3), np.float32)
    wh = np.zeros((Hc3, 4 * Hc3), np.float32)
    bc = np.zeros((1, 4 * Hc3), np.float32)
    for r, p in enumerate([P["min15"], P["min1"], P["sec1"]]):
        for g, gn in enumerate("ifgo"):
            c0 = g * Hc3 + r * Hc
            wx[r, :, c0:c0 + Hc] = np.asarray(p["wx" + gn])
            wh[r * Hc:(r + 1) * Hc, c0:c0 + Hc] = np.asarray(p["wh" + gn])
            bc[0, c0:c0 + Hc] = np.asarray(p["b" + gn])[0]
    K["wx_cd"] = jnp.asarray(wx)
    K["wh_cd"] = jnp.asarray(wh)
    K["b_cd"] = jnp.asarray(bc)

    # dueling-head first layer: [w1_val | w1_adv] packed to bf16 and regrouped so
    # that grid step n streams exactly the rows multiplying that step's hidden state.
    hp = P["head"]
    W1 = np.concatenate([np.asarray(hp["w1v"]), np.asarray(hp["w1a"])], axis=1)
    Ne, Nt, Nc = cfg["event_len"], cfg["trade_len"], cfg["candle_len"]
    He, Ht = EVENT_LSTM_HL, TRADES_LSTM_HL
    N = max(Ne, Nt, Nc)
    off = 0
    lob_rows = slice(off, off + 10); off += 10
    ev_off = off; off += Ne * He
    tr_off = off; off += Nt * Ht
    cd_offs = []
    for _ in range(3):
        cd_offs.append(off); off += Nc * Hc
    sup_rows = slice(off, off + 10); off += 10
    ap_rows = slice(off, off + 10); off += 10
    assert off == W1.shape[0]

    Hstep = He + Ht + Hc3                      # 448 rows per grid step
    w1_seq = np.zeros((N * Hstep, W1.shape[1]), np.float32)
    for n in range(N):
        base = n * Hstep
        if n < Ne:
            w1_seq[base:base + He] = W1[ev_off + n * He: ev_off + (n + 1) * He]
        if n < Nt:
            w1_seq[base + He: base + He + Ht] = W1[tr_off + n * Ht: tr_off + (n + 1) * Ht]
        if n < Nc:
            for r in range(3):
                d0 = base + He + Ht + r * Hc
                w1_seq[d0:d0 + Hc] = W1[cd_offs[r] + n * Hc: cd_offs[r] + (n + 1) * Hc]

    K["w1_lob"] = jnp.asarray(W1[lob_rows], dtype=jnp.bfloat16)
    K["w1_sup"] = jnp.asarray(W1[sup_rows], dtype=jnp.bfloat16)
    K["w1_ap"] = jnp.asarray(W1[ap_rows], dtype=jnp.bfloat16)
    K["w1_seq"] = jnp.asarray(w1_seq, dtype=jnp.bfloat16)
    K["b1"] = jnp.concatenate([hp["b1v"], hp["b1a"]], axis=1)
    K["w2v"], K["b2v"] = hp["w2v"], hp["b2v"]
    K["w2a"], K["b2a"] = hp["w2a"], hp["b2a"]
    return K


# ---------------------------------------------------------------------------
# Pure-JAX reference for validation (mirrors the PyTorch module exactly)
# ---------------------------------------------------------------------------
def ref_lstm(x_seq, p):
    N = x_seq.shape[1]
    H = p["whi"].shape[1]

    def step(carry, xt):
        h, c = carry
        i = jax.nn.sigmoid(xt @ p["wxi"] + h @ p["whi"] + p["bi"])
        f = jax.nn.sigmoid(xt @ p["wxf"] + h @ p["whf"] + p["bf"])
        g = jnp.tanh(xt @ p["wxg"] + h @ p["whg"] + p["bg"])
        o = jax.nn.sigmoid(xt @ p["wxo"] + h @ p["who"] + p["bo"])
        c2 = f * c + i * g
        h2 = o * jnp.tanh(c2)
        return (h2, c2), h2

    init = (jnp.zeros((N, H), jnp.float32), jnp.zeros((N, H), jnp.float32))
    _, ys = jax.lax.scan(step, init, x_seq)
    return ys


def ref_mlp(x, layers):
    h = x
    for li, (w, b) in enumerate(layers):
        h = h @ w + b
        if li < len(layers) - 1:
            h = jnp.maximum(h, 0.0)
    return h


def dqn_forward_ref(x, P, cfg):
    B = x.shape[0]
    lob = x[:, 0, 0, :]
    events = x[:, 1, :, :cfg["event_width"]]
    trades = x[:, 2, :cfg["trade_len"], :cfg["trade_width"]]
    min15 = x[:, 3, :cfg["candle_len"], :cfg["candle_width"]]
    min1 = x[:, 4, :cfg["candle_len"], :cfg["candle_width"]]
    sec1 = x[:, 5, :cfg["candle_len"], :cfg["candle_width"]]
    supres = x[:, 6, 0, :cfg["supres_width"]]
    ap = x[:, 7, 0, :cfg["ap_width"]]

    total = jnp.concatenate(
        [ref_mlp(lob, P["lob"]),
         ref_lstm(events, P["events"]).reshape(B, -1),
         ref_lstm(trades, P["trades"]).reshape(B, -1),
         ref_lstm(min15, P["min15"]).reshape(B, -1),
         ref_lstm(min1, P["min1"]).reshape(B, -1),
         ref_lstm(sec1, P["sec1"]).reshape(B, -1),
         ref_mlp(supres, P["supres"]),
         ref_mlp(ap, P["ap"])], axis=1)

    hp = P["head"]
    hv = jnp.maximum(total @ hp["w1v"] + hp["b1v"], 0.0)
    val = hv @ hp["w2v"] + hp["b2v"]
    ha = jnp.maximum(total @ hp["w1a"] + hp["b1a"], 0.0)
    adv = ha @ hp["w2a"] + hp["b2a"]
    return val + adv - jnp.mean(adv, axis=1, keepdims=True)


if __name__ == "__main__":
    cfg = dict(lob_level_num=4, event_len=8, event_width=6,
               candle_len=8, candle_width=5, trade_len=8, trade_width=4,
               ap_width=7, supres_width=3, actions_n=4)
    B = 2
    L = cfg["event_len"]                 # x's 3rd dim must equal event_len
    W = 4 * cfg["lob_level_num"]         # x's 4th dim must equal 4*lob_level_num

    key = jax.random.PRNGKey(0)
    kx, kp = jax.random.split(key)
    x = jax.random.normal(kx, (B, 8, L, W), jnp.float32)
    P = init_params(kp, cfg)
    K = pack_params(P, cfg)              # one-time packing, out of the call path

    fwd = jax.jit(lambda xx: dqn_forward(xx, K, cfg))
    out = jax.block_until_ready(fwd(x))

    ref = jax.block_until_ready(dqn_forward_ref(x, P, cfg))
    assert out.shape == (B, cfg["actions_n"])
    np.testing.assert_allclose(np.asarray(out), np.asarray(ref), rtol=2e-3, atol=2e-3)
    print("KERNEL_OK")
</pallas_src>

<mosaic_0001>
module attributes {stable_mosaic.version = 11 : i64} {
  func.func @_dqn_fused_kernel(%arg0: i32, %arg1: memref<2x16xf32, #tpu.memory_space<vmem>>, %arg2: memref<2x3xf32, #tpu.memory_space<vmem>>, %arg3: memref<2x7xf32, #tpu.memory_space<vmem>>, %arg4: memref<2x8x6xf32, #tpu.memory_space<vmem>>, %arg5: memref<2x8x4xf32, #tpu.memory_space<vmem>>, %arg6: memref<2x3x8x5xf32, #tpu.memory_space<vmem>>, %arg7: memref<16x64xf32, #tpu.memory_space<vmem>>, %arg8: memref<1x64xf32, #tpu.memory_space<vmem>>, %arg9: memref<64x64xf32, #tpu.memory_space<vmem>>, %arg10: memref<1x64xf32, #tpu.memory_space<vmem>>, %arg11: memref<64x10xf32, #tpu.memory_space<vmem>>, %arg12: memref<1x10xf32, #tpu.memory_space<vmem>>, %arg13: memref<3x64xf32, #tpu.memory_space<vmem>>, %arg14: memref<1x64xf32, #tpu.memory_space<vmem>>, %arg15: memref<64x10xf32, #tpu.memory_space<vmem>>, %arg16: memref<1x10xf32, #tpu.memory_space<vmem>>, %arg17: memref<7x64xf32, #tpu.memory_space<vmem>>, %arg18: memref<1x64xf32, #tpu.memory_space<vmem>>, %arg19: memref<64x10xf32, #tpu.memory_space<vmem>>, %arg20: memref<1x10xf32, #tpu.memory_space<vmem>>, %arg21: memref<6x512xf32, #tpu.memory_space<vmem>>, %arg22: memref<128x512xf32, #tpu.memory_space<vmem>>, %arg23: memref<1x512xf32, #tpu.memory_space<vmem>>, %arg24: memref<4x512xf32, #tpu.memory_space<vmem>>, %arg25: memref<128x512xf32, #tpu.memory_space<vmem>>, %arg26: memref<1x512xf32, #tpu.memory_space<vmem>>, %arg27: memref<3x5x768xf32, #tpu.memory_space<vmem>>, %arg28: memref<192x768xf32, #tpu.memory_space<vmem>>, %arg29: memref<1x768xf32, #tpu.memory_space<vmem>>, %arg30: memref<10x1024xbf16, #tpu.memory_space<vmem>>, %arg31: memref<10x1024xbf16, #tpu.memory_space<vmem>>, %arg32: memref<10x1024xbf16, #tpu.memory_space<vmem>>, %arg33: memref<448x1024xbf16, #tpu.memory_space<vmem>>, %arg34: memref<1x1024xf32, #tpu.memory_space<vmem>>, %arg35: memref<512x1xf32, #tpu.memory_space<vmem>>, %arg36: memref<1x1xf32, #tpu.memory_space<vmem>>, %arg37: memref<512x4xf32, #tpu.memory_space<vmem>>, %arg38: memref<1x4xf32, #tpu.memory_space<vmem>>, %arg39: memref<2x4xf32, #tpu.memory_space<vmem>>, %arg40: memref<8x448xf32, #tpu.memory_space<vmem>>, %arg41: memref<8x448xf32, #tpu.memory_space<vmem>>, %arg42: memref<2x1024xf32, #tpu.memory_space<vmem>>) attributes {dimension_semantics = [#tpu.dimension_semantics<arbitrary>], iteration_bounds = array<i64: 8>, scalar_prefetch = 0 : i64, scratch_operands = 3 : i64, tpu.core_type = #tpu.core_type<tc>, window_params = [{pipeline_mode = #tpu.pipeline_mode<synchronous>, transform_indices = @transform_0, window_bounds = array<i64: 2, 16>}, {pipeline_mode = #tpu.pipeline_mode<synchronous>, transform_indices = @transform_1, window_bounds = array<i64: 2, 3>}, {pipeline_mode = #tpu.pipeline_mode<synchronous>, transform_indices = @transform_2, window_bounds = array<i64: 2, 7>}, {pipeline_mode = #tpu.pipeline_mode<synchronous>, transform_indices = @transform_3, window_bounds = array<i64: 2, 8, 6>}, {pipeline_mode = #tpu.pipeline_mode<synchronous>, transform_indices = @transform_4, window_bounds = array<i64: 2, 8, 4>}, {pipeline_mode = #tpu.pipeline_mode<synchronous>, transform_indices = @transform_5, window_bounds = array<i64: 2, 3, 8, 5>}, {pipeline_mode = #tpu.pipeline_mode<synchronous>, transform_indices = @transform_6, window_bounds = array<i64: 16, 64>}, {pipeline_mode = #tpu.pipeline_mode<synchronous>, transform_indices = @transform_7, window_bounds = array<i64: 1, 64>}, {pipeline_mode = #tpu.pipeline_mode<synchronous>, transform_indices = @transform_8, window_bounds = array<i64: 64, 64>}, {pipeline_mode = #tpu.pipeline_mode<synchronous>, transform_indices = @transform_9, window_bounds = array<i64: 1, 64>}, {pipeline_mode = #tpu.pipeline_mode<synchronous>, transform_indices = @transform_10, window_bounds = array<i64: 64, 10>}, {pipeline_mode = #tpu.pipeline_mode<synchronous>, transform_indices = @transform_11, window_bounds = array<i64: 1, 10>}, {pipeline_mode = #tpu.pipeline_mode<synchronous>, transform_indices = @transform_12, window_bounds = array<i64: 3, 64>}, {pipeline_mode = #tpu.pipeline_mode<synchronous>, transform_indices = @transform_13, window_bounds = array<i64: 1, 64>}, {pipeline_mode = #tpu.pipeline_mode<synchronous>, transform_indices = @transform_14, window_bounds = array<i64: 64, 10>}, {pipeline_mode = #tpu.pipeline_mode<synchronous>, transform_indices = @transform_15, window_bounds = array<i64: 1, 10>}, {pipeline_mode = #tpu.pipeline_mode<synchronous>, transform_indices = @transform_16, window_bounds = array<i64: 7, 64>}, {pipeline_mode = #tpu.pipeline_mode<synchronous>, transform_indices = @transform_17, window_bounds = array<i64: 1, 64>}, {pipeline_mode = #tpu.pipeline_mode<synchronous>, transform_indices = @transform_18, window_bounds = array<i64: 64, 10>}, {pipeline_mode = #tpu.pipeline_mode<synchronous>, transform_indices = @transform_19, window_bounds = array<i64: 1, 10>}, {pipeline_mode = #tpu.pipeline_mode<synchronous>, transform_indices = @transform_20, window_bounds = array<i64: 6, 512>}, {pipeline_mode = #tpu.pipeline_mode<synchronous>, transform_indices = @transform_21, window_bounds = array<i64: 128, 512>}, {pipeline_mode = #tpu.pipeline_mode<synchronous>, transform_indices = @transform_22, window_bounds = array<i64: 1, 512>}, {pipeline_mode = #tpu.pipeline_mode<synchronous>, transform_indices = @transform_23, window_bounds = array<i64: 4, 512>}, {pipeline_mode = #tpu.pipeline_mode<synchronous>, transform_indices = @transform_24, window_bounds = array<i64: 128, 512>}, {pipeline_mode = #tpu.pipeline_mode<synchronous>, transform_indices = @transform_25, window_bounds = array<i64: 1, 512>}, {pipeline_mode = #tpu.pipeline_mode<synchronous>, transform_indices = @transform_26, window_bounds = array<i64: 3, 5, 768>}, {pipeline_mode = #tpu.pipeline_mode<synchronous>, transform_indices = @transform_27, window_bounds = array<i64: 192, 768>}, {pipeline_mode = #tpu.pipeline_mode<synchronous>, transform_indices = @transform_28, window_bounds = array<i64: 1, 768>}, {pipeline_mode = #tpu.pipeline_mode<synchronous>, transform_indices = @transform_29, window_bounds = array<i64: 10, 1024>}, {pipeline_mode = #tpu.pipeline_mode<synchronous>, transform_indices = @transform_30, window_bounds = array<i64: 10, 1024>}, {pipeline_mode = #tpu.pipeline_mode<synchronous>, transform_indices = @transform_31, window_bounds = array<i64: 10, 1024>}, {transform_indices = @transform_32, window_bounds = array<i64: 448, 1024>}, {pipeline_mode = #tpu.pipeline_mode<synchronous>, transform_indices = @transform_33, window_bounds = array<i64: 1, 1024>}, {pipeline_mode = #tpu.pipeline_mode<synchronous>, transform_indices = @transform_34, window_bounds = array<i64: 512, 1>}, {pipeline_mode = #tpu.pipeline_mode<synchronous>, transform_indices = @transform_35, window_bounds = array<i64: 1, 1>}, {pipeline_mode = #tpu.pipeline_mode<synchronous>, transform_indices = @transform_36, window_bounds = array<i64: 512, 4>}, {pipeline_mode = #tpu.pipeline_mode<synchronous>, transform_indices = @transform_37, window_bounds = array<i64: 1, 4>}, {pipeline_mode = #tpu.pipeline_mode<synchronous>, transform_indices = @transform_38, window_bounds = array<i64: 2, 4>}]} {
    %c0_i32 = arith.constant 0 : i32
    %0 = arith.cmpi eq, %arg0, %c0_i32 : i32
    %1 = arith.extui %0 : i1 to i32
    %c0_i32_0 = arith.constant 0 : i32
    %2 = arith.cmpi ne, %1, %c0_i32_0 : i32
    scf.if %2 {
      %c0_9 = arith.constant 0 : index
      %c0_10 = arith.constant 0 : index
      %17 = vector.load %arg1[%c0_9, %c0_10] : memref<2x16xf32, #tpu.memory_space<vmem>>, vector<2x16xf32>
      %c0_11 = arith.constant 0 : index
      %c0_12 = arith.constant 0 : index
      %18 = vector.load %arg7[%c0_11, %c0_12] : memref<16x64xf32, #tpu.memory_space<vmem>>, vector<16x64xf32>
      %cst_13 = arith.constant dense<0.000000e+00> : vector<2x64xf32>
      %19 = tpu.matmul %17, %18, %cst_13 {dimension_numbers = #tpu.dot_dimension_numbers<[1], [0], [0], [1], [0, 0, 1, 1], [], []>} : vector<2x16xf32>, vector<16x64xf32>, vector<2x64xf32> -> vector<2x64xf32>
      %c0_14 = arith.constant 0 : index
      %c0_15 = arith.constant 0 : index
      %20 = vector.load %arg8[%c0_14, %c0_15] : memref<1x64xf32, #tpu.memory_space<vmem>>, vector<1x64xf32>
      %21 = vector.broadcast %20 : vector<1x64xf32> to vector<2x64xf32>
      %22 = arith.addf %19, %21 : vector<2x64xf32>
      %cst_16 = arith.constant 0.000000e+00 : f32
      %23 = vector.broadcast %cst_16 : f32 to vector<2x64xf32>
      %24 = arith.maximumf %22, %23 : vector<2x64xf32>
      %c0_17 = arith.constant 0 : index
      %c0_18 = arith.constant 0 : index
      %25 = vector.load %arg9[%c0_17, %c0_18] : memref<64x64xf32, #tpu.memory_space<vmem>>, vector<64x64xf32>
      %cst_19 = arith.constant dense<0.000000e+00> : vector<2x64xf32>
      %26 = tpu.matmul %24, %25, %cst_19 {dimension_numbers = #tpu.dot_dimension_numbers<[1], [0], [0], [1], [0, 0, 1, 1], [], []>} : vector<2x64xf32>, vector<64x64xf32>, vector<2x64xf32> -> vector<2x64xf32>
      %c0_20 = arith.constant 0 : index
      %c0_21 = arith.constant 0 : index
      %27 = vector.load %arg10[%c0_20, %c0_21] : memref<1x64xf32, #tpu.memory_space<vmem>>, vector<1x64xf32>
      %28 = vector.broadcast %27 : vector<1x64xf32> to vector<2x64xf32>
      %29 = arith.addf %26, %28 : vector<2x64xf32>
      %cst_22 = arith.constant 0.000000e+00 : f32
      %30 = vector.broadcast %cst_22 : f32 to vector<2x64xf32>
      %31 = arith.maximumf %29, %30 : vector<2x64xf32>
      %c0_23 = arith.constant 0 : index
      %c0_24 = arith.constant 0 : index
      %32 = vector.load %arg11[%c0_23, %c0_24] : memref<64x10xf32, #tpu.memory_space<vmem>>, vector<64x10xf32>
      %cst_25 = arith.constant dense<0.000000e+00> : vector<2x10xf32>
      %33 = tpu.matmul %31, %32, %cst_25 {dimension_numbers = #tpu.dot_dimension_numbers<[1], [0], [0], [1], [0, 0, 1, 1], [], []>} : vector<2x64xf32>, vector<64x10xf32>, vector<2x10xf32> -> vector<2x10xf32>
      %c0_26 = arith.constant 0 : index
      %c0_27 = arith.constant 0 : index
      %34 = vector.load %arg12[%c0_26, %c0_27] : memref<1x10xf32, #tpu.memory_space<vmem>>, vector<1x10xf32>
      %35 = vector.broadcast %34 : vector<1x10xf32> to vector<2x10xf32>
      %36 = arith.addf %33, %35 : vector<2x10xf32>
      %c0_28 = arith.constant 0 : index
      %c0_29 = arith.constant 0 : index
      %37 = vector.load %arg2[%c0_28, %c0_29] : memref<2x3xf32, #tpu.memory_space<vmem>>, vector<2x3xf32>
      %c0_30 = arith.constant 0 : index
      %c0_31 = arith.constant 0 : index
      %38 = vector.load %arg13[%c0_30, %c0_31] : memref<3x64xf32, #tpu.memory_space<vmem>>, vector<3x64xf32>
      %cst_32 = arith.constant dense<0.000000e+00> : vector<2x64xf32>
      %39 = tpu.matmul %37, %38, %cst_32 {dimension_numbers = #tpu.dot_dimension_numbers<[1], [0], [0], [1], [0, 0, 1, 1], [], []>} : vector<2x3xf32>, vector<3x64xf32>, vector<2x64xf32> -> vector<2x64xf32>
      %c0_33 = arith.constant 0 : index
      %c0_34 = arith.constant 0 : index
      %40 = vector.load %arg14[%c0_33, %c0_34] : memref<1x64xf32, #tpu.memory_space<vmem>>, vector<1x64xf32>
      %41 = vector.broadcast %40 : vector<1x64xf32> to vector<2x64xf32>
      %42 = arith.addf %39, %41 : vector<2x64xf32>
      %cst_35 = arith.constant 0.000000e+00 : f32
      %43 = vector.broadcast %cst_35 : f32 to vector<2x64xf32>
      %44 = arith.maximumf %42, %43 : vector<2x64xf32>
      %c0_36 = arith.constant 0 : index
      %c0_37 = arith.constant 0 : index
      %45 = vector.load %arg15[%c0_36, %c0_37] : memref<64x10xf32, #tpu.memory_space<vmem>>, vector<64x10xf32>
      %cst_38 = arith.constant dense<0.000000e+00> : vector<2x10xf32>
      %46 = tpu.matmul %44, %45, %cst_38 {dimension_numbers = #tpu.dot_dimension_numbers<[1], [0], [0], [1], [0, 0, 1, 1], [], []>} : vector<2x64xf32>, vector<64x10xf32>, vector<2x10xf32> -> vector<2x10xf32>
      %c0_39 = arith.constant 0 : index
      %c0_40 = arith.constant 0 : index
      %47 = vector.load %arg16[%c0_39, %c0_40] : memref<1x10xf32, #tpu.memory_space<vmem>>, vector<1x10xf32>
      %48 = vector.broadcast %47 : vector<1x10xf32> to vector<2x10xf32>
      %49 = arith.addf %46, %48 : vector<2x10xf32>
      %c0_41 = arith.constant 0 : index
      %c0_42 = arith.constant 0 : index
      %50 = vector.load %arg3[%c0_41, %c0_42] : memref<2x7xf32, #tpu.memory_space<vmem>>, vector<2x7xf32>
      %c0_43 = arith.constant 0 : index
      %c0_44 = arith.constant 0 : index
      %51 = vector.load %arg17[%c0_43, %c0_44] : memref<7x64xf32, #tpu.memory_space<vmem>>, vector<7x64xf32>
      %cst_45 = arith.constant dense<0.000000e+00> : vector<2x64xf32>
      %52 = tpu.matmul %50, %51, %cst_45 {dimension_numbers = #tpu.dot_dimension_numbers<[1], [0], [0], [1], [0, 0, 1, 1], [], []>} : vector<2x7xf32>, vector<7x64xf32>, vector<2x64xf32> -> vector<2x64xf32>
      %c0_46 = arith.constant 0 : index
      %c0_47 = arith.constant 0 : index
      %53 = vector.load %arg18[%c0_46, %c0_47] : memref<1x64xf32, #tpu.memory_space<vmem>>, vector<1x64xf32>
      %54 = vector.broadcast %53 : vector<1x64xf32> to vector<2x64xf32>
      %55 = arith.addf %52, %54 : vector<2x64xf32>
      %cst_48 = arith.constant 0.000000e+00 : f32
      %56 = vector.broadcast %cst_48 : f32 to vector<2x64xf32>
      %57 = arith.maximumf %55, %56 : vector<2x64xf32>
      %c0_49 = arith.constant 0 : index
      %c0_50 = arith.constant 0 : index
      %58 = vector.load %arg19[%c0_49, %c0_50] : memref<64x10xf32, #tpu.memory_space<vmem>>, vector<64x10xf32>
      %cst_51 = arith.constant dense<0.000000e+00> : vector<2x10xf32>
      %59 = tpu.matmul %57, %58, %cst_51 {dimension_numbers = #tpu.dot_dimension_numbers<[1], [0], [0], [1], [0, 0, 1, 1], [], []>} : vector<2x64xf32>, vector<64x10xf32>, vector<2x10xf32> -> vector<2x10xf32>
      %c0_52 = arith.constant 0 : index
      %c0_53 = arith.constant 0 : index
      %60 = vector.load %arg20[%c0_52, %c0_53] : memref<1x10xf32, #tpu.memory_space<vmem>>, vector<1x10xf32>
      %61 = vector.broadcast %60 : vector<1x10xf32> to vector<2x10xf32>
      %62 = arith.addf %59, %61 : vector<2x10xf32>
      %63 = arith.truncf %36 : vector<2x10xf32> to vector<2x10xbf16>
      %c0_54 = arith.constant 0 : index
      %c0_55 = arith.constant 0 : index
      %64 = vector.load %arg30[%c0_54, %c0_55] : memref<10x1024xbf16, #tpu.memory_space<vmem>>, vector<10x1024xbf16>
      %cst_56 = arith.constant dense<0.000000e+00> : vector<2x1024xf32>
      %65 = tpu.matmul %63, %64, %cst_56 {dimension_numbers = #tpu.dot_dimension_numbers<[1], [0], [0], [1], [0, 0, 1, 1], [], []>} : vector<2x10xbf16>, vector<10x1024xbf16>, vector<2x1024xf32> -> vector<2x1024xf32>
      %66 = arith.truncf %49 : vector<2x10xf32> to vector<2x10xbf16>
      %c0_57 = arith.constant 0 : index
      %c0_58 = arith.constant 0 : index
      %67 = vector.load %arg31[%c0_57, %c0_58] : memref<10x1024xbf16, #tpu.memory_space<vmem>>, vector<10x1024xbf16>
      %cst_59 = arith.constant dense<0.000000e+00> : vector<2x1024xf32>
      %68 = tpu.matmul %66, %67, %cst_59 {dimension_numbers = #tpu.dot_dimension_numbers<[1], [0], [0], [1], [0, 0, 1, 1], [], []>} : vector<2x10xbf16>, vector<10x1024xbf16>, vector<2x1024xf32> -> vector<2x1024xf32>
      %69 = arith.addf %65, %68 : vector<2x1024xf32>
      %70 = arith.truncf %62 : vector<2x10xf32> to vector<2x10xbf16>
      %c0_60 = arith.constant 0 : index
      %c0_61 = arith.constant 0 : index
      %71 = vector.load %arg32[%c0_60, %c0_61] : memref<10x1024xbf16, #tpu.memory_space<vmem>>, vector<10x1024xbf16>
      %cst_62 = arith.constant dense<0.000000e+00> : vector<2x1024xf32>
      %72 = tpu.matmul %70, %71, %cst_62 {dimension_numbers = #tpu.dot_dimension_numbers<[1], [0], [0], [1], [0, 0, 1, 1], [], []>} : vector<2x10xbf16>, vector<10x1024xbf16>, vector<2x1024xf32> -> vector<2x1024xf32>
      %73 = arith.addf %69, %72 : vector<2x1024xf32>
      %c0_63 = arith.constant 0 : index
      %c0_64 = arith.constant 0 : index
      %74 = vector.load %arg42[%c0_63, %c0_64] : memref<2x1024xf32, #tpu.memory_space<vmem>>, vector<2x1024xf32>
      tpu.vector_store %arg42[%c0_63, %c0_64], %73 {strides = array<i32>} : memref<2x1024xf32, #tpu.memory_space<vmem>>, vector<2x1024xf32>,
      %c0_65 = arith.constant 0 : index
      %c0_66 = arith.constant 0 : index
      %c0_67 = arith.constant 0 : index
      %75 = vector.load %arg4[%c0_65, %c0_66, %c0_67] : memref<2x8x6xf32, #tpu.memory_space<vmem>>, vector<2x8x6xf32>
      %c0_68 = arith.constant 0 : index
      %c0_69 = arith.constant 0 : index
      %c0_70 = arith.constant 0 : index
      %76 = vector.load %arg5[%c0_68, %c0_69, %c0_70] : memref<2x8x4xf32, #tpu.memory_space<vmem>>, vector<2x8x4xf32>
      %c0_71 = arith.constant 0 : index
      %c0_72 = arith.constant 0 : index
      %c0_73 = arith.constant 0 : index
      %c0_74 = arith.constant 0 : index
      %77 = vector.load %arg6[%c0_71, %c0_72, %c0_73, %c0_74] : memref<2x3x8x5xf32, #tpu.memory_space<vmem>>, vector<2x3x8x5xf32>
      %cst_75 = arith.constant 0.000000e+00 : f32
      %78 = vector.broadcast %cst_75 : f32 to vector<8x128xf32>
      %cst_76 = arith.constant 0.000000e+00 : f32
      %79 = vector.broadcast %cst_76 : f32 to vector<8x128xf32>
      %cst_77 = arith.constant 0.000000e+00 : f32
      %80 = vector.broadcast %cst_77 : f32 to vector<8x192xf32>
      %81 = vector.extract_strided_slice %75 {offsets = [0, 0, 0], sizes = [1, 8, 6], strides = [1, 1, 1]} : vector<2x8x6xf32> to vector<1x8x6xf32>
      %82 = vector.shape_cast %81 : vector<1x8x6xf32> to vector<8x6xf32>
      %c0_78 = arith.constant 0 : index
      %c0_79 = arith.constant 0 : index
      %83 = vector.load %arg21[%c0_78, %c0_79] : memref<6x512xf32, #tpu.memory_space<vmem>>, vector<6x512xf32>
      %cst_80 = arith.constant dense<0.000000e+00> : vector<8x512xf32>
      %84 = tpu.matmul %82, %83, %cst_80 {dimension_numbers = #tpu.dot_dimension_numbers<[1], [0], [0], [1], [0, 0, 1, 1], [], []>} : vector<8x6xf32>, vector<6x512xf32>, vector<8x512xf32> -> vector<8x512xf32>
      %c0_81 = arith.constant 0 : index
      %c0_82 = arith.constant 0 : index
      %85 = vector.load %arg22[%c0_81, %c0_82] : memref<128x512xf32, #tpu.memory_space<vmem>>, vector<128x512xf32>
      %cst_83 = arith.constant dense<0.000000e+00> : vector<8x512xf32>
      %86 = tpu.matmul %78, %85, %cst_83 {dimension_numbers = #tpu.dot_dimension_numbers<[1], [0], [0], [1], [0, 0, 1, 1], [], []>} : vector<8x128xf32>, vector<128x512xf32>, vector<8x512xf32> -> vector<8x512xf32>
      %87 = arith.addf %84, %86 : vector<8x512xf32>
      %c0_84 = arith.constant 0 : index
      %c0_85 = arith.constant 0 : index
      %88 = vector.load %arg23[%c0_84, %c0_85] : memref<1x512xf32, #tpu.memory_space<vmem>>, vector<1x512xf32>
      %89 = vector.broadcast %88 : vector<1x512xf32> to vector<8x512xf32>
      %90 = arith.addf %87, %89 : vector<8x512xf32>
      %91 = vector.extract_strided_slice %90 {offsets = [0, 0], sizes = [8, 128], strides = [1, 1]} : vector<8x512xf32> to vector<8x128xf32>
      %92 = arith.negf %91 : vector<8x128xf32>
      %93 = math.exp %92 : vector<8x128xf32>
      %cst_86 = arith.constant 1.000000e+00 : f32
      %94 = vector.broadcast %cst_86 : f32 to vector<8x128xf32>
      %95 = arith.addf %94, %93 : vector<8x128xf32>
      %96 = arith.divf %94, %95 : vector<8x128xf32>
      %97 = vector.extract_strided_slice %90 {offsets = [0, 128], sizes = [8, 128], strides = [1, 1]} : vector<8x512xf32> to vector<8x128xf32>
      %98 = arith.negf %97 : vector<8x128xf32>
      %99 = math.exp %98 : vector<8x128xf32>
      %cst_87 = arith.constant 1.000000e+00 : f32
      %100 = vector.broadcast %cst_87 : f32 to vector<8x128xf32>
      %101 = arith.addf %100, %99 : vector<8x128xf32>
      %102 = arith.divf %100, %101 : vector<8x128xf32>
      %103 = vector.extract_strided_slice %90 {offsets = [0, 256], sizes = [8, 128], strides = [1, 1]} : vector<8x512xf32> to vector<8x128xf32>
      %104 = math.tanh %103 : vector<8x128xf32>
      %105 = vector.extract_strided_slice %90 {offsets = [0, 384], sizes = [8, 128], strides = [1, 1]} : vector<8x512xf32> to vector<8x128xf32>
      %106 = arith.negf %105 : vector<8x128xf32>
      %107 = math.exp %106 : vector<8x128xf32>
      %cst_88 = arith.constant 1.000000e+00 : f32
      %108 = vector.broadcast %cst_88 : f32 to vector<8x128xf32>
      %109 = arith.addf %108, %107 : vector<8x128xf32>
      %110 = arith.divf %108, %109 : vector<8x128xf32>
      %111 = arith.mulf %102, %78 : vector<8x128xf32>
      %112 = arith.mulf %96, %104 : vector<8x128xf32>
      %113 = arith.addf %111, %112 : vector<8x128xf32>
      %114 = math.tanh %113 : vector<8x128xf32>
      %115 = arith.mulf %110, %114 : vector<8x128xf32>
      %116 = vector.extract_strided_slice %76 {offsets = [0, 0, 0], sizes = [1, 8, 4], strides = [1, 1, 1]} : vector<2x8x4xf32> to vector<1x8x4xf32>
      %117 = vector.shape_cast %116 : vector<1x8x4xf32> to vector<8x4xf32>
      %c0_89 = arith.constant 0 : index
      %c0_90 = arith.constant 0 : index
      %118 = vector.load %arg24[%c0_89, %c0_90] : memref<4x512xf32, #tpu.memory_space<vmem>>, vector<4x512xf32>
      %cst_91 = arith.constant dense<0.000000e+00> : vector<8x512xf32>
      %119 = tpu.matmul %117, %118, %cst_91 {dimension_numbers = #tpu.dot_dimension_numbers<[1], [0], [0], [1], [0, 0, 1, 1], [], []>} : vector<8x4xf32>, vector<4x512xf32>, vector<8x512xf32> -> vector<8x512xf32>
      %c0_92 = arith.constant 0 : index
      %c0_93 = arith.constant 0 : index
      %120 = vector.load %arg25[%c0_92, %c0_93] : memref<128x512xf32, #tpu.memory_space<vmem>>, vector<128x512xf32>
      %cst_94 = arith.constant dense<0.000000e+00> : vector<8x512xf32>
      %121 = tpu.matmul %79, %120, %cst_94 {dimension_numbers = #tpu.dot_dimension_numbers<[1], [0], [0], [1], [0, 0, 1, 1], [], []>} : vector<8x128xf32>, vector<128x512xf32>, vector<8x512xf32> -> vector<8x512xf32>
      %122 = arith.addf %119, %121 : vector<8x512xf32>
      %c0_95 = arith.constant 0 : index
      %c0_96 = arith.constant 0 : index
      %123 = vector.load %arg26[%c0_95, %c0_96] : memref<1x512xf32, #tpu.memory_space<vmem>>, vector<1x512xf32>
      %124 = vector.broadcast %123 : vector<1x512xf32> to vector<8x512xf32>
      %125 = arith.addf %122, %124 : vector<8x512xf32>
      %126 = vector.extract_strided_slice %125 {offsets = [0, 0], sizes = [8, 128], strides = [1, 1]} : vector<8x512xf32> to vector<8x128xf32>
      %127 = arith.negf %126 : vector<8x128xf32>
      %128 = math.exp %127 : vector<8x128xf32>
      %cst_97 = arith.constant 1.000000e+00 : f32
      %129 = vector.broadcast %cst_97 : f32 to vector<8x128xf32>
      %130 = arith.addf %129, %128 : vector<8x128xf32>
      %131 = arith.divf %129, %130 : vector<8x128xf32>
      %132 = vector.extract_strided_slice %125 {offsets = [0, 128], sizes = [8, 128], strides = [1, 1]} : vector<8x512xf32> to vector<8x128xf32>
      %133 = arith.negf %132 : vector<8x128xf32>
      %134 = math.exp %133 : vector<8x128xf32>
      %cst_98 = arith.constant 1.000000e+00 : f32
      %135 = vector.broadcast %cst_98 : f32 to vector<8x128xf32>
      %136 = arith.addf %135, %134 : vector<8x128xf32>
      %137 = arith.divf %135, %136 : vector<8x128xf32>
      %138 = vector.extract_strided_slice %125 {offsets = [0, 256], sizes = [8, 128], strides = [1, 1]} : vector<8x512xf32> to vector<8x128xf32>
      %139 = math.tanh %138 : vector<8x128xf32>
      %140 = vector.extract_strided_slice %125 {offsets = [0, 384], sizes = [8, 128], strides = [1, 1]} : vector<8x512xf32> to vector<8x128xf32>
      %141 = arith.negf %140 : vector<8x128xf32>
      %142 = math.exp %141 : vector<8x128xf32>
      %cst_99 = arith.constant 1.000000e+00 : f32
      %143 = vector.broadcast %cst_99 : f32 to vector<8x128xf32>
      %144 = arith.addf %143, %142 : vector<8x128xf32>
      %145 = arith.divf %143, %144 : vector<8x128xf32>
      %146 = arith.mulf %137, %79 : vector<8x128xf32>
      %147 = arith.mulf %131, %139 : vector<8x128xf32>
      %148 = arith.addf %146, %147 : vector<8x128xf32>
      %149 = math.tanh %148 : vector<8x128xf32>
      %150 = arith.mulf %145, %149 : vector<8x128xf32>
      %151 = vector.extract_strided_slice %77 {offsets = [0, 0, 0, 0], sizes = [1, 1, 8, 5], strides = [1, 1, 1, 1]} : vector<2x3x8x5xf32> to vector<1x1x8x5xf32>
      %152 = vector.shape_cast %151 : vector<1x1x8x5xf32> to vector<8x5xf32>
      %c0_100 = arith.constant 0 : index
      %c0_101 = arith.constant 0 : index
      %c0_102 = arith.constant 0 : index
      %153 = vector.load %arg27[%c0_100, %c0_101, %c0_102] : memref<3x5x768xf32, #tpu.memory_space<vmem>>, vector<1x5x768xf32>
      %154 = vector.shape_cast %153 : vector<1x5x768xf32> to vector<5x768xf32>
      %cst_103 = arith.constant dense<0.000000e+00> : vector<8x768xf32>
      %155 = tpu.matmul %152, %154, %cst_103 {dimension_numbers = #tpu.dot_dimension_numbers<[1], [0], [0], [1], [0, 0, 1, 1], [], []>} : vector<8x5xf32>, vector<5x768xf32>, vector<8x768xf32> -> vector<8x768xf32>
      %156 = vector.extract_strided_slice %77 {offsets = [0, 1, 0, 0], sizes = [1, 1, 8, 5], strides = [1, 1, 1, 1]} : vector<2x3x8x5xf32> to vector<1x1x8x5xf32>
      %157 = vector.shape_cast %156 : vector<1x1x8x5xf32> to vector<8x5xf32>
      %c1 = arith.constant 1 : index
      %c0_104 = arith.constant 0 : index
      %c0_105 = arith.constant 0 : index
      %158 = vector.load %arg27[%c1, %c0_104, %c0_105] : memref<3x5x768xf32, #tpu.memory_space<vmem>>, vector<1x5x768xf32>
      %159 = vector.shape_cast %158 : vector<1x5x768xf32> to vector<5x768xf32>
      %cst_106 = arith.constant dense<0.000000e+00> : vector<8x768xf32>
      %160 = tpu.matmul %157, %159, %cst_106 {dimension_numbers = #tpu.dot_dimension_numbers<[1], [0], [0], [1], [0, 0, 1, 1], [], []>} : vector<8x5xf32>, vector<5x768xf32>, vector<8x768xf32> -> vector<8x768xf32>
      %161 = arith.addf %155, %160 : vector<8x768xf32>
      %162 = vector.extract_strided_slice %77 {offsets = [0, 2, 0, 0], sizes = [1, 1, 8, 5], strides = [1, 1, 1, 1]} : vector<2x3x8x5xf32> to vector<1x1x8x5xf32>
      %163 = vector.shape_cast %162 : vector<1x1x8x5xf32> to vector<8x5xf32>
      %c2 = arith.constant 2 : index
      %c0_107 = arith.constant 0 : index
      %c0_108 = arith.constant 0 : index
      %164 = vector.load %arg27[%c2, %c0_107, %c0_108] : memref<3x5x768xf32, #tpu.memory_space<vmem>>, vector<1x5x768xf32>
      %165 = vector.shape_cast %164 : vector<1x5x768xf32> to vector<5x768xf32>
      %cst_109 = arith.constant dense<0.000000e+00> : vector<8x768xf32>
      %166 = tpu.matmul %163, %165, %cst_109 {dimension_numbers = #tpu.dot_dimension_numbers<[1], [0], [0], [1], [0, 0, 1, 1], [], []>} : vector<8x5xf32>, vector<5x768xf32>, vector<8x768xf32> -> vector<8x768xf32>
      %167 = arith.addf %161, %166 : vector<8x768xf32>
      %c0_110 = arith.constant 0 : index
      %c0_111 = arith.constant 0 : index
      %168 = vector.load %arg28[%c0_110, %c0_111] : memref<192x768xf32, #tpu.memory_space<vmem>>, vector<192x768xf32>
      %cst_112 = arith.constant dense<0.000000e+00> : vector<8x768xf32>
      %169 = tpu.matmul %80, %168, %cst_112 {dimension_numbers = #tpu.dot_dimension_numbers<[1], [0], [0], [1], [0, 0, 1, 1], [], []>} : vector<8x192xf32>, vector<192x768xf32>, vector<8x768xf32> -> vector<8x768xf32>
      %170 = arith.addf %167, %169 : vector<8x768xf32>
      %c0_113 = arith.constant 0 : index
      %c0_114 = arith.constant 0 : index
      %171 = vector.load %arg29[%c0_113, %c0_114] : memref<1x768xf32, #tpu.memory_space<vmem>>, vector<1x768xf32>
      %172 = vector.broadcast %171 : vector<1x768xf32> to vector<8x768xf32>
      %173 = arith.addf %170, %172 : vector<8x768xf32>
      %174 = vector.extract_strided_slice %173 {offsets = [0, 0], sizes = [8, 192], strides = [1, 1]} : vector<8x768xf32> to vector<8x192xf32>
      %175 = arith.negf %174 : vector<8x192xf32>
      %176 = math.exp %175 : vector<8x192xf32>
      %cst_115 = arith.constant 1.000000e+00 : f32
      %177 = vector.broadcast %cst_115 : f32 to vector<8x192xf32>
      %178 = arith.addf %177, %176 : vector<8x192xf32>
      %179 = arith.divf %177, %178 : vector<8x192xf32>
      %180 = vector.extract_strided_slice %173 {offsets = [0, 192], sizes = [8, 192], strides = [1, 1]} : vector<8x768xf32> to vector<8x192xf32>
      %181 = arith.negf %180 : vector<8x192xf32>
      %182 = math.exp %181 : vector<8x192xf32>
      %cst_116 = arith.constant 1.000000e+00 : f32
      %183 = vector.broadcast %cst_116 : f32 to vector<8x192xf32>
      %184 = arith.addf %183, %182 : vector<8x192xf32>
      %185 = arith.divf %183, %184 : vector<8x192xf32>
      %186 = vector.extract_strided_slice %173 {offsets = [0, 384], sizes = [8, 192], strides = [1, 1]} : vector<8x768xf32> to vector<8x192xf32>
      %187 = math.tanh %186 : vector<8x192xf32>
      %188 = vector.extract_strided_slice %173 {offsets = [0, 576], sizes = [8, 192], strides = [1, 1]} : vector<8x768xf32> to vector<8x192xf32>
      %189 = arith.negf %188 : vector<8x192xf32>
      %190 = math.exp %189 : vector<8x192xf32>
      %cst_117 = arith.constant 1.000000e+00 : f32
      %191 = vector.broadcast %cst_117 : f32 to vector<8x192xf32>
      %192 = arith.addf %191, %190 : vector<8x192xf32>
      %193 = arith.divf %191, %192 : vector<8x192xf32>
      %194 = arith.mulf %185, %80 : vector<8x192xf32>
      %195 = arith.mulf %179, %187 : vector<8x192xf32>
      %196 = arith.addf %194, %195 : vector<8x192xf32>
      %197 = math.tanh %196 : vector<8x192xf32>
      %198 = arith.mulf %193, %197 : vector<8x192xf32>
      %c0_118 = arith.constant 0 : index
      %c0_119 = arith.constant 0 : index
      %199 = vector.load %arg40[%c0_118, %c0_119] : memref<8x448xf32, #tpu.memory_space<vmem>>, vector<8x128xf32>
      tpu.vector_store %arg40[%c0_118, %c0_119], %115 {strides = array<i32>} : memref<8x448xf32, #tpu.memory_space<vmem>>, vector<8x128xf32>,
      %c0_120 = arith.constant 0 : index
      %c128 = arith.constant 128 : index
      %200 = vector.load %arg40[%c0_120, %c128] : memref<8x448xf32, #tpu.memory_space<vmem>>, vector<8x128xf32>
      tpu.vector_store %arg40[%c0_120, %c128], %150 {strides = array<i32>} : memref<8x448xf32, #tpu.memory_space<vmem>>, vector<8x128xf32>,
      %c0_121 = arith.constant 0 : index
      %c256 = arith.constant 256 : index
      %201 = vector.load %arg40[%c0_121, %c256] : memref<8x448xf32, #tpu.memory_space<vmem>>, vector<8x192xf32>
      tpu.vector_store %arg40[%c0_121, %c256], %198 {strides = array<i32>} : memref<8x448xf32, #tpu.memory_space<vmem>>, vector<8x192xf32>,
      %202 = vector.extract_strided_slice %75 {offsets = [1, 0, 0], sizes = [1, 8, 6], strides = [1, 1, 1]} : vector<2x8x6xf32> to vector<1x8x6xf32>
      %203 = vector.shape_cast %202 : vector<1x8x6xf32> to vector<8x6xf32>
      %c0_122 = arith.constant 0 : index
      %c0_123 = arith.constant 0 : index
      %204 = vector.load %arg21[%c0_122, %c0_123] : memref<6x512xf32, #tpu.memory_space<vmem>>, vector<6x512xf32>
      %cst_124 = arith.constant dense<0.000000e+00> : vector<8x512xf32>
      %205 = tpu.matmul %203, %204, %cst_124 {dimension_numbers = #tpu.dot_dimension_numbers<[1], [0], [0], [1], [0, 0, 1, 1], [], []>} : vector<8x6xf32>, vector<6x512xf32>, vector<8x512xf32> -> vector<8x512xf32>
      %c0_125 = arith.constant 0 : index
      %c0_126 = arith.constant 0 : index
      %206 = vector.load %arg22[%c0_125, %c0_126] : memref<128x512xf32, #tpu.memory_space<vmem>>, vector<128x512xf32>
      %cst_127 = arith.constant dense<0.000000e+00> : vector<8x512xf32>
      %207 = tpu.matmul %115, %206, %cst_127 {dimension_numbers = #tpu.dot_dimension_numbers<[1], [0], [0], [1], [0, 0, 1, 1], [], []>} : vector<8x128xf32>, vector<128x512xf32>, vector<8x512xf32> -> vector<8x512xf32>
      %208 = arith.addf %205, %207 : vector<8x512xf32>
      %c0_128 = arith.constant 0 : index
      %c0_129 = arith.constant 0 : index
      %209 = vector.load %arg23[%c0_128, %c0_129] : memref<1x512xf32, #tpu.memory_space<vmem>>, vector<1x512xf32>
      %210 = vector.broadcast %209 : vector<1x512xf32> to vector<8x512xf32>
      %211 = arith.addf %208, %210 : vector<8x512xf32>
      %212 = vector.extract_strided_slice %211 {offsets = [0, 0], sizes = [8, 128], strides = [1, 1]} : vector<8x512xf32> to vector<8x128xf32>
      %213 = arith.negf %212 : vector<8x128xf32>
      %214 = math.exp %213 : vector<8x128xf32>
      %cst_130 = arith.constant 1.000000e+00 : f32
      %215 = vector.broadcast %cst_130 : f32 to vector<8x128xf32>
      %216 = arith.addf %215, %214 : vector<8x128xf32>
      %217 = arith.divf %215, %216 : vector<8x128xf32>
      %218 = vector.extract_strided_slice %211 {offsets = [0, 128], sizes = [8, 128], strides = [1, 1]} : vector<8x512xf32> to vector<8x128xf32>
      %219 = arith.negf %218 : vector<8x128xf32>
      %220 = math.exp %219 : vector<8x128xf32>
      %cst_131 = arith.constant 1.000000e+00 : f32
      %221 = vector.broadcast %cst_131 : f32 to vector<8x128xf32>
      %222 = arith.addf %221, %220 : vector<8x128xf32>
      %223 = arith.divf %221, %222 : vector<8x128xf32>
      %224 = vector.extract_strided_slice %211 {offsets = [0, 256], sizes = [8, 128], strides = [1, 1]} : vector<8x512xf32> to vector<8x128xf32>
      %225 = math.tanh %224 : vector<8x128xf32>
      %226 = vector.extract_strided_slice %211 {offsets = [0, 384], sizes = [8, 128], strides = [1, 1]} : vector<8x512xf32> to vector<8x128xf32>
      %227 = arith.negf %226 : vector<8x128xf32>
      %228 = math.exp %227 : vector<8x128xf32>
      %cst_132 = arith.constant 1.000000e+00 : f32
      %229 = vector.broadcast %cst_132 : f32 to vector<8x128xf32>
      %230 = arith.addf %229, %228 : vector<8x128xf32>
      %231 = arith.divf %229, %230 : vector<8x128xf32>
      %232 = arith.mulf %223, %113 : vector<8x128xf32>
      %233 = arith.mulf %217, %225 : vector<8x128xf32>
      %234 = arith.addf %232, %233 : vector<8x128xf32>
      %235 = math.tanh %234 : vector<8x128xf32>
      %236 = arith.mulf %231, %235 : vector<8x128xf32>
      %237 = vector.extract_strided_slice %76 {offsets = [1, 0, 0], sizes = [1, 8, 4], strides = [1, 1, 1]} : vector<2x8x4xf32> to vector<1x8x4xf32>
      %238 = vector.shape_cast %237 : vector<1x8x4xf32> to vector<8x4xf32>
      %c0_133 = arith.constant 0 : index
      %c0_134 = arith.constant 0 : index
      %239 = vector.load %arg24[%c0_133, %c0_134] : memref<4x512xf32, #tpu.memory_space<vmem>>, vector<4x512xf32>
      %cst_135 = arith.constant dense<0.000000e+00> : vector<8x512xf32>
      %240 = tpu.matmul %238, %239, %cst_135 {dimension_numbers = #tpu.dot_dimension_numbers<[1], [0], [0], [1], [0, 0, 1, 1], [], []>} : vector<8x4xf32>, vector<4x512xf32>, vector<8x512xf32> -> vector<8x512xf32>
      %c0_136 = arith.constant 0 : index
      %c0_137 = arith.constant 0 : index
      %241 = vector.load %arg25[%c0_136, %c0_137] : memref<128x512xf32, #tpu.memory_space<vmem>>, vector<128x512xf32>
      %cst_138 = arith.constant dense<0.000000e+00> : vector<8x512xf32>
      %242 = tpu.matmul %150, %241, %cst_138 {dimension_numbers = #tpu.dot_dimension_numbers<[1], [0], [0], [1], [0, 0, 1, 1], [], []>} : vector<8x128xf32>, vector<128x512xf32>, vector<8x512xf32> -> vector<8x512xf32>
      %243 = arith.addf %240, %242 : vector<8x512xf32>
      %c0_139 = arith.constant 0 : index
      %c0_140 = arith.constant 0 : index
      %244 = vector.load %arg26[%c0_139, %c0_140] : memref<1x512xf32, #tpu.memory_space<vmem>>, vector<1x512xf32>
      %245 = vector.broadcast %244 : vector<1x512xf32> to vector<8x512xf32>
      %246 = arith.addf %243, %245 : vector<8x512xf32>
      %247 = vector.extract_strided_slice %246 {offsets = [0, 0], sizes = [8, 128], strides = [1, 1]} : vector<8x512xf32> to vector<8x128xf32>
      %248 = arith.negf %247 : vector<8x128xf32>
      %249 = math.exp %248 : vector<8x128xf32>
      %cst_141 = arith.constant 1.000000e+00 : f32
      %250 = vector.broadcast %cst_141 : f32 to vector<8x128xf32>
      %251 = arith.addf %250, %249 : vector<8x128xf32>
      %252 = arith.divf %250, %251 : vector<8x128xf32>
      %253 = vector.extract_strided_slice %246 {offsets = [0, 128], sizes = [8, 128], strides = [1, 1]} : vector<8x512xf32> to vector<8x128xf32>
      %254 = arith.negf %253 : vector<8x128xf32>
      %255 = math.exp %254 : vector<8x128xf32>
      %cst_142 = arith.constant 1.000000e+00 : f32
      %256 = vector.broadcast %cst_142 : f32 to vector<8x128xf32>
      %257 = arith.addf %256, %255 : vector<8x128xf32>
      %258 = arith.divf %256, %257 : vector<8x128xf32>
      %259 = vector.extract_strided_slice %246 {offsets = [0, 256], sizes = [8, 128], strides = [1, 1]} : vector<8x512xf32> to vector<8x128xf32>
      %260 = math.tanh %259 : vector<8x128xf32>
      %261 = vector.extract_strided_slice %246 {offsets = [0, 384], sizes = [8, 128], strides = [1, 1]} : vector<8x512xf32> to vector<8x128xf32>
      %262 = arith.negf %261 : vector<8x128xf32>
      %263 = math.exp %262 : vector<8x128xf32>
      %cst_143 = arith.constant 1.000000e+00 : f32
      %264 = vector.broadcast %cst_143 : f32 to vector<8x128xf32>
      %265 = arith.addf %264, %263 : vector<8x128xf32>
      %266 = arith.divf %264, %265 : vector<8x128xf32>
      %267 = arith.mulf %258, %148 : vector<8x128xf32>
      %268 = arith.mulf %252, %260 : vector<8x128xf32>
      %269 = arith.addf %267, %268 : vector<8x128xf32>
      %270 = math.tanh %269 : vector<8x128xf32>
      %271 = arith.mulf %266, %270 : vector<8x128xf32>
      %272 = vector.extract_strided_slice %77 {offsets = [1, 0, 0, 0], sizes = [1, 1, 8, 5], strides = [1, 1, 1, 1]} : vector<2x3x8x5xf32> to vector<1x1x8x5xf32>
      %273 = vector.shape_cast %272 : vector<1x1x8x5xf32> to vector<8x5xf32>
      %c0_144 = arith.constant 0 : index
      %c0_145 = arith.constant 0 : index
      %c0_146 = arith.constant 0 : index
      %274 = vector.load %arg27[%c0_144, %c0_145, %c0_146] : memref<3x5x768xf32, #tpu.memory_space<vmem>>, vector<1x5x768xf32>
      %275 = vector.shape_cast %274 : vector<1x5x768xf32> to vector<5x768xf32>
      %cst_147 = arith.constant dense<0.000000e+00> : vector<8x768xf32>
      %276 = tpu.matmul %273, %275, %cst_147 {dimension_numbers = #tpu.dot_dimension_numbers<[1], [0], [0], [1], [0, 0, 1, 1], [], []>} : vector<8x5xf32>, vector<5x768xf32>, vector<8x768xf32> -> vector<8x768xf32>
      %277 = vector.extract_strided_slice %77 {offsets = [1, 1, 0, 0], sizes = [1, 1, 8, 5], strides = [1, 1, 1, 1]} : vector<2x3x8x5xf32> to vector<1x1x8x5xf32>
      %278 = vector.shape_cast %277 : vector<1x1x8x5xf32> to vector<8x5xf32>
      %c1_148 = arith.constant 1 : index
      %c0_149 = arith.constant 0 : index
      %c0_150 = arith.constant 0 : index
      %279 = vector.load %arg27[%c1_148, %c0_149, %c0_150] : memref<3x5x768xf32, #tpu.memory_space<vmem>>, vector<1x5x768xf32>
      %280 = vector.shape_cast %279 : vector<1x5x768xf32> to vector<5x768xf32>
      %cst_151 = arith.constant dense<0.000000e+00> : vector<8x768xf32>
      %281 = tpu.matmul %278, %280, %cst_151 {dimension_numbers = #tpu.dot_dimension_numbers<[1], [0], [0], [1], [0, 0, 1, 1], [], []>} : vector<8x5xf32>, vector<5x768xf32>, vector<8x768xf32> -> vector<8x768xf32>
      %282 = arith.addf %276, %281 : vector<8x768xf32>
      %283 = vector.extract_strided_slice %77 {offsets = [1, 2, 0, 0], sizes = [1, 1, 8, 5], strides = [1, 1, 1, 1]} : vector<2x3x8x5xf32> to vector<1x1x8x5xf32>
      %284 = vector.shape_cast %283 : vector<1x1x8x5xf32> to vector<8x5xf32>
      %c2_152 = arith.constant 2 : index
      %c0_153 = arith.constant 0 : index
      %c0_154 = arith.constant 0 : index
      %285 = vector.load %arg27[%c2_152, %c0_153, %c0_154] : memref<3x5x768xf32, #tpu.memory_space<vmem>>, vector<1x5x768xf32>
      %286 = vector.shape_cast %285 : vector<1x5x768xf32> to vector<5x768xf32>
      %cst_155 = arith.constant dense<0.000000e+00> : vector<8x768xf32>
      %287 = tpu.matmul %284, %286, %cst_155 {dimension_numbers = #tpu.dot_dimension_numbers<[1], [0], [0], [1], [0, 0, 1, 1], [], []>} : vector<8x5xf32>, vector<5x768xf32>, vector<8x768xf32> -> vector<8x768xf32>
      %288 = arith.addf %282, %287 : vector<8x768xf32>
      %c0_156 = arith.constant 0 : index
      %c0_157 = arith.constant 0 : index
      %289 = vector.load %arg28[%c0_156, %c0_157] : memref<192x768xf32, #tpu.memory_space<vmem>>, vector<192x768xf32>
      %cst_158 = arith.constant dense<0.000000e+00> : vector<8x768xf32>
      %290 = tpu.matmul %198, %289, %cst_158 {dimension_numbers = #tpu.dot_dimension_numbers<[1], [0], [0], [1], [0, 0, 1, 1], [], []>} : vector<8x192xf32>, vector<192x768xf32>, vector<8x768xf32> -> vector<8x768xf32>
      %291 = arith.addf %288, %290 : vector<8x768xf32>
      %c0_159 = arith.constant 0 : index
      %c0_160 = arith.constant 0 : index
      %292 = vector.load %arg29[%c0_159, %c0_160] : memref<1x768xf32, #tpu.memory_space<vmem>>, vector<1x768xf32>
      %293 = vector.broadcast %292 : vector<1x768xf32> to vector<8x768xf32>
      %294 = arith.addf %291, %293 : vector<8x768xf32>
      %295 = vector.extract_strided_slice %294 {offsets = [0, 0], sizes = [8, 192], strides = [1, 1]} : vector<8x768xf32> to vector<8x192xf32>
      %296 = arith.negf %295 : vector<8x192xf32>
      %297 = math.exp %296 : vector<8x192xf32>
      %cst_161 = arith.constant 1.000000e+00 : f32
      %298 = vector.broadcast %cst_161 : f32 to vector<8x192xf32>
      %299 = arith.addf %298, %297 : vector<8x192xf32>
      %300 = arith.divf %298, %299 : vector<8x192xf32>
      %301 = vector.extract_strided_slice %294 {offsets = [0, 192], sizes = [8, 192], strides = [1, 1]} : vector<8x768xf32> to vector<8x192xf32>
      %302 = arith.negf %301 : vector<8x192xf32>
      %303 = math.exp %302 : vector<8x192xf32>
      %cst_162 = arith.constant 1.000000e+00 : f32
      %304 = vector.broadcast %cst_162 : f32 to vector<8x192xf32>
      %305 = arith.addf %304, %303 : vector<8x192xf32>
      %306 = arith.divf %304, %305 : vector<8x192xf32>
      %307 = vector.extract_strided_slice %294 {offsets = [0, 384], sizes = [8, 192], strides = [1, 1]} : vector<8x768xf32> to vector<8x192xf32>
      %308 = math.tanh %307 : vector<8x192xf32>
      %309 = vector.extract_strided_slice %294 {offsets = [0, 576], sizes = [8, 192], strides = [1, 1]} : vector<8x768xf32> to vector<8x192xf32>
      %310 = arith.negf %309 : vector<8x192xf32>
      %311 = math.exp %310 : vector<8x192xf32>
      %cst_163 = arith.constant 1.000000e+00 : f32
      %312 = vector.broadcast %cst_163 : f32 to vector<8x192xf32>
      %313 = arith.addf %312, %311 : vector<8x192xf32>
      %314 = arith.divf %312, %313 : vector<8x192xf32>
      %315 = arith.mulf %306, %196 : vector<8x192xf32>
      %316 = arith.mulf %300, %308 : vector<8x192xf32>
      %317 = arith.addf %315, %316 : vector<8x192xf32>
      %318 = math.tanh %317 : vector<8x192xf32>
      %319 = arith.mulf %314, %318 : vector<8x192xf32>
      %c0_164 = arith.constant 0 : index
      %c0_165 = arith.constant 0 : index
      %320 = vector.load %arg41[%c0_164, %c0_165] : memref<8x448xf32, #tpu.memory_space<vmem>>, vector<8x128xf32>
      tpu.vector_store %arg41[%c0_164, %c0_165], %236 {strides = array<i32>} : memref<8x448xf32, #tpu.memory_space<vmem>>, vector<8x128xf32>,
      %c0_166 = arith.constant 0 : index
      %c128_167 = arith.constant 128 : index
      %321 = vector.load %arg41[%c0_166, %c128_167] : memref<8x448xf32, #tpu.memory_space<vmem>>, vector<8x128xf32>
      tpu.vector_store %arg41[%c0_166, %c128_167], %271 {strides = array<i32>} : memref<8x448xf32, #tpu.memory_space<vmem>>, vector<8x128xf32>,
      %c0_168 = arith.constant 0 : index
      %c256_169 = arith.constant 256 : index
      %322 = vector.load %arg41[%c0_168, %c256_169] : memref<8x448xf32, #tpu.memory_space<vmem>>, vector<8x192xf32>
      tpu.vector_store %arg41[%c0_168, %c256_169], %319 {strides = array<i32>} : memref<8x448xf32, #tpu.memory_space<vmem>>, vector<8x192xf32>,
    } else {
    }
    %3 = arith.index_cast %arg0 : i32 to index
    %c0 = arith.constant 0 : index
    %4 = vector.load %arg40[%3, %c0] : memref<8x448xf32, #tpu.memory_space<vmem>>, vector<1x448xf32>
    %5 = arith.index_cast %arg0 : i32 to index
    %c0_1 = arith.constant 0 : index
    %6 = vector.load %arg41[%5, %c0_1] : memref<8x448xf32, #tpu.memory_space<vmem>>, vector<1x448xf32>
    %7 = tpu.concatenate %4, %6 in 0 : vector<1x448xf32>, vector<1x448xf32> -> vector<2x448xf32>
    %c0_2 = arith.constant 0 : index
    %c0_3 = arith.constant 0 : index
    %8 = vector.load %arg42[%c0_2, %c0_3] : memref<2x1024xf32, #tpu.memory_space<vmem>>, vector<2x1024xf32>
    %9 = arith.truncf %7 : vector<2x448xf32> to vector<2x448xbf16>
    %c0_4 = arith.constant 0 : index
    %c0_5 = arith.constant 0 : index
    %10 = vector.load %arg33[%c0_4, %c0_5] : memref<448x1024xbf16, #tpu.memory_space<vmem>>, vector<448x1024xbf16>
    %cst = arith.constant dense<0.000000e+00> : vector<2x1024xf32>
    %11 = tpu.matmul %9, %10, %cst {dimension_numbers = #tpu.dot_dimension_numbers<[1], [0], [0], [1], [0, 0, 1, 1], [], []>} : vector<2x448xbf16>, vector<448x1024xbf16>, vector<2x1024xf32> -> vector<2x1024xf32>
    %12 = arith.addf %8, %11 : vector<2x1024xf32>
    %c0_6 = arith.constant 0 : index
    %c0_7 = arith.constant 0 : index
    %13 = vector.load %arg42[%c0_6, %c0_7] : memref<2x1024xf32, #tpu.memory_space<vmem>>, vector<2x1024xf32>
    tpu.vector_store %arg42[%c0_6, %c0_7], %12 {strides = array<i32>} : memref<2x1024xf32, #tpu.memory_space<vmem>>, vector<2x1024xf32>,
    %c7_i32 = arith.constant 7 : i32
    %14 = arith.cmpi eq, %arg0, %c7_i32 : i32
    %15 = arith.extui %14 : i1 to i32
    %c0_i32_8 = arith.constant 0 : i32
    %16 = arith.cmpi ne, %15, %c0_i32_8 : i32
    scf.if %16 {
      %c0_9 = arith.constant 0 : index
      %c0_10 = arith.constant 0 : index
      %17 = vector.load %arg42[%c0_9, %c0_10] : memref<2x1024xf32, #tpu.memory_space<vmem>>, vector<2x1024xf32>
      %c0_11 = arith.constant 0 : index
      %c0_12 = arith.constant 0 : index
      %18 = vector.load %arg34[%c0_11, %c0_12] : memref<1x1024xf32, #tpu.memory_space<vmem>>, vector<1x1024xf32>
      %19 = vector.broadcast %18 : vector<1x1024xf32> to vector<2x1024xf32>
      %20 = arith.addf %17, %19 : vector<2x1024xf32>
      %21 = vector.extract_strided_slice %20 {offsets = [0, 0], sizes = [2, 512], strides = [1, 1]} : vector<2x1024xf32> to vector<2x512xf32>
      %cst_13 = arith.constant 0.000000e+00 : f32
      %22 = vector.broadcast %cst_13 : f32 to vector<2x512xf32>
      %23 = arith.maximumf %21, %22 : vector<2x512xf32>
      %24 = vector.extract_strided_slice %20 {offsets = [0, 512], sizes = [2, 512], strides = [1, 1]} : vector<2x1024xf32> to vector<2x512xf32>
      %cst_14 = arith.constant 0.000000e+00 : f32
      %25 = vector.broadcast %cst_14 : f32 to vector<2x512xf32>
      %26 = arith.maximumf %24, %25 : vector<2x512xf32>
      %c0_15 = arith.constant 0 : index
      %c0_16 = arith.constant 0 : index
      %27 = vector.load %arg35[%c0_15, %c0_16] : memref<512x1xf32, #tpu.memory_space<vmem>>, vector<512x1xf32>
      %cst_17 = arith.constant dense<0.000000e+00> : vector<2x1xf32>
      %28 = tpu.matmul %23, %27, %cst_17 {dimension_numbers = #tpu.dot_dimension_numbers<[1], [0], [0], [1], [0, 0, 1, 1], [], []>} : vector<2x512xf32>, vector<512x1xf32>, vector<2x1xf32> -> vector<2x1xf32>
      %c0_18 = arith.constant 0 : index
      %c0_19 = arith.constant 0 : index
      %29 = vector.load %arg36[%c0_18, %c0_19] : memref<1x1xf32, #tpu.memory_space<vmem>>, vector<1x1xf32>
      %30 = vector.broadcast %29 : vector<1x1xf32> to vector<2x1xf32>
      %31 = arith.addf %28, %30 : vector<2x1xf32>
      %c0_20 = arith.constant 0 : index
      %c0_21 = arith.constant 0 : index
      %32 = vector.load %arg37[%c0_20, %c0_21] : memref<512x4xf32, #tpu.memory_space<vmem>>, vector<512x4xf32>
      %cst_22 = arith.constant dense<0.000000e+00> : vector<2x4xf32>
      %33 = tpu.matmul %26, %32, %cst_22 {dimension_numbers = #tpu.dot_dimension_numbers<[1], [0], [0], [1], [0, 0, 1, 1], [], []>} : vector<2x512xf32>, vector<512x4xf32>, vector<2x4xf32> -> vector<2x4xf32>
      %c0_23 = arith.constant 0 : index
      %c0_24 = arith.constant 0 : index
      %34 = vector.load %arg38[%c0_23, %c0_24] : memref<1x4xf32, #tpu.memory_space<vmem>>, vector<1x4xf32>
      %35 = vector.broadcast %34 : vector<1x4xf32> to vector<2x4xf32>
      %36 = arith.addf %33, %35 : vector<2x4xf32>
      %37 = vector.broadcast %31 : vector<2x1xf32> to vector<2x4xf32>
      %38 = arith.addf %37, %36 : vector<2x4xf32>
      %cst_25 = arith.constant dense<0.000000e+00> : vector<2xf32>
      %39 = vector.multi_reduction <add>, %36, %cst_25 [1] : vector<2x4xf32> to vector<2xf32>
      %40 = vector.shape_cast %39 : vector<2xf32> to vector<2x1xf32>
      %cst_26 = arith.constant 4.000000e+00 : f32
      %41 = vector.broadcast %cst_26 : f32 to vector<2x1xf32>
      %42 = arith.divf %40, %41 : vector<2x1xf32>
      %43 = vector.broadcast %42 : vector<2x1xf32> to vector<2x4xf32>
      %44 = arith.subf %38, %43 : vector<2x4xf32>
      %c0_27 = arith.constant 0 : index
      %c0_28 = arith.constant 0 : index
      %45 = vector.load %arg39[%c0_27, %c0_28] : memref<2x4xf32, #tpu.memory_space<vmem>>, vector<2x4xf32>
      tpu.vector_store %arg39[%c0_27, %c0_28], %44 {strides = array<i32>} : memref<2x4xf32, #tpu.memory_space<vmem>>, vector<2x4xf32>,
    } else {
    }
    return
  }
  func.func @transform_0(%arg0: i32) -> (i32, i32) {
    %c0_i32 = arith.constant 0 : i32
    %c0_i32_0 = arith.constant 0 : i32
    %c0_i32_1 = arith.constant 0 : i32
    return %c0_i32, %c0_i32_0 : i32, i32
  }
  func.func @transform_1(%arg0: i32) -> (i32, i32) {
    %c0_i32 = arith.constant 0 : i32
    %c0_i32_0 = arith.constant 0 : i32
    %c0_i32_1 = arith.constant 0 : i32
    return %c0_i32, %c0_i32_0 : i32, i32
  }
  func.func @transform_2(%arg0: i32) -> (i32, i32) {
    %c0_i32 = arith.constant 0 : i32
    %c0_i32_0 = arith.constant 0 : i32
    %c0_i32_1 = arith.constant 0 : i32
    return %c0_i32, %c0_i32_0 : i32, i32
  }
  func.func @transform_3(%arg0: i32) -> (i32, i32, i32) {
    %c0_i32 = arith.constant 0 : i32
    %c0_i32_0 = arith.constant 0 : i32
    %c0_i32_1 = arith.constant 0 : i32
    %c0_i32_2 = arith.constant 0 : i32
    return %c0_i32, %c0_i32_0, %c0_i32_1 : i32, i32, i32
  }
  func.func @transform_4(%arg0: i32) -> (i32, i32, i32) {
    %c0_i32 = arith.constant 0 : i32
    %c0_i32_0 = arith.constant 0 : i32
    %c0_i32_1 = arith.constant 0 : i32
    %c0_i32_2 = arith.constant 0 : i32
    return %c0_i32, %c0_i32_0, %c0_i32_1 : i32, i32, i32
  }
  func.func @transform_5(%arg0: i32) -> (i32, i32, i32, i32) {
    %c0_i32 = arith.constant 0 : i32
    %c0_i32_0 = arith.constant 0 : i32
    %c0_i32_1 = arith.constant 0 : i32
    %c0_i32_2 = arith.constant 0 : i32
    %c0_i32_3 = arith.constant 0 : i32
    return %c0_i32, %c0_i32_0, %c0_i32_1, %c0_i32_2 : i32, i32, i32, i32
  }
  func.func @transform_6(%arg0: i32) -> (i32, i32) {
    %c0_i32 = arith.constant 0 : i32
    %c0_i32_0 = arith.constant 0 : i32
    %c0_i32_1 = arith.constant 0 : i32
    return %c0_i32, %c0_i32_0 : i32, i32
  }
  func.func @transform_7(%arg0: i32) -> (i32, i32) {
    %c0_i32 = arith.constant 0 : i32
    %c0_i32_0 = arith.constant 0 : i32
    %c0_i32_1 = arith.constant 0 : i32
    return %c0_i32, %c0_i32_0 : i32, i32
  }
  func.func @transform_8(%arg0: i32) -> (i32, i32) {
    %c0_i32 = arith.constant 0 : i32
    %c0_i32_0 = arith.constant 0 : i32
    %c0_i32_1 = arith.constant 0 : i32
    return %c0_i32, %c0_i32_0 : i32, i32
  }
  func.func @transform_9(%arg0: i32) -> (i32, i32) {
    %c0_i32 = arith.constant 0 : i32
    %c0_i32_0 = arith.constant 0 : i32
    %c0_i32_1 = arith.constant 0 : i32
    return %c0_i32, %c0_i32_0 : i32, i32
  }
  func.func @transform_10(%arg0: i32) -> (i32, i32) {
    %c0_i32 = arith.constant 0 : i32
    %c0_i32_0 = arith.constant 0 : i32
    %c0_i32_1 = arith.constant 0 : i32
    return %c0_i32, %c0_i32_0 : i32, i32
  }
  func.func @transform_11(%arg0: i32) -> (i32, i32) {
    %c0_i32 = arith.constant 0 : i32
    %c0_i32_0 = arith.constant 0 : i32
    %c0_i32_1 = arith.constant 0 : i32
    return %c0_i32, %c0_i32_0 : i32, i32
  }
  func.func @transform_12(%arg0: i32) -> (i32, i32) {
    %c0_i32 = arith.constant 0 : i32
    %c0_i32_0 = arith.constant 0 : i32
    %c0_i32_1 = arith.constant 0 : i32
    return %c0_i32, %c0_i32_0 : i32, i32
  }
  func.func @transform_13(%arg0: i32) -> (i32, i32) {
    %c0_i32 = arith.constant 0 : i32
    %c0_i32_0 = arith.constant 0 : i32
    %c0_i32_1 = arith.constant 0 : i32
    return %c0_i32, %c0_i32_0 : i32, i32
  }
  func.func @transform_14(%arg0: i32) -> (i32, i32) {
    %c0_i32 = arith.constant 0 : i32
    %c0_i32_0 = arith.constant 0 : i32
    %c0_i32_1 = arith.constant 0 : i32
    return %c0_i32, %c0_i32_0 : i32, i32
  }
  func.func @transform_15(%arg0: i32) -> (i32, i32) {
    %c0_i32 = arith.constant 0 : i32
    %c0_i32_0 = arith.constant 0 : i32
    %c0_i32_1 = arith.constant 0 : i32
    return %c0_i32, %c0_i32_0 : i32, i32
  }
  func.func @transform_16(%arg0: i32) -> (i32, i32) {
    %c0_i32 = arith.constant 0 : i32
    %c0_i32_0 = arith.constant 0 : i32
    %c0_i32_1 = arith.constant 0 : i32
    return %c0_i32, %c0_i32_0 : i32, i32
  }
  func.func @transform_17(%arg0: i32) -> (i32, i32) {
    %c0_i32 = arith.constant 0 : i32
    %c0_i32_0 = arith.constant 0 : i32
    %c0_i32_1 = arith.constant 0 : i32
    return %c0_i32, %c0_i32_0 : i32, i32
  }
  func.func @transform_18(%arg0: i32) -> (i32, i32) {
    %c0_i32 = arith.constant 0 : i32
    %c0_i32_0 = arith.constant 0 : i32
    %c0_i32_1 = arith.constant 0 : i32
    return %c0_i32, %c0_i32_0 : i32, i32
  }
  func.func @transform_19(%arg0: i32) -> (i32, i32) {
    %c0_i32 = arith.constant 0 : i32
    %c0_i32_0 = arith.constant 0 : i32
    %c0_i32_1 = arith.constant 0 : i32
    return %c0_i32, %c0_i32_0 : i32, i32
  }
  func.func @transform_20(%arg0: i32) -> (i32, i32) {
    %c0_i32 = arith.constant 0 : i32
    %c0_i32_0 = arith.constant 0 : i32
    %c0_i32_1 = arith.constant 0 : i32
    return %c0_i32, %c0_i32_0 : i32, i32
  }
  func.func @transform_21(%arg0: i32) -> (i32, i32) {
    %c0_i32 = arith.constant 0 : i32
    %c0_i32_0 = arith.constant 0 : i32
    %c0_i32_1 = arith.constant 0 : i32
    return %c0_i32, %c0_i32_0 : i32, i32
  }
  func.func @transform_22(%arg0: i32) -> (i32, i32) {
    %c0_i32 = arith.constant 0 : i32
    %c0_i32_0 = arith.constant 0 : i32
    %c0_i32_1 = arith.constant 0 : i32
    return %c0_i32, %c0_i32_0 : i32, i32
  }
  func.func @transform_23(%arg0: i32) -> (i32, i32) {
    %c0_i32 = arith.constant 0 : i32
    %c0_i32_0 = arith.constant 0 : i32
    %c0_i32_1 = arith.constant 0 : i32
    return %c0_i32, %c0_i32_0 : i32, i32
  }
  func.func @transform_24(%arg0: i32) -> (i32, i32) {
    %c0_i32 = arith.constant 0 : i32
    %c0_i32_0 = arith.constant 0 : i32
    %c0_i32_1 = arith.constant 0 : i32
    return %c0_i32, %c0_i32_0 : i32, i32
  }
  func.func @transform_25(%arg0: i32) -> (i32, i32) {
    %c0_i32 = arith.constant 0 : i32
    %c0_i32_0 = arith.constant 0 : i32
    %c0_i32_1 = arith.constant 0 : i32
    return %c0_i32, %c0_i32_0 : i32, i32
  }
  func.func @transform_26(%arg0: i32) -> (i32, i32, i32) {
    %c0_i32 = arith.constant 0 : i32
    %c0_i32_0 = arith.constant 0 : i32
    %c0_i32_1 = arith.constant 0 : i32
    %c0_i32_2 = arith.constant 0 : i32
    return %c0_i32, %c0_i32_0, %c0_i32_1 : i32, i32, i32
  }
  func.func @transform_27(%arg0: i32) -> (i32, i32) {
    %c0_i32 = arith.constant 0 : i32
    %c0_i32_0 = arith.constant 0 : i32
    %c0_i32_1 = arith.constant 0 : i32
    return %c0_i32, %c0_i32_0 : i32, i32
  }
  func.func @transform_28(%arg0: i32) -> (i32, i32) {
    %c0_i32 = arith.constant 0 : i32
    %c0_i32_0 = arith.constant 0 : i32
    %c0_i32_1 = arith.constant 0 : i32
    return %c0_i32, %c0_i32_0 : i32, i32
  }
  func.func @transform_29(%arg0: i32) -> (i32, i32) {
    %c0_i32 = arith.constant 0 : i32
    %c0_i32_0 = arith.constant 0 : i32
    %c0_i32_1 = arith.constant 0 : i32
    return %c0_i32, %c0_i32_0 : i32, i32
  }
  func.func @transform_30(%arg0: i32) -> (i32, i32) {
    %c0_i32 = arith.constant 0 : i32
    %c0_i32_0 = arith.constant 0 : i32
    %c0_i32_1 = arith.constant 0 : i32
    return %c0_i32, %c0_i32_0 : i32, i32
  }
  func.func @transform_31(%arg0: i32) -> (i32, i32) {
    %c0_i32 = arith.constant 0 : i32
    %c0_i32_0 = arith.constant 0 : i32
    %c0_i32_1 = arith.constant 0 : i32
    return %c0_i32, %c0_i32_0 : i32, i32
  }
  func.func @transform_32(%arg0: i32) -> (i32, i32) {
    %c0_i32 = arith.constant 0 : i32
    %c0_i32_0 = arith.constant 0 : i32
    return %arg0, %c0_i32 : i32, i32
  }
  func.func @transform_33(%arg0: i32) -> (i32, i32) {
    %c0_i32 = arith.constant 0 : i32
    %c0_i32_0 = arith.constant 0 : i32
    %c0_i32_1 = arith.constant 0 : i32
    return %c0_i32, %c0_i32_0 : i32, i32
  }
  func.func @transform_34(%arg0: i32) -> (i32, i32) {
    %c0_i32 = arith.constant 0 : i32
    %c0_i32_0 = arith.constant 0 : i32
    %c0_i32_1 = arith.constant 0 : i32
    return %c0_i32, %c0_i32_0 : i32, i32
  }
  func.func @transform_35(%arg0: i32) -> (i32, i32) {
    %c0_i32 = arith.constant 0 : i32
    %c0_i32_0 = arith.constant 0 : i32
    %c0_i32_1 = arith.constant 0 : i32
    return %c0_i32, %c0_i32_0 : i32, i32
  }
  func.func @transform_36(%arg0: i32) -> (i32, i32) {
    %c0_i32 = arith.constant 0 : i32
    %c0_i32_0 = arith.constant 0 : i32
    %c0_i32_1 = arith.constant 0 : i32
    return %c0_i32, %c0_i32_0 : i32, i32
  }
  func.func @transform_37(%arg0: i32) -> (i32, i32) {
    %c0_i32 = arith.constant 0 : i32
    %c0_i32_0 = arith.constant 0 : i32
    %c0_i32_1 = arith.constant 0 : i32
    return %c0_i32, %c0_i32_0 : i32, i32
  }
  func.func @transform_38(%arg0: i32) -> (i32, i32) {
    %c0_i32 = arith.constant 0 : i32
    %c0_i32_0 = arith.constant 0 : i32
    %c0_i32_1 = arith.constant 0 : i32
    return %c0_i32, %c0_i32_0 : i32, i32
  }
}

</mosaic_0001>

<llo_original>
// kernel: _lambda_.1
$region0: #{_lambda_.1}
  #allocation0 [shape = 'u32[]', space=smem, size = 0x4, offset = 0x4, fixed_abs, tag = 'smem constant byte address 0x4 - core index']
  #allocation1 [shape = 'u32[144,128]{1,0:T(1,128)}', space=vmem, size = 0x12000, scoped, tag = 'internal scratch']
  #allocation2 [shape = 'f32[8,448]{1,0:T(8,128)}', space=vmem, size = 0x4000, scoped, tag = 'scratch operand']
  #allocation3 [shape = 'f32[8,448]{1,0:T(8,128)}', space=vmem, size = 0x4000, scoped, tag = 'scratch operand']
  #allocation4 [shape = 'f32[2,1024]{1,0:T(2,128)}', space=vmem, size = 0x2000, scoped, tag = 'scratch operand']
  #allocation5 [shape = 'f32[1,1]{1,0:T(1,128)S(1)}', space=vmem, size = 0x200, scoped, tag = 'scoped memory for _lambda_.1']
  %s0 = inlined_call_operand.smem [shape: u32[39], index: -1, kind: input, shape index: {}]
  %s1 = sld [smem:[%s0]]
  %s2 = scalar_lea.smem %s0, 1
  %s3 = sld [smem:[%s2]]
  %s4 = scalar_lea.smem %s0, 2
  %s5 = sld [smem:[%s4]]
  %s6 = scalar_lea.smem %s0, 3
  %s7 = sld [smem:[%s6]]
  %s8 = scalar_lea.smem %s0, 4
  %s9 = sld [smem:[%s8]]
  %s10 = scalar_lea.smem %s0, 5
  %s11 = sld [smem:[%s10]]
  %s12 = scalar_lea.smem %s0, 6
  %s13 = sld [smem:[%s12]]
  %s14 = scalar_lea.smem %s0, 7
  %s15 = sld [smem:[%s14]]
  %s16 = scalar_lea.smem %s0, 8
  %s17 = sld [smem:[%s16]]
  %s18 = scalar_lea.smem %s0, 9
  %s19 = sld [smem:[%s18]]
  %s20 = scalar_lea.smem %s0, 10
  %s21 = sld [smem:[%s20]]
  %s22 = scalar_lea.smem %s0, 11
  %s23 = sld [smem:[%s22]]
  %s24 = scalar_lea.smem %s0, 12
  %s25 = sld [smem:[%s24]]
  %s26 = scalar_lea.smem %s0, 13
  %s27 = sld [smem:[%s26]]
  %s28 = scalar_lea.smem %s0, 14
  %s29 = sld [smem:[%s28]]
  %s30 = scalar_lea.smem %s0, 15
  %s31 = sld [smem:[%s30]]
  %s32 = scalar_lea.smem %s0, 16
  %s33 = sld [smem:[%s32]]
  %s34 = scalar_lea.smem %s0, 17
  %s35 = sld [smem:[%s34]]
  %s36 = scalar_lea.smem %s0, 18
  %s37 = sld [smem:[%s36]]
  %s38 = scalar_lea.smem %s0, 19
  %s39 = sld [smem:[%s38]]
  %s40 = scalar_lea.smem %s0, 20
  %s41 = sld [smem:[%s40]]
  %s42 = scalar_lea.smem %s0, 21
  %s43 = sld [smem:[%s42]]
  %s44 = scalar_lea.smem %s0, 22
  %s45 = sld [smem:[%s44]]
  %s46 = scalar_lea.smem %s0, 23
  %s47 = sld [smem:[%s46]]
  %s48 = scalar_lea.smem %s0, 24
  %s49 = sld [smem:[%s48]]
  %s50 = scalar_lea.smem %s0, 25
  %s51 = sld [smem:[%s50]]
  %s52 = scalar_lea.smem %s0, 26
  %s53 = sld [smem:[%s52]]
  %s54 = scalar_lea.smem %s0, 27
  %s55 = sld [smem:[%s54]]
  %s56 = scalar_lea.smem %s0, 28
  %s57 = sld [smem:[%s56]]
  %s58 = scalar_lea.smem %s0, 29
  %s59 = sld [smem:[%s58]]
  %s60 = scalar_lea.smem %s0, 30
  %s61 = sld [smem:[%s60]]
  %s62 = scalar_lea.smem %s0, 31
  %s63 = sld [smem:[%s62]]
  %s64 = scalar_lea.smem %s0, 32
  %s65 = sld [smem:[%s64]]
  %s66 = scalar_lea.smem %s0, 33
  %s67 = sld [smem:[%s66]]
  %s68 = scalar_lea.smem %s0, 34
  %s69 = sld [smem:[%s68]]
  %s70 = scalar_lea.smem %s0, 35
  %s71 = sld [smem:[%s70]]
  %s72 = scalar_lea.smem %s0, 36
  %s73 = sld [smem:[%s72]]
  %s74 = scalar_lea.smem %s0, 37
  %s75 = sld [smem:[%s74]]
  %s76 = scalar_lea.smem %s0, 38
  %s77 = sld [smem:[%s76]]
  %s78 = sld [smem:[#allocation0]]
  $region193: #{_lambda_.1} parent=0
    _
  %s80 = ssub.s32 1, %s78
  %s81 = scalar_select 0, %s80, %s78
  %v82 = vstv %s71
  %83 = vst [vmem:[#allocation5] sm:$0x1] %v82
  $region1: #{_lambda_.1} parent=0
    #allocation6 [shape = 'u8[1024]{0}', space=vmem, size = 0x400, scoped, tag = 'output window, operand 0, single buffered']
    #allocation7 [shape = 's32[2]{0}', space=sflag, size = 0x8, scoped, tag = 'scoped memory for _lambda_.1']
    %84 = vsyncpa [#allocation7], 0
    loop: start=0, step=1, limit=10
    $region2: #{_lambda_.1} parent=1 // loop_pre_header
      _
    $region3: #{_lambda_.1} parent=1 // loop_header
      %s86 = sphi 0, %s90
      %p87 = scmp.ge.s32.totalorder %s86, 10
      %s94 = sphi 0, %s94
      %s96 = sphi 0, %s94
      %s97 = sphi 0, %s96
      %s111 = sphi 0, %s97
      %s115 = sphi 0, %s115
      %s117 = sphi 0, %s115
      %s118 = sphi 0, %s117
      %s132 = sphi 0, %s118
      %s136 = sphi 0, %s136
      %s138 = sphi 0, %s136
      %s139 = sphi 0, %s138
      %s153 = sphi 0, %s139
      %s157 = sphi 0, %s157
      %s159 = sphi 0, %s157
      %s160 = sphi 0, %s159
      %s174 = sphi 0, %s160
      %s178 = sphi 0, %s178
      %s180 = sphi 0, %s178
      %s181 = sphi 0, %s180
      %s195 = sphi 0, %s181
      %s199 = sphi 0, %s199
      %s201 = sphi 0, %s199
      %s202 = sphi 0, %s201
      %s216 = sphi 0, %s202
      %s220 = sphi 0, %s220
      %s222 = sphi 0, %s220
      %s223 = sphi 0, %s222
      %s237 = sphi 0, %s223
      %s241 = sphi 0, %s241
      %s243 = sphi 0, %s241
      %s244 = sphi 0, %s243
      %s258 = sphi 0, %s244
      %s262 = sphi 0, %s262
      %s264 = sphi 0, %s262
      %s265 = sphi 0, %s264
      %s279 = sphi 0, %s265
      %s283 = sphi 0, %s283
      %s285 = sphi 0, %s283
      %s286 = sphi 0, %s285
      %s300 = sphi 0, %s286
      %s304 = sphi 0, %s304
      %s306 = sphi 0, %s304
      %s307 = sphi 0, %s306
      %s321 = sphi 0, %s307
      %s325 = sphi 0, %s325
      %s327 = sphi 0, %s325
      %s328 = sphi 0, %s327
      %s342 = sphi 0, %s328
      %s346 = sphi 0, %s346
      %s348 = sphi 0, %s346
      %s349 = sphi 0, %s348
      %s363 = sphi 0, %s349
      %s367 = sphi 0, %s367
      %s369 = sphi 0, %s367
      %s370 = sphi 0, %s369
      %s384 = sphi 0, %s370
      %s388 = sphi 0, %s388
      %s390 = sphi 0, %s388
      %s391 = sphi 0, %s390
      %s405 = sphi 0, %s391
      %s409 = sphi 0, %s409
      %s411 = sphi 0, %s409
      %s412 = sphi 0, %s411
      %s426 = sphi 0, %s412
      %s430 = sphi 0, %s430
      %s432 = sphi 0, %s430
      %s433 = sphi 0, %s432
      %s447 = sphi 0, %s433
      %s451 = sphi 0, %s451
      %s453 = sphi 0, %s451
      %s454 = sphi 0, %s453
      %s468 = sphi 0, %s454
      %s472 = sphi 0, %s472
      %s474 = sphi 0, %s472
      %s475 = sphi 0, %s474
      %s489 = sphi 0, %s475
      %s493 = sphi 0, %s493
      %s495 = sphi 0, %s493
      %s496 = sphi 0, %s495
      %s510 = sphi 0, %s496
      %s514 = sphi 0, %s514
      %s516 = sphi 0, %s514
      %s517 = sphi 0, %s516
      %s531 = sphi 0, %s517
      %s535 = sphi 0, %s535
      %s537 = sphi 0, %s535
      %s538 = sphi 0, %s537
      %s552 = sphi 0, %s538
      %s556 = sphi 0, %s556
      %s558 = sphi 0, %s556
      %s559 = sphi 0, %s558
      %s573 = sphi 0, %s559
      %s577 = sphi 0, %s577
      %s579 = sphi 0, %s577
      %s580 = sphi 0, %s579
      %s594 = sphi 0, %s580
      %s598 = sphi 0, %s598
      %s600 = sphi 0, %s598
      %s601 = sphi 0, %s600
      %s615 = sphi 0, %s601
      %s619 = sphi 0, %s619
      %s621 = sphi 0, %s619
      %s622 = sphi 0, %s621
      %s636 = sphi 0, %s622
      %s640 = sphi 0, %s640
      %s642 = sphi 0, %s640
      %s643 = sphi 0, %s642
      %s657 = sphi 0, %s643
      %s661 = sphi 0, %s661
      %s663 = sphi 0, %s661
      %s664 = sphi 0, %s663
      %s678 = sphi 0, %s664
      %s682 = sphi 0, %s682
      %s684 = sphi 0, %s682
      %s685 = sphi 0, %s684
      %s699 = sphi 0, %s685
      %s703 = sphi 0, %s703
      %s705 = sphi 0, %s703
      %s706 = sphi 0, %s705
      %s720 = sphi 0, %s706
      %s724 = sphi 0, %s724
      %s726 = sphi 0, %s724
      %s727 = sphi 0, %s726
      %s741 = sphi 0, %s727
      %s745 = sphi 0, %s745
      %s747 = sphi 0, %s745
      %s748 = sphi 0, %s747
      %s762 = sphi 0, %s748
      %s768 = sphi 0, %s770
      %s771 = sphi 0, %s768
      %s772 = sphi 0, %s771
      %s788 = sphi 0, %s772
      %s792 = sphi 0, %s792
      %s794 = sphi 0, %s792
      %s795 = sphi 0, %s794
      %s809 = sphi 0, %s795
      %s813 = sphi 0, %s813
      %s815 = sphi 0, %s813
      %s816 = sphi 0, %s815
      %s830 = sphi 0, %s816
      %s834 = sphi 0, %s834
      %s836 = sphi 0, %s834
      %s837 = sphi 0, %s836
      %s851 = sphi 0, %s837
      %s855 = sphi 0, %s855
      %s857 = sphi 0, %s855
      %s858 = sphi 0, %s857
      %s872 = sphi 0, %s858
      %s876 = sphi 0, %s876
      %s878 = sphi 0, %s876
      %s879 = sphi 0, %s878
      %s893 = sphi 0, %s879
      %s897 = sphi 0, %s897
      %s899 = sphi 0, %s897
      %s900 = sphi 0, %s899
      %s914 = sphi 0, %s900
    $region4: #{_lambda_.1} parent=1 // loop_header_branch
      %89 = sbr.rel (%p87) target = $region8
    $region5: #{_lambda_.1} parent=1 // loop_body
      %s91 = ssub.s32 %s86, 1
      %s92 = ssub.s32 %s86, 2
      %s93 = sadd.s32 %s86, 1
      %s95 = sadd.s32 %s94, 1
      %p98 = scmp.eq.s32.totalorder %s86, 7
      %p99 = scmp.ne.s32.totalorder %s94, %s96
      %p100 = scmp.eq.s32.totalorder %s86, 0
      %p101 = por %p99, %p100
      %p102 = scmp.ne.s32.totalorder %s94, %s96
      %p103 = scmp.eq.s32.totalorder %s91, 7
      %p104 = por %p102, %p103
      %p105 = scmp.ne.s32.totalorder %s96, %s97
      %p106 = scmp.eq.s32.totalorder %s91, 0
      %p107 = por %p105, %p106
      %p108 = scmp.ne.s32.totalorder %s96, %s97
      %p109 = scmp.eq.s32.totalorder %s92, 7
      %p110 = por %p108, %p109
      %p112 = scmp.ne.s32.totalorder %s97, %s111
      %p113 = scmp.eq.s32.totalorder %s92, 0
      %p114 = por %p112, %p113
      %s116 = sadd.s32 %s115, 1
      %p119 = scmp.eq.s32.totalorder %s86, 7
      %p120 = scmp.ne.s32.totalorder %s115, %s117
      %p121 = scmp.eq.s32.totalorder %s86, 0
      %p122 = por %p120, %p121
      %p123 = scmp.ne.s32.totalorder %s115, %s117
      %p124 = scmp.eq.s32.totalorder %s91, 7
      %p125 = por %p123, %p124
      %p126 = scmp.ne.s32.totalorder %s117, %s118
      %p127 = scmp.eq.s32.totalorder %s91, 0
      %p128 = por %p126, %p127
      %p129 = scmp.ne.s32.totalorder %s117, %s118
      %p130 = scmp.eq.s32.totalorder %s92, 7
      %p131 = por %p129, %p130
      %p133 = scmp.ne.s32.totalorder %s118, %s132
      %p134 = scmp.eq.s32.totalorder %s92, 0
      %p135 = por %p133, %p134
      %s137 = sadd.s32 %s136, 1
      %p140 = scmp.eq.s32.totalorder %s86, 7
      %p141 = scmp.ne.s32.totalorder %s136, %s138
      %p142 = scmp.eq.s32.totalorder %s86, 0
      %p143 = por %p141, %p142
      %p144 = scmp.ne.s32.totalorder %s136, %s138
      %p145 = scmp.eq.s32.totalorder %s91, 7
      %p146 = por %p144, %p145
      %p147 = scmp.ne.s32.totalorder %s138, %s139
      %p148 = scmp.eq.s32.totalorder %s91, 0
      %p149 = por %p147, %p148
      %p150 = scmp.ne.s32.totalorder %s138, %s139
      %p151 = scmp.eq.s32.totalorder %s92, 7
      %p152 = por %p150, %p151
      %p154 = scmp.ne.s32.totalorder %s139, %s153
      %p155 = scmp.eq.s32.totalorder %s92, 0
      %p156 = por %p154, %p155
      %s158 = sadd.s32 %s157, 1
      %p161 = scmp.eq.s32.totalorder %s86, 7
      %p162 = scmp.ne.s32.totalorder %s157, %s159
      %p163 = scmp.eq.s32.totalorder %s86, 0
      %p164 = por %p162, %p163
      %p165 = scmp.ne.s32.totalorder %s157, %s159
      %p166 = scmp.eq.s32.totalorder %s91, 7
      %p167 = por %p165, %p166
      %p168 = scmp.ne.s32.totalorder %s159, %s160
      %p169 = scmp.eq.s32.totalorder %s91, 0
      %p170 = por %p168, %p169
      %p171 = scmp.ne.s32.totalorder %s159, %s160
      %p172 = scmp.eq.s32.totalorder %s92, 7
      %p173 = por %p171, %p172
      %p175 = scmp.ne.s32.totalorder %s160, %s174
      %p176 = scmp.eq.s32.totalorder %s92, 0
      %p177 = por %p175, %p176
      %s179 = sadd.s32 %s178, 1
      %p182 = scmp.eq.s32.totalorder %s86, 7
      %p183 = scmp.ne.s32.totalorder %s178, %s180
      %p184 = scmp.eq.s32.totalorder %s86, 0
      %p185 = por %p183, %p184
      %p186 = scmp.ne.s32.totalorder %s178, %s180
      %p187 = scmp.eq.s32.totalorder %s91, 7
      %p188 = por %p186, %p187
      %p189 = scmp.ne.s32.totalorder %s180, %s181
      %p190 = scmp.eq.s32.totalorder %s91, 0
      %p191 = por %p189, %p190
      %p192 = scmp.ne.s32.totalorder %s180, %s181
      %p193 = scmp.eq.s32.totalorder %s92, 7
      %p194 = por %p192, %p193
      %p196 = scmp.ne.s32.totalorder %s181, %s195
      %p197 = scmp.eq.s32.totalorder %s92, 0
      %p198 = por %p196, %p197
      %s200 = sadd.s32 %s199, 1
      %p203 = scmp.eq.s32.totalorder %s86, 7
      %p204 = scmp.ne.s32.totalorder %s199, %s201
      %p205 = scmp.eq.s32.totalorder %s86, 0
      %p206 = por %p204, %p205
      %p207 = scmp.ne.s32.totalorder %s199, %s201
      %p208 = scmp.eq.s32.totalorder %s91, 7
      %p209 = por %p207, %p208
      %p210 = scmp.ne.s32.totalorder %s201, %s202
      %p211 = scmp.eq.s32.totalorder %s91, 0
      %p212 = por %p210, %p211
      %p213 = scmp.ne.s32.totalorder %s201, %s202
      %p214 = scmp.eq.s32.totalorder %s92, 7
      %p215 = por %p213, %p214
      %p217 = scmp.ne.s32.totalorder %s202, %s216
      %p218 = scmp.eq.s32.totalorder %s92, 0
      %p219 = por %p217, %p218
      %s221 = sadd.s32 %s220, 1
      %p224 = scmp.eq.s32.totalorder %s86, 7
      %p225 = scmp.ne.s32.totalorder %s220, %s222
      %p226 = scmp.eq.s32.totalorder %s86, 0
      %p227 = por %p225, %p226
      %p228 = scmp.ne.s32.totalorder %s220, %s222
      %p229 = scmp.eq.s32.totalorder %s91, 7
      %p230 = por %p228, %p229
      %p231 = scmp.ne.s32.totalorder %s222, %s223
      %p232 = scmp.eq.s32.totalorder %s91, 0
      %p233 = por %p231, %p232
      %p234 = scmp.ne.s32.totalorder %s222, %s223
      %p235 = scmp.eq.s32.totalorder %s92, 7
      %p236 = por %p234, %p235
      %p238 = scmp.ne.s32.totalorder %s223, %s237
      %p239 = scmp.eq.s32.totalorder %s92, 0
      %p240 = por %p238, %p239
      %s242 = sadd.s32 %s241, 1
      %p245 = scmp.eq.s32.totalorder %s86, 7
      %p246 = scmp.ne.s32.totalorder %s241, %s243
      %p247 = scmp.eq.s32.totalorder %s86, 0
      %p248 = por %p246, %p247
      %p249 = scmp.ne.s32.totalorder %s241, %s243
      %p250 = scmp.eq.s32.totalorder %s91, 7
      %p251 = por %p249, %p250
      %p252 = scmp.ne.s32.totalorder %s243, %s244
      %p253 = scmp.eq.s32.totalorder %s91, 0
      %p254 = por %p252, %p253
      %p255 = scmp.ne.s32.totalorder %s243, %s244
      %p256 = scmp.eq.s32.totalorder %s92, 7
      %p257 = por %p255, %p256
      %p259 = scmp.ne.s32.totalorder %s244, %s258
      %p260 = scmp.eq.s32.totalorder %s92, 0
      %p261 = por %p259, %p260
      %s263 = sadd.s32 %s262, 1
      %p266 = scmp.eq.s32.totalorder %s86, 7
      %p267 = scmp.ne.s32.totalorder %s262, %s264
      %p268 = scmp.eq.s32.totalorder %s86, 0
      %p269 = por %p267, %p268
      %p270 = scmp.ne.s32.totalorder %s262, %s264
      %p271 = scmp.eq.s32.totalorder %s91, 7
      %p272 = por %p270, %p271
      %p273 = scmp.ne.s32.totalorder %s264, %s265
      %p274 = scmp.eq.s32.totalorder %s91, 0
      %p275 = por %p273, %p274
      %p276 = scmp.ne.s32.totalorder %s264, %s265
      %p277 = scmp.eq.s32.totalorder %s92, 7
      %p278 = por %p276, %p277
      %p280 = scmp.ne.s32.totalorder %s265, %s279
      %p281 = scmp.eq.s32.totalorder %s92, 0
      %p282 = por %p280, %p281
      %s284 = sadd.s32 %s283, 1
      %p287 = scmp.eq.s32.totalorder %s86, 7
      %p288 = scmp.ne.s32.totalorder %s283, %s285
      %p289 = scmp.eq.s32.totalorder %s86, 0
      %p290 = por %p288, %p289
      %p291 = scmp.ne.s32.totalorder %s283, %s285
      %p292 = scmp.eq.s32.totalorder %s91, 7
      %p293 = por %p291, %p292
      %p294 = scmp.ne.s32.totalorder %s285, %s286
      %p295 = scmp.eq.s32.totalorder %s91, 0
      %p296 = por %p294, %p295
      %p297 = scmp.ne.s32.totalorder %s285, %s286
      %p298 = scmp.eq.s32.totalorder %s92, 7
      %p299 = por %p297, %p298
      %p301 = scmp.ne.s32.totalorder %s286, %s300
      %p302 = scmp.eq.s32.totalorder %s92, 0
      %p303 = por %p301, %p302
      %s305 = sadd.s32 %s304, 1
      %p308 = scmp.eq.s32.totalorder %s86, 7
      %p309 = scmp.ne.s32.totalorder %s304, %s306
      %p310 = scmp.eq.s32.totalorder %s86, 0
      %p311 = por %p309, %p310
      %p312 = scmp.ne.s32.totalorder %s304, %s306
      %p313 = scmp.eq.s32.totalorder %s91, 7
      %p314 = por %p312, %p313
      %p315 = scmp.ne.s32.totalorder %s306, %s307
      %p316 = scmp.eq.s32.totalorder %s91, 0
      %p317 = por %p315, %p316
      %p318 = scmp.ne.s32.totalorder %s306, %s307
      %p319 = scmp.eq.s32.totalorder %s92, 7
      %p320 = por %p318, %p319
      %p322 = scmp.ne.s32.totalorder %s307, %s321
      %p323 = scmp.eq.s32.totalorder %s92, 0
      %p324 = por %p322, %p323
      %s326 = sadd.s32 %s325, 1
      %p329 = scmp.eq.s32.totalorder %s86, 7
      %p330 = scmp.ne.s32.totalorder %s325, %s327
      %p331 = scmp.eq.s32.totalorder %s86, 0
      %p332 = por %p330, %p331
      %p333 = scmp.ne.s32.totalorder %s325, %s327
      %p334 = scmp.eq.s32.totalorder %s91, 7
      %p335 = por %p333, %p334
      %p336 = scmp.ne.s32.totalorder %s327, %s328
      %p337 = scmp.eq.s32.totalorder %s91, 0
      %p338 = por %p336, %p337
      %p339 = scmp.ne.s32.totalorder %s327, %s328
      %p340 = scmp.eq.s32.totalorder %s92, 7
      %p341 = por %p339, %p340
      %p343 = scmp.ne.s32.totalorder %s328, %s342
      %p344 = scmp.eq.s32.totalorder %s92, 0
      %p345 = por %p343, %p344
      %s347 = sadd.s32 %s346, 1
      %p350 = scmp.eq.s32.totalorder %s86, 7
      %p351 = scmp.ne.s32.totalorder %s346, %s348
      %p352 = scmp.eq.s32.totalorder %s86, 0
      %p353 = por %p351, %p352
      %p354 = scmp.ne.s32.totalorder %s346, %s348
      %p355 = scmp.eq.s32.totalorder %s91, 7
      %p356 = por %p354, %p355
      %p357 = scmp.ne.s32.totalorder %s348, %s349
      %p358 = scmp.eq.s32.totalorder %s91, 0
      %p359 = por %p357, %p358
      %p360 = scmp.ne.s32.totalorder %s348, %s349
      %p361 = scmp.eq.s32.totalorder %s92, 7
      %p362 = por %p360, %p361
      %p364 = scmp.ne.s32.totalorder %s349, %s363
      %p365 = scmp.eq.s32.totalorder %s92, 0
      %p366 = por %p364, %p365
      %s368 = sadd.s32 %s367, 1
      %p371 = scmp.eq.s32.totalorder %s86, 7
      %p372 = scmp.ne.s32.totalorder %s367, %s369
      %p373 = scmp.eq.s32.totalorder %s86, 0
      %p374 = por %p372, %p373
      %p375 = scmp.ne.s32.totalorder %s367, %s369
      %p376 = scmp.eq.s32.totalorder %s91, 7
      %p377 = por %p375, %p376
      %p378 = scmp.ne.s32.totalorder %s369, %s370
      %p379 = scmp.eq.s32.totalorder %s91, 0
      %p380 = por %p378, %p379
      %p381 = scmp.ne.s32.totalorder %s369, %s370
      %p382 = scmp.eq.s32.totalorder %s92, 7
      %p383 = por %p381, %p382
      %p385 = scmp.ne.s32.totalorder %s370, %s384
      %p386 = scmp.eq.s32.totalorder %s92, 0
      %p387 = por %p385, %p386
      %s389 = sadd.s32 %s388, 1
      %p392 = scmp.eq.s32.totalorder %s86, 7
      %p393 = scmp.ne.s32.totalorder %s388, %s390
      %p394 = scmp.eq.s32.totalorder %s86, 0
      %p395 = por %p393, %p394
      %p396 = scmp.ne.s32.totalorder %s388, %s390
      %p397 = scmp.eq.s32.totalorder %s91, 7
      %p398 = por %p396, %p397
      %p399 = scmp.ne.s32.totalorder %s390, %s391
      %p400 = scmp.eq.s32.totalorder %s91, 0
      %p401 = por %p399, %p400
      %p402 = scmp.ne.s32.totalorder %s390, %s391
      %p403 = scmp.eq.s32.totalorder %s92, 7
      %p404 = por %p402, %p403
      %p406 = scmp.ne.s32.totalorder %s391, %s405
      %p407 = scmp.eq.s32.totalorder %s92, 0
      %p408 = por %p406, %p407
      %s410 = sadd.s32 %s409, 1
      %p413 = scmp.eq.s32.totalorder %s86, 7
      %p414 = scmp.ne.s32.totalorder %s409, %s411
      %p415 = scmp.eq.s32.totalorder %s86, 0
      %p416 = por %p414, %p415
      %p417 = scmp.ne.s32.totalorder %s409, %s411
      %p418 = scmp.eq.s32.totalorder %s91, 7
      %p419 = por %p417, %p418
      %p420 = scmp.ne.s32.totalorder %s411, %s412
      %p421 = scmp.eq.s32.totalorder %s91, 0
      %p422 = por %p420, %p421
      %p423 = scmp.ne.s32.totalorder %s411, %s412
      %p424 = scmp.eq.s32.totalorder %s92, 7
      %p425 = por %p423, %p424
      %p427 = scmp.ne.s32.totalorder %s412, %s426
      %p428 = scmp.eq.s32.totalorder %s92, 0
      %p429 = por %p427, %p428
      %s431 = sadd.s32 %s430, 1
      %p434 = scmp.eq.s32.totalorder %s86, 7
      %p435 = scmp.ne.s32.totalorder %s430, %s432
      %p436 = scmp.eq.s32.totalorder %s86, 0
      %p437 = por %p435, %p436
      %p438 = scmp.ne.s32.totalorder %s430, %s432
      %p439 = scmp.eq.s32.totalorder %s91, 7
      %p440 = por %p438, %p439
      %p441 = scmp.ne.s32.totalorder %s432, %s433
      %p442 = scmp.eq.s32.totalorder %s91, 0
      %p443 = por %p441, %p442
      %p444 = scmp.ne.s32.totalorder %s432, %s433
      %p445 = scmp.eq.s32.totalorder %s92, 7
      %p446 = por %p444, %p445
      %p448 = scmp.ne.s32.totalorder %s433, %s447
      %p449 = scmp.eq.s32.totalorder %s92, 0
      %p450 = por %p448, %p449
      %s452 = sadd.s32 %s451, 1
      %p455 = scmp.eq.s32.totalorder %s86, 7
      %p456 = scmp.ne.s32.totalorder %s451, %s453
      %p457 = scmp.eq.s32.totalorder %s86, 0
      %p458 = por %p456, %p457
      %p459 = scmp.ne.s32.totalorder %s451, %s453
      %p460 = scmp.eq.s32.totalorder %s91, 7
      %p461 = por %p459, %p460
      %p462 = scmp.ne.s32.totalorder %s453, %s454
      %p463 = scmp.eq.s32.totalorder %s91, 0
      %p464 = por %p462, %p463
      %p465 = scmp.ne.s32.totalorder %s453, %s454
      %p466 = scmp.eq.s32.totalorder %s92, 7
      %p467 = por %p465, %p466
      %p469 = scmp.ne.s32.totalorder %s454, %s468
      %p470 = scmp.eq.s32.totalorder %s92, 0
      %p471 = por %p469, %p470
      %s473 = sadd.s32 %s472, 1
      %p476 = scmp.eq.s32.totalorder %s86, 7
      %p477 = scmp.ne.s32.totalorder %s472, %s474
      %p478 = scmp.eq.s32.totalorder %s86, 0
      %p479 = por %p477, %p478
      %p480 = scmp.ne.s32.totalorder %s472, %s474
      %p481 = scmp.eq.s32.totalorder %s91, 7
      %p482 = por %p480, %p481
      %p483 = scmp.ne.s32.totalorder %s474, %s475
      %p484 = scmp.eq.s32.totalorder %s91, 0
      %p485 = por %p483, %p484
      %p486 = scmp.ne.s32.totalorder %s474, %s475
      %p487 = scmp.eq.s32.totalorder %s92, 7
      %p488 = por %p486, %p487
      %p490 = scmp.ne.s32.totalorder %s475, %s489
      %p491 = scmp.eq.s32.totalorder %s92, 0
      %p492 = por %p490, %p491
      %s494 = sadd.s32 %s493, 1
      %p497 = scmp.eq.s32.totalorder %s86, 7
      %p498 = scmp.ne.s32.totalorder %s493, %s495
      %p499 = scmp.eq.s32.totalorder %s86, 0
      %p500 = por %p498, %p499
      %p501 = scmp.ne.s32.totalorder %s493, %s495
      %p502 = scmp.eq.s32.totalorder %s91, 7
      %p503 = por %p501, %p502
      %p504 = scmp.ne.s32.totalorder %s495, %s496
      %p505 = scmp.eq.s32.totalorder %s91, 0
      %p506 = por %p504, %p505
      %p507 = scmp.ne.s32.totalorder %s495, %s496
      %p508 = scmp.eq.s32.totalorder %s92, 7
      %p509 = por %p507, %p508
      %p511 = scmp.ne.s32.totalorder %s496, %s510
      %p512 = scmp.eq.s32.totalorder %s92, 0
      %p513 = por %p511, %p512
      %s515 = sadd.s32 %s514, 1
      %p518 = scmp.eq.s32.totalorder %s86, 7
      %p519 = scmp.ne.s32.totalorder %s514, %s516
      %p520 = scmp.eq.s32.totalorder %s86, 0
      %p521 = por %p519, %p520
      %p522 = scmp.ne.s32.totalorder %s514, %s516
      %p523 = scmp.eq.s32.totalorder %s91, 7
      %p524 = por %p522, %p523
      %p525 = scmp.ne.s32.totalorder %s516, %s517
      %p526 = scmp.eq.s32.totalorder %s91, 0
      %p527 = por %p525, %p526
      %p528 = scmp.ne.s32.totalorder %s516, %s517
      %p529 = scmp.eq.s32.totalorder %s92, 7
      %p530 = por %p528, %p529
      %p532 = scmp.ne.s32.totalorder %s517, %s531
      %p533 = scmp.eq.s32.totalorder %s92, 0
      %p534 = por %p532, %p533
      %s536 = sadd.s32 %s535, 1
      %p539 = scmp.eq.s32.totalorder %s86, 7
      %p540 = scmp.ne.s32.totalorder %s535, %s537
      %p541 = scmp.eq.s32.totalorder %s86, 0
      %p542 = por %p540, %p541
      %p543 = scmp.ne.s32.totalorder %s535, %s537
      %p544 = scmp.eq.s32.totalorder %s91, 7
      %p545 = por %p543, %p544
      %p546 = scmp.ne.s32.totalorder %s537, %s538
      %p547 = scmp.eq.s32.totalorder %s91, 0
      %p548 = por %p546, %p547
      %p549 = scmp.ne.s32.totalorder %s537, %s538
      %p550 = scmp.eq.s32.totalorder %s92, 7
      %p551 = por %p549, %p550
      %p553 = scmp.ne.s32.totalorder %s538, %s552
      %p554 = scmp.eq.s32.totalorder %s92, 0
      %p555 = por %p553, %p554
      %s557 = sadd.s32 %s556, 1
      %p560 = scmp.eq.s32.totalorder %s86, 7
      %p561 = scmp.ne.s32.totalorder %s556, %s558
      %p562 = scmp.eq.s32.totalorder %s86, 0
      %p563 = por %p561, %p562
      %p564 = scmp.ne.s32.totalorder %s556, %s558
      %p565 = scmp.eq.s32.totalorder %s91, 7
      %p566 = por %p564, %p565
      %p567 = scmp.ne.s32.totalorder %s558, %s559
      %p568 = scmp.eq.s32.totalorder %s91, 0
      %p569 = por %p567, %p568
      %p570 = scmp.ne.s32.totalorder %s558, %s559
      %p571 = scmp.eq.s32.totalorder %s92, 7
      %p572 = por %p570, %p571
      %p574 = scmp.ne.s32.totalorder %s559, %s573
      %p575 = scmp.eq.s32.totalorder %s92, 0
      %p576 = por %p574, %p575
      %s578 = sadd.s32 %s577, 1
      %p581 = scmp.eq.s32.totalorder %s86, 7
      %p582 = scmp.ne.s32.totalorder %s577, %s579
      %p583 = scmp.eq.s32.totalorder %s86, 0
      %p584 = por %p582, %p583
      %p585 = scmp.ne.s32.totalorder %s577, %s579
      %p586 = scmp.eq.s32.totalorder %s91, 7
      %p587 = por %p585, %p586
      %p588 = scmp.ne.s32.totalorder %s579, %s580
      %p589 = scmp.eq.s32.totalorder %s91, 0
      %p590 = por %p588, %p589
      %p591 = scmp.ne.s32.totalorder %s579, %s580
      %p592 = scmp.eq.s32.totalorder %s92, 7
      %p593 = por %p591, %p592
      %p595 = scmp.ne.s32.totalorder %s580, %s594
      %p596 = scmp.eq.s32.totalorder %s92, 0
      %p597 = por %p595, %p596
      %s599 = sadd.s32 %s598, 1
      %p602 = scmp.eq.s32.totalorder %s86, 7
      %p603 = scmp.ne.s32.totalorder %s598, %s600
      %p604 = scmp.eq.s32.totalorder %s86, 0
      %p605 = por %p603, %p604
      %p606 = scmp.ne.s32.totalorder %s598, %s600
      %p607 = scmp.eq.s32.totalorder %s91, 7
      %p608 = por %p606, %p607
      %p609 = scmp.ne.s32.totalorder %s600, %s601
      %p610 = scmp.eq.s32.totalorder %s91, 0
      %p611 = por %p609, %p610
      %p612 = scmp.ne.s32.totalorder %s600, %s601
      %p613 = scmp.eq.s32.totalorder %s92, 7
      %p614 = por %p612, %p613
      %p616 = scmp.ne.s32.totalorder %s601, %s615
      %p617 = scmp.eq.s32.totalorder %s92, 0
      %p618 = por %p616, %p617
      %s620 = sadd.s32 %s619, 1
      %p623 = scmp.eq.s32.totalorder %s86, 7
      %p624 = scmp.ne.s32.totalorder %s619, %s621
      %p625 = scmp.eq.s32.totalorder %s86, 0
      %p626 = por %p624, %p625
      %p627 = scmp.ne.s32.totalorder %s619, %s621
      %p628 = scmp.eq.s32.totalorder %s91, 7
      %p629 = por %p627, %p628
      %p630 = scmp.ne.s32.totalorder %s621, %s622
      %p631 = scmp.eq.s32.totalorder %s91, 0
      %p632 = por %p630, %p631
      %p633 = scmp.ne.s32.totalorder %s621, %s622
      %p634 = scmp.eq.s32.totalorder %s92, 7
      %p635 = por %p633, %p634
      %p637 = scmp.ne.s32.totalorder %s622, %s636
      %p638 = scmp.eq.s32.totalorder %s92, 0
      %p639 = por %p637, %p638
      %s641 = sadd.s32 %s640, 1
      %p644 = scmp.eq.s32.totalorder %s86, 7
      %p645 = scmp.ne.s32.totalorder %s640, %s642
      %p646 = scmp.eq.s32.totalorder %s86, 0
      %p647 = por %p645, %p646
      %p648 = scmp.ne.s32.totalorder %s640, %s642
      %p649 = scmp.eq.s32.totalorder %s91, 7
      %p650 = por %p648, %p649
      %p651 = scmp.ne.s32.totalorder %s642, %s643
      %p652 = scmp.eq.s32.totalorder %s91, 0
      %p653 = por %p651, %p652
      %p654 = scmp.ne.s32.totalorder %s642, %s643
      %p655 = scmp.eq.s32.totalorder %s92, 7
      %p656 = por %p654, %p655
      %p658 = scmp.ne.s32.totalorder %s643, %s657
      %p659 = scmp.eq.s32.totalorder %s92, 0
      %p660 = por %p658, %p659
      %s662 = sadd.s32 %s661, 1
      %p665 = scmp.eq.s32.totalorder %s86, 7
      %p666 = scmp.ne.s32.totalorder %s661, %s663
      %p667 = scmp.eq.s32.totalorder %s86, 0
      %p668 = por %p666, %p667
      %p669 = scmp.ne.s32.totalorder %s661, %s663
      %p670 = scmp.eq.s32.totalorder %s91, 7
      %p671 = por %p669, %p670
      %p672 = scmp.ne.s32.totalorder %s663, %s664
      %p673 = scmp.eq.s32.totalorder %s91, 0
      %p674 = por %p672, %p673
      %p675 = scmp.ne.s32.totalorder %s663, %s664
      %p676 = scmp.eq.s32.totalorder %s92, 7
      %p677 = por %p675, %p676
      %p679 = scmp.ne.s32.totalorder %s664, %s678
      %p680 = scmp.eq.s32.totalorder %s92, 0
      %p681 = por %p679, %p680
      %s683 = sadd.s32 %s682, 1
      %p686 = scmp.eq.s32.totalorder %s86, 7
      %p687 = scmp.ne.s32.totalorder %s682, %s684
      %p688 = scmp.eq.s32.totalorder %s86, 0
      %p689 = por %p687, %p688
      %p690 = scmp.ne.s32.totalorder %s682, %s684
      %p691 = scmp.eq.s32.totalorder %s91, 7
      %p692 = por %p690, %p691
      %p693 = scmp.ne.s32.totalorder %s684, %s685
      %p694 = scmp.eq.s32.totalorder %s91, 0
      %p695 = por %p693, %p694
      %p696 = scmp.ne.s32.totalorder %s684, %s685
      %p697 = scmp.eq.s32.totalorder %s92, 7
      %p698 = por %p696, %p697
      %p700 = scmp.ne.s32.totalorder %s685, %s699
      %p701 = scmp.eq.s32.totalorder %s92, 0
      %p702 = por %p700, %p701
      %s704 = sadd.s32 %s703, 1
      %p707 = scmp.eq.s32.totalorder %s86, 7
      %p708 = scmp.ne.s32.totalorder %s703, %s705
      %p709 = scmp.eq.s32.totalorder %s86, 0
      %p710 = por %p708, %p709
      %p711 = scmp.ne.s32.totalorder %s703, %s705
      %p712 = scmp.eq.s32.totalorder %s91, 7
      %p713 = por %p711, %p712
      %p714 = scmp.ne.s32.totalorder %s705, %s706
      %p715 = scmp.eq.s32.totalorder %s91, 0
      %p716 = por %p714, %p715
      %p717 = scmp.ne.s32.totalorder %s705, %s706
      %p718 = scmp.eq.s32.totalorder %s92, 7
      %p719 = por %p717, %p718
      %p721 = scmp.ne.s32.totalorder %s706, %s720
      %p722 = scmp.eq.s32.totalorder %s92, 0
      %p723 = por %p721, %p722
      %s725 = sadd.s32 %s724, 1
      %p728 = scmp.eq.s32.totalorder %s86, 7
      %p729 = scmp.ne.s32.totalorder %s724, %s726
      %p730 = scmp.eq.s32.totalorder %s86, 0
      %p731 = por %p729, %p730
      %p732 = scmp.ne.s32.totalorder %s724, %s726
      %p733 = scmp.eq.s32.totalorder %s91, 7
      %p734 = por %p732, %p733
      %p735 = scmp.ne.s32.totalorder %s726, %s727
      %p736 = scmp.eq.s32.totalorder %s91, 0
      %p737 = por %p735, %p736
      %p738 = scmp.ne.s32.totalorder %s726, %s727
      %p739 = scmp.eq.s32.totalorder %s92, 7
      %p740 = por %p738, %p739
      %p742 = scmp.ne.s32.totalorder %s727, %s741
      %p743 = scmp.eq.s32.totalorder %s92, 0
      %p744 = por %p742, %p743
      %s746 = sadd.s32 %s745, 1
      %p749 = scmp.eq.s32.totalorder %s86, 7
      %p750 = scmp.ne.s32.totalorder %s745, %s747
      %p751 = scmp.eq.s32.totalorder %s86, 0
      %p752 = por %p750, %p751
      %p753 = scmp.ne.s32.totalorder %s745, %s747
      %p754 = scmp.eq.s32.totalorder %s91, 7
      %p755 = por %p753, %p754
      %p756 = scmp.ne.s32.totalorder %s747, %s748
      %p757 = scmp.eq.s32.totalorder %s91, 0
      %p758 = por %p756, %p757
      %p759 = scmp.ne.s32.totalorder %s747, %s748
      %p760 = scmp.eq.s32.totalorder %s92, 7
      %p761 = por %p759, %p760
      %p763 = scmp.ne.s32.totalorder %s748, %s762
      %p764 = scmp.eq.s32.totalorder %s92, 0
      %p765 = por %p763, %p764
      %s766 = ssub.s32 %s86, %s93
      %p767 = scmp.eq.s32.totalorder %s766, 0
      %s769 = sadd.s32 %s768, 1
      %s770 = scalar_select %p767, %s768, %s769
      %p773 = pneg %p767
      %p774 = scmp.eq.s32.totalorder %s86, 7
      %p775 = por %p773, %p774
      %p776 = scmp.ne.s32.totalorder %s768, %s771
      %p777 = scmp.eq.s32.totalorder %s86, 0
      %p778 = por %p776, %p777
      %p779 = scmp.ne.s32.totalorder %s768, %s771
      %p780 = scmp.eq.s32.totalorder %s91, 7
      %p781 = por %p779, %p780
      %p782 = scmp.ne.s32.totalorder %s771, %s772
      %p783 = scmp.eq.s32.totalorder %s91, 0
      %p784 = por %p782, %p783
      %p785 = scmp.ne.s32.totalorder %s771, %s772
      %p786 = scmp.eq.s32.totalorder %s92, 7
      %p787 = por %p785, %p786
      %p789 = scmp.ne.s32.totalorder %s772, %s788
      %p790 = scmp.eq.s32.totalorder %s92, 0
      %p791 = por %p789, %p790
      %s793 = sadd.s32 %s792, 1
      %p796 = scmp.eq.s32.totalorder %s86, 7
      %p797 = scmp.ne.s32.totalorder %s792, %s794
      %p798 = scmp.eq.s32.totalorder %s86, 0
      %p799 = por %p797, %p798
      %p800 = scmp.ne.s32.totalorder %s792, %s794
      %p801 = scmp.eq.s32.totalorder %s91, 7
      %p802 = por %p800, %p801
      %p803 = scmp.ne.s32.totalorder %s794, %s795
      %p804 = scmp.eq.s32.totalorder %s91, 0
      %p805 = por %p803, %p804
      %p806 = scmp.ne.s32.totalorder %s794, %s795
      %p807 = scmp.eq.s32.totalorder %s92, 7
      %p808 = por %p806, %p807
      %p810 = scmp.ne.s32.totalorder %s795, %s809
      %p811 = scmp.eq.s32.totalorder %s92, 0
      %p812 = por %p810, %p811
      %s814 = sadd.s32 %s813, 1
      %p817 = scmp.eq.s32.totalorder %s86, 7
      %p818 = scmp.ne.s32.totalorder %s813, %s815
      %p819 = scmp.eq.s32.totalorder %s86, 0
      %p820 = por %p818, %p819
      %p821 = scmp.ne.s32.totalorder %s813, %s815
      %p822 = scmp.eq.s32.totalorder %s91, 7
      %p823 = por %p821, %p822
      %p824 = scmp.ne.s32.totalorder %s815, %s816
      %p825 = scmp.eq.s32.totalorder %s91, 0
      %p826 = por %p824, %p825
      %p827 = scmp.ne.s32.totalorder %s815, %s816
      %p828 = scmp.eq.s32.totalorder %s92, 7
      %p829 = por %p827, %p828
      %p831 = scmp.ne.s32.totalorder %s816, %s830
      %p832 = scmp.eq.s32.totalorder %s92, 0
      %p833 = por %p831, %p832
      %s835 = sadd.s32 %s834, 1
      %p838 = scmp.eq.s32.totalorder %s86, 7
      %p839 = scmp.ne.s32.totalorder %s834, %s836
      %p840 = scmp.eq.s32.totalorder %s86, 0
      %p841 = por %p839, %p840
      %p842 = scmp.ne.s32.totalorder %s834, %s836
      %p843 = scmp.eq.s32.totalorder %s91, 7
      %p844 = por %p842, %p843
      %p845 = scmp.ne.s32.totalorder %s836, %s837
      %p846 = scmp.eq.s32.totalorder %s91, 0
      %p847 = por %p845, %p846
      %p848 = scmp.ne.s32.totalorder %s836, %s837
      %p849 = scmp.eq.s32.totalorder %s92, 7
      %p850 = por %p848, %p849
      %p852 = scmp.ne.s32.totalorder %s837, %s851
      %p853 = scmp.eq.s32.totalorder %s92, 0
      %p854 = por %p852, %p853
      %s856 = sadd.s32 %s855, 1
      %p859 = scmp.eq.s32.totalorder %s86, 7
      %p860 = scmp.ne.s32.totalorder %s855, %s857
      %p861 = scmp.eq.s32.totalorder %s86, 0
      %p862 = por %p860, %p861
      %p863 = scmp.ne.s32.totalorder %s855, %s857
      %p864 = scmp.eq.s32.totalorder %s91, 7
      %p865 = por %p863, %p864
      %p866 = scmp.ne.s32.totalorder %s857, %s858
      %p867 = scmp.eq.s32.totalorder %s91, 0
      %p868 = por %p866, %p867
      %p869 = scmp.ne.s32.totalorder %s857, %s858
      %p870 = scmp.eq.s32.totalorder %s92, 7
      %p871 = por %p869, %p870
      %p873 = scmp.ne.s32.totalorder %s858, %s872
      %p874 = scmp.eq.s32.totalorder %s92, 0
      %p875 = por %p873, %p874
      %s877 = sadd.s32 %s876, 1
      %p880 = scmp.eq.s32.totalorder %s86, 7
      %p881 = scmp.ne.s32.totalorder %s876, %s878
      %p882 = scmp.eq.s32.totalorder %s86, 0
      %p883 = por %p881, %p882
      %p884 = scmp.ne.s32.totalorder %s876, %s878
      %p885 = scmp.eq.s32.totalorder %s91, 7
      %p886 = por %p884, %p885
      %p887 = scmp.ne.s32.totalorder %s878, %s879
      %p888 = scmp.eq.s32.totalorder %s91, 0
      %p889 = por %p887, %p888
      %p890 = scmp.ne.s32.totalorder %s878, %s879
      %p891 = scmp.eq.s32.totalorder %s92, 7
      %p892 = por %p890, %p891
      %p894 = scmp.ne.s32.totalorder %s879, %s893
      %p895 = scmp.eq.s32.totalorder %s92, 0
      %p896 = por %p894, %p895
      %s898 = sadd.s32 %s897, 1
      %p901 = scmp.eq.s32.totalorder %s86, 7
      %p902 = scmp.ne.s32.totalorder %s897, %s899
      %p903 = scmp.eq.s32.totalorder %s86, 0
      %p904 = por %p902, %p903
      %p905 = scmp.ne.s32.totalorder %s897, %s899
      %p906 = scmp.eq.s32.totalorder %s91, 7
      %p907 = por %p905, %p906
      %p908 = scmp.ne.s32.totalorder %s899, %s900
      %p909 = scmp.eq.s32.totalorder %s91, 0
      %p910 = por %p908, %p909
      %p911 = scmp.ne.s32.totalorder %s899, %s900
      %p912 = scmp.eq.s32.totalorder %s92, 7
      %p913 = por %p911, %p912
      %p915 = scmp.ne.s32.totalorder %s900, %s914
      %p916 = scmp.eq.s32.totalorder %s92, 0
      %p917 = por %p915, %p916
      %p918 = scmp.le.s32.totalorder 1, %s86
      %p919 = scmp.lt.s32.totalorder %s86, 9
      %p920 = pnand %p918, %p919
      %p921 = pneg %p920
      // Predicated region
      $region9: #{_lambda_.1} parent=5 // pred_check
        _
      $region10: #{_lambda_.1} parent=5 // pred_check_branch
        %923 = sbr.rel (%p920) target = $region12
      $region11: #{_lambda_.1} parent=5 // pred_region
        %s924 = ssub.s32 %s86, 1
        // Predicated region
        $region13: #{_lambda_.1} parent=11 // pred_check
          %p925 = pneg %p107
        $region14: #{_lambda_.1} parent=11 // pred_check_branch
          %927 = sbr.rel (%p925) target = $region16
        $region15: #{_lambda_.1} parent=11 // pred_region
          _
        $region16: #{_lambda_.1} parent=11 // pred_fallthru
          _
        // Predicated region
        $region17: #{_lambda_.1} parent=11 // pred_check
          %p928 = pneg %p128
        $region18: #{_lambda_.1} parent=11 // pred_check_branch
          %930 = sbr.rel (%p928) target = $region20
        $region19: #{_lambda_.1} parent=11 // pred_region
          _
        $region20: #{_lambda_.1} parent=11 // pred_fallthru
          _
        // Predicated region
        $region21: #{_lambda_.1} parent=11 // pred_check
          %p931 = pneg %p149
        $region22: #{_lambda_.1} parent=11 // pred_check_branch
          %933 = sbr.rel (%p931) target = $region24
        $region23: #{_lambda_.1} parent=11 // pred_region
          _
        $region24: #{_lambda_.1} parent=11 // pred_fallthru
          _
        // Predicated region
        $region25: #{_lambda_.1} parent=11 // pred_check
          %p934 = pneg %p170
        $region26: #{_lambda_.1} parent=11 // pred_check_branch
          %936 = sbr.rel (%p934) target = $region28
        $region27: #{_lambda_.1} parent=11 // pred_region
          _
        $region28: #{_lambda_.1} parent=11 // pred_fallthru
          _
        // Predicated region
        $region29: #{_lambda_.1} parent=11 // pred_check
          %p937 = pneg %p191
        $region30: #{_lambda_.1} parent=11 // pred_check_branch
          %939 = sbr.rel (%p937) target = $region32
        $region31: #{_lambda_.1} parent=11 // pred_region
          _
        $region32: #{_lambda_.1} parent=11 // pred_fallthru
          _
        // Predicated region
        $region33: #{_lambda_.1} parent=11 // pred_check
          %p940 = pneg %p212
        $region34: #{_lambda_.1} parent=11 // pred_check_branch
          %942 = sbr.rel (%p940) target = $region36
        $region35: #{_lambda_.1} parent=11 // pred_region
          _
        $region36: #{_lambda_.1} parent=11 // pred_fallthru
          _
        // Predicated region
        $region37: #{_lambda_.1} parent=11 // pred_check
          %p943 = pneg %p233
        $region38: #{_lambda_.1} parent=11 // pred_check_branch
          %945 = sbr.rel (%p943) target = $region40
        $region39: #{_lambda_.1} parent=11 // pred_region
          _
        $region40: #{_lambda_.1} parent=11 // pred_fallthru
          _
        // Predicated region
        $region41: #{_lambda_.1} parent=11 // pred_check
          %p946 = pneg %p254
        $region42: #{_lambda_.1} parent=11 // pred_check_branch
          %948 = sbr.rel (%p946) target = $region44
        $region43: #{_lambda_.1} parent=11 // pred_region
          _
        $region44: #{_lambda_.1} parent=11 // pred_fallthru
          _
        // Predicated region
        $region45: #{_lambda_.1} parent=11 // pred_check
          %p949 = pneg %p275
        $region46: #{_lambda_.1} parent=11 // pred_check_branch
          %951 = sbr.rel (%p949) target = $region48
        $region47: #{_lambda_.1} parent=11 // pred_region
          _
        $region48: #{_lambda_.1} parent=11 // pred_fallthru
          _
        // Predicated region
        $region49: #{_lambda_.1} parent=11 // pred_check
          %p952 = pneg %p296
        $region50: #{_lambda_.1} parent=11 // pred_check_branch
          %954 = sbr.rel (%p952) target = $region52
        $region51: #{_lambda_.1} parent=11 // pred_region
          _
        $region52: #{_lambda_.1} parent=11 // pred_fallthru
          _
        // Predicated region
        $region53: #{_lambda_.1} parent=11 // pred_check
          %p955 = pneg %p317
        $region54: #{_lambda_.1} parent=11 // pred_check_branch
          %957 = sbr.rel (%p955) target = $region56
        $region55: #{_lambda_.1} parent=11 // pred_region
          _
        $region56: #{_lambda_.1} parent=11 // pred_fallthru
          _
        // Predicated region
        $region57: #{_lambda_.1} parent=11 // pred_check
          %p958 = pneg %p338
        $region58: #{_lambda_.1} parent=11 // pred_check_branch
          %960 = sbr.rel (%p958) target = $region60
        $region59: #{_lambda_.1} parent=11 // pred_region
          _
        $region60: #{_lambda_.1} parent=11 // pred_fallthru
          _
        // Predicated region
        $region61: #{_lambda_.1} parent=11 // pred_check
          %p961 = pneg %p359
        $region62: #{_lambda_.1} parent=11 // pred_check_branch
          %963 = sbr.rel (%p961) target = $region64
        $region63: #{_lambda_.1} parent=11 // pred_region
          _
        $region64: #{_lambda_.1} parent=11 // pred_fallthru
          _
        // Predicated region
        $region65: #{_lambda_.1} parent=11 // pred_check
          %p964 = pneg %p380
        $region66: #{_lambda_.1} parent=11 // pred_check_branch
          %966 = sbr.rel (%p964) target = $region68
        $region67: #{_lambda_.1} parent=11 // pred_region
          _
        $region68: #{_lambda_.1} parent=11 // pred_fallthru
          _
        // Predicated region
        $region69: #{_lambda_.1} parent=11 // pred_check
          %p967 = pneg %p401
        $region70: #{_lambda_.1} parent=11 // pred_check_branch
          %969 = sbr.rel (%p967) target = $region72
        $region71: #{_lambda_.1} parent=11 // pred_region
          _
        $region72: #{_lambda_.1} parent=11 // pred_fallthru
          _
        // Predicated region
        $region73: #{_lambda_.1} parent=11 // pred_check
          %p970 = pneg %p422
        $region74: #{_lambda_.1} parent=11 // pred_check_branch
          %972 = sbr.rel (%p970) target = $region76
        $region75: #{_lambda_.1} parent=11 // pred_region
          _
        $region76: #{_lambda_.1} parent=11 // pred_fallthru
          _
        // Predicated region
        $region77: #{_lambda_.1} parent=11 // pred_check
          %p973 = pneg %p443
        $region78: #{_lambda_.1} parent=11 // pred_check_branch
          %975 = sbr.rel (%p973) target = $region80
        $region79: #{_lambda_.1} parent=11 // pred_region
          _
        $region80: #{_lambda_.1} parent=11 // pred_fallthru
          _
        // Predicated region
        $region81: #{_lambda_.1} parent=11 // pred_check
          %p976 = pneg %p464
        $region82: #{_lambda_.1} parent=11 // pred_check_branch
          %978 = sbr.rel (%p976) target = $region84
        $region83: #{_lambda_.1} parent=11 // pred_region
          _
        $region84: #{_lambda_.1} parent=11 // pred_fallthru
          _
        // Predicated region
        $region85: #{_lambda_.1} parent=11 // pred_check
          %p979 = pneg %p485
        $region86: #{_lambda_.1} parent=11 // pred_check_branch
          %981 = sbr.rel (%p979) target = $region88
        $region87: #{_lambda_.1} parent=11 // pred_region
          _
        $region88: #{_lambda_.1} parent=11 // pred_fallthru
          _
        // Predicated region
        $region89: #{_lambda_.1} parent=11 // pred_check
          %p982 = pneg %p506
        $region90: #{_lambda_.1} parent=11 // pred_check_branch
          %984 = sbr.rel (%p982) target = $region92
        $region91: #{_lambda_.1} parent=11 // pred_region
          _
        $region92: #{_lambda_.1} parent=11 // pred_fallthru
          _
        // Predicated region
        $region93: #{_lambda_.1} parent=11 // pred_check
          %p985 = pneg %p527
        $region94: #{_lambda_.1} parent=11 // pred_check_branch
          %987 = sbr.rel (%p985) target = $region96
        $region95: #{_lambda_.1} parent=11 // pred_region
          _
        $region96: #{_lambda_.1} parent=11 // pred_fallthru
          _
        // Predicated region
        $region97: #{_lambda_.1} parent=11 // pred_check
          %p988 = pneg %p548
        $region98: #{_lambda_.1} parent=11 // pred_check_branch
          %990 = sbr.rel (%p988) target = $region100
        $region99: #{_lambda_.1} parent=11 // pred_region
          _
        $region100: #{_lambda_.1} parent=11 // pred_fallthru
          _
        // Predicated region
        $region101: #{_lambda_.1} parent=11 // pred_check
          %p991 = pneg %p569
        $region102: #{_lambda_.1} parent=11 // pred_check_branch
          %993 = sbr.rel (%p991) target = $region104
        $region103: #{_lambda_.1} parent=11 // pred_region
          _
        $region104: #{_lambda_.1} parent=11 // pred_fallthru
          _
        // Predicated region
        $region105: #{_lambda_.1} parent=11 // pred_check
          %p994 = pneg %p590
        $region106: #{_lambda_.1} parent=11 // pred_check_branch
          %996 = sbr.rel (%p994) target = $region108
        $region107: #{_lambda_.1} parent=11 // pred_region
          _
        $region108: #{_lambda_.1} parent=11 // pred_fallthru
          _
        // Predicated region
        $region109: #{_lambda_.1} parent=11 // pred_check
          %p997 = pneg %p611
        $region110: #{_lambda_.1} parent=11 // pred_check_branch
          %999 = sbr.rel (%p997) target = $region112
        $region111: #{_lambda_.1} parent=11 // pred_region
          _
        $region112: #{_lambda_.1} parent=11 // pred_fallthru
          _
        // Predicated region
        $region113: #{_lambda_.1} parent=11 // pred_check
          %p1000 = pneg %p632
        $region114: #{_lambda_.1} parent=11 // pred_check_branch
          %1002 = sbr.rel (%p1000) target = $region116
        $region115: #{_lambda_.1} parent=11 // pred_region
          _
        $region116: #{_lambda_.1} parent=11 // pred_fallthru
          _
        // Predicated region
        $region117: #{_lambda_.1} parent=11 // pred_check
          %p1003 = pneg %p653
        $region118: #{_lambda_.1} parent=11 // pred_check_branch
          %1005 = sbr.rel (%p1003) target = $region120
        $region119: #{_lambda_.1} parent=11 // pred_region
          _
        $region120: #{_lambda_.1} parent=11 // pred_fallthru
          _
        // Predicated region
        $region121: #{_lambda_.1} parent=11 // pred_check
          %p1006 = pneg %p674
        $region122: #{_lambda_.1} parent=11 // pred_check_branch
          %1008 = sbr.rel (%p1006) target = $region124
        $region123: #{_lambda_.1} parent=11 // pred_region
          _
        $region124: #{_lambda_.1} parent=11 // pred_fallthru
          _
        // Predicated region
        $region125: #{_lambda_.1} parent=11 // pred_check
          %p1009 = pneg %p695
        $region126: #{_lambda_.1} parent=11 // pred_check_branch
          %1011 = sbr.rel (%p1009) target = $region128
        $region127: #{_lambda_.1} parent=11 // pred_region
          _
        $region128: #{_lambda_.1} parent=11 // pred_fallthru
          _
        // Predicated region
        $region129: #{_lambda_.1} parent=11 // pred_check
          %p1012 = pneg %p716
        $region130: #{_lambda_.1} parent=11 // pred_check_branch
          %1014 = sbr.rel (%p1012) target = $region132
        $region131: #{_lambda_.1} parent=11 // pred_region
          _
        $region132: #{_lambda_.1} parent=11 // pred_fallthru
          _
        // Predicated region
        $region133: #{_lambda_.1} parent=11 // pred_check
          %p1015 = pneg %p737
        $region134: #{_lambda_.1} parent=11 // pred_check_branch
          %1017 = sbr.rel (%p1015) target = $region136
        $region135: #{_lambda_.1} parent=11 // pred_region
          _
        $region136: #{_lambda_.1} parent=11 // pred_fallthru
          _
        // Predicated region
        $region137: #{_lambda_.1} parent=11 // pred_check
          %p1018 = pneg %p758
        $region138: #{_lambda_.1} parent=11 // pred_check_branch
          %1020 = sbr.rel (%p1018) target = $region140
        $region139: #{_lambda_.1} parent=11 // pred_region
          _
        $region140: #{_lambda_.1} parent=11 // pred_fallthru
          _
        // Predicated region
        $region141: #{_lambda_.1} parent=11 // pred_check
          %p1021 = pneg %p805
        $region142: #{_lambda_.1} parent=11 // pred_check_branch
          %1023 = sbr.rel (%p1021) target = $region144
        $region143: #{_lambda_.1} parent=11 // pred_region
          _
        $region144: #{_lambda_.1} parent=11 // pred_fallthru
          _
        // Predicated region
        $region145: #{_lambda_.1} parent=11 // pred_check
          %p1024 = pneg %p826
        $region146: #{_lambda_.1} parent=11 // pred_check_branch
          %1026 = sbr.rel (%p1024) target = $region148
        $region147: #{_lambda_.1} parent=11 // pred_region
          _
        $region148: #{_lambda_.1} parent=11 // pred_fallthru
          _
        // Predicated region
        $region149: #{_lambda_.1} parent=11 // pred_check
          %p1027 = pneg %p847
        $region150: #{_lambda_.1} parent=11 // pred_check_branch
          %1029 = sbr.rel (%p1027) target = $region152
        $region151: #{_lambda_.1} parent=11 // pred_region
          _
        $region152: #{_lambda_.1} parent=11 // pred_fallthru
          _
        // Predicated region
        $region153: #{_lambda_.1} parent=11 // pred_check
          %p1030 = pneg %p868
        $region154: #{_lambda_.1} parent=11 // pred_check_branch
          %1032 = sbr.rel (%p1030) target = $region156
        $region155: #{_lambda_.1} parent=11 // pred_region
          _
        $region156: #{_lambda_.1} parent=11 // pred_fallthru
          _
        // Predicated region
        $region157: #{_lambda_.1} parent=11 // pred_check
          %p1033 = pneg %p889
        $region158: #{_lambda_.1} parent=11 // pred_check_branch
          %1035 = sbr.rel (%p1033) target = $region160
        $region159: #{_lambda_.1} parent=11 // pred_region
          _
        $region160: #{_lambda_.1} parent=11 // pred_fallthru
          _
      $region12: #{_lambda_.1} parent=5 // pred_fallthru
        _
      %p1036 = scmp.lt.s32.totalorder %s86, 8
      // Predicated region
      $region161: #{_lambda_.1} parent=5 // pred_check
        %p1037 = pneg %p1036
      $region162: #{_lambda_.1} parent=5 // pred_check_branch
        %1039 = sbr.rel (%p1037) target = $region164
      $region163: #{_lambda_.1} parent=5 // pred_region
        // Predicated region
        $region165: #{_lambda_.1} parent=163 // pred_check
          %p1040 = pneg %p778
        $region166: #{_lambda_.1} parent=163 // pred_check_branch
          %1042 = sbr.rel (%p1040) target = $region168
        $region167: #{_lambda_.1} parent=163 // pred_region
          %s1043 = smul.u32 56, %s86
          %p1044 = scmp.lt.s32.totalorder %s1043, 447
          %s1045 = scalar_select %p1044, %s1043, 447
          %s1046 = smul.addr %s1045, 8
          %s1047 = smul.addr %s1046, 4
          %s1048 = scalar_lea.vmem %s65, %s1047
          %s1049 = smul.u32 56, %s86
        $region168: #{_lambda_.1} parent=163 // pred_fallthru
          _
      $region164: #{_lambda_.1} parent=5 // pred_fallthru
        _
      %p1050 = scmp.le.s32.totalorder 1, %s86
      %p1051 = scmp.lt.s32.totalorder %s86, 9
      %p1052 = pnand %p1050, %p1051
      %p1053 = pneg %p1052
      // Predicated region
      $region169: #{_lambda_.1} parent=5 // pred_check
        _
      $region170: #{_lambda_.1} parent=5 // pred_check_branch
        %1055 = sbr.rel (%p1052) target = $region172
      $region171: #{_lambda_.1} parent=5 // pred_region
        %s1056 = ssub.s32 %s86, 1
        %p1057 = pneg %p107
        %p1058 = pneg %p104
        %p1059 = pneg %p128
        %p1060 = pneg %p125
        %p1061 = pneg %p149
        %p1062 = pneg %p146
        %p1063 = pneg %p170
        %p1064 = pneg %p167
        %p1065 = pneg %p191
        %p1066 = pneg %p188
        %p1067 = pneg %p212
        %p1068 = pneg %p209
        %p1069 = pneg %p233
        %p1070 = pneg %p230
        %p1071 = pneg %p254
        %p1072 = pneg %p251
        %p1073 = pneg %p275
        %p1074 = pneg %p272
        %p1075 = pneg %p296
        %p1076 = pneg %p293
        %p1077 = pneg %p317
        %p1078 = pneg %p314
        %p1079 = pneg %p338
        %p1080 = pneg %p335
        %p1081 = pneg %p359
        %p1082 = pneg %p356
        %p1083 = pneg %p380
        %p1084 = pneg %p377
        %p1085 = pneg %p401
        %p1086 = pneg %p398
        %p1087 = pneg %p422
        %p1088 = pneg %p419
        %p1089 = pneg %p443
        %p1090 = pneg %p440
        %p1091 = pneg %p464
        %p1092 = pneg %p461
        %p1093 = pneg %p485
        %p1094 = pneg %p482
        %p1095 = pneg %p506
        %p1096 = pneg %p503
        %p1097 = pneg %p527
        %p1098 = pneg %p524
        %p1099 = pneg %p548
        %p1100 = pneg %p545
        %p1101 = pneg %p569
        %p1102 = pneg %p566
        %p1103 = pneg %p590
        %p1104 = pneg %p587
        %p1105 = pneg %p611
        %p1106 = pneg %p608
        %p1107 = pneg %p632
        %p1108 = pneg %p629
        %p1109 = pneg %p653
        %p1110 = pneg %p650
        %p1111 = pneg %p674
        %p1112 = pneg %p671
        %p1113 = pneg %p695
        %p1114 = pneg %p692
        %p1115 = pneg %p716
        %p1116 = pneg %p713
        %p1117 = pneg %p737
        %p1118 = pneg %p734
        %p1119 = pneg %p758
        %p1120 = pneg %p755
        %s1121 = smul.u32 56, %s91
        %p1122 = scmp.lt.s32.totalorder %s1121, 447
        %s1123 = scalar_select %p1122, %s1121, 447
        %s1124 = smul.addr %s1123, 8
        %s1125 = smul.addr %s1124, 4
        %s1126 = scalar_lea.vmem %s65, %s1125
        %p1127 = pneg %p784
        %p1128 = pneg %p781
        %p1129 = pneg %p805
        %p1130 = pneg %p802
        %p1131 = pneg %p826
        %p1132 = pneg %p823
        %p1133 = pneg %p847
        %p1134 = pneg %p844
        %p1135 = pneg %p868
        %p1136 = pneg %p865
        %p1137 = pneg %p889
        %p1138 = pneg %p886
        %p1139 = pneg %p910
        %p1140 = pneg %p907
        %s1141 = smul.u32 56, %s91
        %p1142 = scmp.lt.s32.totalorder %s1141, 447
        %s1143 = scalar_select %p1142, %s1141, 447
        %s1144 = smul.addr %s1143, 8
        %s1145 = smul.addr %s1144, 4
        %s1146 = scalar_lea.vmem %s65, %s1145
        %s1147 = smul.u32 56, %s91
        %p1149 = scmp.eq.s32.totalorder %s91, 0
        // Predicated region
        $region173: #{_lambda_.1} parent=171 // pred_check
          %p1150 = pneg %p1149
        $region174: #{_lambda_.1} parent=171 // pred_check_branch
          %1152 = sbr.rel (%p1150) target = $region176
        $region175: #{_lambda_.1} parent=171 // pred_region
          %v1153 = vld [vmem:[%s1] sm:$0x3]
          %v1154 = vld [vmem:[%s13] sm:$0xff]
          %v1155 = vld [vmem:[%s13 + $0x8] sm:$0xff]
          %v1156 = vld [vmem:[%s15] sm:$0x1]
          %v1158 = vlaneseq
          %v1159 = vshrl.u32 %v1158, 7
          %v1160 = vsub.s32 0, %v1159
          %v1161 = vrot.slane %v1156, %v1160
          %vm1163 = vcmask 130048
          %v1165 = vsel %vm1163, %v1153, 0
          %1167 = vmatprep.subr.mxu0 0.0
          %1168 = vmatpush1.msra.mxu0 %v1154
          %1169 = vmatprep.subr.mxu0 0.0
          %1170 = vmatpush1.msra.mxu0 %v1155
          %1171 = vmatprep.subr.mxu0 0.0
          %1172 = vmatpush1.msra.mxu0 0.0
          %1173 = vmatprep.subr.mxu0 0.0
          %1174 = vmatpush1.msra.mxu0 0.0
          %1175 = vmatprep.subr.mxu0 0.0
          %1176 = vmatpush1.msra.mxu0 0.0
          %1177 = vmatprep.subr.mxu0 0.0
          %1178 = vmatpush1.msra.mxu0 0.0
          %1179 = vmatprep.subr.mxu0 0.0
          %1180 = vmatpush1.msra.mxu0 0.0
          %1181 = vmatprep.subr.mxu0 0.0
          %1182 = vmatpush1.msra.mxu0 0.0
          %1183 = vmatprep.subr.mxu0 0.0
          %1184 = vmatpush1.msra.mxu0 0.0
          %1185 = vmatprep.subr.mxu0 0.0
          %1186 = vmatpush1.msra.mxu0 0.0
          %1187 = vmatprep.subr.mxu0 0.0
          %1188 = vmatpush1.msra.mxu0 0.0
          %1189 = vmatprep.subr.mxu0 0.0
          %1190 = vmatpush1.msra.mxu0 0.0
          %1191 = vmatprep.subr.mxu0 0.0
          %1192 = vmatpush1.msra.mxu0 0.0
          %1193 = vmatprep.subr.mxu0 0.0
          %1194 = vmatpush1.msra.mxu0 0.0
          %1195 = vmatprep.subr.mxu0 0.0
          %1196 = vmatpush1.msra.mxu0 0.0
          %1197 = vmatprep.subr.mxu0 0.0
          %1198 = vmatpush1.msra.mxu0 0.0
          %1199 = vmatprep.subr.mxu0 0.0
          %1200 = vmatpush1.msra.mxu0 0.0
          %1201 = vmatprep.subr.mxu0 0.0
          %1202 = vmatpush1.msra.mxu0 0.0
          %1203 = vmatprep.subr.mxu0 0.0
          %1204 = vmatpush1.msra.mxu0 0.0
          %1205 = vmatprep.subr.mxu0 0.0
          %1206 = vmatpush1.msra.mxu0 0.0
          %1207 = vmatprep.subr.mxu0 0.0
          %1208 = vmatpush1.msra.mxu0 0.0
          %1209 = vmatprep.subr.mxu0 0.0
          %1210 = vmatpush1.msra.mxu0 0.0
          %1211 = vmatprep.subr.mxu0 0.0
          %1212 = vmatpush1.msra.mxu0 0.0
          %1213 = vmatprep.subr.mxu0 0.0
          %1214 = vmatpush1.msra.mxu0 0.0
          %1215 = vmatprep.subr.mxu0 0.0
          %1216 = vmatpush1.msra.mxu0 0.0
          %1217 = vmatprep.subr.mxu0 0.0
          %1218 = vmatpush1.msra.mxu0 0.0
          %1219 = vmatprep.subr.mxu0 0.0
          %1220 = vmatpush1.msra.mxu0 0.0
          %1221 = vmatprep.subr.mxu0 0.0
          %1222 = vmatpush1.msra.mxu0 0.0
          %1223 = vmatprep.subr.mxu0 0.0
          %1224 = vmatpush1.msra.mxu0 0.0
          %1225 = vmatprep.subr.mxu0 0.0
          %1226 = vmatpush1.msra.mxu0 0.0
          %1227 = vmatprep.subr.mxu0 0.0
          %1228 = vmatpush1.msra.mxu0 0.0
          %1229 = vmatprep.subr.mxu0 0.0
          %1230 = vmatpush1.msra.mxu0 0.0
          %1231 = vmatprep.mubr.f32.mxu0 0.0
          %1232 = vmatmul.mubr.f32.gmra.mrb[0].mxu0 %v1165
          %v1233 = vpop.f32.mrb[0].mxu0
          %v1234 = vadd.f32 %v1161, %v1233
          %v1235 = vpop.f32.mrb[0].mxu0
          %1236 = vdwg.mxu0
          %v1237 = vmax.f32 %v1234, 0.0
          %v1238 = vld [vmem:[%s17] sm:$0xff]
          %v1239 = vld [vmem:[%s17 + $0x8] sm:$0xff]
          %v1240 = vld [vmem:[%s17 + $0x10] sm:$0xff]
          %v1241 = vld [vmem:[%s17 + $0x18] sm:$0xff]
          %v1242 = vld [vmem:[%s17 + $0x20] sm:$0xff]
          %v1243 = vld [vmem:[%s17 + $0x28] sm:$0xff]
          %v1244 = vld [vmem:[%s17 + $0x30] sm:$0xff]
          %v1245 = vld [vmem:[%s17 + $0x38] sm:$0xff]
          %v1246 = vld [vmem:[%s19] sm:$0x1]
          %v1248 = vlaneseq
          %v1249 = vshrl.u32 %v1248, 7
          %v1250 = vsub.s32 0, %v1249
          %v1251 = vrot.slane %v1246, %v1250
          %vm1253 = vcmask 523264
          %v1255 = vsel %vm1253, %v1237, 0
          %1257 = vmatprep.subr.mxu0 0.0
          %1258 = vmatpush1.msra.mxu0 %v1238
          %1259 = vmatprep.subr.mxu0 0.0
          %1260 = vmatpush1.msra.mxu0 %v1239
          %1261 = vmatprep.subr.mxu0 0.0
          %1262 = vmatpush1.msra.mxu0 %v1240
          %1263 = vmatprep.subr.mxu0 0.0
          %1264 = vmatpush1.msra.mxu0 %v1241
          %1265 = vmatprep.subr.mxu0 0.0
          %1266 = vmatpush1.msra.mxu0 %v1242
          %1267 = vmatprep.subr.mxu0 0.0
          %1268 = vmatpush1.msra.mxu0 %v1243
          %1269 = vmatprep.subr.mxu0 0.0
          %1270 = vmatpush1.msra.mxu0 %v1244
          %1271 = vmatprep.subr.mxu0 0.0
          %1272 = vmatpush1.msra.mxu0 %v1245
          %1273 = vmatprep.subr.mxu0 0.0
          %1274 = vmatpush1.msra.mxu0 0.0
          %1275 = vmatprep.subr.mxu0 0.0
          %1276 = vmatpush1.msra.mxu0 0.0
          %1277 = vmatprep.subr.mxu0 0.0
          %1278 = vmatpush1.msra.mxu0 0.0
          %1279 = vmatprep.subr.mxu0 0.0
          %1280 = vmatpush1.msra.mxu0 0.0
          %1281 = vmatprep.subr.mxu0 0.0
          %1282 = vmatpush1.msra.mxu0 0.0
          %1283 = vmatprep.subr.mxu0 0.0
          %1284 = vmatpush1.msra.mxu0 0.0
          %1285 = vmatprep.subr.mxu0 0.0
          %1286 = vmatpush1.msra.mxu0 0.0
          %1287 = vmatprep.subr.mxu0 0.0
          %1288 = vmatpush1.msra.mxu0 0.0
          %1289 = vmatprep.subr.mxu0 0.0
          %1290 = vmatpush1.msra.mxu0 0.0
          %1291 = vmatprep.subr.mxu0 0.0
          %1292 = vmatpush1.msra.mxu0 0.0
          %1293 = vmatprep.subr.mxu0 0.0
          %1294 = vmatpush1.msra.mxu0 0.0
          %1295 = vmatprep.subr.mxu0 0.0
          %1296 = vmatpush1.msra.mxu0 0.0
          %1297 = vmatprep.subr.mxu0 0.0
          %1298 = vmatpush1.msra.mxu0 0.0
          %1299 = vmatprep.subr.mxu0 0.0
          %1300 = vmatpush1.msra.mxu0 0.0
          %1301 = vmatprep.subr.mxu0 0.0
          %1302 = vmatpush1.msra.mxu0 0.0
          %1303 = vmatprep.subr.mxu0 0.0
          %1304 = vmatpush1.msra.mxu0 0.0
          %1305 = vmatprep.subr.mxu0 0.0
          %1306 = vmatpush1.msra.mxu0 0.0
          %1307 = vmatprep.subr.mxu0 0.0
          %1308 = vmatpush1.msra.mxu0 0.0
          %1309 = vmatprep.subr.mxu0 0.0
          %1310 = vmatpush1.msra.mxu0 0.0
          %1311 = vmatprep.subr.mxu0 0.0
          %1312 = vmatpush1.msra.mxu0 0.0
          %1313 = vmatprep.subr.mxu0 0.0
          %1314 = vmatpush1.msra.mxu0 0.0
          %1315 = vmatprep.subr.mxu0 0.0
          %1316 = vmatpush1.msra.mxu0 0.0
          %1317 = vmatprep.subr.mxu0 0.0
          %1318 = vmatpush1.msra.mxu0 0.0
          %1319 = vmatprep.subr.mxu0 0.0
          %1320 = vmatpush1.msra.mxu0 0.0
          %1321 = vmatprep.mubr.f32.mxu0 0.0
          %1322 = vmatmul.mubr.f32.gmra.mrb[0].mxu0 %v1255
          %v1323 = vpop.f32.mrb[0].mxu0
          %v1324 = vadd.f32 %v1251, %v1323
          %v1325 = vpop.f32.mrb[0].mxu0
          %1326 = vdwg.mxu0
          %v1327 = vmax.f32 %v1324, 0.0
          %v1328 = vld [vmem:[%s21] sm:$0xff]
          %v1329 = vld [vmem:[%s21 + $0x8] sm:$0xff]
          %v1330 = vld [vmem:[%s21 + $0x10] sm:$0xff]
          %v1331 = vld [vmem:[%s21 + $0x18] sm:$0xff]
          %v1332 = vld [vmem:[%s21 + $0x20] sm:$0xff]
          %v1333 = vld [vmem:[%s21 + $0x28] sm:$0xff]
          %v1334 = vld [vmem:[%s21 + $0x30] sm:$0xff]
          %v1335 = vld [vmem:[%s21 + $0x38] sm:$0xff]
          %v1336 = vld [vmem:[%s23] sm:$0x1]
          %v1338 = vlaneseq
          %v1339 = vshrl.u32 %v1338, 7
          %v1340 = vsub.s32 0, %v1339
          %v1341 = vrot.slane %v1336, %v1340
          %v1344 = vsel %vm1253, %v1327, 0
          %1346 = vmatprep.subr.mxu0 0.0
          %1347 = vmatpush1.msra.mxu0 %v1328
          %1348 = vmatprep.subr.mxu0 0.0
          %1349 = vmatpush1.msra.mxu0 %v1329
          %1350 = vmatprep.subr.mxu0 0.0
          %1351 = vmatpush1.msra.mxu0 %v1330
          %1352 = vmatprep.subr.mxu0 0.0
          %1353 = vmatpush1.msra.mxu0 %v1331
          %1354 = vmatprep.subr.mxu0 0.0
          %1355 = vmatpush1.msra.mxu0 %v1332
          %1356 = vmatprep.subr.mxu0 0.0
          %1357 = vmatpush1.msra.mxu0 %v1333
          %1358 = vmatprep.subr.mxu0 0.0
          %1359 = vmatpush1.msra.mxu0 %v1334
          %1360 = vmatprep.subr.mxu0 0.0
          %1361 = vmatpush1.msra.mxu0 %v1335
          %1362 = vmatprep.subr.mxu0 0.0
          %1363 = vmatpush1.msra.mxu0 0.0
          %1364 = vmatprep.subr.mxu0 0.0
          %1365 = vmatpush1.msra.mxu0 0.0
          %1366 = vmatprep.subr.mxu0 0.0
          %1367 = vmatpush1.msra.mxu0 0.0
          %1368 = vmatprep.subr.mxu0 0.0
          %1369 = vmatpush1.msra.mxu0 0.0
          %1370 = vmatprep.subr.mxu0 0.0
          %1371 = vmatpush1.msra.mxu0 0.0
          %1372 = vmatprep.subr.mxu0 0.0
          %1373 = vmatpush1.msra.mxu0 0.0
          %1374 = vmatprep.subr.mxu0 0.0
          %1375 = vmatpush1.msra.mxu0 0.0
          %1376 = vmatprep.subr.mxu0 0.0
          %1377 = vmatpush1.msra.mxu0 0.0
          %1378 = vmatprep.subr.mxu0 0.0
          %1379 = vmatpush1.msra.mxu0 0.0
          %1380 = vmatprep.subr.mxu0 0.0
          %1381 = vmatpush1.msra.mxu0 0.0
          %1382 = vmatprep.subr.mxu0 0.0
          %1383 = vmatpush1.msra.mxu0 0.0
          %1384 = vmatprep.subr.mxu0 0.0
          %1385 = vmatpush1.msra.mxu0 0.0
          %1386 = vmatprep.subr.mxu0 0.0
          %1387 = vmatpush1.msra.mxu0 0.0
          %1388 = vmatprep.subr.mxu0 0.0
          %1389 = vmatpush1.msra.mxu0 0.0
          %1390 = vmatprep.subr.mxu0 0.0
          %1391 = vmatpush1.msra.mxu0 0.0
          %1392 = vmatprep.subr.mxu0 0.0
          %1393 = vmatpush1.msra.mxu0 0.0
          %1394 = vmatprep.subr.mxu0 0.0
          %1395 = vmatpush1.msra.mxu0 0.0
          %1396 = vmatprep.subr.mxu0 0.0
          %1397 = vmatpush1.msra.mxu0 0.0
          %1398 = vmatprep.subr.mxu0 0.0
          %1399 = vmatpush1.msra.mxu0 0.0
          %1400 = vmatprep.subr.mxu0 0.0
          %1401 = vmatpush1.msra.mxu0 0.0
          %1402 = vmatprep.subr.mxu0 0.0
          %1403 = vmatpush1.msra.mxu0 0.0
          %1404 = vmatprep.subr.mxu0 0.0
          %1405 = vmatpush1.msra.mxu0 0.0
          %1406 = vmatprep.subr.mxu0 0.0
          %1407 = vmatpush1.msra.mxu0 0.0
          %1408 = vmatprep.subr.mxu0 0.0
          %1409 = vmatpush1.msra.mxu0 0.0
          %1410 = vmatprep.mubr.f32.mxu0 0.0
          %1411 = vmatmul.mubr.f32.gmra.mrb[0].mxu0 %v1344
          %v1412 = vpop.f32.mrb[0].mxu0
          %v1413 = vadd.f32 %v1341, %v1412
          %v1414 = vpop.f32.mrb[0].mxu0
          %1415 = vdwg.mxu0
          %v1416 = vld [vmem:[%s3] sm:$0x3]
          %v1417 = vld [vmem:[%s25] sm:$0x7]
          %v1418 = vld [vmem:[%s27] sm:$0x1]
          %v1420 = vlaneseq
          %v1421 = vshrl.u32 %v1420, 7
          %v1422 = vsub.s32 0, %v1421
          %v1423 = vrot.slane %v1418, %v1422
          %vm1425 = vcmask 23552
          %v1427 = vsel %vm1425, %v1416, 0
          %vm1429 = vcmask 1042432
          %v1431 = vsel %vm1429, %v1417, 0
          %1433 = vmatprep.subr.mxu0 0.0
          %1434 = vmatpush1.msra.mxu0 %v1431
          %1435 = vmatprep.subr.mxu0 0.0
          %1436 = vmatpush1.msra.mxu0 0.0
          %1437 = vmatprep.subr.mxu0 0.0
          %1438 = vmatpush1.msra.mxu0 0.0
          %1439 = vmatprep.subr.mxu0 0.0
          %1440 = vmatpush1.msra.mxu0 0.0
          %1441 = vmatprep.subr.mxu0 0.0
          %1442 = vmatpush1.msra.mxu0 0.0
          %1443 = vmatprep.subr.mxu0 0.0
          %1444 = vmatpush1.msra.mxu0 0.0
          %1445 = vmatprep.subr.mxu0 0.0
          %1446 = vmatpush1.msra.mxu0 0.0
          %1447 = vmatprep.subr.mxu0 0.0
          %1448 = vmatpush1.msra.mxu0 0.0
          %1449 = vmatprep.subr.mxu0 0.0
          %1450 = vmatpush1.msra.mxu0 0.0
          %1451 = vmatprep.subr.mxu0 0.0
          %1452 = vmatpush1.msra.mxu0 0.0
          %1453 = vmatprep.subr.mxu0 0.0
          %1454 = vmatpush1.msra.mxu0 0.0
          %1455 = vmatprep.subr.mxu0 0.0
          %1456 = vmatpush1.msra.mxu0 0.0
          %1457 = vmatprep.subr.mxu0 0.0
          %1458 = vmatpush1.msra.mxu0 0.0
          %1459 = vmatprep.subr.mxu0 0.0
          %1460 = vmatpush1.msra.mxu0 0.0
          %1461 = vmatprep.subr.mxu0 0.0
          %1462 = vmatpush1.msra.mxu0 0.0
          %1463 = vmatprep.subr.mxu0 0.0
          %1464 = vmatpush1.msra.mxu0 0.0
          %1465 = vmatprep.subr.mxu0 0.0
          %1466 = vmatpush1.msra.mxu0 0.0
          %1467 = vmatprep.subr.mxu0 0.0
          %1468 = vmatpush1.msra.mxu0 0.0
          %1469 = vmatprep.subr.mxu0 0.0
          %1470 = vmatpush1.msra.mxu0 0.0
          %1471 = vmatprep.subr.mxu0 0.0
          %1472 = vmatpush1.msra.mxu0 0.0
          %1473 = vmatprep.subr.mxu0 0.0
          %1474 = vmatpush1.msra.mxu0 0.0
          %1475 = vmatprep.subr.mxu0 0.0
          %1476 = vmatpush1.msra.mxu0 0.0
          %1477 = vmatprep.subr.mxu0 0.0
          %1478 = vmatpush1.msra.mxu0 0.0
          %1479 = vmatprep.subr.mxu0 0.0
          %1480 = vmatpush1.msra.mxu0 0.0
          %1481 = vmatprep.subr.mxu0 0.0
          %1482 = vmatpush1.msra.mxu0 0.0
          %1483 = vmatprep.subr.mxu0 0.0
          %1484 = vmatpush1.msra.mxu0 0.0
          %1485 = vmatprep.subr.mxu0 0.0
          %1486 = vmatpush1.msra.mxu0 0.0
          %1487 = vmatprep.subr.mxu0 0.0
          %1488 = vmatpush1.msra.mxu0 0.0
          %1489 = vmatprep.subr.mxu0 0.0
          %1490 = vmatpush1.msra.mxu0 0.0
          %1491 = vmatprep.subr.mxu0 0.0
          %1492 = vmatpush1.msra.mxu0 0.0
          %1493 = vmatprep.subr.mxu0 0.0
          %1494 = vmatpush1.msra.mxu0 0.0
          %1495 = vmatprep.subr.mxu0 0.0
          %1496 = vmatpush1.msra.mxu0 0.0
          %1497 = vmatprep.mubr.f32.mxu0 0.0
          %1498 = vmatmul.mubr.f32.gmra.mrb[0].mxu0 %v1427
          %v1499 = vpop.f32.mrb[0].mxu0
          %v1500 = vadd.f32 %v1423, %v1499
          %v1501 = vpop.f32.mrb[0].mxu0
          %1502 = vdwg.mxu0
          %v1503 = vmax.f32 %v1500, 0.0
          %v1504 = vld [vmem:[%s29] sm:$0xff]
          %v1505 = vld [vmem:[%s29 + $0x8] sm:$0xff]
          %v1506 = vld [vmem:[%s29 + $0x10] sm:$0xff]
          %v1507 = vld [vmem:[%s29 + $0x18] sm:$0xff]
          %v1508 = vld [vmem:[%s29 + $0x20] sm:$0xff]
          %v1509 = vld [vmem:[%s29 + $0x28] sm:$0xff]
          %v1510 = vld [vmem:[%s29 + $0x30] sm:$0xff]
          %v1511 = vld [vmem:[%s29 + $0x38] sm:$0xff]
          %v1512 = vld [vmem:[%s31] sm:$0x1]
          %v1514 = vlaneseq
          %v1515 = vshrl.u32 %v1514, 7
          %v1516 = vsub.s32 0, %v1515
          %v1517 = vrot.slane %v1512, %v1516
          %v1520 = vsel %vm1253, %v1503, 0
          %1522 = vmatprep.subr.mxu0 0.0
          %1523 = vmatpush1.msra.mxu0 %v1504
          %1524 = vmatprep.subr.mxu0 0.0
          %1525 = vmatpush1.msra.mxu0 %v1505
          %1526 = vmatprep.subr.mxu0 0.0
          %1527 = vmatpush1.msra.mxu0 %v1506
          %1528 = vmatprep.subr.mxu0 0.0
          %1529 = vmatpush1.msra.mxu0 %v1507
          %1530 = vmatprep.subr.mxu0 0.0
          %1531 = vmatpush1.msra.mxu0 %v1508
          %1532 = vmatprep.subr.mxu0 0.0
          %1533 = vmatpush1.msra.mxu0 %v1509
          %1534 = vmatprep.subr.mxu0 0.0
          %1535 = vmatpush1.msra.mxu0 %v1510
          %1536 = vmatprep.subr.mxu0 0.0
          %1537 = vmatpush1.msra.mxu0 %v1511
          %1538 = vmatprep.subr.mxu0 0.0
          %1539 = vmatpush1.msra.mxu0 0.0
          %1540 = vmatprep.subr.mxu0 0.0
          %1541 = vmatpush1.msra.mxu0 0.0
          %1542 = vmatprep.subr.mxu0 0.0
          %1543 = vmatpush1.msra.mxu0 0.0
          %1544 = vmatprep.subr.mxu0 0.0
          %1545 = vmatpush1.msra.mxu0 0.0
          %1546 = vmatprep.subr.mxu0 0.0
          %1547 = vmatpush1.msra.mxu0 0.0
          %1548 = vmatprep.subr.mxu0 0.0
          %1549 = vmatpush1.msra.mxu0 0.0
          %1550 = vmatprep.subr.mxu0 0.0
          %1551 = vmatpush1.msra.mxu0 0.0
          %1552 = vmatprep.subr.mxu0 0.0
          %1553 = vmatpush1.msra.mxu0 0.0
          %1554 = vmatprep.subr.mxu0 0.0
          %1555 = vmatpush1.msra.mxu0 0.0
          %1556 = vmatprep.subr.mxu0 0.0
          %1557 = vmatpush1.msra.mxu0 0.0
          %1558 = vmatprep.subr.mxu0 0.0
          %1559 = vmatpush1.msra.mxu0 0.0
          %1560 = vmatprep.subr.mxu0 0.0
          %1561 = vmatpush1.msra.mxu0 0.0
          %1562 = vmatprep.subr.mxu0 0.0
          %1563 = vmatpush1.msra.mxu0 0.0
          %1564 = vmatprep.subr.mxu0 0.0
          %1565 = vmatpush1.msra.mxu0 0.0
          %1566 = vmatprep.subr.mxu0 0.0
          %1567 = vmatpush1.msra.mxu0 0.0
          %1568 = vmatprep.subr.mxu0 0.0
          %1569 = vmatpush1.msra.mxu0 0.0
          %1570 = vmatprep.subr.mxu0 0.0
          %1571 = vmatpush1.msra.mxu0 0.0
          %1572 = vmatprep.subr.mxu0 0.0
          %1573 = vmatpush1.msra.mxu0 0.0
          %1574 = vmatprep.subr.mxu0 0.0
          %1575 = vmatpush1.msra.mxu0 0.0
          %1576 = vmatprep.subr.mxu0 0.0
          %1577 = vmatpush1.msra.mxu0 0.0
          %1578 = vmatprep.subr.mxu0 0.0
          %1579 = vmatpush1.msra.mxu0 0.0
          %1580 = vmatprep.subr.mxu0 0.0
          %1581 = vmatpush1.msra.mxu0 0.0
          %1582 = vmatprep.subr.mxu0 0.0
          %1583 = vmatpush1.msra.mxu0 0.0
          %1584 = vmatprep.subr.mxu0 0.0
          %1585 = vmatpush1.msra.mxu0 0.0
          %1586 = vmatprep.mubr.f32.mxu0 0.0
          %1587 = vmatmul.mubr.f32.gmra.mrb[0].mxu0 %v1520
          %v1588 = vpop.f32.mrb[0].mxu0
          %v1589 = vadd.f32 %v1517, %v1588
          %v1590 = vpop.f32.mrb[0].mxu0
          %1591 = vdwg.mxu0
          %v1592 = vld [vmem:[%s5] sm:$0x3]
          %v1593 = vld [vmem:[%s33] sm:$0x7f]
          %v1594 = vld [vmem:[%s35] sm:$0x1]
          %v1596 = vlaneseq
          %v1597 = vshrl.u32 %v1596, 7
          %v1598 = vsub.s32 0, %v1597
          %v1599 = vrot.slane %v1594, %v1598
          %vm1601 = vcmask 56320
          %v1603 = vsel %vm1601, %v1592, 0
          %vm1605 = vcmask 1046528
          %v1607 = vsel %vm1605, %v1593, 0
          %1609 = vmatprep.subr.mxu0 0.0
          %1610 = vmatpush1.msra.mxu0 %v1607
          %1611 = vmatprep.subr.mxu0 0.0
          %1612 = vmatpush1.msra.mxu0 0.0
          %1613 = vmatprep.subr.mxu0 0.0
          %1614 = vmatpush1.msra.mxu0 0.0
          %1615 = vmatprep.subr.mxu0 0.0
          %1616 = vmatpush1.msra.mxu0 0.0
          %1617 = vmatprep.subr.mxu0 0.0
          %1618 = vmatpush1.msra.mxu0 0.0
          %1619 = vmatprep.subr.mxu0 0.0
          %1620 = vmatpush1.msra.mxu0 0.0
          %1621 = vmatprep.subr.mxu0 0.0
          %1622 = vmatpush1.msra.mxu0 0.0
          %1623 = vmatprep.subr.mxu0 0.0
          %1624 = vmatpush1.msra.mxu0 0.0
          %1625 = vmatprep.subr.mxu0 0.0
          %1626 = vmatpush1.msra.mxu0 0.0
          %1627 = vmatprep.subr.mxu0 0.0
          %1628 = vmatpush1.msra.mxu0 0.0
          %1629 = vmatprep.subr.mxu0 0.0
          %1630 = vmatpush1.msra.mxu0 0.0
          %1631 = vmatprep.subr.mxu0 0.0
          %1632 = vmatpush1.msra.mxu0 0.0
          %1633 = vmatprep.subr.mxu0 0.0
          %1634 = vmatpush1.msra.mxu0 0.0
          %1635 = vmatprep.subr.mxu0 0.0
          %1636 = vmatpush1.msra.mxu0 0.0
          %1637 = vmatprep.subr.mxu0 0.0
          %1638 = vmatpush1.msra.mxu0 0.0
          %1639 = vmatprep.subr.mxu0 0.0
          %1640 = vmatpush1.msra.mxu0 0.0
          %1641 = vmatprep.subr.mxu0 0.0
          %1642 = vmatpush1.msra.mxu0 0.0
          %1643 = vmatprep.subr.mxu0 0.0
          %1644 = vmatpush1.msra.mxu0 0.0
          %1645 = vmatprep.subr.mxu0 0.0
          %1646 = vmatpush1.msra.mxu0 0.0
          %1647 = vmatprep.subr.mxu0 0.0
          %1648 = vmatpush1.msra.mxu0 0.0
          %1649 = vmatprep.subr.mxu0 0.0
          %1650 = vmatpush1.msra.mxu0 0.0
          %1651 = vmatprep.subr.mxu0 0.0
          %1652 = vmatpush1.msra.mxu0 0.0
          %1653 = vmatprep.subr.mxu0 0.0
          %1654 = vmatpush1.msra.mxu0 0.0
          %1655 = vmatprep.subr.mxu0 0.0
          %1656 = vmatpush1.msra.mxu0 0.0
          %1657 = vmatprep.subr.mxu0 0.0
          %1658 = vmatpush1.msra.mxu0 0.0
          %1659 = vmatprep.subr.mxu0 0.0
          %1660 = vmatpush1.msra.mxu0 0.0
          %1661 = vmatprep.subr.mxu0 0.0
          %1662 = vmatpush1.msra.mxu0 0.0
          %1663 = vmatprep.subr.mxu0 0.0
          %1664 = vmatpush1.msra.mxu0 0.0
          %1665 = vmatprep.subr.mxu0 0.0
          %1666 = vmatpush1.msra.mxu0 0.0
          %1667 = vmatprep.subr.mxu0 0.0
          %1668 = vmatpush1.msra.mxu0 0.0
          %1669 = vmatprep.subr.mxu0 0.0
          %1670 = vmatpush1.msra.mxu0 0.0
          %1671 = vmatprep.subr.mxu0 0.0
          %1672 = vmatpush1.msra.mxu0 0.0
          %1673 = vmatprep.mubr.f32.mxu0 0.0
          %1674 = vmatmul.mubr.f32.gmra.mrb[0].mxu0 %v1603
          %v1675 = vpop.f32.mrb[0].mxu0
          %v1676 = vadd.f32 %v1599, %v1675
          %v1677 = vpop.f32.mrb[0].mxu0
          %1678 = vdwg.mxu0
          %v1679 = vmax.f32 %v1676, 0.0
          %v1680 = vld [vmem:[%s37] sm:$0xff]
          %v1681 = vld [vmem:[%s37 + $0x8] sm:$0xff]
          %v1682 = vld [vmem:[%s37 + $0x10] sm:$0xff]
          %v1683 = vld [vmem:[%s37 + $0x18] sm:$0xff]
          %v1684 = vld [vmem:[%s37 + $0x20] sm:$0xff]
          %v1685 = vld [vmem:[%s37 + $0x28] sm:$0xff]
          %v1686 = vld [vmem:[%s37 + $0x30] sm:$0xff]
          %v1687 = vld [vmem:[%s37 + $0x38] sm:$0xff]
          %v1688 = vld [vmem:[%s39] sm:$0x1]
          %v1690 = vlaneseq
          %v1691 = vshrl.u32 %v1690, 7
          %v1692 = vsub.s32 0, %v1691
          %v1693 = vrot.slane %v1688, %v1692
          %v1696 = vsel %vm1253, %v1679, 0
          %1698 = vmatprep.subr.mxu0 0.0
          %1699 = vmatpush1.msra.mxu0 %v1680
          %1700 = vmatprep.subr.mxu0 0.0
          %1701 = vmatpush1.msra.mxu0 %v1681
          %1702 = vmatprep.subr.mxu0 0.0
          %1703 = vmatpush1.msra.mxu0 %v1682
          %1704 = vmatprep.subr.mxu0 0.0
          %1705 = vmatpush1.msra.mxu0 %v1683
          %1706 = vmatprep.subr.mxu0 0.0
          %1707 = vmatpush1.msra.mxu0 %v1684
          %1708 = vmatprep.subr.mxu0 0.0
          %1709 = vmatpush1.msra.mxu0 %v1685
          %1710 = vmatprep.subr.mxu0 0.0
          %1711 = vmatpush1.msra.mxu0 %v1686
          %1712 = vmatprep.subr.mxu0 0.0
          %1713 = vmatpush1.msra.mxu0 %v1687
          %1714 = vmatprep.subr.mxu0 0.0
          %1715 = vmatpush1.msra.mxu0 0.0
          %1716 = vmatprep.subr.mxu0 0.0
          %1717 = vmatpush1.msra.mxu0 0.0
          %1718 = vmatprep.subr.mxu0 0.0
          %1719 = vmatpush1.msra.mxu0 0.0
          %1720 = vmatprep.subr.mxu0 0.0
          %1721 = vmatpush1.msra.mxu0 0.0
          %1722 = vmatprep.subr.mxu0 0.0
          %1723 = vmatpush1.msra.mxu0 0.0
          %1724 = vmatprep.subr.mxu0 0.0
          %1725 = vmatpush1.msra.mxu0 0.0
          %1726 = vmatprep.subr.mxu0 0.0
          %1727 = vmatpush1.msra.mxu0 0.0
          %1728 = vmatprep.subr.mxu0 0.0
          %1729 = vmatpush1.msra.mxu0 0.0
          %1730 = vmatprep.subr.mxu0 0.0
          %1731 = vmatpush1.msra.mxu0 0.0
          %1732 = vmatprep.subr.mxu0 0.0
          %1733 = vmatpush1.msra.mxu0 0.0
          %1734 = vmatprep.subr.mxu0 0.0
          %1735 = vmatpush1.msra.mxu0 0.0
          %1736 = vmatprep.subr.mxu0 0.0
          %1737 = vmatpush1.msra.mxu0 0.0
          %1738 = vmatprep.subr.mxu0 0.0
          %1739 = vmatpush1.msra.mxu0 0.0
          %1740 = vmatprep.subr.mxu0 0.0
          %1741 = vmatpush1.msra.mxu0 0.0
          %1742 = vmatprep.subr.mxu0 0.0
          %1743 = vmatpush1.msra.mxu0 0.0
          %1744 = vmatprep.subr.mxu0 0.0
          %1745 = vmatpush1.msra.mxu0 0.0
          %1746 = vmatprep.subr.mxu0 0.0
          %1747 = vmatpush1.msra.mxu0 0.0
          %1748 = vmatprep.subr.mxu0 0.0
          %1749 = vmatpush1.msra.mxu0 0.0
          %1750 = vmatprep.subr.mxu0 0.0
          %1751 = vmatpush1.msra.mxu0 0.0
          %1752 = vmatprep.subr.mxu0 0.0
          %1753 = vmatpush1.msra.mxu0 0.0
          %1754 = vmatprep.subr.mxu0 0.0
          %1755 = vmatpush1.msra.mxu0 0.0
          %1756 = vmatprep.subr.mxu0 0.0
          %1757 = vmatpush1.msra.mxu0 0.0
          %1758 = vmatprep.subr.mxu0 0.0
          %1759 = vmatpush1.msra.mxu0 0.0
          %1760 = vmatprep.subr.mxu0 0.0
          %1761 = vmatpush1.msra.mxu0 0.0
          %1762 = vmatprep.mubr.f32.mxu0 0.0
          %1763 = vmatmul.mubr.f32.gmra.mrb[0].mxu0 %v1696
          %v1764 = vpop.f32.mrb[0].mxu0
          %v1765 = vadd.f32 %v1693, %v1764
          %v1766 = vpop.f32.mrb[0].mxu0
          %1767 = vdwg.mxu0
          %v1768 = vpack.c.bf16 %v1413, %v1413
          %v1769 = vld [vmem:[%s59] sm:$0xff]
          %v1770 = vld [vmem:[%s59 + $0x8] sm:$0xff]
          %v1771 = vld [vmem:[%s59 + $0x10] sm:$0xff]
          %v1772 = vld [vmem:[%s59 + $0x18] sm:$0xff]
          %v1773 = vld [vmem:[%s59 + $0x20] sm:$0x11]
          %v1774 = vld [vmem:[%s59 + $0x28] sm:$0x11]
          %v1775 = vld [vmem:[%s59 + $0x30] sm:$0x11]
          %v1776 = vld [vmem:[%s59 + $0x38] sm:$0x11]
          %v1777 = vpack.c.bf16 %v1589, %v1589
          %v1778 = vld [vmem:[%s61] sm:$0xff]
          %v1779 = vld [vmem:[%s61 + $0x8] sm:$0xff]
          %v1780 = vld [vmem:[%s61 + $0x10] sm:$0xff]
          %v1781 = vld [vmem:[%s61 + $0x18] sm:$0xff]
          %v1782 = vld [vmem:[%s61 + $0x20] sm:$0x11]
          %v1783 = vld [vmem:[%s61 + $0x28] sm:$0x11]
          %v1784 = vld [vmem:[%s61 + $0x30] sm:$0x11]
          %v1785 = vld [vmem:[%s61 + $0x38] sm:$0x11]
          %v1794 = vunpack.c.l.b16 %v1778
          %v1795 = vunpack.c.h.b16 %v1778
          %v1796 = vunpack.c.l.b16 %v1779
          %v1797 = vunpack.c.h.b16 %v1779
          %v1798 = vunpack.c.l.b16 %v1780
          %v1799 = vunpack.c.h.b16 %v1780
          %v1800 = vunpack.c.l.b16 %v1781
          %v1801 = vunpack.c.h.b16 %v1781
          %v1802 = vunpack.c.l.b16 %v1782
          %v1803 = vunpack.c.h.b16 %v1782
          %v1804 = vunpack.c.l.b16 %v1783
          %v1805 = vunpack.c.h.b16 %v1783
          %v1806 = vunpack.c.l.b16 %v1784
          %v1807 = vunpack.c.h.b16 %v1784
          %v1808 = vunpack.c.l.b16 %v1785
          %v1809 = vunpack.c.h.b16 %v1785
          %v1810 = vpack.c.b16 %v1802, %v1794
          %v1811 = vpack.c.b16 %v1803, %v1795
          %v1812 = vpack.c.b16 %v1804, %v1796
          %v1813 = vpack.c.b16 %v1805, %v1797
          %v1814 = vpack.c.b16 %v1806, %v1798
          %v1815 = vpack.c.b16 %v1807, %v1799
          %v1816 = vpack.c.b16 %v1808, %v1800
          %v1817 = vpack.c.b16 %v1809, %v1801
          %vm1818 = vcmask 80896
          %v1820 = vsel %vm1818, %v1777, 0
          %vm1822 = vcmask 1044480
          %v1824 = vsel %vm1822, %v1810, 0
          %v1827 = vsel %vm1822, %v1811, 0
          %v1830 = vsel %vm1822, %v1812, 0
          %v1833 = vsel %vm1822, %v1813, 0
          %v1836 = vsel %vm1822, %v1814, 0
          %v1839 = vsel %vm1822, %v1815, 0
          %v1842 = vsel %vm1822, %v1816, 0
          %v1845 = vsel %vm1822, %v1817, 0
          %1847 = vmatprep.subr.bf16.mxu0 %v1827
          %1848 = vmatpush1.bf16.msra.mxu0 %v1824
          %1849 = vmatprep.subr.bf16.mxu0 0
          %1850 = vmatpush1.bf16.msra.mxu0 0
          %1851 = vmatprep.subr.bf16.mxu0 0
          %1852 = vmatpush1.bf16.msra.mxu0 0
          %1853 = vmatprep.subr.bf16.mxu0 0
          %1854 = vmatpush1.bf16.msra.mxu0 0
          %1855 = vmatprep.subr.bf16.mxu0 0
          %1856 = vmatpush1.bf16.msra.mxu0 0
          %1857 = vmatprep.subr.bf16.mxu0 0
          %1858 = vmatpush1.bf16.msra.mxu0 0
          %1859 = vmatprep.subr.bf16.mxu0 0
          %1860 = vmatpush1.bf16.msra.mxu0 0
          %1861 = vmatprep.subr.bf16.mxu0 0
          %1862 = vmatpush1.bf16.msra.mxu0 0
          %1863 = vmatprep.subr.bf16.mxu0 0
          %1864 = vmatpush1.bf16.msra.mxu0 0
          %1865 = vmatprep.subr.bf16.mxu0 0
          %1866 = vmatpush1.bf16.msra.mxu0 0
          %1867 = vmatprep.subr.bf16.mxu0 0
          %1868 = vmatpush1.bf16.msra.mxu0 0
          %1869 = vmatprep.subr.bf16.mxu0 0
          %1870 = vmatpush1.bf16.msra.mxu0 0
          %1871 = vmatprep.subr.bf16.mxu0 0
          %1872 = vmatpush1.bf16.msra.mxu0 0
          %1873 = vmatprep.subr.bf16.mxu0 0
          %1874 = vmatpush1.bf16.msra.mxu0 0
          %1875 = vmatprep.subr.bf16.mxu0 0
          %1876 = vmatpush1.bf16.msra.mxu0 0
          %1877 = vmatprep.subr.bf16.mxu0 0
          %1878 = vmatpush1.bf16.msra.mxu0 0
          %1879 = vmatprep.mubr.bf16.mxu0 0
          %1880 = vmatmul.mubr.bf16.gmra.mrb[0].mxu0 %v1820
          %v1881 = vpop.f32.mrb[0].mxu0
          %v1882 = vadd.f32 0.0, %v1881
          %v1883 = vpop.f32.mrb[0].mxu0
          %v1884 = vadd.f32 0.0, %v1883
          %v1885 = vpop.f32.mrb[0].mxu0
          %v1886 = vpop.f32.mrb[0].mxu0
          %1887 = vdwg.mxu0
          %1888 = vmatprep.subr.bf16.mxu0 %v1833
          %1889 = vmatpush1.bf16.msra.mxu0 %v1830
          %1890 = vmatprep.subr.bf16.mxu0 0
          %1891 = vmatpush1.bf16.msra.mxu0 0
          %1892 = vmatprep.subr.bf16.mxu0 0
          %1893 = vmatpush1.bf16.msra.mxu0 0
          %1894 = vmatprep.subr.bf16.mxu0 0
          %1895 = vmatpush1.bf16.msra.mxu0 0
          %1896 = vmatprep.subr.bf16.mxu0 0
          %1897 = vmatpush1.bf16.msra.mxu0 0
          %1898 = vmatprep.subr.bf16.mxu0 0
          %1899 = vmatpush1.bf16.msra.mxu0 0
          %1900 = vmatprep.subr.bf16.mxu0 0
          %1901 = vmatpush1.bf16.msra.mxu0 0
          %1902 = vmatprep.subr.bf16.mxu0 0
          %1903 = vmatpush1.bf16.msra.mxu0 0
          %1904 = vmatprep.subr.bf16.mxu0 0
          %1905 = vmatpush1.bf16.msra.mxu0 0
          %1906 = vmatprep.subr.bf16.mxu0 0
          %1907 = vmatpush1.bf16.msra.mxu0 0
          %1908 = vmatprep.subr.bf16.mxu0 0
          %1909 = vmatpush1.bf16.msra.mxu0 0
          %1910 = vmatprep.subr.bf16.mxu0 0
          %1911 = vmatpush1.bf16.msra.mxu0 0
          %1912 = vmatprep.subr.bf16.mxu0 0
          %1913 = vmatpush1.bf16.msra.mxu0 0
          %1914 = vmatprep.subr.bf16.mxu0 0
          %1915 = vmatpush1.bf16.msra.mxu0 0
          %1916 = vmatprep.subr.bf16.mxu0 0
          %1917 = vmatpush1.bf16.msra.mxu0 0
          %1918 = vmatprep.subr.bf16.mxu0 0
          %1919 = vmatpush1.bf16.msra.mxu0 0
          %1920 = vmatprep.mubr.bf16.mxu0 0
          %1921 = vmatmul.mubr.bf16.gmra.mrb[0].mxu0 %v1820
          %v1922 = vpop.f32.mrb[0].mxu0
          %v1923 = vadd.f32 0.0, %v1922
          %v1924 = vpop.f32.mrb[0].mxu0
          %v1925 = vadd.f32 0.0, %v1924
          %v1926 = vpop.f32.mrb[0].mxu0
          %v1927 = vpop.f32.mrb[0].mxu0
          %1928 = vdwg.mxu0
          %1929 = vmatprep.subr.bf16.mxu0 %v1839
          %1930 = vmatpush1.bf16.msra.mxu0 %v1836
          %1931 = vmatprep.subr.bf16.mxu0 0
          %1932 = vmatpush1.bf16.msra.mxu0 0
          %1933 = vmatprep.subr.bf16.mxu0 0
          %1934 = vmatpush1.bf16.msra.mxu0 0
          %1935 = vmatprep.subr.bf16.mxu0 0
          %1936 = vmatpush1.bf16.msra.mxu0 0
          %1937 = vmatprep.subr.bf16.mxu0 0
          %1938 = vmatpush1.bf16.msra.mxu0 0
          %1939 = vmatprep.subr.bf16.mxu0 0
          %1940 = vmatpush1.bf16.msra.mxu0 0
          %1941 = vmatprep.subr.bf16.mxu0 0
          %1942 = vmatpush1.bf16.msra.mxu0 0
          %1943 = vmatprep.subr.bf16.mxu0 0
          %1944 = vmatpush1.bf16.msra.mxu0 0
          %1945 = vmatprep.subr.bf16.mxu0 0
          %1946 = vmatpush1.bf16.msra.mxu0 0
          %1947 = vmatprep.subr.bf16.mxu0 0
          %1948 = vmatpush1.bf16.msra.mxu0 0
          %1949 = vmatprep.subr.bf16.mxu0 0
          %1950 = vmatpush1.bf16.msra.mxu0 0
          %1951 = vmatprep.subr.bf16.mxu0 0
          %1952 = vmatpush1.bf16.msra.mxu0 0
          %1953 = vmatprep.subr.bf16.mxu0 0
          %1954 = vmatpush1.bf16.msra.mxu0 0
          %1955 = vmatprep.subr.bf16.mxu0 0
          %1956 = vmatpush1.bf16.msra.mxu0 0
          %1957 = vmatprep.subr.bf16.mxu0 0
          %1958 = vmatpush1.bf16.msra.mxu0 0
          %1959 = vmatprep.subr.bf16.mxu0 0
          %1960 = vmatpush1.bf16.msra.mxu0 0
          %1961 = vmatprep.mubr.bf16.mxu0 0
          %1962 = vmatmul.mubr.bf16.gmra.mrb[0].mxu0 %v1820
          %v1963 = vpop.f32.mrb[0].mxu0
          %v1964 = vadd.f32 0.0, %v1963
          %v1965 = vpop.f32.mrb[0].mxu0
          %v1966 = vadd.f32 0.0, %v1965
          %v1967 = vpop.f32.mrb[0].mxu0
          %v1968 = vpop.f32.mrb[0].mxu0
          %1969 = vdwg.mxu0
          %1970 = vmatprep.subr.bf16.mxu0 %v1845
          %1971 = vmatpush1.bf16.msra.mxu0 %v1842
          %1972 = vmatprep.subr.bf16.mxu0 0
          %1973 = vmatpush1.bf16.msra.mxu0 0
          %1974 = vmatprep.subr.bf16.mxu0 0
          %1975 = vmatpush1.bf16.msra.mxu0 0
          %1976 = vmatprep.subr.bf16.mxu0 0
          %1977 = vmatpush1.bf16.msra.mxu0 0
          %1978 = vmatprep.subr.bf16.mxu0 0
          %1979 = vmatpush1.bf16.msra.mxu0 0
          %1980 = vmatprep.subr.bf16.mxu0 0
          %1981 = vmatpush1.bf16.msra.mxu0 0
          %1982 = vmatprep.subr.bf16.mxu0 0
          %1983 = vmatpush1.bf16.msra.mxu0 0
          %1984 = vmatprep.subr.bf16.mxu0 0
          %1985 = vmatpush1.bf16.msra.mxu0 0
          %1986 = vmatprep.subr.bf16.mxu0 0
          %1987 = vmatpush1.bf16.msra.mxu0 0
          %1988 = vmatprep.subr.bf16.mxu0 0
          %1989 = vmatpush1.bf16.msra.mxu0 0
          %1990 = vmatprep.subr.bf16.mxu0 0
          %1991 = vmatpush1.bf16.msra.mxu0 0
          %1992 = vmatprep.subr.bf16.mxu0 0
          %1993 = vmatpush1.bf16.msra.mxu0 0
          %1994 = vmatprep.subr.bf16.mxu0 0
          %1995 = vmatpush1.bf16.msra.mxu0 0
          %1996 = vmatprep.subr.bf16.mxu0 0
          %1997 = vmatpush1.bf16.msra.mxu0 0
          %1998 = vmatprep.subr.bf16.mxu0 0
          %1999 = vmatpush1.bf16.msra.mxu0 0
          %2000 = vmatprep.subr.bf16.mxu0 0
          %2001 = vmatpush1.bf16.msra.mxu0 0
          %2002 = vmatprep.mubr.bf16.mxu0 0
          %2003 = vmatmul.mubr.bf16.gmra.mrb[0].mxu0 %v1820
          %v2004 = vpop.f32.mrb[0].mxu0
          %v2005 = vadd.f32 0.0, %v2004
          %v2006 = vpop.f32.mrb[0].mxu0
          %v2007 = vadd.f32 0.0, %v2006
          %v2008 = vpop.f32.mrb[0].mxu0
          %v2009 = vpop.f32.mrb[0].mxu0
          %2010 = vdwg.mxu0
          %v2019 = vunpack.c.l.b16 %v1769
          %v2020 = vunpack.c.h.b16 %v1769
          %v2021 = vunpack.c.l.b16 %v1770
          %v2022 = vunpack.c.h.b16 %v1770
          %v2023 = vunpack.c.l.b16 %v1771
          %v2024 = vunpack.c.h.b16 %v1771
          %v2025 = vunpack.c.l.b16 %v1772
          %v2026 = vunpack.c.h.b16 %v1772
          %v2027 = vunpack.c.l.b16 %v1773
          %v2028 = vunpack.c.h.b16 %v1773
          %v2029 = vunpack.c.l.b16 %v1774
          %v2030 = vunpack.c.h.b16 %v1774
          %v2031 = vunpack.c.l.b16 %v1775
          %v2032 = vunpack.c.h.b16 %v1775
          %v2033 = vunpack.c.l.b16 %v1776
          %v2034 = vunpack.c.h.b16 %v1776
          %v2035 = vpack.c.b16 %v2027, %v2019
          %v2036 = vpack.c.b16 %v2028, %v2020
          %v2037 = vpack.c.b16 %v2029, %v2021
          %v2038 = vpack.c.b16 %v2030, %v2022
          %v2039 = vpack.c.b16 %v2031, %v2023
          %v2040 = vpack.c.b16 %v2032, %v2024
          %v2041 = vpack.c.b16 %v2033, %v2025
          %v2042 = vpack.c.b16 %v2034, %v2026
          %v2044 = vsel %vm1818, %v1768, 0
          %v2047 = vsel %vm1822, %v2035, 0
          %v2050 = vsel %vm1822, %v2036, 0
          %v2053 = vsel %vm1822, %v2037, 0
          %v2056 = vsel %vm1822, %v2038, 0
          %v2059 = vsel %vm1822, %v2039, 0
          %v2062 = vsel %vm1822, %v2040, 0
          %v2065 = vsel %vm1822, %v2041, 0
          %v2068 = vsel %vm1822, %v2042, 0
          %2070 = vmatprep.subr.bf16.mxu0 %v2050
          %2071 = vmatpush1.bf16.msra.mxu0 %v2047
          %2072 = vmatprep.subr.bf16.mxu0 0
          %2073 = vmatpush1.bf16.msra.mxu0 0
          %2074 = vmatprep.subr.bf16.mxu0 0
          %2075 = vmatpush1.bf16.msra.mxu0 0
          %2076 = vmatprep.subr.bf16.mxu0 0
          %2077 = vmatpush1.bf16.msra.mxu0 0
          %2078 = vmatprep.subr.bf16.mxu0 0
          %2079 = vmatpush1.bf16.msra.mxu0 0
          %2080 = vmatprep.subr.bf16.mxu0 0
          %2081 = vmatpush1.bf16.msra.mxu0 0
          %2082 = vmatprep.subr.bf16.mxu0 0
          %2083 = vmatpush1.bf16.msra.mxu0 0
          %2084 = vmatprep.subr.bf16.mxu0 0
          %2085 = vmatpush1.bf16.msra.mxu0 0
          %2086 = vmatprep.subr.bf16.mxu0 0
          %2087 = vmatpush1.bf16.msra.mxu0 0
          %2088 = vmatprep.subr.bf16.mxu0 0
          %2089 = vmatpush1.bf16.msra.mxu0 0
          %2090 = vmatprep.subr.bf16.mxu0 0
          %2091 = vmatpush1.bf16.msra.mxu0 0
          %2092 = vmatprep.subr.bf16.mxu0 0
          %2093 = vmatpush1.bf16.msra.mxu0 0
          %2094 = vmatprep.subr.bf16.mxu0 0
          %2095 = vmatpush1.bf16.msra.mxu0 0
          %2096 = vmatprep.subr.bf16.mxu0 0
          %2097 = vmatpush1.bf16.msra.mxu0 0
          %2098 = vmatprep.subr.bf16.mxu0 0
          %2099 = vmatpush1.bf16.msra.mxu0 0
          %2100 = vmatprep.subr.bf16.mxu0 0
          %2101 = vmatpush1.bf16.msra.mxu0 0
          %2102 = vmatprep.mubr.bf16.mxu0 0
          %2103 = vmatmul.mubr.bf16.gmra.mrb[0].mxu0 %v2044
          %v2104 = vpop.f32.mrb[0].mxu0
          %v2105 = vadd.f32 %v1882, %v2104
          %v2106 = vpop.f32.mrb[0].mxu0
          %v2107 = vadd.f32 %v1884, %v2106
          %v2108 = vpop.f32.mrb[0].mxu0
          %v2109 = vpop.f32.mrb[0].mxu0
          %2110 = vdwg.mxu0
          %2111 = vmatprep.subr.bf16.mxu0 %v2056
          %2112 = vmatpush1.bf16.msra.mxu0 %v2053
          %2113 = vmatprep.subr.bf16.mxu0 0
          %2114 = vmatpush1.bf16.msra.mxu0 0
          %2115 = vmatprep.subr.bf16.mxu0 0
          %2116 = vmatpush1.bf16.msra.mxu0 0
          %2117 = vmatprep.subr.bf16.mxu0 0
          %2118 = vmatpush1.bf16.msra.mxu0 0
          %2119 = vmatprep.subr.bf16.mxu0 0
          %2120 = vmatpush1.bf16.msra.mxu0 0
          %2121 = vmatprep.subr.bf16.mxu0 0
          %2122 = vmatpush1.bf16.msra.mxu0 0
          %2123 = vmatprep.subr.bf16.mxu0 0
          %2124 = vmatpush1.bf16.msra.mxu0 0
          %2125 = vmatprep.subr.bf16.mxu0 0
          %2126 = vmatpush1.bf16.msra.mxu0 0
          %2127 = vmatprep.subr.bf16.mxu0 0
          %2128 = vmatpush1.bf16.msra.mxu0 0
          %2129 = vmatprep.subr.bf16.mxu0 0
          %2130 = vmatpush1.bf16.msra.mxu0 0
          %2131 = vmatprep.subr.bf16.mxu0 0
          %2132 = vmatpush1.bf16.msra.mxu0 0
          %2133 = vmatprep.subr.bf16.mxu0 0
          %2134 = vmatpush1.bf16.msra.mxu0 0
          %2135 = vmatprep.subr.bf16.mxu0 0
          %2136 = vmatpush1.bf16.msra.mxu0 0
          %2137 = vmatprep.subr.bf16.mxu0 0
          %2138 = vmatpush1.bf16.msra.mxu0 0
          %2139 = vmatprep.subr.bf16.mxu0 0
          %2140 = vmatpush1.bf16.msra.mxu0 0
          %2141 = vmatprep.subr.bf16.mxu0 0
          %2142 = vmatpush1.bf16.msra.mxu0 0
          %2143 = vmatprep.mubr.bf16.mxu0 0
          %2144 = vmatmul.mubr.bf16.gmra.mrb[0].mxu0 %v2044
          %v2145 = vpop.f32.mrb[0].mxu0
          %v2146 = vadd.f32 %v1923, %v2145
          %v2147 = vpop.f32.mrb[0].mxu0
          %v2148 = vadd.f32 %v1925, %v2147
          %v2149 = vpop.f32.mrb[0].mxu0
          %v2150 = vpop.f32.mrb[0].mxu0
          %2151 = vdwg.mxu0
          %2152 = vmatprep.subr.bf16.mxu0 %v2062
          %2153 = vmatpush1.bf16.msra.mxu0 %v2059
          %2154 = vmatprep.subr.bf16.mxu0 0
          %2155 = vmatpush1.bf16.msra.mxu0 0
          %2156 = vmatprep.subr.bf16.mxu0 0
          %2157 = vmatpush1.bf16.msra.mxu0 0
          %2158 = vmatprep.subr.bf16.mxu0 0
          %2159 = vmatpush1.bf16.msra.mxu0 0
          %2160 = vmatprep.subr.bf16.mxu0 0
          %2161 = vmatpush1.bf16.msra.mxu0 0
          %2162 = vmatprep.subr.bf16.mxu0 0
          %2163 = vmatpush1.bf16.msra.mxu0 0
          %2164 = vmatprep.subr.bf16.mxu0 0
          %2165 = vmatpush1.bf16.msra.mxu0 0
          %2166 = vmatprep.subr.bf16.mxu0 0
          %2167 = vmatpush1.bf16.msra.mxu0 0
          %2168 = vmatprep.subr.bf16.mxu0 0
          %2169 = vmatpush1.bf16.msra.mxu0 0
          %2170 = vmatprep.subr.bf16.mxu0 0
          %2171 = vmatpush1.bf16.msra.mxu0 0
          %2172 = vmatprep.subr.bf16.mxu0 0
          %2173 = vmatpush1.bf16.msra.mxu0 0
          %2174 = vmatprep.subr.bf16.mxu0 0
          %2175 = vmatpush1.bf16.msra.mxu0 0
          %2176 = vmatprep.subr.bf16.mxu0 0
          %2177 = vmatpush1.bf16.msra.mxu0 0
          %2178 = vmatprep.subr.bf16.mxu0 0
          %2179 = vmatpush1.bf16.msra.mxu0 0
          %2180 = vmatprep.subr.bf16.mxu0 0
          %2181 = vmatpush1.bf16.msra.mxu0 0
          %2182 = vmatprep.subr.bf16.mxu0 0
          %2183 = vmatpush1.bf16.msra.mxu0 0
          %2184 = vmatprep.mubr.bf16.mxu0 0
          %2185 = vmatmul.mubr.bf16.gmra.mrb[0].mxu0 %v2044
          %v2186 = vpop.f32.mrb[0].mxu0
          %v2187 = vadd.f32 %v1964, %v2186
          %v2188 = vpop.f32.mrb[0].mxu0
          %v2189 = vadd.f32 %v1966, %v2188
          %v2190 = vpop.f32.mrb[0].mxu0
          %v2191 = vpop.f32.mrb[0].mxu0
          %2192 = vdwg.mxu0
          %2193 = vmatprep.subr.bf16.mxu0 %v2068
          %2194 = vmatpush1.bf16.msra.mxu0 %v2065
          %2195 = vmatprep.subr.bf16.mxu0 0
          %2196 = vmatpush1.bf16.msra.mxu0 0
          %2197 = vmatprep.subr.bf16.mxu0 0
          %2198 = vmatpush1.bf16.msra.mxu0 0
          %2199 = vmatprep.subr.bf16.mxu0 0
          %2200 = vmatpush1.bf16.msra.mxu0 0
          %2201 = vmatprep.subr.bf16.mxu0 0
          %2202 = vmatpush1.bf16.msra.mxu0 0
          %2203 = vmatprep.subr.bf16.mxu0 0
          %2204 = vmatpush1.bf16.msra.mxu0 0
          %2205 = vmatprep.subr.bf16.mxu0 0
          %2206 = vmatpush1.bf16.msra.mxu0 0
          %2207 = vmatprep.subr.bf16.mxu0 0
          %2208 = vmatpush1.bf16.msra.mxu0 0
          %2209 = vmatprep.subr.bf16.mxu0 0
          %2210 = vmatpush1.bf16.msra.mxu0 0
          %2211 = vmatprep.subr.bf16.mxu0 0
          %2212 = vmatpush1.bf16.msra.mxu0 0
          %2213 = vmatprep.subr.bf16.mxu0 0
          %2214 = vmatpush1.bf16.msra.mxu0 0
          %2215 = vmatprep.subr.bf16.mxu0 0
          %2216 = vmatpush1.bf16.msra.mxu0 0
          %2217 = vmatprep.subr.bf16.mxu0 0
          %2218 = vmatpush1.bf16.msra.mxu0 0
          %2219 = vmatprep.subr.bf16.mxu0 0
          %2220 = vmatpush1.bf16.msra.mxu0 0
          %2221 = vmatprep.subr.bf16.mxu0 0
          %2222 = vmatpush1.bf16.msra.mxu0 0
          %2223 = vmatprep.subr.bf16.mxu0 0
          %2224 = vmatpush1.bf16.msra.mxu0 0
          %2225 = vmatprep.mubr.bf16.mxu0 0
          %2226 = vmatmul.mubr.bf16.gmra.mrb[0].mxu0 %v2044
          %v2227 = vpop.f32.mrb[0].mxu0
          %v2228 = vadd.f32 %v2005, %v2227
          %v2229 = vpop.f32.mrb[0].mxu0
          %v2230 = vadd.f32 %v2007, %v2229
          %v2231 = vpop.f32.mrb[0].mxu0
          %v2232 = vpop.f32.mrb[0].mxu0
          %2233 = vdwg.mxu0
          %v2234 = vpack.c.bf16 %v1765, %v1765
          %v2235 = vld [vmem:[%s63] sm:$0xff]
          %v2236 = vld [vmem:[%s63 + $0x8] sm:$0xff]
          %v2237 = vld [vmem:[%s63 + $0x10] sm:$0xff]
          %v2238 = vld [vmem:[%s63 + $0x18] sm:$0xff]
          %v2239 = vld [vmem:[%s63 + $0x20] sm:$0x11]
          %v2240 = vld [vmem:[%s63 + $0x28] sm:$0x11]
          %v2241 = vld [vmem:[%s63 + $0x30] sm:$0x11]
          %v2242 = vld [vmem:[%s63 + $0x38] sm:$0x11]
          %v2251 = vunpack.c.l.b16 %v2235
          %v2252 = vunpack.c.h.b16 %v2235
          %v2253 = vunpack.c.l.b16 %v2236
          %v2254 = vunpack.c.h.b16 %v2236
          %v2255 = vunpack.c.l.b16 %v2237
          %v2256 = vunpack.c.h.b16 %v2237
          %v2257 = vunpack.c.l.b16 %v2238
          %v2258 = vunpack.c.h.b16 %v2238
          %v2259 = vunpack.c.l.b16 %v2239
          %v2260 = vunpack.c.h.b16 %v2239
          %v2261 = vunpack.c.l.b16 %v2240
          %v2262 = vunpack.c.h.b16 %v2240
          %v2263 = vunpack.c.l.b16 %v2241
          %v2264 = vunpack.c.h.b16 %v2241
          %v2265 = vunpack.c.l.b16 %v2242
          %v2266 = vunpack.c.h.b16 %v2242
          %v2267 = vpack.c.b16 %v2259, %v2251
          %v2268 = vpack.c.b16 %v2260, %v2252
          %v2269 = vpack.c.b16 %v2261, %v2253
          %v2270 = vpack.c.b16 %v2262, %v2254
          %v2271 = vpack.c.b16 %v2263, %v2255
          %v2272 = vpack.c.b16 %v2264, %v2256
          %v2273 = vpack.c.b16 %v2265, %v2257
          %v2274 = vpack.c.b16 %v2266, %v2258
          %v2276 = vsel %vm1818, %v2234, 0
          %v2279 = vsel %vm1822, %v2267, 0
          %v2282 = vsel %vm1822, %v2268, 0
          %v2285 = vsel %vm1822, %v2269, 0
          %v2288 = vsel %vm1822, %v2270, 0
          %v2291 = vsel %vm1822, %v2271, 0
          %v2294 = vsel %vm1822, %v2272, 0
          %v2297 = vsel %vm1822, %v2273, 0
          %v2300 = vsel %vm1822, %v2274, 0
          %2302 = vmatprep.subr.bf16.mxu0 %v2282
          %2303 = vmatpush1.bf16.msra.mxu0 %v2279
          %2304 = vmatprep.subr.bf16.mxu0 0
          %2305 = vmatpush1.bf16.msra.mxu0 0
          %2306 = vmatprep.subr.bf16.mxu0 0
          %2307 = vmatpush1.bf16.msra.mxu0 0
          %2308 = vmatprep.subr.bf16.mxu0 0
          %2309 = vmatpush1.bf16.msra.mxu0 0
          %2310 = vmatprep.subr.bf16.mxu0 0
          %2311 = vmatpush1.bf16.msra.mxu0 0
          %2312 = vmatprep.subr.bf16.mxu0 0
          %2313 = vmatpush1.bf16.msra.mxu0 0
          %2314 = vmatprep.subr.bf16.mxu0 0
          %2315 = vmatpush1.bf16.msra.mxu0 0
          %2316 = vmatprep.subr.bf16.mxu0 0
          %2317 = vmatpush1.bf16.msra.mxu0 0
          %2318 = vmatprep.subr.bf16.mxu0 0
          %2319 = vmatpush1.bf16.msra.mxu0 0
          %2320 = vmatprep.subr.bf16.mxu0 0
          %2321 = vmatpush1.bf16.msra.mxu0 0
          %2322 = vmatprep.subr.bf16.mxu0 0
          %2323 = vmatpush1.bf16.msra.mxu0 0
          %2324 = vmatprep.subr.bf16.mxu0 0
          %2325 = vmatpush1.bf16.msra.mxu0 0
          %2326 = vmatprep.subr.bf16.mxu0 0
          %2327 = vmatpush1.bf16.msra.mxu0 0
          %2328 = vmatprep.subr.bf16.mxu0 0
          %2329 = vmatpush1.bf16.msra.mxu0 0
          %2330 = vmatprep.subr.bf16.mxu0 0
          %2331 = vmatpush1.bf16.msra.mxu0 0
          %2332 = vmatprep.subr.bf16.mxu0 0
          %2333 = vmatpush1.bf16.msra.mxu0 0
          %2334 = vmatprep.mubr.bf16.mxu0 0
          %2335 = vmatmul.mubr.bf16.gmra.mrb[0].mxu0 %v2276
          %v2336 = vpop.f32.mrb[0].mxu0
          %v2337 = vadd.f32 0.0, %v2336
          %v2338 = vpop.f32.mrb[0].mxu0
          %v2339 = vadd.f32 0.0, %v2338
          %v2340 = vpop.f32.mrb[0].mxu0
          %v2341 = vpop.f32.mrb[0].mxu0
          %2342 = vdwg.mxu0
          %2343 = vmatprep.subr.bf16.mxu0 %v2288
          %2344 = vmatpush1.bf16.msra.mxu0 %v2285
          %2345 = vmatprep.subr.bf16.mxu0 0
          %2346 = vmatpush1.bf16.msra.mxu0 0
          %2347 = vmatprep.subr.bf16.mxu0 0
          %2348 = vmatpush1.bf16.msra.mxu0 0
          %2349 = vmatprep.subr.bf16.mxu0 0
          %2350 = vmatpush1.bf16.msra.mxu0 0
          %2351 = vmatprep.subr.bf16.mxu0 0
          %2352 = vmatpush1.bf16.msra.mxu0 0
          %2353 = vmatprep.subr.bf16.mxu0 0
          %2354 = vmatpush1.bf16.msra.mxu0 0
          %2355 = vmatprep.subr.bf16.mxu0 0
          %2356 = vmatpush1.bf16.msra.mxu0 0
          %2357 = vmatprep.subr.bf16.mxu0 0
          %2358 = vmatpush1.bf16.msra.mxu0 0
          %2359 = vmatprep.subr.bf16.mxu0 0
          %2360 = vmatpush1.bf16.msra.mxu0 0
          %2361 = vmatprep.subr.bf16.mxu0 0
          %2362 = vmatpush1.bf16.msra.mxu0 0
          %2363 = vmatprep.subr.bf16.mxu0 0
          %2364 = vmatpush1.bf16.msra.mxu0 0
          %2365 = vmatprep.subr.bf16.mxu0 0
          %2366 = vmatpush1.bf16.msra.mxu0 0
          %2367 = vmatprep.subr.bf16.mxu0 0
          %2368 = vmatpush1.bf16.msra.mxu0 0
          %2369 = vmatprep.subr.bf16.mxu0 0
          %2370 = vmatpush1.bf16.msra.mxu0 0
          %2371 = vmatprep.subr.bf16.mxu0 0
          %2372 = vmatpush1.bf16.msra.mxu0 0
          %2373 = vmatprep.subr.bf16.mxu0 0
          %2374 = vmatpush1.bf16.msra.mxu0 0
          %2375 = vmatprep.mubr.bf16.mxu0 0
          %2376 = vmatmul.mubr.bf16.gmra.mrb[0].mxu0 %v2276
          %v2377 = vpop.f32.mrb[0].mxu0
          %v2378 = vadd.f32 0.0, %v2377
          %v2379 = vpop.f32.mrb[0].mxu0
          %v2380 = vadd.f32 0.0, %v2379
          %v2381 = vpop.f32.mrb[0].mxu0
          %v2382 = vpop.f32.mrb[0].mxu0
          %2383 = vdwg.mxu0
          %2384 = vmatprep.subr.bf16.mxu0 %v2294
          %2385 = vmatpush1.bf16.msra.mxu0 %v2291
          %2386 = vmatprep.subr.bf16.mxu0 0
          %2387 = vmatpush1.bf16.msra.mxu0 0
          %2388 = vmatprep.subr.bf16.mxu0 0
          %2389 = vmatpush1.bf16.msra.mxu0 0
          %2390 = vmatprep.subr.bf16.mxu0 0
          %2391 = vmatpush1.bf16.msra.mxu0 0
          %2392 = vmatprep.subr.bf16.mxu0 0
          %2393 = vmatpush1.bf16.msra.mxu0 0
          %2394 = vmatprep.subr.bf16.mxu0 0
          %2395 = vmatpush1.bf16.msra.mxu0 0
          %2396 = vmatprep.subr.bf16.mxu0 0
          %2397 = vmatpush1.bf16.msra.mxu0 0
          %2398 = vmatprep.subr.bf16.mxu0 0
          %2399 = vmatpush1.bf16.msra.mxu0 0
          %2400 = vmatprep.subr.bf16.mxu0 0
          %2401 = vmatpush1.bf16.msra.mxu0 0
          %2402 = vmatprep.subr.bf16.mxu0 0
          %2403 = vmatpush1.bf16.msra.mxu0 0
          %2404 = vmatprep.subr.bf16.mxu0 0
          %2405 = vmatpush1.bf16.msra.mxu0 0
          %2406 = vmatprep.subr.bf16.mxu0 0
          %2407 = vmatpush1.bf16.msra.mxu0 0
          %2408 = vmatprep.subr.bf16.mxu0 0
          %2409 = vmatpush1.bf16.msra.mxu0 0
          %2410 = vmatprep.subr.bf16.mxu0 0
          %2411 = vmatpush1.bf16.msra.mxu0 0
          %2412 = vmatprep.subr.bf16.mxu0 0
          %2413 = vmatpush1.bf16.msra.mxu0 0
          %2414 = vmatprep.subr.bf16.mxu0 0
          %2415 = vmatpush1.bf16.msra.mxu0 0
          %2416 = vmatprep.mubr.bf16.mxu0 0
          %2417 = vmatmul.mubr.bf16.gmra.mrb[0].mxu0 %v2276
          %v2418 = vpop.f32.mrb[0].mxu0
          %v2419 = vadd.f32 0.0, %v2418
          %v2420 = vpop.f32.mrb[0].mxu0
          %v2421 = vadd.f32 0.0, %v2420
          %v2422 = vpop.f32.mrb[0].mxu0
          %v2423 = vpop.f32.mrb[0].mxu0
          %2424 = vdwg.mxu0
          %2425 = vmatprep.subr.bf16.mxu0 %v2300
          %2426 = vmatpush1.bf16.msra.mxu0 %v2297
          %2427 = vmatprep.subr.bf16.mxu0 0
          %2428 = vmatpush1.bf16.msra.mxu0 0
          %2429 = vmatprep.subr.bf16.mxu0 0
          %2430 = vmatpush1.bf16.msra.mxu0 0
          %2431 = vmatprep.subr.bf16.mxu0 0
          %2432 = vmatpush1.bf16.msra.mxu0 0
          %2433 = vmatprep.subr.bf16.mxu0 0
          %2434 = vmatpush1.bf16.msra.mxu0 0
          %2435 = vmatprep.subr.bf16.mxu0 0
          %2436 = vmatpush1.bf16.msra.mxu0 0
          %2437 = vmatprep.subr.bf16.mxu0 0
          %2438 = vmatpush1.bf16.msra.mxu0 0
          %2439 = vmatprep.subr.bf16.mxu0 0
          %2440 = vmatpush1.bf16.msra.mxu0 0
          %2441 = vmatprep.subr.bf16.mxu0 0
          %2442 = vmatpush1.bf16.msra.mxu0 0
          %2443 = vmatprep.subr.bf16.mxu0 0
          %2444 = vmatpush1.bf16.msra.mxu0 0
          %2445 = vmatprep.subr.bf16.mxu0 0
          %2446 = vmatpush1.bf16.msra.mxu0 0
          %2447 = vmatprep.subr.bf16.mxu0 0
          %2448 = vmatpush1.bf16.msra.mxu0 0
          %2449 = vmatprep.subr.bf16.mxu0 0
          %2450 = vmatpush1.bf16.msra.mxu0 0
          %2451 = vmatprep.subr.bf16.mxu0 0
          %2452 = vmatpush1.bf16.msra.mxu0 0
          %2453 = vmatprep.subr.bf16.mxu0 0
          %2454 = vmatpush1.bf16.msra.mxu0 0
          %2455 = vmatprep.subr.bf16.mxu0 0
          %2456 = vmatpush1.bf16.msra.mxu0 0
          %2457 = vmatprep.mubr.bf16.mxu0 0
          %2458 = vmatmul.mubr.bf16.gmra.mrb[0].mxu0 %v2276
          %v2459 = vpop.f32.mrb[0].mxu0
          %v2460 = vadd.f32 0.0, %v2459
          %v2461 = vpop.f32.mrb[0].mxu0
          %v2462 = vadd.f32 0.0, %v2461
          %v2463 = vpop.f32.mrb[0].mxu0
          %v2464 = vpop.f32.mrb[0].mxu0
          %2465 = vdwg.mxu0
          %v2466 = vadd.f32 %v2105, %v2337
          %v2467 = vadd.f32 %v2107, %v2339
          %v2468 = vadd.f32 %v2146, %v2378
          %v2469 = vadd.f32 %v2148, %v2380
          %v2470 = vadd.f32 %v2187, %v2419
          %v2471 = vadd.f32 %v2189, %v2421
          %v2472 = vadd.f32 %v2228, %v2460
          %v2473 = vadd.f32 %v2230, %v2462
          %v2482 = vcombine.low %v2466, %v2467
          %v2483 = vcombine.low %v2468, %v2469
          %v2485 = vunpack.c.l.s4 1983009808
          %v2486 = vunpack.c.0.s8 %v2485
          %v2487 = vlaneseq
          %v2488 = vshrl.u32 %v2487, 7
          %v2489 = vsub.s32 %v2486, %v2488
          %v2490 = vrot.slane %v2482, %v2489
          %v2492 = vunpack.c.l.s4 1983009808
          %v2493 = vunpack.c.0.s8 %v2492
          %v2494 = vlaneseq
          %v2495 = vshrl.u32 %v2494, 7
          %v2496 = vsub.s32 %v2493, %v2495
          %v2497 = vrot.slane %v2483, %v2496
          %v2498 = vcombine.low %v2490, %v2497
          %v2499 = vcombine.low %v2470, %v2471
          %v2500 = vcombine.low %v2472, %v2473
          %v2502 = vunpack.c.l.s4 1983009808
          %v2503 = vunpack.c.0.s8 %v2502
          %v2504 = vlaneseq
          %v2505 = vshrl.u32 %v2504, 7
          %v2506 = vsub.s32 %v2503, %v2505
          %v2507 = vrot.slane %v2499, %v2506
          %v2509 = vunpack.c.l.s4 1983009808
          %v2510 = vunpack.c.0.s8 %v2509
          %v2511 = vlaneseq
          %v2512 = vshrl.u32 %v2511, 7
          %v2513 = vsub.s32 %v2510, %v2512
          %v2514 = vrot.slane %v2500, %v2513
          %v2515 = vcombine.low %v2507, %v2514
          %2518 = vst [vmem:[#allocation4] sm:$0xff] %v2498
          %2519 = vst [vmem:[#allocation4 + $0x8] sm:$0xff] %v2515
          %v2520 = vld [vmem:[%s7] sm:$0xff]
          %v2521 = vld [vmem:[%s7 + $0x8] sm:$0xff]
          %v2522 = vld [vmem:[%s9] sm:$0xff]
          %v2523 = vld [vmem:[%s9 + $0x8] sm:$0xff]
          %v2524 = vld [vmem:[%s11] sm:$0xff]
          %v2525 = vld [vmem:[%s11 + $0x8] sm:$0xff]
          %v2526 = vld [vmem:[%s11 + $0x10] sm:$0xff]
          %v2527 = vld [vmem:[%s11 + $0x18] sm:$0xff]
          %v2528 = vld [vmem:[%s11 + $0x20] sm:$0xff]
          %v2529 = vld [vmem:[%s11 + $0x28] sm:$0xff]
          %v2530 = vld [vmem:[%s41] sm:$0x3f]
          %v2531 = vld [vmem:[%s41 + $0x8] sm:$0x3f]
          %v2532 = vld [vmem:[%s41 + $0x10] sm:$0x3f]
          %v2533 = vld [vmem:[%s41 + $0x18] sm:$0x3f]
          %v2534 = vld [vmem:[%s43] sm:$0xff]
          %v2535 = vld [vmem:[%s43 + $0x8] sm:$0xff]
          %v2536 = vld [vmem:[%s43 + $0x10] sm:$0xff]
          %v2537 = vld [vmem:[%s43 + $0x18] sm:$0xff]
          %v2538 = vld [vmem:[%s43 + $0x20] sm:$0xff]
          %v2539 = vld [vmem:[%s43 + $0x28] sm:$0xff]
          %v2540 = vld [vmem:[%s43 + $0x30] sm:$0xff]
          %v2541 = vld [vmem:[%s43 + $0x38] sm:$0xff]
          %v2542 = vld [vmem:[%s43 + $0x40] sm:$0xff]
          %v2543 = vld [vmem:[%s43 + $0x48] sm:$0xff]
          %v2544 = vld [vmem:[%s43 + $0x50] sm:$0xff]
          %v2545 = vld [vmem:[%s43 + $0x58] sm:$0xff]
          %v2546 = vld [vmem:[%s43 + $0x60] sm:$0xff]
          %v2547 = vld [vmem:[%s43 + $0x68] sm:$0xff]
          %v2548 = vld [vmem:[%s43 + $0x70] sm:$0xff]
          %v2549 = vld [vmem:[%s43 + $0x78] sm:$0xff]
          %v2550 = vld [vmem:[%s43 + $0x80] sm:$0xff]
          %v2551 = vld [vmem:[%s43 + $0x88] sm:$0xff]
          %v2552 = vld [vmem:[%s43 + $0x90] sm:$0xff]
          %v2553 = vld [vmem:[%s43 + $0x98] sm:$0xff]
          %v2554 = vld [vmem:[%s43 + $0xa0] sm:$0xff]
          %v2555 = vld [vmem:[%s43 + $0xa8] sm:$0xff]
          %v2556 = vld [vmem:[%s43 + $0xb0] sm:$0xff]
          %v2557 = vld [vmem:[%s43 + $0xb8] sm:$0xff]
          %v2558 = vld [vmem:[%s43 + $0xc0] sm:$0xff]
          %v2559 = vld [vmem:[%s43 + $0xc8] sm:$0xff]
          %v2560 = vld [vmem:[%s43 + $0xd0] sm:$0xff]
          %v2561 = vld [vmem:[%s43 + $0xd8] sm:$0xff]
          %v2562 = vld [vmem:[%s43 + $0xe0] sm:$0xff]
          %v2563 = vld [vmem:[%s43 + $0xe8] sm:$0xff]
          %v2564 = vld [vmem:[%s43 + $0xf0] sm:$0xff]
          %v2565 = vld [vmem:[%s43 + $0xf8] sm:$0xff]
          %v2566 = vld [vmem:[%s43 + $0x100] sm:$0xff]
          %v2567 = vld [vmem:[%s43 + $0x108] sm:$0xff]
          %v2568 = vld [vmem:[%s43 + $0x110] sm:$0xff]
          %v2569 = vld [vmem:[%s43 + $0x118] sm:$0xff]
          %v2570 = vld [vmem:[%s43 + $0x120] sm:$0xff]
          %v2571 = vld [vmem:[%s43 + $0x128] sm:$0xff]
          %v2572 = vld [vmem:[%s43 + $0x130] sm:$0xff]
          %v2573 = vld [vmem:[%s43 + $0x138] sm:$0xff]
          %v2574 = vld [vmem:[%s43 + $0x140] sm:$0xff]
          %v2575 = vld [vmem:[%s43 + $0x148] sm:$0xff]
          %v2576 = vld [vmem:[%s43 + $0x150] sm:$0xff]
          %v2577 = vld [vmem:[%s43 + $0x158] sm:$0xff]
          %v2578 = vld [vmem:[%s43 + $0x160] sm:$0xff]
          %v2579 = vld [vmem:[%s43 + $0x168] sm:$0xff]
          %v2580 = vld [vmem:[%s43 + $0x170] sm:$0xff]
          %v2581 = vld [vmem:[%s43 + $0x178] sm:$0xff]
          %v2582 = vld [vmem:[%s43 + $0x180] sm:$0xff]
          %v2583 = vld [vmem:[%s43 + $0x188] sm:$0xff]
          %v2584 = vld [vmem:[%s43 + $0x190] sm:$0xff]
          %v2585 = vld [vmem:[%s43 + $0x198] sm:$0xff]
          %v2586 = vld [vmem:[%s43 + $0x1a0] sm:$0xff]
          %v2587 = vld [vmem:[%s43 + $0x1a8] sm:$0xff]
          %v2588 = vld [vmem:[%s43 + $0x1b0] sm:$0xff]
          %v2589 = vld [vmem:[%s43 + $0x1b8] sm:$0xff]
          %v2590 = vld [vmem:[%s43 + $0x1c0] sm:$0xff]
          %v2591 = vld [vmem:[%s43 + $0x1c8] sm:$0xff]
          %v2592 = vld [vmem:[%s43 + $0x1d0] sm:$0xff]
          %v2593 = vld [vmem:[%s43 + $0x1d8] sm:$0xff]
          %v2594 = vld [vmem:[%s43 + $0x1e0] sm:$0xff]
          %v2595 = vld [vmem:[%s43 + $0x1e8] sm:$0xff]
          %v2596 = vld [vmem:[%s43 + $0x1f0] sm:$0xff]
          %v2597 = vld [vmem:[%s43 + $0x1f8] sm:$0xff]
          %2598 = vmatprep.subr.mxu0 %v2535
          %2599 = vmatpush1.msra.mxu0 %v2534
          %2600 = vmatprep.subr.mxu0 %v2539
          %2601 = vmatpush1.msra.mxu0 %v2538
          %2602 = vmatprep.subr.mxu0 %v2543
          %2603 = vmatpush1.msra.mxu0 %v2542
          %2604 = vmatprep.subr.mxu0 %v2547
          %2605 = vmatpush1.msra.mxu0 %v2546
          %2606 = vmatprep.subr.mxu0 %v2551
          %2607 = vmatpush1.msra.mxu0 %v2550
          %2608 = vmatprep.subr.mxu0 %v2555
          %2609 = vmatpush1.msra.mxu0 %v2554
          %2610 = vmatprep.subr.mxu0 %v2559
          %2611 = vmatpush1.msra.mxu0 %v2558
          %2612 = vmatprep.subr.mxu0 %v2563
          %2613 = vmatpush1.msra.mxu0 %v2562
          %2614 = vmatprep.subr.mxu0 %v2567
          %2615 = vmatpush1.msra.mxu0 %v2566
          %2616 = vmatprep.subr.mxu0 %v2571
          %2617 = vmatpush1.msra.mxu0 %v2570
          %2618 = vmatprep.subr.mxu0 %v2575
          %2619 = vmatpush1.msra.mxu0 %v2574
          %2620 = vmatprep.subr.mxu0 %v2579
          %2621 = vmatpush1.msra.mxu0 %v2578
          %2622 = vmatprep.subr.mxu0 %v2583
          %2623 = vmatpush1.msra.mxu0 %v2582
          %2624 = vmatprep.subr.mxu0 %v2587
          %2625 = vmatpush1.msra.mxu0 %v2586
          %2626 = vmatprep.subr.mxu0 %v2591
          %2627 = vmatpush1.msra.mxu0 %v2590
          %2628 = vmatprep.subr.mxu0 %v2595
          %2629 = vmatpush1.msra.mxu0 %v2594
          %2630 = vmatprep.subr.mxu0 0.0
          %2631 = vmatpush1.msra.mxu0 0.0
          %2632 = vmatprep.subr.mxu0 0.0
          %2633 = vmatpush1.msra.mxu0 0.0
          %2634 = vmatprep.subr.mxu0 0.0
          %2635 = vmatpush1.msra.mxu0 0.0
          %2636 = vmatprep.subr.mxu0 0.0
          %2637 = vmatpush1.msra.mxu0 0.0
          %2638 = vmatprep.subr.mxu0 0.0
          %2639 = vmatpush1.msra.mxu0 0.0
          %2640 = vmatprep.subr.mxu0 0.0
          %2641 = vmatpush1.msra.mxu0 0.0
          %2642 = vmatprep.subr.mxu0 0.0
          %2643 = vmatpush1.msra.mxu0 0.0
          %2644 = vmatprep.subr.mxu0 0.0
          %2645 = vmatpush1.msra.mxu0 0.0
          %2646 = vmatprep.subr.mxu0 0.0
          %2647 = vmatpush1.msra.mxu0 0.0
          %2648 = vmatprep.subr.mxu0 0.0
          %2649 = vmatpush1.msra.mxu0 0.0
          %2650 = vmatprep.subr.mxu0 0.0
          %2651 = vmatpush1.msra.mxu0 0.0
          %2652 = vmatprep.subr.mxu0 0.0
          %2653 = vmatpush1.msra.mxu0 0.0
          %2654 = vmatprep.subr.mxu0 0.0
          %2655 = vmatpush1.msra.mxu0 0.0
          %2656 = vmatprep.subr.mxu0 0.0
          %2657 = vmatpush1.msra.mxu0 0.0
          %2658 = vmatprep.subr.mxu0 0.0
          %2659 = vmatpush1.msra.mxu0 0.0
          %2660 = vmatprep.subr.mxu0 0.0
          %2661 = vmatpush1.msra.mxu0 0.0
          %2662 = vmatprep.mubr.f32.mxu0 0.0
          %2663 = vmatmul.mubr.f32.gmra.mrb[0].mxu0 0.0
          %v2664 = vpop.f32.mrb[0].mxu0
          %v2665 = vadd.f32 0.0, %v2664
          %v2666 = vpop.f32.mrb[0].mxu0
          %v2667 = vadd.f32 0.0, %v2666
          %2668 = vdwg.mxu0
          %2669 = vmatprep.subr.mxu0 %v2537
          %2670 = vmatpush1.msra.mxu0 %v2536
          %2671 = vmatprep.subr.mxu0 %v2541
          %2672 = vmatpush1.msra.mxu0 %v2540
          %2673 = vmatprep.subr.mxu0 %v2545
          %2674 = vmatpush1.msra.mxu0 %v2544
          %2675 = vmatprep.subr.mxu0 %v2549
          %2676 = vmatpush1.msra.mxu0 %v2548
          %2677 = vmatprep.subr.mxu0 %v2553
          %2678 = vmatpush1.msra.mxu0 %v2552
          %2679 = vmatprep.subr.mxu0 %v2557
          %2680 = vmatpush1.msra.mxu0 %v2556
          %2681 = vmatprep.subr.mxu0 %v2561
          %2682 = vmatpush1.msra.mxu0 %v2560
          %2683 = vmatprep.subr.mxu0 %v2565
          %2684 = vmatpush1.msra.mxu0 %v2564
          %2685 = vmatprep.subr.mxu0 %v2569
          %2686 = vmatpush1.msra.mxu0 %v2568
          %2687 = vmatprep.subr.mxu0 %v2573
          %2688 = vmatpush1.msra.mxu0 %v2572
          %2689 = vmatprep.subr.mxu0 %v2577
          %2690 = vmatpush1.msra.mxu0 %v2576
          %2691 = vmatprep.subr.mxu0 %v2581
          %2692 = vmatpush1.msra.mxu0 %v2580
          %2693 = vmatprep.subr.mxu0 %v2585
          %2694 = vmatpush1.msra.mxu0 %v2584
          %2695 = vmatprep.subr.mxu0 %v2589
          %2696 = vmatpush1.msra.mxu0 %v2588
          %2697 = vmatprep.subr.mxu0 %v2593
          %2698 = vmatpush1.msra.mxu0 %v2592
          %2699 = vmatprep.subr.mxu0 %v2597
          %2700 = vmatpush1.msra.mxu0 %v2596
          %2701 = vmatprep.subr.mxu0 0.0
          %2702 = vmatpush1.msra.mxu0 0.0
          %2703 = vmatprep.subr.mxu0 0.0
          %2704 = vmatpush1.msra.mxu0 0.0
          %2705 = vmatprep.subr.mxu0 0.0
          %2706 = vmatpush1.msra.mxu0 0.0
          %2707 = vmatprep.subr.mxu0 0.0
          %2708 = vmatpush1.msra.mxu0 0.0
          %2709 = vmatprep.subr.mxu0 0.0
          %2710 = vmatpush1.msra.mxu0 0.0
          %2711 = vmatprep.subr.mxu0 0.0
          %2712 = vmatpush1.msra.mxu0 0.0
          %2713 = vmatprep.subr.mxu0 0.0
          %2714 = vmatpush1.msra.mxu0 0.0
          %2715 = vmatprep.subr.mxu0 0.0
          %2716 = vmatpush1.msra.mxu0 0.0
          %2717 = vmatprep.subr.mxu0 0.0
          %2718 = vmatpush1.msra.mxu0 0.0
          %2719 = vmatprep.subr.mxu0 0.0
          %2720 = vmatpush1.msra.mxu0 0.0
          %2721 = vmatprep.subr.mxu0 0.0
          %2722 = vmatpush1.msra.mxu0 0.0
          %2723 = vmatprep.subr.mxu0 0.0
          %2724 = vmatpush1.msra.mxu0 0.0
          %2725 = vmatprep.subr.mxu0 0.0
          %2726 = vmatpush1.msra.mxu0 0.0
          %2727 = vmatprep.subr.mxu0 0.0
          %2728 = vmatpush1.msra.mxu0 0.0
          %2729 = vmatprep.subr.mxu0 0.0
          %2730 = vmatpush1.msra.mxu0 0.0
          %2731 = vmatprep.subr.mxu0 0.0
          %2732 = vmatpush1.msra.mxu0 0.0
          %2733 = vmatprep.mubr.f32.mxu0 0.0
          %2734 = vmatmul.mubr.f32.gmra.mrb[0].mxu0 0.0
          %v2735 = vpop.f32.mrb[0].mxu0
          %v2736 = vadd.f32 0.0, %v2735
          %v2737 = vpop.f32.mrb[0].mxu0
          %v2738 = vadd.f32 0.0, %v2737
          %2739 = vdwg.mxu0
          %vm2740 = vcmask 48128
          %v2742 = vsel %vm2740, %v2520, 0
          %vm2744 = vcmask 1045504
          %v2746 = vsel %vm2744, %v2530, 0
          %v2749 = vsel %vm2744, %v2531, 0
          %v2752 = vsel %vm2744, %v2532, 0
          %v2755 = vsel %vm2744, %v2533, 0
          %2757 = vmatprep.subr.mxu0 %v2749
          %2758 = vmatpush1.msra.mxu0 %v2746
          %2759 = vmatprep.subr.mxu0 0.0
          %2760 = vmatpush1.msra.mxu0 0.0
          %2761 = vmatprep.subr.mxu0 0.0
          %2762 = vmatpush1.msra.mxu0 0.0
          %2763 = vmatprep.subr.mxu0 0.0
          %2764 = vmatpush1.msra.mxu0 0.0
          %2765 = vmatprep.subr.mxu0 0.0
          %2766 = vmatpush1.msra.mxu0 0.0
          %2767 = vmatprep.subr.mxu0 0.0
          %2768 = vmatpush1.msra.mxu0 0.0
          %2769 = vmatprep.subr.mxu0 0.0
          %2770 = vmatpush1.msra.mxu0 0.0
          %2771 = vmatprep.subr.mxu0 0.0
          %2772 = vmatpush1.msra.mxu0 0.0
          %2773 = vmatprep.subr.mxu0 0.0
          %2774 = vmatpush1.msra.mxu0 0.0
          %2775 = vmatprep.subr.mxu0 0.0
          %2776 = vmatpush1.msra.mxu0 0.0
          %2777 = vmatprep.subr.mxu0 0.0
          %2778 = vmatpush1.msra.mxu0 0.0
          %2779 = vmatprep.subr.mxu0 0.0
          %2780 = vmatpush1.msra.mxu0 0.0
          %2781 = vmatprep.subr.mxu0 0.0
          %2782 = vmatpush1.msra.mxu0 0.0
          %2783 = vmatprep.subr.mxu0 0.0
          %2784 = vmatpush1.msra.mxu0 0.0
          %2785 = vmatprep.subr.mxu0 0.0
          %2786 = vmatpush1.msra.mxu0 0.0
          %2787 = vmatprep.subr.mxu0 0.0
          %2788 = vmatpush1.msra.mxu0 0.0
          %2789 = vmatprep.subr.mxu0 0.0
          %2790 = vmatpush1.msra.mxu0 0.0
          %2791 = vmatprep.subr.mxu0 0.0
          %2792 = vmatpush1.msra.mxu0 0.0
          %2793 = vmatprep.subr.mxu0 0.0
          %2794 = vmatpush1.msra.mxu0 0.0
          %2795 = vmatprep.subr.mxu0 0.0
          %2796 = vmatpush1.msra.mxu0 0.0
          %2797 = vmatprep.subr.mxu0 0.0
          %2798 = vmatpush1.msra.mxu0 0.0
          %2799 = vmatprep.subr.mxu0 0.0
          %2800 = vmatpush1.msra.mxu0 0.0
          %2801 = vmatprep.subr.mxu0 0.0
          %2802 = vmatpush1.msra.mxu0 0.0
          %2803 = vmatprep.subr.mxu0 0.0
          %2804 = vmatpush1.msra.mxu0 0.0
          %2805 = vmatprep.subr.mxu0 0.0
          %2806 = vmatpush1.msra.mxu0 0.0
          %2807 = vmatprep.subr.mxu0 0.0
          %2808 = vmatpush1.msra.mxu0 0.0
          %2809 = vmatprep.subr.mxu0 0.0
          %2810 = vmatpush1.msra.mxu0 0.0
          %2811 = vmatprep.subr.mxu0 0.0
          %2812 = vmatpush1.msra.mxu0 0.0
          %2813 = vmatprep.subr.mxu0 0.0
          %2814 = vmatpush1.msra.mxu0 0.0
          %2815 = vmatprep.subr.mxu0 0.0
          %2816 = vmatpush1.msra.mxu0 0.0
          %2817 = vmatprep.subr.mxu0 0.0
          %2818 = vmatpush1.msra.mxu0 0.0
          %2819 = vmatprep.subr.mxu0 0.0
          %2820 = vmatpush1.msra.mxu0 0.0
          %2821 = vmatprep.mubr.f32.mxu0 0.0
          %2822 = vmatmul.mubr.f32.gmra.mrb[0].mxu0 %v2742
          %v2823 = vpop.f32.mrb[0].mxu0
          %v2824 = vadd.f32 %v2665, %v2823
          %v2825 = vpop.f32.mrb[0].mxu0
          %v2826 = vadd.f32 %v2667, %v2825
          %2827 = vdwg.mxu0
          %2828 = vmatprep.subr.mxu0 %v2755
          %2829 = vmatpush1.msra.mxu0 %v2752
          %2830 = vmatprep.subr.mxu0 0.0
          %2831 = vmatpush1.msra.mxu0 0.0
          %2832 = vmatprep.subr.mxu0 0.0
          %2833 = vmatpush1.msra.mxu0 0.0
          %2834 = vmatprep.subr.mxu0 0.0
          %2835 = vmatpush1.msra.mxu0 0.0
          %2836 = vmatprep.subr.mxu0 0.0
          %2837 = vmatpush1.msra.mxu0 0.0
          %2838 = vmatprep.subr.mxu0 0.0
          %2839 = vmatpush1.msra.mxu0 0.0
          %2840 = vmatprep.subr.mxu0 0.0
          %2841 = vmatpush1.msra.mxu0 0.0
          %2842 = vmatprep.subr.mxu0 0.0
          %2843 = vmatpush1.msra.mxu0 0.0
          %2844 = vmatprep.subr.mxu0 0.0
          %2845 = vmatpush1.msra.mxu0 0.0
          %2846 = vmatprep.subr.mxu0 0.0
          %2847 = vmatpush1.msra.mxu0 0.0
          %2848 = vmatprep.subr.mxu0 0.0
          %2849 = vmatpush1.msra.mxu0 0.0
          %2850 = vmatprep.subr.mxu0 0.0
          %2851 = vmatpush1.msra.mxu0 0.0
          %2852 = vmatprep.subr.mxu0 0.0
          %2853 = vmatpush1.msra.mxu0 0.0
          %2854 = vmatprep.subr.mxu0 0.0
          %2855 = vmatpush1.msra.mxu0 0.0
          %2856 = vmatprep.subr.mxu0 0.0
          %2857 = vmatpush1.msra.mxu0 0.0
          %2858 = vmatprep.subr.mxu0 0.0
          %2859 = vmatpush1.msra.mxu0 0.0
          %2860 = vmatprep.subr.mxu0 0.0
          %2861 = vmatpush1.msra.mxu0 0.0
          %2862 = vmatprep.subr.mxu0 0.0
          %2863 = vmatpush1.msra.mxu0 0.0
          %2864 = vmatprep.subr.mxu0 0.0
          %2865 = vmatpush1.msra.mxu0 0.0
          %2866 = vmatprep.subr.mxu0 0.0
          %2867 = vmatpush1.msra.mxu0 0.0
          %2868 = vmatprep.subr.mxu0 0.0
          %2869 = vmatpush1.msra.mxu0 0.0
          %2870 = vmatprep.subr.mxu0 0.0
          %2871 = vmatpush1.msra.mxu0 0.0
          %2872 = vmatprep.subr.mxu0 0.0
          %2873 = vmatpush1.msra.mxu0 0.0
          %2874 = vmatprep.subr.mxu0 0.0
          %2875 = vmatpush1.msra.mxu0 0.0
          %2876 = vmatprep.subr.mxu0 0.0
          %2877 = vmatpush1.msra.mxu0 0.0
          %2878 = vmatprep.subr.mxu0 0.0
          %2879 = vmatpush1.msra.mxu0 0.0
          %2880 = vmatprep.subr.mxu0 0.0
          %2881 = vmatpush1.msra.mxu0 0.0
          %2882 = vmatprep.subr.mxu0 0.0
          %2883 = vmatpush1.msra.mxu0 0.0
          %2884 = vmatprep.subr.mxu0 0.0
          %2885 = vmatpush1.msra.mxu0 0.0
          %2886 = vmatprep.subr.mxu0 0.0
          %2887 = vmatpush1.msra.mxu0 0.0
          %2888 = vmatprep.subr.mxu0 0.0
          %2889 = vmatpush1.msra.mxu0 0.0
          %2890 = vmatprep.subr.mxu0 0.0
          %2891 = vmatpush1.msra.mxu0 0.0
          %2892 = vmatprep.mubr.f32.mxu0 0.0
          %2893 = vmatmul.mubr.f32.gmra.mrb[0].mxu0 %v2742
          %v2894 = vpop.f32.mrb[0].mxu0
          %v2895 = vadd.f32 %v2736, %v2894
          %v2896 = vpop.f32.mrb[0].mxu0
          %v2897 = vadd.f32 %v2738, %v2896
          %2898 = vdwg.mxu0
          %v2899 = vld [vmem:[%s45] sm:$0xf]
          %v2901 = vlaneseq
          %v2902 = vshrl.u32 %v2901, 7
          %v2903 = vsub.s32 0, %v2902
          %v2904 = vrot.slane %v2899, %v2903
          %v2905 = vlaneseq
          %v2906 = vshrl.u32 %v2905, 7
          %v2907 = vsub.s32 1, %v2906
          %v2908 = vrot.slane %v2899, %v2907
          %v2909 = vlaneseq
          %v2910 = vshrl.u32 %v2909, 7
          %v2911 = vsub.s32 2, %v2910
          %v2912 = vrot.slane %v2899, %v2911
          %v2913 = vlaneseq
          %v2914 = vshrl.u32 %v2913, 7
          %v2915 = vsub.s32 3, %v2914
          %v2916 = vrot.slane %v2899, %v2915
          %v2921 = vadd.f32 %v2824, %v2904
          %v2922 = vadd.f32 %v2826, %v2908
          %v2923 = vadd.f32 %v2895, %v2912
          %v2924 = vadd.f32 %v2897, %v2916
          %v2925 = vxor.u32 %v2921, 2147483648
          %v2926 = vmul.f32 %v2925, 1.442695
          %v2927 = vpow.pop %v2926
          %v2928 = vadd.f32 %v2927, 1.0
          %v2929 = vrcp.pop %v2928
          %v2930 = vmul.f32 1.0, %v2929
          %v2931 = vxor.u32 %v2922, 2147483648
          %v2932 = vmul.f32 %v2931, 1.442695
          %v2933 = vpow.pop %v2932
          %v2934 = vadd.f32 %v2933, 1.0
          %v2935 = vrcp.pop %v2934
          %v2936 = vmul.f32 1.0, %v2935
          %v2937 = vtanh.pop %v2923
          %v2938 = vxor.u32 %v2924, 2147483648
          %v2939 = vmul.f32 %v2938, 1.442695
          %v2940 = vpow.pop %v2939
          %v2941 = vadd.f32 %v2940, 1.0
          %v2942 = vrcp.pop %v2941
          %v2943 = vmul.f32 1.0, %v2942
          %v2944 = vmul.f32 %v2936, 0.0
          %v2945 = vmul.f32 %v2930, %v2937
          %v2946 = vadd.f32 %v2944, %v2945
          %v2947 = vtanh.pop %v2946
          %v2948 = vmul.f32 %v2943, %v2947
          %v2949 = vld [vmem:[%s47] sm:$0xff]
          %v2950 = vld [vmem:[%s47 + $0x8] sm:$0xff]
          %v2951 = vld [vmem:[%s49] sm:$0xff]
          %v2952 = vld [vmem:[%s49 + $0x8] sm:$0xff]
          %v2953 = vld [vmem:[%s49 + $0x10] sm:$0xff]
          %v2954 = vld [vmem:[%s49 + $0x18] sm:$0xff]
          %v2955 = vld [vmem:[%s49 + $0x20] sm:$0xff]
          %v2956 = vld [vmem:[%s49 + $0x28] sm:$0xff]
          %v2957 = vld [vmem:[%s49 + $0x30] sm:$0xff]
          %v2958 = vld [vmem:[%s49 + $0x38] sm:$0xff]
          %v2959 = vld [vmem:[%s49 + $0x40] sm:$0xff]
          %v2960 = vld [vmem:[%s49 + $0x48] sm:$0xff]
          %v2961 = vld [vmem:[%s49 + $0x50] sm:$0xff]
          %v2962 = vld [vmem:[%s49 + $0x58] sm:$0xff]
          %v2963 = vld [vmem:[%s49 + $0x60] sm:$0xff]
          %v2964 = vld [vmem:[%s49 + $0x68] sm:$0xff]
          %v2965 = vld [vmem:[%s49 + $0x70] sm:$0xff]
          %v2966 = vld [vmem:[%s49 + $0x78] sm:$0xff]
          %v2967 = vld [vmem:[%s49 + $0x80] sm:$0xff]
          %v2968 = vld [vmem:[%s49 + $0x88] sm:$0xff]
          %v2969 = vld [vmem:[%s49 + $0x90] sm:$0xff]
          %v2970 = vld [vmem:[%s49 + $0x98] sm:$0xff]
          %v2971 = vld [vmem:[%s49 + $0xa0] sm:$0xff]
          %v2972 = vld [vmem:[%s49 + $0xa8] sm:$0xff]
          %v2973 = vld [vmem:[%s49 + $0xb0] sm:$0xff]
          %v2974 = vld [vmem:[%s49 + $0xb8] sm:$0xff]
          %v2975 = vld [vmem:[%s49 + $0xc0] sm:$0xff]
          %v2976 = vld [vmem:[%s49 + $0xc8] sm:$0xff]
          %v2977 = vld [vmem:[%s49 + $0xd0] sm:$0xff]
          %v2978 = vld [vmem:[%s49 + $0xd8] sm:$0xff]
          %v2979 = vld [vmem:[%s49 + $0xe0] sm:$0xff]
          %v2980 = vld [vmem:[%s49 + $0xe8] sm:$0xff]
          %v2981 = vld [vmem:[%s49 + $0xf0] sm:$0xff]
          %v2982 = vld [vmem:[%s49 + $0xf8] sm:$0xff]
          %v2983 = vld [vmem:[%s49 + $0x100] sm:$0xff]
          %v2984 = vld [vmem:[%s49 + $0x108] sm:$0xff]
          %v2985 = vld [vmem:[%s49 + $0x110] sm:$0xff]
          %v2986 = vld [vmem:[%s49 + $0x118] sm:$0xff]
          %v2987 = vld [vmem:[%s49 + $0x120] sm:$0xff]
          %v2988 = vld [vmem:[%s49 + $0x128] sm:$0xff]
          %v2989 = vld [vmem:[%s49 + $0x130] sm:$0xff]
          %v2990 = vld [vmem:[%s49 + $0x138] sm:$0xff]
          %v2991 = vld [vmem:[%s49 + $0x140] sm:$0xff]
          %v2992 = vld [vmem:[%s49 + $0x148] sm:$0xff]
          %v2993 = vld [vmem:[%s49 + $0x150] sm:$0xff]
          %v2994 = vld [vmem:[%s49 + $0x158] sm:$0xff]
          %v2995 = vld [vmem:[%s49 + $0x160] sm:$0xff]
          %v2996 = vld [vmem:[%s49 + $0x168] sm:$0xff]
          %v2997 = vld [vmem:[%s49 + $0x170] sm:$0xff]
          %v2998 = vld [vmem:[%s49 + $0x178] sm:$0xff]
          %v2999 = vld [vmem:[%s49 + $0x180] sm:$0xff]
          %v3000 = vld [vmem:[%s49 + $0x188] sm:$0xff]
          %v3001 = vld [vmem:[%s49 + $0x190] sm:$0xff]
          %v3002 = vld [vmem:[%s49 + $0x198] sm:$0xff]
          %v3003 = vld [vmem:[%s49 + $0x1a0] sm:$0xff]
          %v3004 = vld [vmem:[%s49 + $0x1a8] sm:$0xff]
          %v3005 = vld [vmem:[%s49 + $0x1b0] sm:$0xff]
          %v3006 = vld [vmem:[%s49 + $0x1b8] sm:$0xff]
          %v3007 = vld [vmem:[%s49 + $0x1c0] sm:$0xff]
          %v3008 = vld [vmem:[%s49 + $0x1c8] sm:$0xff]
          %v3009 = vld [vmem:[%s49 + $0x1d0] sm:$0xff]
          %v3010 = vld [vmem:[%s49 + $0x1d8] sm:$0xff]
          %v3011 = vld [vmem:[%s49 + $0x1e0] sm:$0xff]
          %v3012 = vld [vmem:[%s49 + $0x1e8] sm:$0xff]
          %v3013 = vld [vmem:[%s49 + $0x1f0] sm:$0xff]
          %v3014 = vld [vmem:[%s49 + $0x1f8] sm:$0xff]
          %3015 = vmatprep.subr.mxu0 %v2952
          %3016 = vmatpush1.msra.mxu0 %v2951
          %3017 = vmatprep.subr.mxu0 %v2956
          %3018 = vmatpush1.msra.mxu0 %v2955
          %3019 = vmatprep.subr.mxu0 %v2960
          %3020 = vmatpush1.msra.mxu0 %v2959
          %3021 = vmatprep.subr.mxu0 %v2964
          %3022 = vmatpush1.msra.mxu0 %v2963
          %3023 = vmatprep.subr.mxu0 %v2968
          %3024 = vmatpush1.msra.mxu0 %v2967
          %3025 = vmatprep.subr.mxu0 %v2972
          %3026 = vmatpush1.msra.mxu0 %v2971
          %3027 = vmatprep.subr.mxu0 %v2976
          %3028 = vmatpush1.msra.mxu0 %v2975
          %3029 = vmatprep.subr.mxu0 %v2980
          %3030 = vmatpush1.msra.mxu0 %v2979
          %3031 = vmatprep.subr.mxu0 %v2984
          %3032 = vmatpush1.msra.mxu0 %v2983
          %3033 = vmatprep.subr.mxu0 %v2988
          %3034 = vmatpush1.msra.mxu0 %v2987
          %3035 = vmatprep.subr.mxu0 %v2992
          %3036 = vmatpush1.msra.mxu0 %v2991
          %3037 = vmatprep.subr.mxu0 %v2996
          %3038 = vmatpush1.msra.mxu0 %v2995
          %3039 = vmatprep.subr.mxu0 %v3000
          %3040 = vmatpush1.msra.mxu0 %v2999
          %3041 = vmatprep.subr.mxu0 %v3004
          %3042 = vmatpush1.msra.mxu0 %v3003
          %3043 = vmatprep.subr.mxu0 %v3008
          %3044 = vmatpush1.msra.mxu0 %v3007
          %3045 = vmatprep.subr.mxu0 %v3012
          %3046 = vmatpush1.msra.mxu0 %v3011
          %3047 = vmatprep.subr.mxu0 0.0
          %3048 = vmatpush1.msra.mxu0 0.0
          %3049 = vmatprep.subr.mxu0 0.0
          %3050 = vmatpush1.msra.mxu0 0.0
          %3051 = vmatprep.subr.mxu0 0.0
          %3052 = vmatpush1.msra.mxu0 0.0
          %3053 = vmatprep.subr.mxu0 0.0
          %3054 = vmatpush1.msra.mxu0 0.0
          %3055 = vmatprep.subr.mxu0 0.0
          %3056 = vmatpush1.msra.mxu0 0.0
          %3057 = vmatprep.subr.mxu0 0.0
          %3058 = vmatpush1.msra.mxu0 0.0
          %3059 = vmatprep.subr.mxu0 0.0
          %3060 = vmatpush1.msra.mxu0 0.0
          %3061 = vmatprep.subr.mxu0 0.0
          %3062 = vmatpush1.msra.mxu0 0.0
          %3063 = vmatprep.subr.mxu0 0.0
          %3064 = vmatpush1.msra.mxu0 0.0
          %3065 = vmatprep.subr.mxu0 0.0
          %3066 = vmatpush1.msra.mxu0 0.0
          %3067 = vmatprep.subr.mxu0 0.0
          %3068 = vmatpush1.msra.mxu0 0.0
          %3069 = vmatprep.subr.mxu0 0.0
          %3070 = vmatpush1.msra.mxu0 0.0
          %3071 = vmatprep.subr.mxu0 0.0
          %3072 = vmatpush1.msra.mxu0 0.0
          %3073 = vmatprep.subr.mxu0 0.0
          %3074 = vmatpush1.msra.mxu0 0.0
          %3075 = vmatprep.subr.mxu0 0.0
          %3076 = vmatpush1.msra.mxu0 0.0
          %3077 = vmatprep.subr.mxu0 0.0
          %3078 = vmatpush1.msra.mxu0 0.0
          %3079 = vmatprep.mubr.f32.mxu0 0.0
          %3080 = vmatmul.mubr.f32.gmra.mrb[0].mxu0 0.0
          %v3081 = vpop.f32.mrb[0].mxu0
          %v3082 = vadd.f32 0.0, %v3081
          %v3083 = vpop.f32.mrb[0].mxu0
          %v3084 = vadd.f32 0.0, %v3083
          %3085 = vdwg.mxu0
          %3086 = vmatprep.subr.mxu0 %v2954
          %3087 = vmatpush1.msra.mxu0 %v2953
          %3088 = vmatprep.subr.mxu0 %v2958
          %3089 = vmatpush1.msra.mxu0 %v2957
          %3090 = vmatprep.subr.mxu0 %v2962
          %3091 = vmatpush1.msra.mxu0 %v2961
          %3092 = vmatprep.subr.mxu0 %v2966
          %3093 = vmatpush1.msra.mxu0 %v2965
          %3094 = vmatprep.subr.mxu0 %v2970
          %3095 = vmatpush1.msra.mxu0 %v2969
          %3096 = vmatprep.subr.mxu0 %v2974
          %3097 = vmatpush1.msra.mxu0 %v2973
          %3098 = vmatprep.subr.mxu0 %v2978
          %3099 = vmatpush1.msra.mxu0 %v2977
          %3100 = vmatprep.subr.mxu0 %v2982
          %3101 = vmatpush1.msra.mxu0 %v2981
          %3102 = vmatprep.subr.mxu0 %v2986
          %3103 = vmatpush1.msra.mxu0 %v2985
          %3104 = vmatprep.subr.mxu0 %v2990
          %3105 = vmatpush1.msra.mxu0 %v2989
          %3106 = vmatprep.subr.mxu0 %v2994
          %3107 = vmatpush1.msra.mxu0 %v2993
          %3108 = vmatprep.subr.mxu0 %v2998
          %3109 = vmatpush1.msra.mxu0 %v2997
          %3110 = vmatprep.subr.mxu0 %v3002
          %3111 = vmatpush1.msra.mxu0 %v3001
          %3112 = vmatprep.subr.mxu0 %v3006
          %3113 = vmatpush1.msra.mxu0 %v3005
          %3114 = vmatprep.subr.mxu0 %v3010
          %3115 = vmatpush1.msra.mxu0 %v3009
          %3116 = vmatprep.subr.mxu0 %v3014
          %3117 = vmatpush1.msra.mxu0 %v3013
          %3118 = vmatprep.subr.mxu0 0.0
          %3119 = vmatpush1.msra.mxu0 0.0
          %3120 = vmatprep.subr.mxu0 0.0
          %3121 = vmatpush1.msra.mxu0 0.0
          %3122 = vmatprep.subr.mxu0 0.0
          %3123 = vmatpush1.msra.mxu0 0.0
          %3124 = vmatprep.subr.mxu0 0.0
          %3125 = vmatpush1.msra.mxu0 0.0
          %3126 = vmatprep.subr.mxu0 0.0
          %3127 = vmatpush1.msra.mxu0 0.0
          %3128 = vmatprep.subr.mxu0 0.0
          %3129 = vmatpush1.msra.mxu0 0.0
          %3130 = vmatprep.subr.mxu0 0.0
          %3131 = vmatpush1.msra.mxu0 0.0
          %3132 = vmatprep.subr.mxu0 0.0
          %3133 = vmatpush1.msra.mxu0 0.0
          %3134 = vmatprep.subr.mxu0 0.0
          %3135 = vmatpush1.msra.mxu0 0.0
          %3136 = vmatprep.subr.mxu0 0.0
          %3137 = vmatpush1.msra.mxu0 0.0
          %3138 = vmatprep.subr.mxu0 0.0
          %3139 = vmatpush1.msra.mxu0 0.0
          %3140 = vmatprep.subr.mxu0 0.0
          %3141 = vmatpush1.msra.mxu0 0.0
          %3142 = vmatprep.subr.mxu0 0.0
          %3143 = vmatpush1.msra.mxu0 0.0
          %3144 = vmatprep.subr.mxu0 0.0
          %3145 = vmatpush1.msra.mxu0 0.0
          %3146 = vmatprep.subr.mxu0 0.0
          %3147 = vmatpush1.msra.mxu0 0.0
          %3148 = vmatprep.subr.mxu0 0.0
          %3149 = vmatpush1.msra.mxu0 0.0
          %3150 = vmatprep.mubr.f32.mxu0 0.0
          %3151 = vmatmul.mubr.f32.gmra.mrb[0].mxu0 0.0
          %v3152 = vpop.f32.mrb[0].mxu0
          %v3153 = vadd.f32 0.0, %v3152
          %v3154 = vpop.f32.mrb[0].mxu0
          %v3155 = vadd.f32 0.0, %v3154
          %3156 = vdwg.mxu0
          %v3159 = vcombine.high %v2949, %v2949
          %v3160 = vcombine.high %v2950, %v2950
          %vm3161 = vcmask 31744
          %v3163 = vsel %vm3161, %v2522, 0
          %vm3165 = vcmask 1043456
          %v3166 = vsel %vm3165, %v2949, 0
          %v3168 = vsel %vm3165, %v3159, 0
          %v3170 = vsel %vm3165, %v2950, 0
          %v3172 = vsel %vm3165, %v3160, 0
          %3174 = vmatprep.subr.mxu0 %v3168
          %3175 = vmatpush1.msra.mxu0 %v3166
          %3176 = vmatprep.subr.mxu0 0.0
          %3177 = vmatpush1.msra.mxu0 0.0
          %3178 = vmatprep.subr.mxu0 0.0
          %3179 = vmatpush1.msra.mxu0 0.0
          %3180 = vmatprep.subr.mxu0 0.0
          %3181 = vmatpush1.msra.mxu0 0.0
          %3182 = vmatprep.subr.mxu0 0.0
          %3183 = vmatpush1.msra.mxu0 0.0
          %3184 = vmatprep.subr.mxu0 0.0
          %3185 = vmatpush1.msra.mxu0 0.0
          %3186 = vmatprep.subr.mxu0 0.0
          %3187 = vmatpush1.msra.mxu0 0.0
          %3188 = vmatprep.subr.mxu0 0.0
          %3189 = vmatpush1.msra.mxu0 0.0
          %3190 = vmatprep.subr.mxu0 0.0
          %3191 = vmatpush1.msra.mxu0 0.0
          %3192 = vmatprep.subr.mxu0 0.0
          %3193 = vmatpush1.msra.mxu0 0.0
          %3194 = vmatprep.subr.mxu0 0.0
          %3195 = vmatpush1.msra.mxu0 0.0
          %3196 = vmatprep.subr.mxu0 0.0
          %3197 = vmatpush1.msra.mxu0 0.0
          %3198 = vmatprep.subr.mxu0 0.0
          %3199 = vmatpush1.msra.mxu0 0.0
          %3200 = vmatprep.subr.mxu0 0.0
          %3201 = vmatpush1.msra.mxu0 0.0
          %3202 = vmatprep.subr.mxu0 0.0
          %3203 = vmatpush1.msra.mxu0 0.0
          %3204 = vmatprep.subr.mxu0 0.0
          %3205 = vmatpush1.msra.mxu0 0.0
          %3206 = vmatprep.subr.mxu0 0.0
          %3207 = vmatpush1.msra.mxu0 0.0
          %3208 = vmatprep.subr.mxu0 0.0
          %3209 = vmatpush1.msra.mxu0 0.0
          %3210 = vmatprep.subr.mxu0 0.0
          %3211 = vmatpush1.msra.mxu0 0.0
          %3212 = vmatprep.subr.mxu0 0.0
          %3213 = vmatpush1.msra.mxu0 0.0
          %3214 = vmatprep.subr.mxu0 0.0
          %3215 = vmatpush1.msra.mxu0 0.0
          %3216 = vmatprep.subr.mxu0 0.0
          %3217 = vmatpush1.msra.mxu0 0.0
          %3218 = vmatprep.subr.mxu0 0.0
          %3219 = vmatpush1.msra.mxu0 0.0
          %3220 = vmatprep.subr.mxu0 0.0
          %3221 = vmatpush1.msra.mxu0 0.0
          %3222 = vmatprep.subr.mxu0 0.0
          %3223 = vmatpush1.msra.mxu0 0.0
          %3224 = vmatprep.subr.mxu0 0.0
          %3225 = vmatpush1.msra.mxu0 0.0
          %3226 = vmatprep.subr.mxu0 0.0
          %3227 = vmatpush1.msra.mxu0 0.0
          %3228 = vmatprep.subr.mxu0 0.0
          %3229 = vmatpush1.msra.mxu0 0.0
          %3230 = vmatprep.subr.mxu0 0.0
          %3231 = vmatpush1.msra.mxu0 0.0
          %3232 = vmatprep.subr.mxu0 0.0
          %3233 = vmatpush1.msra.mxu0 0.0
          %3234 = vmatprep.subr.mxu0 0.0
          %3235 = vmatpush1.msra.mxu0 0.0
          %3236 = vmatprep.subr.mxu0 0.0
          %3237 = vmatpush1.msra.mxu0 0.0
          %3238 = vmatprep.mubr.f32.mxu0 0.0
          %3239 = vmatmul.mubr.f32.gmra.mrb[0].mxu0 %v3163
          %v3240 = vpop.f32.mrb[0].mxu0
          %v3241 = vadd.f32 %v3082, %v3240
          %v3242 = vpop.f32.mrb[0].mxu0
          %v3243 = vadd.f32 %v3084, %v3242
          %3244 = vdwg.mxu0
          %3245 = vmatprep.subr.mxu0 %v3172
          %3246 = vmatpush1.msra.mxu0 %v3170
          %3247 = vmatprep.subr.mxu0 0.0
          %3248 = vmatpush1.msra.mxu0 0.0
          %3249 = vmatprep.subr.mxu0 0.0
          %3250 = vmatpush1.msra.mxu0 0.0
          %3251 = vmatprep.subr.mxu0 0.0
          %3252 = vmatpush1.msra.mxu0 0.0
          %3253 = vmatprep.subr.mxu0 0.0
          %3254 = vmatpush1.msra.mxu0 0.0
          %3255 = vmatprep.subr.mxu0 0.0
          %3256 = vmatpush1.msra.mxu0 0.0
          %3257 = vmatprep.subr.mxu0 0.0
          %3258 = vmatpush1.msra.mxu0 0.0
          %3259 = vmatprep.subr.mxu0 0.0
          %3260 = vmatpush1.msra.mxu0 0.0
          %3261 = vmatprep.subr.mxu0 0.0
          %3262 = vmatpush1.msra.mxu0 0.0
          %3263 = vmatprep.subr.mxu0 0.0
          %3264 = vmatpush1.msra.mxu0 0.0
          %3265 = vmatprep.subr.mxu0 0.0
          %3266 = vmatpush1.msra.mxu0 0.0
          %3267 = vmatprep.subr.mxu0 0.0
          %3268 = vmatpush1.msra.mxu0 0.0
          %3269 = vmatprep.subr.mxu0 0.0
          %3270 = vmatpush1.msra.mxu0 0.0
          %3271 = vmatprep.subr.mxu0 0.0
          %3272 = vmatpush1.msra.mxu0 0.0
          %3273 = vmatprep.subr.mxu0 0.0
          %3274 = vmatpush1.msra.mxu0 0.0
          %3275 = vmatprep.subr.mxu0 0.0
          %3276 = vmatpush1.msra.mxu0 0.0
          %3277 = vmatprep.subr.mxu0 0.0
          %3278 = vmatpush1.msra.mxu0 0.0
          %3279 = vmatprep.subr.mxu0 0.0
          %3280 = vmatpush1.msra.mxu0 0.0
          %3281 = vmatprep.subr.mxu0 0.0
          %3282 = vmatpush1.msra.mxu0 0.0
          %3283 = vmatprep.subr.mxu0 0.0
          %3284 = vmatpush1.msra.mxu0 0.0
          %3285 = vmatprep.subr.mxu0 0.0
          %3286 = vmatpush1.msra.mxu0 0.0
          %3287 = vmatprep.subr.mxu0 0.0
          %3288 = vmatpush1.msra.mxu0 0.0
          %3289 = vmatprep.subr.mxu0 0.0
          %3290 = vmatpush1.msra.mxu0 0.0
          %3291 = vmatprep.subr.mxu0 0.0
          %3292 = vmatpush1.msra.mxu0 0.0
          %3293 = vmatprep.subr.mxu0 0.0
          %3294 = vmatpush1.msra.mxu0 0.0
          %3295 = vmatprep.subr.mxu0 0.0
          %3296 = vmatpush1.msra.mxu0 0.0
          %3297 = vmatprep.subr.mxu0 0.0
          %3298 = vmatpush1.msra.mxu0 0.0
          %3299 = vmatprep.subr.mxu0 0.0
          %3300 = vmatpush1.msra.mxu0 0.0
          %3301 = vmatprep.subr.mxu0 0.0
          %3302 = vmatpush1.msra.mxu0 0.0
          %3303 = vmatprep.subr.mxu0 0.0
          %3304 = vmatpush1.msra.mxu0 0.0
          %3305 = vmatprep.subr.mxu0 0.0
          %3306 = vmatpush1.msra.mxu0 0.0
          %3307 = vmatprep.subr.mxu0 0.0
          %3308 = vmatpush1.msra.mxu0 0.0
          %3309 = vmatprep.mubr.f32.mxu0 0.0
          %3310 = vmatmul.mubr.f32.gmra.mrb[0].mxu0 %v3163
          %v3311 = vpop.f32.mrb[0].mxu0
          %v3312 = vadd.f32 %v3153, %v3311
          %v3313 = vpop.f32.mrb[0].mxu0
          %v3314 = vadd.f32 %v3155, %v3313
          %3315 = vdwg.mxu0
          %v3316 = vld [vmem:[%s51] sm:$0xf]
          %v3318 = vlaneseq
          %v3319 = vshrl.u32 %v3318, 7
          %v3320 = vsub.s32 0, %v3319
          %v3321 = vrot.slane %v3316, %v3320
          %v3322 = vlaneseq
          %v3323 = vshrl.u32 %v3322, 7
          %v3324 = vsub.s32 1, %v3323
          %v3325 = vrot.slane %v3316, %v3324
          %v3326 = vlaneseq
          %v3327 = vshrl.u32 %v3326, 7
          %v3328 = vsub.s32 2, %v3327
          %v3329 = vrot.slane %v3316, %v3328
          %v3330 = vlaneseq
          %v3331 = vshrl.u32 %v3330, 7
          %v3332 = vsub.s32 3, %v3331
          %v3333 = vrot.slane %v3316, %v3332
          %v3338 = vadd.f32 %v3241, %v3321
          %v3339 = vadd.f32 %v3243, %v3325
          %v3340 = vadd.f32 %v3312, %v3329
          %v3341 = vadd.f32 %v3314, %v3333
          %v3342 = vxor.u32 %v3338, 2147483648
          %v3343 = vmul.f32 %v3342, 1.442695
          %v3344 = vpow.pop %v3343
          %v3345 = vadd.f32 %v3344, 1.0
          %v3346 = vrcp.pop %v3345
          %v3347 = vmul.f32 1.0, %v3346
          %v3348 = vxor.u32 %v3339, 2147483648
          %v3349 = vmul.f32 %v3348, 1.442695
          %v3350 = vpow.pop %v3349
          %v3351 = vadd.f32 %v3350, 1.0
          %v3352 = vrcp.pop %v3351
          %v3353 = vmul.f32 1.0, %v3352
          %v3354 = vtanh.pop %v3340
          %v3355 = vxor.u32 %v3341, 2147483648
          %v3356 = vmul.f32 %v3355, 1.442695
          %v3357 = vpow.pop %v3356
          %v3358 = vadd.f32 %v3357, 1.0
          %v3359 = vrcp.pop %v3358
          %v3360 = vmul.f32 1.0, %v3359
          %v3361 = vmul.f32 %v3353, 0.0
          %v3362 = vmul.f32 %v3347, %v3354
          %v3363 = vadd.f32 %v3361, %v3362
          %v3364 = vtanh.pop %v3363
          %v3365 = vmul.f32 %v3360, %v3364
          %v3366 = vld [vmem:[%s53] sm:$0x1f]
          %v3367 = vld [vmem:[%s53 + $0x8] sm:$0x1f]
          %v3368 = vld [vmem:[%s53 + $0x10] sm:$0x1f]
          %v3369 = vld [vmem:[%s53 + $0x18] sm:$0x1f]
          %v3370 = vld [vmem:[%s53 + $0x20] sm:$0x1f]
          %v3371 = vld [vmem:[%s53 + $0x28] sm:$0x1f]
          %s3372 = scalar_lea.vmem %s53, 48
          %v3373 = vld [vmem:[%s3372] sm:$0x1f]
          %v3374 = vld [vmem:[%s3372 + $0x8] sm:$0x1f]
          %v3375 = vld [vmem:[%s3372 + $0x10] sm:$0x1f]
          %v3376 = vld [vmem:[%s3372 + $0x18] sm:$0x1f]
          %v3377 = vld [vmem:[%s3372 + $0x20] sm:$0x1f]
          %v3378 = vld [vmem:[%s3372 + $0x28] sm:$0x1f]
          %vm3379 = vcmask 39936
          %v3381 = vsel %vm3379, %v2525, 0
          %v3384 = vsel %vm1822, %v3373, 0
          %v3387 = vsel %vm1822, %v3374, 0
          %v3390 = vsel %vm1822, %v3375, 0
          %v3393 = vsel %vm1822, %v3376, 0
          %v3396 = vsel %vm1822, %v3377, 0
          %v3399 = vsel %vm1822, %v3378, 0
          %3401 = vmatprep.subr.mxu0 %v3387
          %3402 = vmatpush1.msra.mxu0 %v3384
          %3403 = vmatprep.subr.mxu0 0.0
          %3404 = vmatpush1.msra.mxu0 0.0
          %3405 = vmatprep.subr.mxu0 0.0
          %3406 = vmatpush1.msra.mxu0 0.0
          %3407 = vmatprep.subr.mxu0 0.0
          %3408 = vmatpush1.msra.mxu0 0.0
          %3409 = vmatprep.subr.mxu0 0.0
          %3410 = vmatpush1.msra.mxu0 0.0
          %3411 = vmatprep.subr.mxu0 0.0
          %3412 = vmatpush1.msra.mxu0 0.0
          %3413 = vmatprep.subr.mxu0 0.0
          %3414 = vmatpush1.msra.mxu0 0.0
          %3415 = vmatprep.subr.mxu0 0.0
          %3416 = vmatpush1.msra.mxu0 0.0
          %3417 = vmatprep.subr.mxu0 0.0
          %3418 = vmatpush1.msra.mxu0 0.0
          %3419 = vmatprep.subr.mxu0 0.0
          %3420 = vmatpush1.msra.mxu0 0.0
          %3421 = vmatprep.subr.mxu0 0.0
          %3422 = vmatpush1.msra.mxu0 0.0
          %3423 = vmatprep.subr.mxu0 0.0
          %3424 = vmatpush1.msra.mxu0 0.0
          %3425 = vmatprep.subr.mxu0 0.0
          %3426 = vmatpush1.msra.mxu0 0.0
          %3427 = vmatprep.subr.mxu0 0.0
          %3428 = vmatpush1.msra.mxu0 0.0
          %3429 = vmatprep.subr.mxu0 0.0
          %3430 = vmatpush1.msra.mxu0 0.0
          %3431 = vmatprep.subr.mxu0 0.0
          %3432 = vmatpush1.msra.mxu0 0.0
          %3433 = vmatprep.subr.mxu0 0.0
          %3434 = vmatpush1.msra.mxu0 0.0
          %3435 = vmatprep.subr.mxu0 0.0
          %3436 = vmatpush1.msra.mxu0 0.0
          %3437 = vmatprep.subr.mxu0 0.0
          %3438 = vmatpush1.msra.mxu0 0.0
          %3439 = vmatprep.subr.mxu0 0.0
          %3440 = vmatpush1.msra.mxu0 0.0
          %3441 = vmatprep.subr.mxu0 0.0
          %3442 = vmatpush1.msra.mxu0 0.0
          %3443 = vmatprep.subr.mxu0 0.0
          %3444 = vmatpush1.msra.mxu0 0.0
          %3445 = vmatprep.subr.mxu0 0.0
          %3446 = vmatpush1.msra.mxu0 0.0
          %3447 = vmatprep.subr.mxu0 0.0
          %3448 = vmatpush1.msra.mxu0 0.0
          %3449 = vmatprep.subr.mxu0 0.0
          %3450 = vmatpush1.msra.mxu0 0.0
          %3451 = vmatprep.subr.mxu0 0.0
          %3452 = vmatpush1.msra.mxu0 0.0
          %3453 = vmatprep.subr.mxu0 0.0
          %3454 = vmatpush1.msra.mxu0 0.0
          %3455 = vmatprep.subr.mxu0 0.0
          %3456 = vmatpush1.msra.mxu0 0.0
          %3457 = vmatprep.subr.mxu0 0.0
          %3458 = vmatpush1.msra.mxu0 0.0
          %3459 = vmatprep.subr.mxu0 0.0
          %3460 = vmatpush1.msra.mxu0 0.0
          %3461 = vmatprep.subr.mxu0 0.0
          %3462 = vmatpush1.msra.mxu0 0.0
          %3463 = vmatprep.subr.mxu0 0.0
          %3464 = vmatpush1.msra.mxu0 0.0
          %3465 = vmatprep.mubr.f32.mxu0 0.0
          %3466 = vmatmul.mubr.f32.gmra.mrb[0].mxu0 %v3381
          %v3467 = vpop.f32.mrb[0].mxu0
          %v3468 = vadd.f32 0.0, %v3467
          %v3469 = vpop.f32.mrb[0].mxu0
          %v3470 = vadd.f32 0.0, %v3469
          %3471 = vdwg.mxu0
          %3472 = vmatprep.subr.mxu0 %v3393
          %3473 = vmatpush1.msra.mxu0 %v3390
          %3474 = vmatprep.subr.mxu0 0.0
          %3475 = vmatpush1.msra.mxu0 0.0
          %3476 = vmatprep.subr.mxu0 0.0
          %3477 = vmatpush1.msra.mxu0 0.0
          %3478 = vmatprep.subr.mxu0 0.0
          %3479 = vmatpush1.msra.mxu0 0.0
          %3480 = vmatprep.subr.mxu0 0.0
          %3481 = vmatpush1.msra.mxu0 0.0
          %3482 = vmatprep.subr.mxu0 0.0
          %3483 = vmatpush1.msra.mxu0 0.0
          %3484 = vmatprep.subr.mxu0 0.0
          %3485 = vmatpush1.msra.mxu0 0.0
          %3486 = vmatprep.subr.mxu0 0.0
          %3487 = vmatpush1.msra.mxu0 0.0
          %3488 = vmatprep.subr.mxu0 0.0
          %3489 = vmatpush1.msra.mxu0 0.0
          %3490 = vmatprep.subr.mxu0 0.0
          %3491 = vmatpush1.msra.mxu0 0.0
          %3492 = vmatprep.subr.mxu0 0.0
          %3493 = vmatpush1.msra.mxu0 0.0
          %3494 = vmatprep.subr.mxu0 0.0
          %3495 = vmatpush1.msra.mxu0 0.0
          %3496 = vmatprep.subr.mxu0 0.0
          %3497 = vmatpush1.msra.mxu0 0.0
          %3498 = vmatprep.subr.mxu0 0.0
          %3499 = vmatpush1.msra.mxu0 0.0
          %3500 = vmatprep.subr.mxu0 0.0
          %3501 = vmatpush1.msra.mxu0 0.0
          %3502 = vmatprep.subr.mxu0 0.0
          %3503 = vmatpush1.msra.mxu0 0.0
          %3504 = vmatprep.subr.mxu0 0.0
          %3505 = vmatpush1.msra.mxu0 0.0
          %3506 = vmatprep.subr.mxu0 0.0
          %3507 = vmatpush1.msra.mxu0 0.0
          %3508 = vmatprep.subr.mxu0 0.0
          %3509 = vmatpush1.msra.mxu0 0.0
          %3510 = vmatprep.subr.mxu0 0.0
          %3511 = vmatpush1.msra.mxu0 0.0
          %3512 = vmatprep.subr.mxu0 0.0
          %3513 = vmatpush1.msra.mxu0 0.0
          %3514 = vmatprep.subr.mxu0 0.0
          %3515 = vmatpush1.msra.mxu0 0.0
          %3516 = vmatprep.subr.mxu0 0.0
          %3517 = vmatpush1.msra.mxu0 0.0
          %3518 = vmatprep.subr.mxu0 0.0
          %3519 = vmatpush1.msra.mxu0 0.0
          %3520 = vmatprep.subr.mxu0 0.0
          %3521 = vmatpush1.msra.mxu0 0.0
          %3522 = vmatprep.subr.mxu0 0.0
          %3523 = vmatpush1.msra.mxu0 0.0
          %3524 = vmatprep.subr.mxu0 0.0
          %3525 = vmatpush1.msra.mxu0 0.0
          %3526 = vmatprep.subr.mxu0 0.0
          %3527 = vmatpush1.msra.mxu0 0.0
          %3528 = vmatprep.subr.mxu0 0.0
          %3529 = vmatpush1.msra.mxu0 0.0
          %3530 = vmatprep.subr.mxu0 0.0
          %3531 = vmatpush1.msra.mxu0 0.0
          %3532 = vmatprep.subr.mxu0 0.0
          %3533 = vmatpush1.msra.mxu0 0.0
          %3534 = vmatprep.subr.mxu0 0.0
          %3535 = vmatpush1.msra.mxu0 0.0
          %3536 = vmatprep.mubr.f32.mxu0 0.0
          %3537 = vmatmul.mubr.f32.gmra.mrb[0].mxu0 %v3381
          %v3538 = vpop.f32.mrb[0].mxu0
          %v3539 = vadd.f32 0.0, %v3538
          %v3540 = vpop.f32.mrb[0].mxu0
          %v3541 = vadd.f32 0.0, %v3540
          %3542 = vdwg.mxu0
          %3543 = vmatprep.subr.mxu0 %v3399
          %3544 = vmatpush1.msra.mxu0 %v3396
          %3545 = vmatprep.subr.mxu0 0.0
          %3546 = vmatpush1.msra.mxu0 0.0
          %3547 = vmatprep.subr.mxu0 0.0
          %3548 = vmatpush1.msra.mxu0 0.0
          %3549 = vmatprep.subr.mxu0 0.0
          %3550 = vmatpush1.msra.mxu0 0.0
          %3551 = vmatprep.subr.mxu0 0.0
          %3552 = vmatpush1.msra.mxu0 0.0
          %3553 = vmatprep.subr.mxu0 0.0
          %3554 = vmatpush1.msra.mxu0 0.0
          %3555 = vmatprep.subr.mxu0 0.0
          %3556 = vmatpush1.msra.mxu0 0.0
          %3557 = vmatprep.subr.mxu0 0.0
          %3558 = vmatpush1.msra.mxu0 0.0
          %3559 = vmatprep.subr.mxu0 0.0
          %3560 = vmatpush1.msra.mxu0 0.0
          %3561 = vmatprep.subr.mxu0 0.0
          %3562 = vmatpush1.msra.mxu0 0.0
          %3563 = vmatprep.subr.mxu0 0.0
          %3564 = vmatpush1.msra.mxu0 0.0
          %3565 = vmatprep.subr.mxu0 0.0
          %3566 = vmatpush1.msra.mxu0 0.0
          %3567 = vmatprep.subr.mxu0 0.0
          %3568 = vmatpush1.msra.mxu0 0.0
          %3569 = vmatprep.subr.mxu0 0.0
          %3570 = vmatpush1.msra.mxu0 0.0
          %3571 = vmatprep.subr.mxu0 0.0
          %3572 = vmatpush1.msra.mxu0 0.0
          %3573 = vmatprep.subr.mxu0 0.0
          %3574 = vmatpush1.msra.mxu0 0.0
          %3575 = vmatprep.subr.mxu0 0.0
          %3576 = vmatpush1.msra.mxu0 0.0
          %3577 = vmatprep.subr.mxu0 0.0
          %3578 = vmatpush1.msra.mxu0 0.0
          %3579 = vmatprep.subr.mxu0 0.0
          %3580 = vmatpush1.msra.mxu0 0.0
          %3581 = vmatprep.subr.mxu0 0.0
          %3582 = vmatpush1.msra.mxu0 0.0
          %3583 = vmatprep.subr.mxu0 0.0
          %3584 = vmatpush1.msra.mxu0 0.0
          %3585 = vmatprep.subr.mxu0 0.0
          %3586 = vmatpush1.msra.mxu0 0.0
          %3587 = vmatprep.subr.mxu0 0.0
          %3588 = vmatpush1.msra.mxu0 0.0
          %3589 = vmatprep.subr.mxu0 0.0
          %3590 = vmatpush1.msra.mxu0 0.0
          %3591 = vmatprep.subr.mxu0 0.0
          %3592 = vmatpush1.msra.mxu0 0.0
          %3593 = vmatprep.subr.mxu0 0.0
          %3594 = vmatpush1.msra.mxu0 0.0
          %3595 = vmatprep.subr.mxu0 0.0
          %3596 = vmatpush1.msra.mxu0 0.0
          %3597 = vmatprep.subr.mxu0 0.0
          %3598 = vmatpush1.msra.mxu0 0.0
          %3599 = vmatprep.subr.mxu0 0.0
          %3600 = vmatpush1.msra.mxu0 0.0
          %3601 = vmatprep.subr.mxu0 0.0
          %3602 = vmatpush1.msra.mxu0 0.0
          %3603 = vmatprep.subr.mxu0 0.0
          %3604 = vmatpush1.msra.mxu0 0.0
          %3605 = vmatprep.subr.mxu0 0.0
          %3606 = vmatpush1.msra.mxu0 0.0
          %3607 = vmatprep.mubr.f32.mxu0 0.0
          %3608 = vmatmul.mubr.f32.gmra.mrb[0].mxu0 %v3381
          %v3609 = vpop.f32.mrb[0].mxu0
          %v3610 = vadd.f32 0.0, %v3609
          %v3611 = vpop.f32.mrb[0].mxu0
          %v3612 = vadd.f32 0.0, %v3611
          %3613 = vdwg.mxu0
          %v3615 = vsel %vm3379, %v2524, 0
          %v3618 = vsel %vm1822, %v3366, 0
          %v3621 = vsel %vm1822, %v3367, 0
          %v3624 = vsel %vm1822, %v3368, 0
          %v3627 = vsel %vm1822, %v3369, 0
          %v3630 = vsel %vm1822, %v3370, 0
          %v3633 = vsel %vm1822, %v3371, 0
          %3635 = vmatprep.subr.mxu0 %v3621
          %3636 = vmatpush1.msra.mxu0 %v3618
          %3637 = vmatprep.subr.mxu0 0.0
          %3638 = vmatpush1.msra.mxu0 0.0
          %3639 = vmatprep.subr.mxu0 0.0
          %3640 = vmatpush1.msra.mxu0 0.0
          %3641 = vmatprep.subr.mxu0 0.0
          %3642 = vmatpush1.msra.mxu0 0.0
          %3643 = vmatprep.subr.mxu0 0.0
          %3644 = vmatpush1.msra.mxu0 0.0
          %3645 = vmatprep.subr.mxu0 0.0
          %3646 = vmatpush1.msra.mxu0 0.0
          %3647 = vmatprep.subr.mxu0 0.0
          %3648 = vmatpush1.msra.mxu0 0.0
          %3649 = vmatprep.subr.mxu0 0.0
          %3650 = vmatpush1.msra.mxu0 0.0
          %3651 = vmatprep.subr.mxu0 0.0
          %3652 = vmatpush1.msra.mxu0 0.0
          %3653 = vmatprep.subr.mxu0 0.0
          %3654 = vmatpush1.msra.mxu0 0.0
          %3655 = vmatprep.subr.mxu0 0.0
          %3656 = vmatpush1.msra.mxu0 0.0
          %3657 = vmatprep.subr.mxu0 0.0
          %3658 = vmatpush1.msra.mxu0 0.0
          %3659 = vmatprep.subr.mxu0 0.0
          %3660 = vmatpush1.msra.mxu0 0.0
          %3661 = vmatprep.subr.mxu0 0.0
          %3662 = vmatpush1.msra.mxu0 0.0
          %3663 = vmatprep.subr.mxu0 0.0
          %3664 = vmatpush1.msra.mxu0 0.0
          %3665 = vmatprep.subr.mxu0 0.0
          %3666 = vmatpush1.msra.mxu0 0.0
          %3667 = vmatprep.subr.mxu0 0.0
          %3668 = vmatpush1.msra.mxu0 0.0
          %3669 = vmatprep.subr.mxu0 0.0
          %3670 = vmatpush1.msra.mxu0 0.0
          %3671 = vmatprep.subr.mxu0 0.0
          %3672 = vmatpush1.msra.mxu0 0.0
          %3673 = vmatprep.subr.mxu0 0.0
          %3674 = vmatpush1.msra.mxu0 0.0
          %3675 = vmatprep.subr.mxu0 0.0
          %3676 = vmatpush1.msra.mxu0 0.0
          %3677 = vmatprep.subr.mxu0 0.0
          %3678 = vmatpush1.msra.mxu0 0.0
          %3679 = vmatprep.subr.mxu0 0.0
          %3680 = vmatpush1.msra.mxu0 0.0
          %3681 = vmatprep.subr.mxu0 0.0
          %3682 = vmatpush1.msra.mxu0 0.0
          %3683 = vmatprep.subr.mxu0 0.0
          %3684 = vmatpush1.msra.mxu0 0.0
          %3685 = vmatprep.subr.mxu0 0.0
          %3686 = vmatpush1.msra.mxu0 0.0
          %3687 = vmatprep.subr.mxu0 0.0
          %3688 = vmatpush1.msra.mxu0 0.0
          %3689 = vmatprep.subr.mxu0 0.0
          %3690 = vmatpush1.msra.mxu0 0.0
          %3691 = vmatprep.subr.mxu0 0.0
          %3692 = vmatpush1.msra.mxu0 0.0
          %3693 = vmatprep.subr.mxu0 0.0
          %3694 = vmatpush1.msra.mxu0 0.0
          %3695 = vmatprep.subr.mxu0 0.0
          %3696 = vmatpush1.msra.mxu0 0.0
          %3697 = vmatprep.subr.mxu0 0.0
          %3698 = vmatpush1.msra.mxu0 0.0
          %3699 = vmatprep.mubr.f32.mxu0 0.0
          %3700 = vmatmul.mubr.f32.gmra.mrb[0].mxu0 %v3615
          %v3701 = vpop.f32.mrb[0].mxu0
          %v3702 = vadd.f32 %v3468, %v3701
          %v3703 = vpop.f32.mrb[0].mxu0
          %v3704 = vadd.f32 %v3470, %v3703
          %3705 = vdwg.mxu0
          %3706 = vmatprep.subr.mxu0 %v3627
          %3707 = vmatpush1.msra.mxu0 %v3624
          %3708 = vmatprep.subr.mxu0 0.0
          %3709 = vmatpush1.msra.mxu0 0.0
          %3710 = vmatprep.subr.mxu0 0.0
          %3711 = vmatpush1.msra.mxu0 0.0
          %3712 = vmatprep.subr.mxu0 0.0
          %3713 = vmatpush1.msra.mxu0 0.0
          %3714 = vmatprep.subr.mxu0 0.0
          %3715 = vmatpush1.msra.mxu0 0.0
          %3716 = vmatprep.subr.mxu0 0.0
          %3717 = vmatpush1.msra.mxu0 0.0
          %3718 = vmatprep.subr.mxu0 0.0
          %3719 = vmatpush1.msra.mxu0 0.0
          %3720 = vmatprep.subr.mxu0 0.0
          %3721 = vmatpush1.msra.mxu0 0.0
          %3722 = vmatprep.subr.mxu0 0.0
          %3723 = vmatpush1.msra.mxu0 0.0
          %3724 = vmatprep.subr.mxu0 0.0
          %3725 = vmatpush1.msra.mxu0 0.0
          %3726 = vmatprep.subr.mxu0 0.0
          %3727 = vmatpush1.msra.mxu0 0.0
          %3728 = vmatprep.subr.mxu0 0.0
          %3729 = vmatpush1.msra.mxu0 0.0
          %3730 = vmatprep.subr.mxu0 0.0
          %3731 = vmatpush1.msra.mxu0 0.0
          %3732 = vmatprep.subr.mxu0 0.0
          %3733 = vmatpush1.msra.mxu0 0.0
          %3734 = vmatprep.subr.mxu0 0.0
          %3735 = vmatpush1.msra.mxu0 0.0
          %3736 = vmatprep.subr.mxu0 0.0
          %3737 = vmatpush1.msra.mxu0 0.0
          %3738 = vmatprep.subr.mxu0 0.0
          %3739 = vmatpush1.msra.mxu0 0.0
          %3740 = vmatprep.subr.mxu0 0.0
          %3741 = vmatpush1.msra.mxu0 0.0
          %3742 = vmatprep.subr.mxu0 0.0
          %3743 = vmatpush1.msra.mxu0 0.0
          %3744 = vmatprep.subr.mxu0 0.0
          %3745 = vmatpush1.msra.mxu0 0.0
          %3746 = vmatprep.subr.mxu0 0.0
          %3747 = vmatpush1.msra.mxu0 0.0
          %3748 = vmatprep.subr.mxu0 0.0
          %3749 = vmatpush1.msra.mxu0 0.0
          %3750 = vmatprep.subr.mxu0 0.0
          %3751 = vmatpush1.msra.mxu0 0.0
          %3752 = vmatprep.subr.mxu0 0.0
          %3753 = vmatpush1.msra.mxu0 0.0
          %3754 = vmatprep.subr.mxu0 0.0
          %3755 = vmatpush1.msra.mxu0 0.0
          %3756 = vmatprep.subr.mxu0 0.0
          %3757 = vmatpush1.msra.mxu0 0.0
          %3758 = vmatprep.subr.mxu0 0.0
          %3759 = vmatpush1.msra.mxu0 0.0
          %3760 = vmatprep.subr.mxu0 0.0
          %3761 = vmatpush1.msra.mxu0 0.0
          %3762 = vmatprep.subr.mxu0 0.0
          %3763 = vmatpush1.msra.mxu0 0.0
          %3764 = vmatprep.subr.mxu0 0.0
          %3765 = vmatpush1.msra.mxu0 0.0
          %3766 = vmatprep.subr.mxu0 0.0
          %3767 = vmatpush1.msra.mxu0 0.0
          %3768 = vmatprep.subr.mxu0 0.0
          %3769 = vmatpush1.msra.mxu0 0.0
          %3770 = vmatprep.mubr.f32.mxu0 0.0
          %3771 = vmatmul.mubr.f32.gmra.mrb[0].mxu0 %v3615
          %v3772 = vpop.f32.mrb[0].mxu0
          %v3773 = vadd.f32 %v3539, %v3772
          %v3774 = vpop.f32.mrb[0].mxu0
          %v3775 = vadd.f32 %v3541, %v3774
          %3776 = vdwg.mxu0
          %3777 = vmatprep.subr.mxu0 %v3633
          %3778 = vmatpush1.msra.mxu0 %v3630
          %3779 = vmatprep.subr.mxu0 0.0
          %3780 = vmatpush1.msra.mxu0 0.0
          %3781 = vmatprep.subr.mxu0 0.0
          %3782 = vmatpush1.msra.mxu0 0.0
          %3783 = vmatprep.subr.mxu0 0.0
          %3784 = vmatpush1.msra.mxu0 0.0
          %3785 = vmatprep.subr.mxu0 0.0
          %3786 = vmatpush1.msra.mxu0 0.0
          %3787 = vmatprep.subr.mxu0 0.0
          %3788 = vmatpush1.msra.mxu0 0.0
          %3789 = vmatprep.subr.mxu0 0.0
          %3790 = vmatpush1.msra.mxu0 0.0
          %3791 = vmatprep.subr.mxu0 0.0
          %3792 = vmatpush1.msra.mxu0 0.0
          %3793 = vmatprep.subr.mxu0 0.0
          %3794 = vmatpush1.msra.mxu0 0.0
          %3795 = vmatprep.subr.mxu0 0.0
          %3796 = vmatpush1.msra.mxu0 0.0
          %3797 = vmatprep.subr.mxu0 0.0
          %3798 = vmatpush1.msra.mxu0 0.0
          %3799 = vmatprep.subr.mxu0 0.0
          %3800 = vmatpush1.msra.mxu0 0.0
          %3801 = vmatprep.subr.mxu0 0.0
          %3802 = vmatpush1.msra.mxu0 0.0
          %3803 = vmatprep.subr.mxu0 0.0
          %3804 = vmatpush1.msra.mxu0 0.0
          %3805 = vmatprep.subr.mxu0 0.0
          %3806 = vmatpush1.msra.mxu0 0.0
          %3807 = vmatprep.subr.mxu0 0.0
          %3808 = vmatpush1.msra.mxu0 0.0
          %3809 = vmatprep.subr.mxu0 0.0
          %3810 = vmatpush1.msra.mxu0 0.0
          %3811 = vmatprep.subr.mxu0 0.0
          %3812 = vmatpush1.msra.mxu0 0.0
          %3813 = vmatprep.subr.mxu0 0.0
          %3814 = vmatpush1.msra.mxu0 0.0
          %3815 = vmatprep.subr.mxu0 0.0
          %3816 = vmatpush1.msra.mxu0 0.0
          %3817 = vmatprep.subr.mxu0 0.0
          %3818 = vmatpush1.msra.mxu0 0.0
          %3819 = vmatprep.subr.mxu0 0.0
          %3820 = vmatpush1.msra.mxu0 0.0
          %3821 = vmatprep.subr.mxu0 0.0
          %3822 = vmatpush1.msra.mxu0 0.0
          %3823 = vmatprep.subr.mxu0 0.0
          %3824 = vmatpush1.msra.mxu0 0.0
          %3825 = vmatprep.subr.mxu0 0.0
          %3826 = vmatpush1.msra.mxu0 0.0
          %3827 = vmatprep.subr.mxu0 0.0
          %3828 = vmatpush1.msra.mxu0 0.0
          %3829 = vmatprep.subr.mxu0 0.0
          %3830 = vmatpush1.msra.mxu0 0.0
          %3831 = vmatprep.subr.mxu0 0.0
          %3832 = vmatpush1.msra.mxu0 0.0
          %3833 = vmatprep.subr.mxu0 0.0
          %3834 = vmatpush1.msra.mxu0 0.0
          %3835 = vmatprep.subr.mxu0 0.0
          %3836 = vmatpush1.msra.mxu0 0.0
          %3837 = vmatprep.subr.mxu0 0.0
          %3838 = vmatpush1.msra.mxu0 0.0
          %3839 = vmatprep.subr.mxu0 0.0
          %3840 = vmatpush1.msra.mxu0 0.0
          %3841 = vmatprep.mubr.f32.mxu0 0.0
          %3842 = vmatmul.mubr.f32.gmra.mrb[0].mxu0 %v3615
          %v3843 = vpop.f32.mrb[0].mxu0
          %v3844 = vadd.f32 %v3610, %v3843
          %v3845 = vpop.f32.mrb[0].mxu0
          %v3846 = vadd.f32 %v3612, %v3845
          %3847 = vdwg.mxu0
          %s3848 = scalar_lea.vmem %s53, 96
          %v3849 = vld [vmem:[%s3848] sm:$0x1f]
          %v3850 = vld [vmem:[%s3848 + $0x8] sm:$0x1f]
          %v3851 = vld [vmem:[%s3848 + $0x10] sm:$0x1f]
          %v3852 = vld [vmem:[%s3848 + $0x18] sm:$0x1f]
          %v3853 = vld [vmem:[%s3848 + $0x20] sm:$0x1f]
          %v3854 = vld [vmem:[%s3848 + $0x28] sm:$0x1f]
          %v3856 = vsel %vm3379, %v2526, 0
          %v3859 = vsel %vm1822, %v3849, 0
          %v3862 = vsel %vm1822, %v3850, 0
          %v3865 = vsel %vm1822, %v3851, 0
          %v3868 = vsel %vm1822, %v3852, 0
          %v3871 = vsel %vm1822, %v3853, 0
          %v3874 = vsel %vm1822, %v3854, 0
          %3876 = vmatprep.subr.mxu0 %v3862
          %3877 = vmatpush1.msra.mxu0 %v3859
          %3878 = vmatprep.subr.mxu0 0.0
          %3879 = vmatpush1.msra.mxu0 0.0
          %3880 = vmatprep.subr.mxu0 0.0
          %3881 = vmatpush1.msra.mxu0 0.0
          %3882 = vmatprep.subr.mxu0 0.0
          %3883 = vmatpush1.msra.mxu0 0.0
          %3884 = vmatprep.subr.mxu0 0.0
          %3885 = vmatpush1.msra.mxu0 0.0
          %3886 = vmatprep.subr.mxu0 0.0
          %3887 = vmatpush1.msra.mxu0 0.0
          %3888 = vmatprep.subr.mxu0 0.0
          %3889 = vmatpush1.msra.mxu0 0.0
          %3890 = vmatprep.subr.mxu0 0.0
          %3891 = vmatpush1.msra.mxu0 0.0
          %3892 = vmatprep.subr.mxu0 0.0
          %3893 = vmatpush1.msra.mxu0 0.0
          %3894 = vmatprep.subr.mxu0 0.0
          %3895 = vmatpush1.msra.mxu0 0.0
          %3896 = vmatprep.subr.mxu0 0.0
          %3897 = vmatpush1.msra.mxu0 0.0
          %3898 = vmatprep.subr.mxu0 0.0
          %3899 = vmatpush1.msra.mxu0 0.0
          %3900 = vmatprep.subr.mxu0 0.0
          %3901 = vmatpush1.msra.mxu0 0.0
          %3902 = vmatprep.subr.mxu0 0.0
          %3903 = vmatpush1.msra.mxu0 0.0
          %3904 = vmatprep.subr.mxu0 0.0
          %3905 = vmatpush1.msra.mxu0 0.0
          %3906 = vmatprep.subr.mxu0 0.0
          %3907 = vmatpush1.msra.mxu0 0.0
          %3908 = vmatprep.subr.mxu0 0.0
          %3909 = vmatpush1.msra.mxu0 0.0
          %3910 = vmatprep.subr.mxu0 0.0
          %3911 = vmatpush1.msra.mxu0 0.0
          %3912 = vmatprep.subr.mxu0 0.0
          %3913 = vmatpush1.msra.mxu0 0.0
          %3914 = vmatprep.subr.mxu0 0.0
          %3915 = vmatpush1.msra.mxu0 0.0
          %3916 = vmatprep.subr.mxu0 0.0
          %3917 = vmatpush1.msra.mxu0 0.0
          %3918 = vmatprep.subr.mxu0 0.0
          %3919 = vmatpush1.msra.mxu0 0.0
          %3920 = vmatprep.subr.mxu0 0.0
          %3921 = vmatpush1.msra.mxu0 0.0
          %3922 = vmatprep.subr.mxu0 0.0
          %3923 = vmatpush1.msra.mxu0 0.0
          %3924 = vmatprep.subr.mxu0 0.0
          %3925 = vmatpush1.msra.mxu0 0.0
          %3926 = vmatprep.subr.mxu0 0.0
          %3927 = vmatpush1.msra.mxu0 0.0
          %3928 = vmatprep.subr.mxu0 0.0
          %3929 = vmatpush1.msra.mxu0 0.0
          %3930 = vmatprep.subr.mxu0 0.0
          %3931 = vmatpush1.msra.mxu0 0.0
          %3932 = vmatprep.subr.mxu0 0.0
          %3933 = vmatpush1.msra.mxu0 0.0
          %3934 = vmatprep.subr.mxu0 0.0
          %3935 = vmatpush1.msra.mxu0 0.0
          %3936 = vmatprep.subr.mxu0 0.0
          %3937 = vmatpush1.msra.mxu0 0.0
          %3938 = vmatprep.subr.mxu0 0.0
          %3939 = vmatpush1.msra.mxu0 0.0
          %3940 = vmatprep.mubr.f32.mxu0 0.0
          %3941 = vmatmul.mubr.f32.gmra.mrb[0].mxu0 %v3856
          %v3942 = vpop.f32.mrb[0].mxu0
          %v3943 = vadd.f32 0.0, %v3942
          %v3944 = vpop.f32.mrb[0].mxu0
          %v3945 = vadd.f32 0.0, %v3944
          %3946 = vdwg.mxu0
          %3947 = vmatprep.subr.mxu0 %v3868
          %3948 = vmatpush1.msra.mxu0 %v3865
          %3949 = vmatprep.subr.mxu0 0.0
          %3950 = vmatpush1.msra.mxu0 0.0
          %3951 = vmatprep.subr.mxu0 0.0
          %3952 = vmatpush1.msra.mxu0 0.0
          %3953 = vmatprep.subr.mxu0 0.0
          %3954 = vmatpush1.msra.mxu0 0.0
          %3955 = vmatprep.subr.mxu0 0.0
          %3956 = vmatpush1.msra.mxu0 0.0
          %3957 = vmatprep.subr.mxu0 0.0
          %3958 = vmatpush1.msra.mxu0 0.0
          %3959 = vmatprep.subr.mxu0 0.0
          %3960 = vmatpush1.msra.mxu0 0.0
          %3961 = vmatprep.subr.mxu0 0.0
          %3962 = vmatpush1.msra.mxu0 0.0
          %3963 = vmatprep.subr.mxu0 0.0
          %3964 = vmatpush1.msra.mxu0 0.0
          %3965 = vmatprep.subr.mxu0 0.0
          %3966 = vmatpush1.msra.mxu0 0.0
          %3967 = vmatprep.subr.mxu0 0.0
          %3968 = vmatpush1.msra.mxu0 0.0
          %3969 = vmatprep.subr.mxu0 0.0
          %3970 = vmatpush1.msra.mxu0 0.0
          %3971 = vmatprep.subr.mxu0 0.0
          %3972 = vmatpush1.msra.mxu0 0.0
          %3973 = vmatprep.subr.mxu0 0.0
          %3974 = vmatpush1.msra.mxu0 0.0
          %3975 = vmatprep.subr.mxu0 0.0
          %3976 = vmatpush1.msra.mxu0 0.0
          %3977 = vmatprep.subr.mxu0 0.0
          %3978 = vmatpush1.msra.mxu0 0.0
          %3979 = vmatprep.subr.mxu0 0.0
          %3980 = vmatpush1.msra.mxu0 0.0
          %3981 = vmatprep.subr.mxu0 0.0
          %3982 = vmatpush1.msra.mxu0 0.0
          %3983 = vmatprep.subr.mxu0 0.0
          %3984 = vmatpush1.msra.mxu0 0.0
          %3985 = vmatprep.subr.mxu0 0.0
          %3986 = vmatpush1.msra.mxu0 0.0
          %3987 = vmatprep.subr.mxu0 0.0
          %3988 = vmatpush1.msra.mxu0 0.0
          %3989 = vmatprep.subr.mxu0 0.0
          %3990 = vmatpush1.msra.mxu0 0.0
          %3991 = vmatprep.subr.mxu0 0.0
          %3992 = vmatpush1.msra.mxu0 0.0
          %3993 = vmatprep.subr.mxu0 0.0
          %3994 = vmatpush1.msra.mxu0 0.0
          %3995 = vmatprep.subr.mxu0 0.0
          %3996 = vmatpush1.msra.mxu0 0.0
          %3997 = vmatprep.subr.mxu0 0.0
          %3998 = vmatpush1.msra.mxu0 0.0
          %3999 = vmatprep.subr.mxu0 0.0
          %4000 = vmatpush1.msra.mxu0 0.0
          %4001 = vmatprep.subr.mxu0 0.0
          %4002 = vmatpush1.msra.mxu0 0.0
          %4003 = vmatprep.subr.mxu0 0.0
          %4004 = vmatpush1.msra.mxu0 0.0
          %4005 = vmatprep.subr.mxu0 0.0
          %4006 = vmatpush1.msra.mxu0 0.0
          %4007 = vmatprep.subr.mxu0 0.0
          %4008 = vmatpush1.msra.mxu0 0.0
          %4009 = vmatprep.subr.mxu0 0.0
          %4010 = vmatpush1.msra.mxu0 0.0
          %4011 = vmatprep.mubr.f32.mxu0 0.0
          %4012 = vmatmul.mubr.f32.gmra.mrb[0].mxu0 %v3856
          %v4013 = vpop.f32.mrb[0].mxu0
          %v4014 = vadd.f32 0.0, %v4013
          %v4015 = vpop.f32.mrb[0].mxu0
          %v4016 = vadd.f32 0.0, %v4015
          %4017 = vdwg.mxu0
          %4018 = vmatprep.subr.mxu0 %v3874
          %4019 = vmatpush1.msra.mxu0 %v3871
          %4020 = vmatprep.subr.mxu0 0.0
          %4021 = vmatpush1.msra.mxu0 0.0
          %4022 = vmatprep.subr.mxu0 0.0
          %4023 = vmatpush1.msra.mxu0 0.0
          %4024 = vmatprep.subr.mxu0 0.0
          %4025 = vmatpush1.msra.mxu0 0.0
          %4026 = vmatprep.subr.mxu0 0.0
          %4027 = vmatpush1.msra.mxu0 0.0
          %4028 = vmatprep.subr.mxu0 0.0
          %4029 = vmatpush1.msra.mxu0 0.0
          %4030 = vmatprep.subr.mxu0 0.0
          %4031 = vmatpush1.msra.mxu0 0.0
          %4032 = vmatprep.subr.mxu0 0.0
          %4033 = vmatpush1.msra.mxu0 0.0
          %4034 = vmatprep.subr.mxu0 0.0
          %4035 = vmatpush1.msra.mxu0 0.0
          %4036 = vmatprep.subr.mxu0 0.0
          %4037 = vmatpush1.msra.mxu0 0.0
          %4038 = vmatprep.subr.mxu0 0.0
          %4039 = vmatpush1.msra.mxu0 0.0
          %4040 = vmatprep.subr.mxu0 0.0
          %4041 = vmatpush1.msra.mxu0 0.0
          %4042 = vmatprep.subr.mxu0 0.0
          %4043 = vmatpush1.msra.mxu0 0.0
          %4044 = vmatprep.subr.mxu0 0.0
          %4045 = vmatpush1.msra.mxu0 0.0
          %4046 = vmatprep.subr.mxu0 0.0
          %4047 = vmatpush1.msra.mxu0 0.0
          %4048 = vmatprep.subr.mxu0 0.0
          %4049 = vmatpush1.msra.mxu0 0.0
          %4050 = vmatprep.subr.mxu0 0.0
          %4051 = vmatpush1.msra.mxu0 0.0
          %4052 = vmatprep.subr.mxu0 0.0
          %4053 = vmatpush1.msra.mxu0 0.0
          %4054 = vmatprep.subr.mxu0 0.0
          %4055 = vmatpush1.msra.mxu0 0.0
          %4056 = vmatprep.subr.mxu0 0.0
          %4057 = vmatpush1.msra.mxu0 0.0
          %4058 = vmatprep.subr.mxu0 0.0
          %4059 = vmatpush1.msra.mxu0 0.0
          %4060 = vmatprep.subr.mxu0 0.0
          %4061 = vmatpush1.msra.mxu0 0.0
          %4062 = vmatprep.subr.mxu0 0.0
          %4063 = vmatpush1.msra.mxu0 0.0
          %4064 = vmatprep.subr.mxu0 0.0
          %4065 = vmatpush1.msra.mxu0 0.0
          %4066 = vmatprep.subr.mxu0 0.0
          %4067 = vmatpush1.msra.mxu0 0.0
          %4068 = vmatprep.subr.mxu0 0.0
          %4069 = vmatpush1.msra.mxu0 0.0
          %4070 = vmatprep.subr.mxu0 0.0
          %4071 = vmatpush1.msra.mxu0 0.0
          %4072 = vmatprep.subr.mxu0 0.0
          %4073 = vmatpush1.msra.mxu0 0.0
          %4074 = vmatprep.subr.mxu0 0.0
          %4075 = vmatpush1.msra.mxu0 0.0
          %4076 = vmatprep.subr.mxu0 0.0
          %4077 = vmatpush1.msra.mxu0 0.0
          %4078 = vmatprep.subr.mxu0 0.0
          %4079 = vmatpush1.msra.mxu0 0.0
          %4080 = vmatprep.subr.mxu0 0.0
          %4081 = vmatpush1.msra.mxu0 0.0
          %4082 = vmatprep.mubr.f32.mxu0 0.0
          %4083 = vmatmul.mubr.f32.gmra.mrb[0].mxu0 %v3856
          %v4084 = vpop.f32.mrb[0].mxu0
          %v4085 = vadd.f32 0.0, %v4084
          %v4086 = vpop.f32.mrb[0].mxu0
          %v4087 = vadd.f32 0.0, %v4086
          %4088 = vdwg.mxu0
          %v4089 = vadd.f32 %v3702, %v3943
          %v4090 = vadd.f32 %v3704, %v3945
          %v4091 = vadd.f32 %v3773, %v4014
          %v4092 = vadd.f32 %v3775, %v4016
          %v4093 = vadd.f32 %v3844, %v4085
          %v4094 = vadd.f32 %v3846, %v4087
          %v4095 = vld [vmem:[%s55] sm:$0xff]
          %v4096 = vld [vmem:[%s55 + $0x8] sm:$0xff]
          %v4097 = vld [vmem:[%s55 + $0x10] sm:$0xff]
          %v4098 = vld [vmem:[%s55 + $0x18] sm:$0xff]
          %v4099 = vld [vmem:[%s55 + $0x20] sm:$0xff]
          %v4100 = vld [vmem:[%s55 + $0x28] sm:$0xff]
          %v4101 = vld [vmem:[%s55 + $0x30] sm:$0xff]
          %v4102 = vld [vmem:[%s55 + $0x38] sm:$0xff]
          %v4103 = vld [vmem:[%s55 + $0x40] sm:$0xff]
          %v4104 = vld [vmem:[%s55 + $0x48] sm:$0xff]
          %v4105 = vld [vmem:[%s55 + $0x50] sm:$0xff]
          %v4106 = vld [vmem:[%s55 + $0x58] sm:$0xff]
          %v4107 = vld [vmem:[%s55 + $0x60] sm:$0xff]
          %v4108 = vld [vmem:[%s55 + $0x68] sm:$0xff]
          %v4109 = vld [vmem:[%s55 + $0x70] sm:$0xff]
          %v4110 = vld [vmem:[%s55 + $0x78] sm:$0xff]
          %v4111 = vld [vmem:[%s55 + $0x80] sm:$0xff]
          %v4112 = vld [vmem:[%s55 + $0x88] sm:$0xff]
          %v4113 = vld [vmem:[%s55 + $0x90] sm:$0xff]
          %v4114 = vld [vmem:[%s55 + $0x98] sm:$0xff]
          %v4115 = vld [vmem:[%s55 + $0xa0] sm:$0xff]
          %v4116 = vld [vmem:[%s55 + $0xa8] sm:$0xff]
          %v4117 = vld [vmem:[%s55 + $0xb0] sm:$0xff]
          %v4118 = vld [vmem:[%s55 + $0xb8] sm:$0xff]
          %v4119 = vld [vmem:[%s55 + $0xc0] sm:$0xff]
          %v4120 = vld [vmem:[%s55 + $0xc8] sm:$0xff]
          %v4121 = vld [vmem:[%s55 + $0xd0] sm:$0xff]
          %v4122 = vld [vmem:[%s55 + $0xd8] sm:$0xff]
          %v4123 = vld [vmem:[%s55 + $0xe0] sm:$0xff]
          %v4124 = vld [vmem:[%s55 + $0xe8] sm:$0xff]
          %v4125 = vld [vmem:[%s55 + $0xf0] sm:$0xff]
          %v4126 = vld [vmem:[%s55 + $0xf8] sm:$0xff]
          %v4127 = vld [vmem:[%s55 + $0x100] sm:$0xff]
          %v4128 = vld [vmem:[%s55 + $0x108] sm:$0xff]
          %v4129 = vld [vmem:[%s55 + $0x110] sm:$0xff]
          %v4130 = vld [vmem:[%s55 + $0x118] sm:$0xff]
          %v4131 = vld [vmem:[%s55 + $0x120] sm:$0xff]
          %v4132 = vld [vmem:[%s55 + $0x128] sm:$0xff]
          %v4133 = vld [vmem:[%s55 + $0x130] sm:$0xff]
          %v4134 = vld [vmem:[%s55 + $0x138] sm:$0xff]
          %v4135 = vld [vmem:[%s55 + $0x140] sm:$0xff]
          %v4136 = vld [vmem:[%s55 + $0x148] sm:$0xff]
          %v4137 = vld [vmem:[%s55 + $0x150] sm:$0xff]
          %v4138 = vld [vmem:[%s55 + $0x158] sm:$0xff]
          %v4139 = vld [vmem:[%s55 + $0x160] sm:$0xff]
          %v4140 = vld [vmem:[%s55 + $0x168] sm:$0xff]
          %v4141 = vld [vmem:[%s55 + $0x170] sm:$0xff]
          %v4142 = vld [vmem:[%s55 + $0x178] sm:$0xff]
          %v4143 = vld [vmem:[%s55 + $0x180] sm:$0xff]
          %v4144 = vld [vmem:[%s55 + $0x188] sm:$0xff]
          %v4145 = vld [vmem:[%s55 + $0x190] sm:$0xff]
          %v4146 = vld [vmem:[%s55 + $0x198] sm:$0xff]
          %v4147 = vld [vmem:[%s55 + $0x1a0] sm:$0xff]
          %v4148 = vld [vmem:[%s55 + $0x1a8] sm:$0xff]
          %v4149 = vld [vmem:[%s55 + $0x1b0] sm:$0xff]
          %v4150 = vld [vmem:[%s55 + $0x1b8] sm:$0xff]
          %v4151 = vld [vmem:[%s55 + $0x1c0] sm:$0xff]
          %v4152 = vld [vmem:[%s55 + $0x1c8] sm:$0xff]
          %v4153 = vld [vmem:[%s55 + $0x1d0] sm:$0xff]
          %v4154 = vld [vmem:[%s55 + $0x1d8] sm:$0xff]
          %v4155 = vld [vmem:[%s55 + $0x1e0] sm:$0xff]
          %v4156 = vld [vmem:[%s55 + $0x1e8] sm:$0xff]
          %v4157 = vld [vmem:[%s55 + $0x1f0] sm:$0xff]
          %v4158 = vld [vmem:[%s55 + $0x1f8] sm:$0xff]
          %v4159 = vld [vmem:[%s55 + $0x200] sm:$0xff]
          %v4160 = vld [vmem:[%s55 + $0x208] sm:$0xff]
          %v4161 = vld [vmem:[%s55 + $0x210] sm:$0xff]
          %v4162 = vld [vmem:[%s55 + $0x218] sm:$0xff]
          %v4163 = vld [vmem:[%s55 + $0x220] sm:$0xff]
          %v4164 = vld [vmem:[%s55 + $0x228] sm:$0xff]
          %v4165 = vld [vmem:[%s55 + $0x230] sm:$0xff]
          %v4166 = vld [vmem:[%s55 + $0x238] sm:$0xff]
          %v4167 = vld [vmem:[%s55 + $0x240] sm:$0xff]
          %v4168 = vld [vmem:[%s55 + $0x248] sm:$0xff]
          %v4169 = vld [vmem:[%s55 + $0x250] sm:$0xff]
          %v4170 = vld [vmem:[%s55 + $0x258] sm:$0xff]
          %v4171 = vld [vmem:[%s55 + $0x260] sm:$0xff]
          %v4172 = vld [vmem:[%s55 + $0x268] sm:$0xff]
          %v4173 = vld [vmem:[%s55 + $0x270] sm:$0xff]
          %v4174 = vld [vmem:[%s55 + $0x278] sm:$0xff]
          %v4175 = vld [vmem:[%s55 + $0x280] sm:$0xff]
          %v4176 = vld [vmem:[%s55 + $0x288] sm:$0xff]
          %v4177 = vld [vmem:[%s55 + $0x290] sm:$0xff]
          %v4178 = vld [vmem:[%s55 + $0x298] sm:$0xff]
          %v4179 = vld [vmem:[%s55 + $0x2a0] sm:$0xff]
          %v4180 = vld [vmem:[%s55 + $0x2a8] sm:$0xff]
          %v4181 = vld [vmem:[%s55 + $0x2b0] sm:$0xff]
          %v4182 = vld [vmem:[%s55 + $0x2b8] sm:$0xff]
          %v4183 = vld [vmem:[%s55 + $0x2c0] sm:$0xff]
          %v4184 = vld [vmem:[%s55 + $0x2c8] sm:$0xff]
          %v4185 = vld [vmem:[%s55 + $0x2d0] sm:$0xff]
          %v4186 = vld [vmem:[%s55 + $0x2d8] sm:$0xff]
          %v4187 = vld [vmem:[%s55 + $0x2e0] sm:$0xff]
          %v4188 = vld [vmem:[%s55 + $0x2e8] sm:$0xff]
          %v4189 = vld [vmem:[%s55 + $0x2f0] sm:$0xff]
          %v4190 = vld [vmem:[%s55 + $0x2f8] sm:$0xff]
          %v4191 = vld [vmem:[%s55 + $0x300] sm:$0xff]
          %v4192 = vld [vmem:[%s55 + $0x308] sm:$0xff]
          %v4193 = vld [vmem:[%s55 + $0x310] sm:$0xff]
          %v4194 = vld [vmem:[%s55 + $0x318] sm:$0xff]
          %v4195 = vld [vmem:[%s55 + $0x320] sm:$0xff]
          %v4196 = vld [vmem:[%s55 + $0x328] sm:$0xff]
          %v4197 = vld [vmem:[%s55 + $0x330] sm:$0xff]
          %v4198 = vld [vmem:[%s55 + $0x338] sm:$0xff]
          %v4199 = vld [vmem:[%s55 + $0x340] sm:$0xff]
          %v4200 = vld [vmem:[%s55 + $0x348] sm:$0xff]
          %v4201 = vld [vmem:[%s55 + $0x350] sm:$0xff]
          %v4202 = vld [vmem:[%s55 + $0x358] sm:$0xff]
          %v4203 = vld [vmem:[%s55 + $0x360] sm:$0xff]
          %v4204 = vld [vmem:[%s55 + $0x368] sm:$0xff]
          %v4205 = vld [vmem:[%s55 + $0x370] sm:$0xff]
          %v4206 = vld [vmem:[%s55 + $0x378] sm:$0xff]
          %v4207 = vld [vmem:[%s55 + $0x380] sm:$0xff]
          %v4208 = vld [vmem:[%s55 + $0x388] sm:$0xff]
          %v4209 = vld [vmem:[%s55 + $0x390] sm:$0xff]
          %v4210 = vld [vmem:[%s55 + $0x398] sm:$0xff]
          %v4211 = vld [vmem:[%s55 + $0x3a0] sm:$0xff]
          %v4212 = vld [vmem:[%s55 + $0x3a8] sm:$0xff]
          %v4213 = vld [vmem:[%s55 + $0x3b0] sm:$0xff]
          %v4214 = vld [vmem:[%s55 + $0x3b8] sm:$0xff]
          %v4215 = vld [vmem:[%s55 + $0x3c0] sm:$0xff]
          %v4216 = vld [vmem:[%s55 + $0x3c8] sm:$0xff]
          %v4217 = vld [vmem:[%s55 + $0x3d0] sm:$0xff]
          %v4218 = vld [vmem:[%s55 + $0x3d8] sm:$0xff]
          %v4219 = vld [vmem:[%s55 + $0x3e0] sm:$0xff]
          %v4220 = vld [vmem:[%s55 + $0x3e8] sm:$0xff]
          %v4221 = vld [vmem:[%s55 + $0x3f0] sm:$0xff]
          %v4222 = vld [vmem:[%s55 + $0x3f8] sm:$0xff]
          %v4223 = vld [vmem:[%s55 + $0x400] sm:$0xff]
          %v4224 = vld [vmem:[%s55 + $0x408] sm:$0xff]
          %v4225 = vld [vmem:[%s55 + $0x410] sm:$0xff]
          %v4226 = vld [vmem:[%s55 + $0x418] sm:$0xff]
          %v4227 = vld [vmem:[%s55 + $0x420] sm:$0xff]
          %v4228 = vld [vmem:[%s55 + $0x428] sm:$0xff]
          %v4229 = vld [vmem:[%s55 + $0x430] sm:$0xff]
          %v4230 = vld [vmem:[%s55 + $0x438] sm:$0xff]
          %v4231 = vld [vmem:[%s55 + $0x440] sm:$0xff]
          %v4232 = vld [vmem:[%s55 + $0x448] sm:$0xff]
          %v4233 = vld [vmem:[%s55 + $0x450] sm:$0xff]
          %v4234 = vld [vmem:[%s55 + $0x458] sm:$0xff]
          %v4235 = vld [vmem:[%s55 + $0x460] sm:$0xff]
          %v4236 = vld [vmem:[%s55 + $0x468] sm:$0xff]
          %v4237 = vld [vmem:[%s55 + $0x470] sm:$0xff]
          %v4238 = vld [vmem:[%s55 + $0x478] sm:$0xff]
          %v4240 = vsel %vm1253, 0.0, 0
          %4242 = vmatprep.subr.mxu0 %v4096
          %4243 = vmatpush1.msra.mxu0 %v4095
          %4244 = vmatprep.subr.mxu0 %v4102
          %4245 = vmatpush1.msra.mxu0 %v4101
          %4246 = vmatprep.subr.mxu0 %v4108
          %4247 = vmatpush1.msra.mxu0 %v4107
          %4248 = vmatprep.subr.mxu0 %v4114
          %4249 = vmatpush1.msra.mxu0 %v4113
          %4250 = vmatprep.subr.mxu0 %v4120
          %4251 = vmatpush1.msra.mxu0 %v4119
          %4252 = vmatprep.subr.mxu0 %v4126
          %4253 = vmatpush1.msra.mxu0 %v4125
          %4254 = vmatprep.subr.mxu0 %v4132
          %4255 = vmatpush1.msra.mxu0 %v4131
          %4256 = vmatprep.subr.mxu0 %v4138
          %4257 = vmatpush1.msra.mxu0 %v4137
          %4258 = vmatprep.subr.mxu0 %v4144
          %4259 = vmatpush1.msra.mxu0 %v4143
          %4260 = vmatprep.subr.mxu0 %v4150
          %4261 = vmatpush1.msra.mxu0 %v4149
          %4262 = vmatprep.subr.mxu0 %v4156
          %4263 = vmatpush1.msra.mxu0 %v4155
          %4264 = vmatprep.subr.mxu0 %v4162
          %4265 = vmatpush1.msra.mxu0 %v4161
          %4266 = vmatprep.subr.mxu0 %v4168
          %4267 = vmatpush1.msra.mxu0 %v4167
          %4268 = vmatprep.subr.mxu0 %v4174
          %4269 = vmatpush1.msra.mxu0 %v4173
          %4270 = vmatprep.subr.mxu0 %v4180
          %4271 = vmatpush1.msra.mxu0 %v4179
          %4272 = vmatprep.subr.mxu0 %v4186
          %4273 = vmatpush1.msra.mxu0 %v4185
          %4274 = vmatprep.subr.mxu0 %v4192
          %4275 = vmatpush1.msra.mxu0 %v4191
          %4276 = vmatprep.subr.mxu0 %v4198
          %4277 = vmatpush1.msra.mxu0 %v4197
          %4278 = vmatprep.subr.mxu0 %v4204
          %4279 = vmatpush1.msra.mxu0 %v4203
          %4280 = vmatprep.subr.mxu0 %v4210
          %4281 = vmatpush1.msra.mxu0 %v4209
          %4282 = vmatprep.subr.mxu0 %v4216
          %4283 = vmatpush1.msra.mxu0 %v4215
          %4284 = vmatprep.subr.mxu0 %v4222
          %4285 = vmatpush1.msra.mxu0 %v4221
          %4286 = vmatprep.subr.mxu0 %v4228
          %4287 = vmatpush1.msra.mxu0 %v4227
          %4288 = vmatprep.subr.mxu0 %v4234
          %4289 = vmatpush1.msra.mxu0 %v4233
          %4290 = vmatprep.subr.mxu0 0.0
          %4291 = vmatpush1.msra.mxu0 0.0
          %4292 = vmatprep.subr.mxu0 0.0
          %4293 = vmatpush1.msra.mxu0 0.0
          %4294 = vmatprep.subr.mxu0 0.0
          %4295 = vmatpush1.msra.mxu0 0.0
          %4296 = vmatprep.subr.mxu0 0.0
          %4297 = vmatpush1.msra.mxu0 0.0
          %4298 = vmatprep.subr.mxu0 0.0
          %4299 = vmatpush1.msra.mxu0 0.0
          %4300 = vmatprep.subr.mxu0 0.0
          %4301 = vmatpush1.msra.mxu0 0.0
          %4302 = vmatprep.subr.mxu0 0.0
          %4303 = vmatpush1.msra.mxu0 0.0
          %4304 = vmatprep.subr.mxu0 0.0
          %4305 = vmatpush1.msra.mxu0 0.0
          %4306 = vmatprep.mubr.f32.mxu0 %v4240
          %4307 = vmatmul.mubr.f32.gmra.mrb[0].mxu0 0.0
          %v4308 = vpop.f32.mrb[0].mxu0
          %v4309 = vadd.f32 0.0, %v4308
          %v4310 = vpop.f32.mrb[0].mxu0
          %v4311 = vadd.f32 0.0, %v4310
          %4312 = vdwg.mxu0
          %4313 = vmatprep.subr.mxu0 %v4098
          %4314 = vmatpush1.msra.mxu0 %v4097
          %4315 = vmatprep.subr.mxu0 %v4104
          %4316 = vmatpush1.msra.mxu0 %v4103
          %4317 = vmatprep.subr.mxu0 %v4110
          %4318 = vmatpush1.msra.mxu0 %v4109
          %4319 = vmatprep.subr.mxu0 %v4116
          %4320 = vmatpush1.msra.mxu0 %v4115
          %4321 = vmatprep.subr.mxu0 %v4122
          %4322 = vmatpush1.msra.mxu0 %v4121
          %4323 = vmatprep.subr.mxu0 %v4128
          %4324 = vmatpush1.msra.mxu0 %v4127
          %4325 = vmatprep.subr.mxu0 %v4134
          %4326 = vmatpush1.msra.mxu0 %v4133
          %4327 = vmatprep.subr.mxu0 %v4140
          %4328 = vmatpush1.msra.mxu0 %v4139
          %4329 = vmatprep.subr.mxu0 %v4146
          %4330 = vmatpush1.msra.mxu0 %v4145
          %4331 = vmatprep.subr.mxu0 %v4152
          %4332 = vmatpush1.msra.mxu0 %v4151
          %4333 = vmatprep.subr.mxu0 %v4158
          %4334 = vmatpush1.msra.mxu0 %v4157
          %4335 = vmatprep.subr.mxu0 %v4164
          %4336 = vmatpush1.msra.mxu0 %v4163
          %4337 = vmatprep.subr.mxu0 %v4170
          %4338 = vmatpush1.msra.mxu0 %v4169
          %4339 = vmatprep.subr.mxu0 %v4176
          %4340 = vmatpush1.msra.mxu0 %v4175
          %4341 = vmatprep.subr.mxu0 %v4182
          %4342 = vmatpush1.msra.mxu0 %v4181
          %4343 = vmatprep.subr.mxu0 %v4188
          %4344 = vmatpush1.msra.mxu0 %v4187
          %4345 = vmatprep.subr.mxu0 %v4194
          %4346 = vmatpush1.msra.mxu0 %v4193
          %4347 = vmatprep.subr.mxu0 %v4200
          %4348 = vmatpush1.msra.mxu0 %v4199
          %4349 = vmatprep.subr.mxu0 %v4206
          %4350 = vmatpush1.msra.mxu0 %v4205
          %4351 = vmatprep.subr.mxu0 %v4212
          %4352 = vmatpush1.msra.mxu0 %v4211
          %4353 = vmatprep.subr.mxu0 %v4218
          %4354 = vmatpush1.msra.mxu0 %v4217
          %4355 = vmatprep.subr.mxu0 %v4224
          %4356 = vmatpush1.msra.mxu0 %v4223
          %4357 = vmatprep.subr.mxu0 %v4230
          %4358 = vmatpush1.msra.mxu0 %v4229
          %4359 = vmatprep.subr.mxu0 %v4236
          %4360 = vmatpush1.msra.mxu0 %v4235
          %4361 = vmatprep.subr.mxu0 0.0
          %4362 = vmatpush1.msra.mxu0 0.0
          %4363 = vmatprep.subr.mxu0 0.0
          %4364 = vmatpush1.msra.mxu0 0.0
          %4365 = vmatprep.subr.mxu0 0.0
          %4366 = vmatpush1.msra.mxu0 0.0
          %4367 = vmatprep.subr.mxu0 0.0
          %4368 = vmatpush1.msra.mxu0 0.0
          %4369 = vmatprep.subr.mxu0 0.0
          %4370 = vmatpush1.msra.mxu0 0.0
          %4371 = vmatprep.subr.mxu0 0.0
          %4372 = vmatpush1.msra.mxu0 0.0
          %4373 = vmatprep.subr.mxu0 0.0
          %4374 = vmatpush1.msra.mxu0 0.0
          %4375 = vmatprep.subr.mxu0 0.0
          %4376 = vmatpush1.msra.mxu0 0.0
          %4377 = vmatprep.mubr.f32.mxu0 %v4240
          %4378 = vmatmul.mubr.f32.gmra.mrb[0].mxu0 0.0
          %v4379 = vpop.f32.mrb[0].mxu0
          %v4380 = vadd.f32 0.0, %v4379
          %v4381 = vpop.f32.mrb[0].mxu0
          %v4382 = vadd.f32 0.0, %v4381
          %4383 = vdwg.mxu0
          %4384 = vmatprep.subr.mxu0 %v4100
          %4385 = vmatpush1.msra.mxu0 %v4099
          %4386 = vmatprep.subr.mxu0 %v4106
          %4387 = vmatpush1.msra.mxu0 %v4105
          %4388 = vmatprep.subr.mxu0 %v4112
          %4389 = vmatpush1.msra.mxu0 %v4111
          %4390 = vmatprep.subr.mxu0 %v4118
          %4391 = vmatpush1.msra.mxu0 %v4117
          %4392 = vmatprep.subr.mxu0 %v4124
          %4393 = vmatpush1.msra.mxu0 %v4123
          %4394 = vmatprep.subr.mxu0 %v4130
          %4395 = vmatpush1.msra.mxu0 %v4129
          %4396 = vmatprep.subr.mxu0 %v4136
          %4397 = vmatpush1.msra.mxu0 %v4135
          %4398 = vmatprep.subr.mxu0 %v4142
          %4399 = vmatpush1.msra.mxu0 %v4141
          %4400 = vmatprep.subr.mxu0 %v4148
          %4401 = vmatpush1.msra.mxu0 %v4147
          %4402 = vmatprep.subr.mxu0 %v4154
          %4403 = vmatpush1.msra.mxu0 %v4153
          %4404 = vmatprep.subr.mxu0 %v4160
          %4405 = vmatpush1.msra.mxu0 %v4159
          %4406 = vmatprep.subr.mxu0 %v4166
          %4407 = vmatpush1.msra.mxu0 %v4165
          %4408 = vmatprep.subr.mxu0 %v4172
          %4409 = vmatpush1.msra.mxu0 %v4171
          %4410 = vmatprep.subr.mxu0 %v4178
          %4411 = vmatpush1.msra.mxu0 %v4177
          %4412 = vmatprep.subr.mxu0 %v4184
          %4413 = vmatpush1.msra.mxu0 %v4183
          %4414 = vmatprep.subr.mxu0 %v4190
          %4415 = vmatpush1.msra.mxu0 %v4189
          %4416 = vmatprep.subr.mxu0 %v4196
          %4417 = vmatpush1.msra.mxu0 %v4195
          %4418 = vmatprep.subr.mxu0 %v4202
          %4419 = vmatpush1.msra.mxu0 %v4201
          %4420 = vmatprep.subr.mxu0 %v4208
          %4421 = vmatpush1.msra.mxu0 %v4207
          %4422 = vmatprep.subr.mxu0 %v4214
          %4423 = vmatpush1.msra.mxu0 %v4213
          %4424 = vmatprep.subr.mxu0 %v4220
          %4425 = vmatpush1.msra.mxu0 %v4219
          %4426 = vmatprep.subr.mxu0 %v4226
          %4427 = vmatpush1.msra.mxu0 %v4225
          %4428 = vmatprep.subr.mxu0 %v4232
          %4429 = vmatpush1.msra.mxu0 %v4231
          %4430 = vmatprep.subr.mxu0 %v4238
          %4431 = vmatpush1.msra.mxu0 %v4237
          %4432 = vmatprep.subr.mxu0 0.0
          %4433 = vmatpush1.msra.mxu0 0.0
          %4434 = vmatprep.subr.mxu0 0.0
          %4435 = vmatpush1.msra.mxu0 0.0
          %4436 = vmatprep.subr.mxu0 0.0
          %4437 = vmatpush1.msra.mxu0 0.0
          %4438 = vmatprep.subr.mxu0 0.0
          %4439 = vmatpush1.msra.mxu0 0.0
          %4440 = vmatprep.subr.mxu0 0.0
          %4441 = vmatpush1.msra.mxu0 0.0
          %4442 = vmatprep.subr.mxu0 0.0
          %4443 = vmatpush1.msra.mxu0 0.0
          %4444 = vmatprep.subr.mxu0 0.0
          %4445 = vmatpush1.msra.mxu0 0.0
          %4446 = vmatprep.subr.mxu0 0.0
          %4447 = vmatpush1.msra.mxu0 0.0
          %4448 = vmatprep.mubr.f32.mxu0 %v4240
          %4449 = vmatmul.mubr.f32.gmra.mrb[0].mxu0 0.0
          %v4450 = vpop.f32.mrb[0].mxu0
          %v4451 = vadd.f32 0.0, %v4450
          %v4452 = vpop.f32.mrb[0].mxu0
          %v4453 = vadd.f32 0.0, %v4452
          %4454 = vdwg.mxu0
          %v4455 = vadd.f32 %v4089, %v4309
          %v4456 = vadd.f32 %v4090, %v4311
          %v4457 = vadd.f32 %v4091, %v4380
          %v4458 = vadd.f32 %v4092, %v4382
          %v4459 = vadd.f32 %v4093, %v4451
          %v4460 = vadd.f32 %v4094, %v4453
          %v4461 = vld [vmem:[%s57] sm:$0x3f]
          %v4463 = vlaneseq
          %v4464 = vshrl.u32 %v4463, 7
          %v4465 = vsub.s32 0, %v4464
          %v4466 = vrot.slane %v4461, %v4465
          %v4467 = vlaneseq
          %v4468 = vshrl.u32 %v4467, 7
          %v4469 = vsub.s32 1, %v4468
          %v4470 = vrot.slane %v4461, %v4469
          %v4471 = vlaneseq
          %v4472 = vshrl.u32 %v4471, 7
          %v4473 = vsub.s32 2, %v4472
          %v4474 = vrot.slane %v4461, %v4473
          %v4475 = vlaneseq
          %v4476 = vshrl.u32 %v4475, 7
          %v4477 = vsub.s32 3, %v4476
          %v4478 = vrot.slane %v4461, %v4477
          %v4479 = vlaneseq
          %v4480 = vshrl.u32 %v4479, 7
          %v4481 = vsub.s32 4, %v4480
          %v4482 = vrot.slane %v4461, %v4481
          %v4483 = vlaneseq
          %v4484 = vshrl.u32 %v4483, 7
          %v4485 = vsub.s32 5, %v4484
          %v4486 = vrot.slane %v4461, %v4485
          %v4493 = vadd.f32 %v4455, %v4466
          %v4494 = vadd.f32 %v4456, %v4470
          %v4495 = vadd.f32 %v4457, %v4474
          %v4496 = vadd.f32 %v4458, %v4478
          %v4497 = vadd.f32 %v4459, %v4482
          %v4498 = vadd.f32 %v4460, %v4486
          %v4499 = vxor.u32 %v4493, 2147483648
          %v4500 = vxor.u32 %v4494, 2147483648
          %v4501 = vmul.f32 %v4499, 1.442695
          %v4502 = vpow.pop %v4501
          %v4503 = vmul.f32 %v4500, 1.442695
          %v4504 = vpow.pop %v4503
          %v4505 = vadd.f32 %v4502, 1.0
          %v4506 = vadd.f32 %v4504, 1.0
          %v4507 = vrcp.pop %v4505
          %v4508 = vmul.f32 1.0, %v4507
          %v4509 = vrcp.pop %v4506
          %v4510 = vmul.f32 1.0, %v4509
          %v4511 = vxor.u32 %v4495, 2147483648
          %v4512 = vmul.f32 %v4511, 1.442695
          %v4513 = vpow.pop %v4512
          %v4514 = vadd.f32 %v4513, 1.0
          %v4515 = vrcp.pop %v4514
          %v4516 = vmul.f32 1.0, %v4515
          %v4517 = vtanh.pop %v4496
          %v4518 = vtanh.pop %v4497
          %v4519 = vxor.u32 %v4497, 2147483648
          %v4520 = vxor.u32 %v4498, 2147483648
          %v4521 = vmul.f32 %v4519, 1.442695
          %v4522 = vpow.pop %v4521
          %v4523 = vmul.f32 %v4520, 1.442695
          %v4524 = vpow.pop %v4523
          %v4525 = vadd.f32 %v4522, 1.0
          %v4526 = vadd.f32 %v4524, 1.0
          %v4527 = vrcp.pop %v4525
          %v4528 = vmul.f32 1.0, %v4527
          %v4529 = vrcp.pop %v4526
          %v4530 = vmul.f32 1.0, %v4529
          %v4531 = vmul.f32 %v4510, 0.0
          %v4532 = vmul.f32 %v4516, 0.0
          %v4533 = vmul.f32 %v4508, %v4517
          %v4534 = vmul.f32 %v4510, %v4518
          %4537 = vrot.lane.b32.xlu0 %v4533, 64
          %v4538 = vpop.permute.xlu0 %4537
          %4539 = vrot.lane.b32.xlu0 %v4534, 64
          %v4540 = vpop.permute.xlu0 %4539
          %v4541 = vsel %vm1253, %v4538, %v4540
          %v4544 = vadd.f32 %v4531, %v4538
          %v4545 = vadd.f32 %v4532, %v4541
          %v4546 = vtanh.pop %v4544
          %v4547 = vtanh.pop %v4545
          %v4548 = vmul.f32 %v4528, %v4546
          %v4549 = vmul.f32 %v4530, %v4547
          %4550 = vst [vmem:[#allocation2] sm:$0xff] %v2948
          %4551 = vst [vmem:[#allocation2 + $0x8] sm:$0xff] %v3365
          %4554 = vrot.lane.b32.xlu0 %v4548, 64
          %v4555 = vpop.permute.xlu0 %4554
          %4556 = vrot.lane.b32.xlu0 %v4549, 64
          %v4557 = vpop.permute.xlu0 %4556
          %v4558 = vsel %vm1253, %v4555, %v4557
          %4561 = vst [vmem:[#allocation2 + $0x10] sm:$0xff] %v4558
          %4562 = vst.msk [vmem:[#allocation2 + $0x18] sm:$0xff] %vm1253, %v4557
          %v4563 = vld [vmem:[%s41] sm:$0x3f]
          %v4564 = vld [vmem:[%s41 + $0x8] sm:$0x3f]
          %v4565 = vld [vmem:[%s41 + $0x10] sm:$0x3f]
          %v4566 = vld [vmem:[%s41 + $0x18] sm:$0x3f]
          %v4567 = vld [vmem:[%s43] sm:$0xff]
          %v4568 = vld [vmem:[%s43 + $0x8] sm:$0xff]
          %v4569 = vld [vmem:[%s43 + $0x10] sm:$0xff]
          %v4570 = vld [vmem:[%s43 + $0x18] sm:$0xff]
          %v4571 = vld [vmem:[%s43 + $0x20] sm:$0xff]
          %v4572 = vld [vmem:[%s43 + $0x28] sm:$0xff]
          %v4573 = vld [vmem:[%s43 + $0x30] sm:$0xff]
          %v4574 = vld [vmem:[%s43 + $0x38] sm:$0xff]
          %v4575 = vld [vmem:[%s43 + $0x40] sm:$0xff]
          %v4576 = vld [vmem:[%s43 + $0x48] sm:$0xff]
          %v4577 = vld [vmem:[%s43 + $0x50] sm:$0xff]
          %v4578 = vld [vmem:[%s43 + $0x58] sm:$0xff]
          %v4579 = vld [vmem:[%s43 + $0x60] sm:$0xff]
          %v4580 = vld [vmem:[%s43 + $0x68] sm:$0xff]
          %v4581 = vld [vmem:[%s43 + $0x70] sm:$0xff]
          %v4582 = vld [vmem:[%s43 + $0x78] sm:$0xff]
          %v4583 = vld [vmem:[%s43 + $0x80] sm:$0xff]
          %v4584 = vld [vmem:[%s43 + $0x88] sm:$0xff]
          %v4585 = vld [vmem:[%s43 + $0x90] sm:$0xff]
          %v4586 = vld [vmem:[%s43 + $0x98] sm:$0xff]
          %v4587 = vld [vmem:[%s43 + $0xa0] sm:$0xff]
          %v4588 = vld [vmem:[%s43 + $0xa8] sm:$0xff]
          %v4589 = vld [vmem:[%s43 + $0xb0] sm:$0xff]
          %v4590 = vld [vmem:[%s43 + $0xb8] sm:$0xff]
          %v4591 = vld [vmem:[%s43 + $0xc0] sm:$0xff]
          %v4592 = vld [vmem:[%s43 + $0xc8] sm:$0xff]
          %v4593 = vld [vmem:[%s43 + $0xd0] sm:$0xff]
          %v4594 = vld [vmem:[%s43 + $0xd8] sm:$0xff]
          %v4595 = vld [vmem:[%s43 + $0xe0] sm:$0xff]
          %v4596 = vld [vmem:[%s43 + $0xe8] sm:$0xff]
          %v4597 = vld [vmem:[%s43 + $0xf0] sm:$0xff]
          %v4598 = vld [vmem:[%s43 + $0xf8] sm:$0xff]
          %v4599 = vld [vmem:[%s43 + $0x100] sm:$0xff]
          %v4600 = vld [vmem:[%s43 + $0x108] sm:$0xff]
          %v4601 = vld [vmem:[%s43 + $0x110] sm:$0xff]
          %v4602 = vld [vmem:[%s43 + $0x118] sm:$0xff]
          %v4603 = vld [vmem:[%s43 + $0x120] sm:$0xff]
          %v4604 = vld [vmem:[%s43 + $0x128] sm:$0xff]
          %v4605 = vld [vmem:[%s43 + $0x130] sm:$0xff]
          %v4606 = vld [vmem:[%s43 + $0x138] sm:$0xff]
          %v4607 = vld [vmem:[%s43 + $0x140] sm:$0xff]
          %v4608 = vld [vmem:[%s43 + $0x148] sm:$0xff]
          %v4609 = vld [vmem:[%s43 + $0x150] sm:$0xff]
          %v4610 = vld [vmem:[%s43 + $0x158] sm:$0xff]
          %v4611 = vld [vmem:[%s43 + $0x160] sm:$0xff]
          %v4612 = vld [vmem:[%s43 + $0x168] sm:$0xff]
          %v4613 = vld [vmem:[%s43 + $0x170] sm:$0xff]
          %v4614 = vld [vmem:[%s43 + $0x178] sm:$0xff]
          %v4615 = vld [vmem:[%s43 + $0x180] sm:$0xff]
          %v4616 = vld [vmem:[%s43 + $0x188] sm:$0xff]
          %v4617 = vld [vmem:[%s43 + $0x190] sm:$0xff]
          %v4618 = vld [vmem:[%s43 + $0x198] sm:$0xff]
          %v4619 = vld [vmem:[%s43 + $0x1a0] sm:$0xff]
          %v4620 = vld [vmem:[%s43 + $0x1a8] sm:$0xff]
          %v4621 = vld [vmem:[%s43 + $0x1b0] sm:$0xff]
          %v4622 = vld [vmem:[%s43 + $0x1b8] sm:$0xff]
          %v4623 = vld [vmem:[%s43 + $0x1c0] sm:$0xff]
          %v4624 = vld [vmem:[%s43 + $0x1c8] sm:$0xff]
          %v4625 = vld [vmem:[%s43 + $0x1d0] sm:$0xff]
          %v4626 = vld [vmem:[%s43 + $0x1d8] sm:$0xff]
          %v4627 = vld [vmem:[%s43 + $0x1e0] sm:$0xff]
          %v4628 = vld [vmem:[%s43 + $0x1e8] sm:$0xff]
          %v4629 = vld [vmem:[%s43 + $0x1f0] sm:$0xff]
          %v4630 = vld [vmem:[%s43 + $0x1f8] sm:$0xff]
          %4631 = vmatprep.subr.mxu0 %v4568
          %4632 = vmatpush1.msra.mxu0 %v4567
          %4633 = vmatprep.subr.mxu0 %v4572
          %4634 = vmatpush1.msra.mxu0 %v4571
          %4635 = vmatprep.subr.mxu0 %v4576
          %4636 = vmatpush1.msra.mxu0 %v4575
          %4637 = vmatprep.subr.mxu0 %v4580
          %4638 = vmatpush1.msra.mxu0 %v4579
          %4639 = vmatprep.subr.mxu0 %v4584
          %4640 = vmatpush1.msra.mxu0 %v4583
          %4641 = vmatprep.subr.mxu0 %v4588
          %4642 = vmatpush1.msra.mxu0 %v4587
          %4643 = vmatprep.subr.mxu0 %v4592
          %4644 = vmatpush1.msra.mxu0 %v4591
          %4645 = vmatprep.subr.mxu0 %v4596
          %4646 = vmatpush1.msra.mxu0 %v4595
          %4647 = vmatprep.subr.mxu0 %v4600
          %4648 = vmatpush1.msra.mxu0 %v4599
          %4649 = vmatprep.subr.mxu0 %v4604
          %4650 = vmatpush1.msra.mxu0 %v4603
          %4651 = vmatprep.subr.mxu0 %v4608
          %4652 = vmatpush1.msra.mxu0 %v4607
          %4653 = vmatprep.subr.mxu0 %v4612
          %4654 = vmatpush1.msra.mxu0 %v4611
          %4655 = vmatprep.subr.mxu0 %v4616
          %4656 = vmatpush1.msra.mxu0 %v4615
          %4657 = vmatprep.subr.mxu0 %v4620
          %4658 = vmatpush1.msra.mxu0 %v4619
          %4659 = vmatprep.subr.mxu0 %v4624
          %4660 = vmatpush1.msra.mxu0 %v4623
          %4661 = vmatprep.subr.mxu0 %v4628
          %4662 = vmatpush1.msra.mxu0 %v4627
          %4663 = vmatprep.subr.mxu0 0.0
          %4664 = vmatpush1.msra.mxu0 0.0
          %4665 = vmatprep.subr.mxu0 0.0
          %4666 = vmatpush1.msra.mxu0 0.0
          %4667 = vmatprep.subr.mxu0 0.0
          %4668 = vmatpush1.msra.mxu0 0.0
          %4669 = vmatprep.subr.mxu0 0.0
          %4670 = vmatpush1.msra.mxu0 0.0
          %4671 = vmatprep.subr.mxu0 0.0
          %4672 = vmatpush1.msra.mxu0 0.0
          %4673 = vmatprep.subr.mxu0 0.0
          %4674 = vmatpush1.msra.mxu0 0.0
          %4675 = vmatprep.subr.mxu0 0.0
          %4676 = vmatpush1.msra.mxu0 0.0
          %4677 = vmatprep.subr.mxu0 0.0
          %4678 = vmatpush1.msra.mxu0 0.0
          %4679 = vmatprep.subr.mxu0 0.0
          %4680 = vmatpush1.msra.mxu0 0.0
          %4681 = vmatprep.subr.mxu0 0.0
          %4682 = vmatpush1.msra.mxu0 0.0
          %4683 = vmatprep.subr.mxu0 0.0
          %4684 = vmatpush1.msra.mxu0 0.0
          %4685 = vmatprep.subr.mxu0 0.0
          %4686 = vmatpush1.msra.mxu0 0.0
          %4687 = vmatprep.subr.mxu0 0.0
          %4688 = vmatpush1.msra.mxu0 0.0
          %4689 = vmatprep.subr.mxu0 0.0
          %4690 = vmatpush1.msra.mxu0 0.0
          %4691 = vmatprep.subr.mxu0 0.0
          %4692 = vmatpush1.msra.mxu0 0.0
          %4693 = vmatprep.subr.mxu0 0.0
          %4694 = vmatpush1.msra.mxu0 0.0
          %4695 = vmatprep.mubr.f32.mxu0 0.0
          %4696 = vmatmul.mubr.f32.gmra.mrb[0].mxu0 %v2948
          %v4697 = vpop.f32.mrb[0].mxu0
          %v4698 = vadd.f32 0.0, %v4697
          %v4699 = vpop.f32.mrb[0].mxu0
          %v4700 = vadd.f32 0.0, %v4699
          %4701 = vdwg.mxu0
          %4702 = vmatprep.subr.mxu0 %v4570
          %4703 = vmatpush1.msra.mxu0 %v4569
          %4704 = vmatprep.subr.mxu0 %v4574
          %4705 = vmatpush1.msra.mxu0 %v4573
          %4706 = vmatprep.subr.mxu0 %v4578
          %4707 = vmatpush1.msra.mxu0 %v4577
          %4708 = vmatprep.subr.mxu0 %v4582
          %4709 = vmatpush1.msra.mxu0 %v4581
          %4710 = vmatprep.subr.mxu0 %v4586
          %4711 = vmatpush1.msra.mxu0 %v4585
          %4712 = vmatprep.subr.mxu0 %v4590
          %4713 = vmatpush1.msra.mxu0 %v4589
          %4714 = vmatprep.subr.mxu0 %v4594
          %4715 = vmatpush1.msra.mxu0 %v4593
          %4716 = vmatprep.subr.mxu0 %v4598
          %4717 = vmatpush1.msra.mxu0 %v4597
          %4718 = vmatprep.subr.mxu0 %v4602
          %4719 = vmatpush1.msra.mxu0 %v4601
          %4720 = vmatprep.subr.mxu0 %v4606
          %4721 = vmatpush1.msra.mxu0 %v4605
          %4722 = vmatprep.subr.mxu0 %v4610
          %4723 = vmatpush1.msra.mxu0 %v4609
          %4724 = vmatprep.subr.mxu0 %v4614
          %4725 = vmatpush1.msra.mxu0 %v4613
          %4726 = vmatprep.subr.mxu0 %v4618
          %4727 = vmatpush1.msra.mxu0 %v4617
          %4728 = vmatprep.subr.mxu0 %v4622
          %4729 = vmatpush1.msra.mxu0 %v4621
          %4730 = vmatprep.subr.mxu0 %v4626
          %4731 = vmatpush1.msra.mxu0 %v4625
          %4732 = vmatprep.subr.mxu0 %v4630
          %4733 = vmatpush1.msra.mxu0 %v4629
          %4734 = vmatprep.subr.mxu0 0.0
          %4735 = vmatpush1.msra.mxu0 0.0
          %4736 = vmatprep.subr.mxu0 0.0
          %4737 = vmatpush1.msra.mxu0 0.0
          %4738 = vmatprep.subr.mxu0 0.0
          %4739 = vmatpush1.msra.mxu0 0.0
          %4740 = vmatprep.subr.mxu0 0.0
          %4741 = vmatpush1.msra.mxu0 0.0
          %4742 = vmatprep.subr.mxu0 0.0
          %4743 = vmatpush1.msra.mxu0 0.0
          %4744 = vmatprep.subr.mxu0 0.0
          %4745 = vmatpush1.msra.mxu0 0.0
          %4746 = vmatprep.subr.mxu0 0.0
          %4747 = vmatpush1.msra.mxu0 0.0
          %4748 = vmatprep.subr.mxu0 0.0
          %4749 = vmatpush1.msra.mxu0 0.0
          %4750 = vmatprep.subr.mxu0 0.0
          %4751 = vmatpush1.msra.mxu0 0.0
          %4752 = vmatprep.subr.mxu0 0.0
          %4753 = vmatpush1.msra.mxu0 0.0
          %4754 = vmatprep.subr.mxu0 0.0
          %4755 = vmatpush1.msra.mxu0 0.0
          %4756 = vmatprep.subr.mxu0 0.0
          %4757 = vmatpush1.msra.mxu0 0.0
          %4758 = vmatprep.subr.mxu0 0.0
          %4759 = vmatpush1.msra.mxu0 0.0
          %4760 = vmatprep.subr.mxu0 0.0
          %4761 = vmatpush1.msra.mxu0 0.0
          %4762 = vmatprep.subr.mxu0 0.0
          %4763 = vmatpush1.msra.mxu0 0.0
          %4764 = vmatprep.subr.mxu0 0.0
          %4765 = vmatpush1.msra.mxu0 0.0
          %4766 = vmatprep.mubr.f32.mxu0 0.0
          %4767 = vmatmul.mubr.f32.gmra.mrb[0].mxu0 %v2948
          %v4768 = vpop.f32.mrb[0].mxu0
          %v4769 = vadd.f32 0.0, %v4768
          %v4770 = vpop.f32.mrb[0].mxu0
          %v4771 = vadd.f32 0.0, %v4770
          %4772 = vdwg.mxu0
          %v4774 = vsel %vm2740, %v2521, 0
          %v4777 = vsel %vm2744, %v4563, 0
          %v4780 = vsel %vm2744, %v4564, 0
          %v4783 = vsel %vm2744, %v4565, 0
          %v4786 = vsel %vm2744, %v4566, 0
          %4788 = vmatprep.subr.mxu0 %v4780
          %4789 = vmatpush1.msra.mxu0 %v4777
          %4790 = vmatprep.subr.mxu0 0.0
          %4791 = vmatpush1.msra.mxu0 0.0
          %4792 = vmatprep.subr.mxu0 0.0
          %4793 = vmatpush1.msra.mxu0 0.0
          %4794 = vmatprep.subr.mxu0 0.0
          %4795 = vmatpush1.msra.mxu0 0.0
          %4796 = vmatprep.subr.mxu0 0.0
          %4797 = vmatpush1.msra.mxu0 0.0
          %4798 = vmatprep.subr.mxu0 0.0
          %4799 = vmatpush1.msra.mxu0 0.0
          %4800 = vmatprep.subr.mxu0 0.0
          %4801 = vmatpush1.msra.mxu0 0.0
          %4802 = vmatprep.subr.mxu0 0.0
          %4803 = vmatpush1.msra.mxu0 0.0
          %4804 = vmatprep.subr.mxu0 0.0
          %4805 = vmatpush1.msra.mxu0 0.0
          %4806 = vmatprep.subr.mxu0 0.0
          %4807 = vmatpush1.msra.mxu0 0.0
          %4808 = vmatprep.subr.mxu0 0.0
          %4809 = vmatpush1.msra.mxu0 0.0
          %4810 = vmatprep.subr.mxu0 0.0
          %4811 = vmatpush1.msra.mxu0 0.0
          %4812 = vmatprep.subr.mxu0 0.0
          %4813 = vmatpush1.msra.mxu0 0.0
          %4814 = vmatprep.subr.mxu0 0.0
          %4815 = vmatpush1.msra.mxu0 0.0
          %4816 = vmatprep.subr.mxu0 0.0
          %4817 = vmatpush1.msra.mxu0 0.0
          %4818 = vmatprep.subr.mxu0 0.0
          %4819 = vmatpush1.msra.mxu0 0.0
          %4820 = vmatprep.subr.mxu0 0.0
          %4821 = vmatpush1.msra.mxu0 0.0
          %4822 = vmatprep.subr.mxu0 0.0
          %4823 = vmatpush1.msra.mxu0 0.0
          %4824 = vmatprep.subr.mxu0 0.0
          %4825 = vmatpush1.msra.mxu0 0.0
          %4826 = vmatprep.subr.mxu0 0.0
          %4827 = vmatpush1.msra.mxu0 0.0
          %4828 = vmatprep.subr.mxu0 0.0
          %4829 = vmatpush1.msra.mxu0 0.0
          %4830 = vmatprep.subr.mxu0 0.0
          %4831 = vmatpush1.msra.mxu0 0.0
          %4832 = vmatprep.subr.mxu0 0.0
          %4833 = vmatpush1.msra.mxu0 0.0
          %4834 = vmatprep.subr.mxu0 0.0
          %4835 = vmatpush1.msra.mxu0 0.0
          %4836 = vmatprep.subr.mxu0 0.0
          %4837 = vmatpush1.msra.mxu0 0.0
          %4838 = vmatprep.subr.mxu0 0.0
          %4839 = vmatpush1.msra.mxu0 0.0
          %4840 = vmatprep.subr.mxu0 0.0
          %4841 = vmatpush1.msra.mxu0 0.0
          %4842 = vmatprep.subr.mxu0 0.0
          %4843 = vmatpush1.msra.mxu0 0.0
          %4844 = vmatprep.subr.mxu0 0.0
          %4845 = vmatpush1.msra.mxu0 0.0
          %4846 = vmatprep.subr.mxu0 0.0
          %4847 = vmatpush1.msra.mxu0 0.0
          %4848 = vmatprep.subr.mxu0 0.0
          %4849 = vmatpush1.msra.mxu0 0.0
          %4850 = vmatprep.subr.mxu0 0.0
          %4851 = vmatpush1.msra.mxu0 0.0
          %4852 = vmatprep.mubr.f32.mxu0 0.0
          %4853 = vmatmul.mubr.f32.gmra.mrb[0].mxu0 %v4774
          %v4854 = vpop.f32.mrb[0].mxu0
          %v4855 = vadd.f32 %v4698, %v4854
          %v4856 = vpop.f32.mrb[0].mxu0
          %v4857 = vadd.f32 %v4700, %v4856
          %4858 = vdwg.mxu0
          %4859 = vmatprep.subr.mxu0 %v4786
          %4860 = vmatpush1.msra.mxu0 %v4783
          %4861 = vmatprep.subr.mxu0 0.0
          %4862 = vmatpush1.msra.mxu0 0.0
          %4863 = vmatprep.subr.mxu0 0.0
          %4864 = vmatpush1.msra.mxu0 0.0
          %4865 = vmatprep.subr.mxu0 0.0
          %4866 = vmatpush1.msra.mxu0 0.0
          %4867 = vmatprep.subr.mxu0 0.0
          %4868 = vmatpush1.msra.mxu0 0.0
          %4869 = vmatprep.subr.mxu0 0.0
          %4870 = vmatpush1.msra.mxu0 0.0
          %4871 = vmatprep.subr.mxu0 0.0
          %4872 = vmatpush1.msra.mxu0 0.0
          %4873 = vmatprep.subr.mxu0 0.0
          %4874 = vmatpush1.msra.mxu0 0.0
          %4875 = vmatprep.subr.mxu0 0.0
          %4876 = vmatpush1.msra.mxu0 0.0
          %4877 = vmatprep.subr.mxu0 0.0
          %4878 = vmatpush1.msra.mxu0 0.0
          %4879 = vmatprep.subr.mxu0 0.0
          %4880 = vmatpush1.msra.mxu0 0.0
          %4881 = vmatprep.subr.mxu0 0.0
          %4882 = vmatpush1.msra.mxu0 0.0
          %4883 = vmatprep.subr.mxu0 0.0
          %4884 = vmatpush1.msra.mxu0 0.0
          %4885 = vmatprep.subr.mxu0 0.0
          %4886 = vmatpush1.msra.mxu0 0.0
          %4887 = vmatprep.subr.mxu0 0.0
          %4888 = vmatpush1.msra.mxu0 0.0
          %4889 = vmatprep.subr.mxu0 0.0
          %4890 = vmatpush1.msra.mxu0 0.0
          %4891 = vmatprep.subr.mxu0 0.0
          %4892 = vmatpush1.msra.mxu0 0.0
          %4893 = vmatprep.subr.mxu0 0.0
          %4894 = vmatpush1.msra.mxu0 0.0
          %4895 = vmatprep.subr.mxu0 0.0
          %4896 = vmatpush1.msra.mxu0 0.0
          %4897 = vmatprep.subr.mxu0 0.0
          %4898 = vmatpush1.msra.mxu0 0.0
          %4899 = vmatprep.subr.mxu0 0.0
          %4900 = vmatpush1.msra.mxu0 0.0
          %4901 = vmatprep.subr.mxu0 0.0
          %4902 = vmatpush1.msra.mxu0 0.0
          %4903 = vmatprep.subr.mxu0 0.0
          %4904 = vmatpush1.msra.mxu0 0.0
          %4905 = vmatprep.subr.mxu0 0.0
          %4906 = vmatpush1.msra.mxu0 0.0
          %4907 = vmatprep.subr.mxu0 0.0
          %4908 = vmatpush1.msra.mxu0 0.0
          %4909 = vmatprep.subr.mxu0 0.0
          %4910 = vmatpush1.msra.mxu0 0.0
          %4911 = vmatprep.subr.mxu0 0.0
          %4912 = vmatpush1.msra.mxu0 0.0
          %4913 = vmatprep.subr.mxu0 0.0
          %4914 = vmatpush1.msra.mxu0 0.0
          %4915 = vmatprep.subr.mxu0 0.0
          %4916 = vmatpush1.msra.mxu0 0.0
          %4917 = vmatprep.subr.mxu0 0.0
          %4918 = vmatpush1.msra.mxu0 0.0
          %4919 = vmatprep.subr.mxu0 0.0
          %4920 = vmatpush1.msra.mxu0 0.0
          %4921 = vmatprep.subr.mxu0 0.0
          %4922 = vmatpush1.msra.mxu0 0.0
          %4923 = vmatprep.mubr.f32.mxu0 0.0
          %4924 = vmatmul.mubr.f32.gmra.mrb[0].mxu0 %v4774
          %v4925 = vpop.f32.mrb[0].mxu0
          %v4926 = vadd.f32 %v4769, %v4925
          %v4927 = vpop.f32.mrb[0].mxu0
          %v4928 = vadd.f32 %v4771, %v4927
          %4929 = vdwg.mxu0
          %v4930 = vld [vmem:[%s45] sm:$0xf]
          %v4932 = vlaneseq
          %v4933 = vshrl.u32 %v4932, 7
          %v4934 = vsub.s32 0, %v4933
          %v4935 = vrot.slane %v4930, %v4934
          %v4936 = vlaneseq
          %v4937 = vshrl.u32 %v4936, 7
          %v4938 = vsub.s32 1, %v4937
          %v4939 = vrot.slane %v4930, %v4938
          %v4940 = vlaneseq
          %v4941 = vshrl.u32 %v4940, 7
          %v4942 = vsub.s32 2, %v4941
          %v4943 = vrot.slane %v4930, %v4942
          %v4944 = vlaneseq
          %v4945 = vshrl.u32 %v4944, 7
          %v4946 = vsub.s32 3, %v4945
          %v4947 = vrot.slane %v4930, %v4946
          %v4952 = vadd.f32 %v4855, %v4935
          %v4953 = vadd.f32 %v4857, %v4939
          %v4954 = vadd.f32 %v4926, %v4943
          %v4955 = vadd.f32 %v4928, %v4947
          %v4956 = vxor.u32 %v4952, 2147483648
          %v4957 = vmul.f32 %v4956, 1.442695
          %v4958 = vpow.pop %v4957
          %v4959 = vadd.f32 %v4958, 1.0
          %v4960 = vrcp.pop %v4959
          %v4961 = vmul.f32 1.0, %v4960
          %v4962 = vxor.u32 %v4953, 2147483648
          %v4963 = vmul.f32 %v4962, 1.442695
          %v4964 = vpow.pop %v4963
          %v4965 = vadd.f32 %v4964, 1.0
          %v4966 = vrcp.pop %v4965
          %v4967 = vmul.f32 1.0, %v4966
          %v4968 = vtanh.pop %v4954
          %v4969 = vxor.u32 %v4955, 2147483648
          %v4970 = vmul.f32 %v4969, 1.442695
          %v4971 = vpow.pop %v4970
          %v4972 = vadd.f32 %v4971, 1.0
          %v4973 = vrcp.pop %v4972
          %v4974 = vmul.f32 1.0, %v4973
          %v4975 = vmul.f32 %v4967, %v2946
          %v4976 = vmul.f32 %v4961, %v4968
          %v4977 = vadd.f32 %v4975, %v4976
          %v4978 = vtanh.pop %v4977
          %v4979 = vmul.f32 %v4974, %v4978
          %v4980 = vld [vmem:[%s47] sm:$0xff]
          %v4981 = vld [vmem:[%s47 + $0x8] sm:$0xff]
          %v4982 = vld [vmem:[%s49] sm:$0xff]
          %v4983 = vld [vmem:[%s49 + $0x8] sm:$0xff]
          %v4984 = vld [vmem:[%s49 + $0x10] sm:$0xff]
          %v4985 = vld [vmem:[%s49 + $0x18] sm:$0xff]
          %v4986 = vld [vmem:[%s49 + $0x20] sm:$0xff]
          %v4987 = vld [vmem:[%s49 + $0x28] sm:$0xff]
          %v4988 = vld [vmem:[%s49 + $0x30] sm:$0xff]
          %v4989 = vld [vmem:[%s49 + $0x38] sm:$0xff]
          %v4990 = vld [vmem:[%s49 + $0x40] sm:$0xff]
          %v4991 = vld [vmem:[%s49 + $0x48] sm:$0xff]
          %v4992 = vld [vmem:[%s49 + $0x50] sm:$0xff]
          %v4993 = vld [vmem:[%s49 + $0x58] sm:$0xff]
          %v4994 = vld [vmem:[%s49 + $0x60] sm:$0xff]
          %v4995 = vld [vmem:[%s49 + $0x68] sm:$0xff]
          %v4996 = vld [vmem:[%s49 + $0x70] sm:$0xff]
          %v4997 = vld [vmem:[%s49 + $0x78] sm:$0xff]
          %v4998 = vld [vmem:[%s49 + $0x80] sm:$0xff]
          %v4999 = vld [vmem:[%s49 + $0x88] sm:$0xff]
          %v5000 = vld [vmem:[%s49 + $0x90] sm:$0xff]
          %v5001 = vld [vmem:[%s49 + $0x98] sm:$0xff]
          %v5002 = vld [vmem:[%s49 + $0xa0] sm:$0xff]
          %v5003 = vld [vmem:[%s49 + $0xa8] sm:$0xff]
          %v5004 = vld [vmem:[%s49 + $0xb0] sm:$0xff]
          %v5005 = vld [vmem:[%s49 + $0xb8] sm:$0xff]
          %v5006 = vld [vmem:[%s49 + $0xc0] sm:$0xff]
          %v5007 = vld [vmem:[%s49 + $0xc8] sm:$0xff]
          %v5008 = vld [vmem:[%s49 + $0xd0] sm:$0xff]
          %v5009 = vld [vmem:[%s49 + $0xd8] sm:$0xff]
          %v5010 = vld [vmem:[%s49 + $0xe0] sm:$0xff]
          %v5011 = vld [vmem:[%s49 + $0xe8] sm:$0xff]
          %v5012 = vld [vmem:[%s49 + $0xf0] sm:$0xff]
          %v5013 = vld [vmem:[%s49 + $0xf8] sm:$0xff]
          %v5014 = vld [vmem:[%s49 + $0x100] sm:$0xff]
          %v5015 = vld [vmem:[%s49 + $0x108] sm:$0xff]
          %v5016 = vld [vmem:[%s49 + $0x110] sm:$0xff]
          %v5017 = vld [vmem:[%s49 + $0x118] sm:$0xff]
          %v5018 = vld [vmem:[%s49 + $0x120] sm:$0xff]
          %v5019 = vld [vmem:[%s49 + $0x128] sm:$0xff]
          %v5020 = vld [vmem:[%s49 + $0x130] sm:$0xff]
          %v5021 = vld [vmem:[%s49 + $0x138] sm:$0xff]
          %v5022 = vld [vmem:[%s49 + $0x140] sm:$0xff]
          %v5023 = vld [vmem:[%s49 + $0x148] sm:$0xff]
          %v5024 = vld [vmem:[%s49 + $0x150] sm:$0xff]
          %v5025 = vld [vmem:[%s49 + $0x158] sm:$0xff]
          %v5026 = vld [vmem:[%s49 + $0x160] sm:$0xff]
          %v5027 = vld [vmem:[%s49 + $0x168] sm:$0xff]
          %v5028 = vld [vmem:[%s49 + $0x170] sm:$0xff]
          %v5029 = vld [vmem:[%s49 + $0x178] sm:$0xff]
          %v5030 = vld [vmem:[%s49 + $0x180] sm:$0xff]
          %v5031 = vld [vmem:[%s49 + $0x188] sm:$0xff]
          %v5032 = vld [vmem:[%s49 + $0x190] sm:$0xff]
          %v5033 = vld [vmem:[%s49 + $0x198] sm:$0xff]
          %v5034 = vld [vmem:[%s49 + $0x1a0] sm:$0xff]
          %v5035 = vld [vmem:[%s49 + $0x1a8] sm:$0xff]
          %v5036 = vld [vmem:[%s49 + $0x1b0] sm:$0xff]
          %v5037 = vld [vmem:[%s49 + $0x1b8] sm:$0xff]
          %v5038 = vld [vmem:[%s49 + $0x1c0] sm:$0xff]
          %v5039 = vld [vmem:[%s49 + $0x1c8] sm:$0xff]
          %v5040 = vld [vmem:[%s49 + $0x1d0] sm:$0xff]
          %v5041 = vld [vmem:[%s49 + $0x1d8] sm:$0xff]
          %v5042 = vld [vmem:[%s49 + $0x1e0] sm:$0xff]
          %v5043 = vld [vmem:[%s49 + $0x1e8] sm:$0xff]
          %v5044 = vld [vmem:[%s49 + $0x1f0] sm:$0xff]
          %v5045 = vld [vmem:[%s49 + $0x1f8] sm:$0xff]
          %5046 = vmatprep.subr.mxu0 %v4983
          %5047 = vmatpush1.msra.mxu0 %v4982
          %5048 = vmatprep.subr.mxu0 %v4987
          %5049 = vmatpush1.msra.mxu0 %v4986
          %5050 = vmatprep.subr.mxu0 %v4991
          %5051 = vmatpush1.msra.mxu0 %v4990
          %5052 = vmatprep.subr.mxu0 %v4995
          %5053 = vmatpush1.msra.mxu0 %v4994
          %5054 = vmatprep.subr.mxu0 %v4999
          %5055 = vmatpush1.msra.mxu0 %v4998
          %5056 = vmatprep.subr.mxu0 %v5003
          %5057 = vmatpush1.msra.mxu0 %v5002
          %5058 = vmatprep.subr.mxu0 %v5007
          %5059 = vmatpush1.msra.mxu0 %v5006
          %5060 = vmatprep.subr.mxu0 %v5011
          %5061 = vmatpush1.msra.mxu0 %v5010
          %5062 = vmatprep.subr.mxu0 %v5015
          %5063 = vmatpush1.msra.mxu0 %v5014
          %5064 = vmatprep.subr.mxu0 %v5019
          %5065 = vmatpush1.msra.mxu0 %v5018
          %5066 = vmatprep.subr.mxu0 %v5023
          %5067 = vmatpush1.msra.mxu0 %v5022
          %5068 = vmatprep.subr.mxu0 %v5027
          %5069 = vmatpush1.msra.mxu0 %v5026
          %5070 = vmatprep.subr.mxu0 %v5031
          %5071 = vmatpush1.msra.mxu0 %v5030
          %5072 = vmatprep.subr.mxu0 %v5035
          %5073 = vmatpush1.msra.mxu0 %v5034
          %5074 = vmatprep.subr.mxu0 %v5039
          %5075 = vmatpush1.msra.mxu0 %v5038
          %5076 = vmatprep.subr.mxu0 %v5043
          %5077 = vmatpush1.msra.mxu0 %v5042
          %5078 = vmatprep.subr.mxu0 0.0
          %5079 = vmatpush1.msra.mxu0 0.0
          %5080 = vmatprep.subr.mxu0 0.0
          %5081 = vmatpush1.msra.mxu0 0.0
          %5082 = vmatprep.subr.mxu0 0.0
          %5083 = vmatpush1.msra.mxu0 0.0
          %5084 = vmatprep.subr.mxu0 0.0
          %5085 = vmatpush1.msra.mxu0 0.0
          %5086 = vmatprep.subr.mxu0 0.0
          %5087 = vmatpush1.msra.mxu0 0.0
          %5088 = vmatprep.subr.mxu0 0.0
          %5089 = vmatpush1.msra.mxu0 0.0
          %5090 = vmatprep.subr.mxu0 0.0
          %5091 = vmatpush1.msra.mxu0 0.0
          %5092 = vmatprep.subr.mxu0 0.0
          %5093 = vmatpush1.msra.mxu0 0.0
          %5094 = vmatprep.subr.mxu0 0.0
          %5095 = vmatpush1.msra.mxu0 0.0
          %5096 = vmatprep.subr.mxu0 0.0
          %5097 = vmatpush1.msra.mxu0 0.0
          %5098 = vmatprep.subr.mxu0 0.0
          %5099 = vmatpush1.msra.mxu0 0.0
          %5100 = vmatprep.subr.mxu0 0.0
          %5101 = vmatpush1.msra.mxu0 0.0
          %5102 = vmatprep.subr.mxu0 0.0
          %5103 = vmatpush1.msra.mxu0 0.0
          %5104 = vmatprep.subr.mxu0 0.0
          %5105 = vmatpush1.msra.mxu0 0.0
          %5106 = vmatprep.subr.mxu0 0.0
          %5107 = vmatpush1.msra.mxu0 0.0
          %5108 = vmatprep.subr.mxu0 0.0
          %5109 = vmatpush1.msra.mxu0 0.0
          %5110 = vmatprep.mubr.f32.mxu0 0.0
          %5111 = vmatmul.mubr.f32.gmra.mrb[0].mxu0 %v3365
          %v5112 = vpop.f32.mrb[0].mxu0
          %v5113 = vadd.f32 0.0, %v5112
          %v5114 = vpop.f32.mrb[0].mxu0
          %v5115 = vadd.f32 0.0, %v5114
          %5116 = vdwg.mxu0
          %5117 = vmatprep.subr.mxu0 %v4985
          %5118 = vmatpush1.msra.mxu0 %v4984
          %5119 = vmatprep.subr.mxu0 %v4989
          %5120 = vmatpush1.msra.mxu0 %v4988
          %5121 = vmatprep.subr.mxu0 %v4993
          %5122 = vmatpush1.msra.mxu0 %v4992
          %5123 = vmatprep.subr.mxu0 %v4997
          %5124 = vmatpush1.msra.mxu0 %v4996
          %5125 = vmatprep.subr.mxu0 %v5001
          %5126 = vmatpush1.msra.mxu0 %v5000
          %5127 = vmatprep.subr.mxu0 %v5005
          %5128 = vmatpush1.msra.mxu0 %v5004
          %5129 = vmatprep.subr.mxu0 %v5009
          %5130 = vmatpush1.msra.mxu0 %v5008
          %5131 = vmatprep.subr.mxu0 %v5013
          %5132 = vmatpush1.msra.mxu0 %v5012
          %5133 = vmatprep.subr.mxu0 %v5017
          %5134 = vmatpush1.msra.mxu0 %v5016
          %5135 = vmatprep.subr.mxu0 %v5021
          %5136 = vmatpush1.msra.mxu0 %v5020
          %5137 = vmatprep.subr.mxu0 %v5025
          %5138 = vmatpush1.msra.mxu0 %v5024
          %5139 = vmatprep.subr.mxu0 %v5029
          %5140 = vmatpush1.msra.mxu0 %v5028
          %5141 = vmatprep.subr.mxu0 %v5033
          %5142 = vmatpush1.msra.mxu0 %v5032
          %5143 = vmatprep.subr.mxu0 %v5037
          %5144 = vmatpush1.msra.mxu0 %v5036
          %5145 = vmatprep.subr.mxu0 %v5041
          %5146 = vmatpush1.msra.mxu0 %v5040
          %5147 = vmatprep.subr.mxu0 %v5045
          %5148 = vmatpush1.msra.mxu0 %v5044
          %5149 = vmatprep.subr.mxu0 0.0
          %5150 = vmatpush1.msra.mxu0 0.0
          %5151 = vmatprep.subr.mxu0 0.0
          %5152 = vmatpush1.msra.mxu0 0.0
          %5153 = vmatprep.subr.mxu0 0.0
          %5154 = vmatpush1.msra.mxu0 0.0
          %5155 = vmatprep.subr.mxu0 0.0
          %5156 = vmatpush1.msra.mxu0 0.0
          %5157 = vmatprep.subr.mxu0 0.0
          %5158 = vmatpush1.msra.mxu0 0.0
          %5159 = vmatprep.subr.mxu0 0.0
          %5160 = vmatpush1.msra.mxu0 0.0
          %5161 = vmatprep.subr.mxu0 0.0
          %5162 = vmatpush1.msra.mxu0 0.0
          %5163 = vmatprep.subr.mxu0 0.0
          %5164 = vmatpush1.msra.mxu0 0.0
          %5165 = vmatprep.subr.mxu0 0.0
          %5166 = vmatpush1.msra.mxu0 0.0
          %5167 = vmatprep.subr.mxu0 0.0
          %5168 = vmatpush1.msra.mxu0 0.0
          %5169 = vmatprep.subr.mxu0 0.0
          %5170 = vmatpush1.msra.mxu0 0.0
          %5171 = vmatprep.subr.mxu0 0.0
          %5172 = vmatpush1.msra.mxu0 0.0
          %5173 = vmatprep.subr.mxu0 0.0
          %5174 = vmatpush1.msra.mxu0 0.0
          %5175 = vmatprep.subr.mxu0 0.0
          %5176 = vmatpush1.msra.mxu0 0.0
          %5177 = vmatprep.subr.mxu0 0.0
          %5178 = vmatpush1.msra.mxu0 0.0
          %5179 = vmatprep.subr.mxu0 0.0
          %5180 = vmatpush1.msra.mxu0 0.0
          %5181 = vmatprep.mubr.f32.mxu0 0.0
          %5182 = vmatmul.mubr.f32.gmra.mrb[0].mxu0 %v3365
          %v5183 = vpop.f32.mrb[0].mxu0
          %v5184 = vadd.f32 0.0, %v5183
          %v5185 = vpop.f32.mrb[0].mxu0
          %v5186 = vadd.f32 0.0, %v5185
          %5187 = vdwg.mxu0
          %v5190 = vcombine.high %v4980, %v4980
          %v5191 = vcombine.high %v4981, %v4981
          %v5193 = vsel %vm3161, %v2523, 0
          %v5195 = vsel %vm3165, %v4980, 0
          %v5197 = vsel %vm3165, %v5190, 0
          %v5199 = vsel %vm3165, %v4981, 0
          %v5201 = vsel %vm3165, %v5191, 0
          %5203 = vmatprep.subr.mxu0 %v5197
          %5204 = vmatpush1.msra.mxu0 %v5195
          %5205 = vmatprep.subr.mxu0 0.0
          %5206 = vmatpush1.msra.mxu0 0.0
          %5207 = vmatprep.subr.mxu0 0.0
          %5208 = vmatpush1.msra.mxu0 0.0
          %5209 = vmatprep.subr.mxu0 0.0
          %5210 = vmatpush1.msra.mxu0 0.0
          %5211 = vmatprep.subr.mxu0 0.0
          %5212 = vmatpush1.msra.mxu0 0.0
          %5213 = vmatprep.subr.mxu0 0.0
          %5214 = vmatpush1.msra.mxu0 0.0
          %5215 = vmatprep.subr.mxu0 0.0
          %5216 = vmatpush1.msra.mxu0 0.0
          %5217 = vmatprep.subr.mxu0 0.0
          %5218 = vmatpush1.msra.mxu0 0.0
          %5219 = vmatprep.subr.mxu0 0.0
          %5220 = vmatpush1.msra.mxu0 0.0
          %5221 = vmatprep.subr.mxu0 0.0
          %5222 = vmatpush1.msra.mxu0 0.0
          %5223 = vmatprep.subr.mxu0 0.0
          %5224 = vmatpush1.msra.mxu0 0.0
          %5225 = vmatprep.subr.mxu0 0.0
          %5226 = vmatpush1.msra.mxu0 0.0
          %5227 = vmatprep.subr.mxu0 0.0
          %5228 = vmatpush1.msra.mxu0 0.0
          %5229 = vmatprep.subr.mxu0 0.0
          %5230 = vmatpush1.msra.mxu0 0.0
          %5231 = vmatprep.subr.mxu0 0.0
          %5232 = vmatpush1.msra.mxu0 0.0
          %5233 = vmatprep.subr.mxu0 0.0
          %5234 = vmatpush1.msra.mxu0 0.0
          %5235 = vmatprep.subr.mxu0 0.0
          %5236 = vmatpush1.msra.mxu0 0.0
          %5237 = vmatprep.subr.mxu0 0.0
          %5238 = vmatpush1.msra.mxu0 0.0
          %5239 = vmatprep.subr.mxu0 0.0
          %5240 = vmatpush1.msra.mxu0 0.0
          %5241 = vmatprep.subr.mxu0 0.0
          %5242 = vmatpush1.msra.mxu0 0.0
          %5243 = vmatprep.subr.mxu0 0.0
          %5244 = vmatpush1.msra.mxu0 0.0
          %5245 = vmatprep.subr.mxu0 0.0
          %5246 = vmatpush1.msra.mxu0 0.0
          %5247 = vmatprep.subr.mxu0 0.0
          %5248 = vmatpush1.msra.mxu0 0.0
          %5249 = vmatprep.subr.mxu0 0.0
          %5250 = vmatpush1.msra.mxu0 0.0
          %5251 = vmatprep.subr.mxu0 0.0
          %5252 = vmatpush1.msra.mxu0 0.0
          %5253 = vmatprep.subr.mxu0 0.0
          %5254 = vmatpush1.msra.mxu0 0.0
          %5255 = vmatprep.subr.mxu0 0.0
          %5256 = vmatpush1.msra.mxu0 0.0
          %5257 = vmatprep.subr.mxu0 0.0
          %5258 = vmatpush1.msra.mxu0 0.0
          %5259 = vmatprep.subr.mxu0 0.0
          %5260 = vmatpush1.msra.mxu0 0.0
          %5261 = vmatprep.subr.mxu0 0.0
          %5262 = vmatpush1.msra.mxu0 0.0
          %5263 = vmatprep.subr.mxu0 0.0
          %5264 = vmatpush1.msra.mxu0 0.0
          %5265 = vmatprep.subr.mxu0 0.0
          %5266 = vmatpush1.msra.mxu0 0.0
          %5267 = vmatprep.mubr.f32.mxu0 0.0
          %5268 = vmatmul.mubr.f32.gmra.mrb[0].mxu0 %v5193
          %v5269 = vpop.f32.mrb[0].mxu0
          %v5270 = vadd.f32 %v5113, %v5269
          %v5271 = vpop.f32.mrb[0].mxu0
          %v5272 = vadd.f32 %v5115, %v5271
          %5273 = vdwg.mxu0
          %5274 = vmatprep.subr.mxu0 %v5201
          %5275 = vmatpush1.msra.mxu0 %v5199
          %5276 = vmatprep.subr.mxu0 0.0
          %5277 = vmatpush1.msra.mxu0 0.0
          %5278 = vmatprep.subr.mxu0 0.0
          %5279 = vmatpush1.msra.mxu0 0.0
          %5280 = vmatprep.subr.mxu0 0.0
          %5281 = vmatpush1.msra.mxu0 0.0
          %5282 = vmatprep.subr.mxu0 0.0
          %5283 = vmatpush1.msra.mxu0 0.0
          %5284 = vmatprep.subr.mxu0 0.0
          %5285 = vmatpush1.msra.mxu0 0.0
          %5286 = vmatprep.subr.mxu0 0.0
          %5287 = vmatpush1.msra.mxu0 0.0
          %5288 = vmatprep.subr.mxu0 0.0
          %5289 = vmatpush1.msra.mxu0 0.0
          %5290 = vmatprep.subr.mxu0 0.0
          %5291 = vmatpush1.msra.mxu0 0.0
          %5292 = vmatprep.subr.mxu0 0.0
          %5293 = vmatpush1.msra.mxu0 0.0
          %5294 = vmatprep.subr.mxu0 0.0
          %5295 = vmatpush1.msra.mxu0 0.0
          %5296 = vmatprep.subr.mxu0 0.0
          %5297 = vmatpush1.msra.mxu0 0.0
          %5298 = vmatprep.subr.mxu0 0.0
          %5299 = vmatpush1.msra.mxu0 0.0
          %5300 = vmatprep.subr.mxu0 0.0
          %5301 = vmatpush1.msra.mxu0 0.0
          %5302 = vmatprep.subr.mxu0 0.0
          %5303 = vmatpush1.msra.mxu0 0.0
          %5304 = vmatprep.subr.mxu0 0.0
          %5305 = vmatpush1.msra.mxu0 0.0
          %5306 = vmatprep.subr.mxu0 0.0
          %5307 = vmatpush1.msra.mxu0 0.0
          %5308 = vmatprep.subr.mxu0 0.0
          %5309 = vmatpush1.msra.mxu0 0.0
          %5310 = vmatprep.subr.mxu0 0.0
          %5311 = vmatpush1.msra.mxu0 0.0
          %5312 = vmatprep.subr.mxu0 0.0
          %5313 = vmatpush1.msra.mxu0 0.0
          %5314 = vmatprep.subr.mxu0 0.0
          %5315 = vmatpush1.msra.mxu0 0.0
          %5316 = vmatprep.subr.mxu0 0.0
          %5317 = vmatpush1.msra.mxu0 0.0
          %5318 = vmatprep.subr.mxu0 0.0
          %5319 = vmatpush1.msra.mxu0 0.0
          %5320 = vmatprep.subr.mxu0 0.0
          %5321 = vmatpush1.msra.mxu0 0.0
          %5322 = vmatprep.subr.mxu0 0.0
          %5323 = vmatpush1.msra.mxu0 0.0
          %5324 = vmatprep.subr.mxu0 0.0
          %5325 = vmatpush1.msra.mxu0 0.0
          %5326 = vmatprep.subr.mxu0 0.0
          %5327 = vmatpush1.msra.mxu0 0.0
          %5328 = vmatprep.subr.mxu0 0.0
          %5329 = vmatpush1.msra.mxu0 0.0
          %5330 = vmatprep.subr.mxu0 0.0
          %5331 = vmatpush1.msra.mxu0 0.0
          %5332 = vmatprep.subr.mxu0 0.0
          %5333 = vmatpush1.msra.mxu0 0.0
          %5334 = vmatprep.subr.mxu0 0.0
          %5335 = vmatpush1.msra.mxu0 0.0
          %5336 = vmatprep.subr.mxu0 0.0
          %5337 = vmatpush1.msra.mxu0 0.0
          %5338 = vmatprep.mubr.f32.mxu0 0.0
          %5339 = vmatmul.mubr.f32.gmra.mrb[0].mxu0 %v5193
          %v5340 = vpop.f32.mrb[0].mxu0
          %v5341 = vadd.f32 %v5184, %v5340
          %v5342 = vpop.f32.mrb[0].mxu0
          %v5343 = vadd.f32 %v5186, %v5342
          %5344 = vdwg.mxu0
          %v5345 = vld [vmem:[%s51] sm:$0xf]
          %v5347 = vlaneseq
          %v5348 = vshrl.u32 %v5347, 7
          %v5349 = vsub.s32 0, %v5348
          %v5350 = vrot.slane %v5345, %v5349
          %v5351 = vlaneseq
          %v5352 = vshrl.u32 %v5351, 7
          %v5353 = vsub.s32 1, %v5352
          %v5354 = vrot.slane %v5345, %v5353
          %v5355 = vlaneseq
          %v5356 = vshrl.u32 %v5355, 7
          %v5357 = vsub.s32 2, %v5356
          %v5358 = vrot.slane %v5345, %v5357
          %v5359 = vlaneseq
          %v5360 = vshrl.u32 %v5359, 7
          %v5361 = vsub.s32 3, %v5360
          %v5362 = vrot.slane %v5345, %v5361
          %v5367 = vadd.f32 %v5270, %v5350
          %v5368 = vadd.f32 %v5272, %v5354
          %v5369 = vadd.f32 %v5341, %v5358
          %v5370 = vadd.f32 %v5343, %v5362
          %v5371 = vxor.u32 %v5367, 2147483648
          %v5372 = vmul.f32 %v5371, 1.442695
          %v5373 = vpow.pop %v5372
          %v5374 = vadd.f32 %v5373, 1.0
          %v5375 = vrcp.pop %v5374
          %v5376 = vmul.f32 1.0, %v5375
          %v5377 = vxor.u32 %v5368, 2147483648
          %v5378 = vmul.f32 %v5377, 1.442695
          %v5379 = vpow.pop %v5378
          %v5380 = vadd.f32 %v5379, 1.0
          %v5381 = vrcp.pop %v5380
          %v5382 = vmul.f32 1.0, %v5381
          %v5383 = vtanh.pop %v5369
          %v5384 = vxor.u32 %v5370, 2147483648
          %v5385 = vmul.f32 %v5384, 1.442695
          %v5386 = vpow.pop %v5385
          %v5387 = vadd.f32 %v5386, 1.0
          %v5388 = vrcp.pop %v5387
          %v5389 = vmul.f32 1.0, %v5388
          %v5390 = vmul.f32 %v5382, %v3363
          %v5391 = vmul.f32 %v5376, %v5383
          %v5392 = vadd.f32 %v5390, %v5391
          %v5393 = vtanh.pop %v5392
          %v5394 = vmul.f32 %v5389, %v5393
          %v5395 = vld [vmem:[%s53] sm:$0x1f]
          %v5396 = vld [vmem:[%s53 + $0x8] sm:$0x1f]
          %v5397 = vld [vmem:[%s53 + $0x10] sm:$0x1f]
          %v5398 = vld [vmem:[%s53 + $0x18] sm:$0x1f]
          %v5399 = vld [vmem:[%s53 + $0x20] sm:$0x1f]
          %v5400 = vld [vmem:[%s53 + $0x28] sm:$0x1f]
          %v5401 = vld [vmem:[%s3372] sm:$0x1f]
          %v5402 = vld [vmem:[%s3372 + $0x8] sm:$0x1f]
          %v5403 = vld [vmem:[%s3372 + $0x10] sm:$0x1f]
          %v5404 = vld [vmem:[%s3372 + $0x18] sm:$0x1f]
          %v5405 = vld [vmem:[%s3372 + $0x20] sm:$0x1f]
          %v5406 = vld [vmem:[%s3372 + $0x28] sm:$0x1f]
          %v5408 = vsel %vm3379, %v2528, 0
          %v5411 = vsel %vm1822, %v5401, 0
          %v5414 = vsel %vm1822, %v5402, 0
          %v5417 = vsel %vm1822, %v5403, 0
          %v5420 = vsel %vm1822, %v5404, 0
          %v5423 = vsel %vm1822, %v5405, 0
          %v5426 = vsel %vm1822, %v5406, 0
          %5428 = vmatprep.subr.mxu0 %v5414
          %5429 = vmatpush1.msra.mxu0 %v5411
          %5430 = vmatprep.subr.mxu0 0.0
          %5431 = vmatpush1.msra.mxu0 0.0
          %5432 = vmatprep.subr.mxu0 0.0
          %5433 = vmatpush1.msra.mxu0 0.0
          %5434 = vmatprep.subr.mxu0 0.0
          %5435 = vmatpush1.msra.mxu0 0.0
          %5436 = vmatprep.subr.mxu0 0.0
          %5437 = vmatpush1.msra.mxu0 0.0
          %5438 = vmatprep.subr.mxu0 0.0
          %5439 = vmatpush1.msra.mxu0 0.0
          %5440 = vmatprep.subr.mxu0 0.0
          %5441 = vmatpush1.msra.mxu0 0.0
          %5442 = vmatprep.subr.mxu0 0.0
          %5443 = vmatpush1.msra.mxu0 0.0
          %5444 = vmatprep.subr.mxu0 0.0
          %5445 = vmatpush1.msra.mxu0 0.0
          %5446 = vmatprep.subr.mxu0 0.0
          %5447 = vmatpush1.msra.mxu0 0.0
          %5448 = vmatprep.subr.mxu0 0.0
          %5449 = vmatpush1.msra.mxu0 0.0
          %5450 = vmatprep.subr.mxu0 0.0
          %5451 = vmatpush1.msra.mxu0 0.0
          %5452 = vmatprep.subr.mxu0 0.0
          %5453 = vmatpush1.msra.mxu0 0.0
          %5454 = vmatprep.subr.mxu0 0.0
          %5455 = vmatpush1.msra.mxu0 0.0
          %5456 = vmatprep.subr.mxu0 0.0
          %5457 = vmatpush1.msra.mxu0 0.0
          %5458 = vmatprep.subr.mxu0 0.0
          %5459 = vmatpush1.msra.mxu0 0.0
          %5460 = vmatprep.subr.mxu0 0.0
          %5461 = vmatpush1.msra.mxu0 0.0
          %5462 = vmatprep.subr.mxu0 0.0
          %5463 = vmatpush1.msra.mxu0 0.0
          %5464 = vmatprep.subr.mxu0 0.0
          %5465 = vmatpush1.msra.mxu0 0.0
          %5466 = vmatprep.subr.mxu0 0.0
          %5467 = vmatpush1.msra.mxu0 0.0
          %5468 = vmatprep.subr.mxu0 0.0
          %5469 = vmatpush1.msra.mxu0 0.0
          %5470 = vmatprep.subr.mxu0 0.0
          %5471 = vmatpush1.msra.mxu0 0.0
          %5472 = vmatprep.subr.mxu0 0.0
          %5473 = vmatpush1.msra.mxu0 0.0
          %5474 = vmatprep.subr.mxu0 0.0
          %5475 = vmatpush1.msra.mxu0 0.0
          %5476 = vmatprep.subr.mxu0 0.0
          %5477 = vmatpush1.msra.mxu0 0.0
          %5478 = vmatprep.subr.mxu0 0.0
          %5479 = vmatpush1.msra.mxu0 0.0
          %5480 = vmatprep.subr.mxu0 0.0
          %5481 = vmatpush1.msra.mxu0 0.0
          %5482 = vmatprep.subr.mxu0 0.0
          %5483 = vmatpush1.msra.mxu0 0.0
          %5484 = vmatprep.subr.mxu0 0.0
          %5485 = vmatpush1.msra.mxu0 0.0
          %5486 = vmatprep.subr.mxu0 0.0
          %5487 = vmatpush1.msra.mxu0 0.0
          %5488 = vmatprep.subr.mxu0 0.0
          %5489 = vmatpush1.msra.mxu0 0.0
          %5490 = vmatprep.subr.mxu0 0.0
          %5491 = vmatpush1.msra.mxu0 0.0
          %5492 = vmatprep.mubr.f32.mxu0 0.0
          %5493 = vmatmul.mubr.f32.gmra.mrb[0].mxu0 %v5408
          %v5494 = vpop.f32.mrb[0].mxu0
          %v5495 = vadd.f32 0.0, %v5494
          %v5496 = vpop.f32.mrb[0].mxu0
          %v5497 = vadd.f32 0.0, %v5496
          %5498 = vdwg.mxu0
          %5499 = vmatprep.subr.mxu0 %v5420
          %5500 = vmatpush1.msra.mxu0 %v5417
          %5501 = vmatprep.subr.mxu0 0.0
          %5502 = vmatpush1.msra.mxu0 0.0
          %5503 = vmatprep.subr.mxu0 0.0
          %5504 = vmatpush1.msra.mxu0 0.0
          %5505 = vmatprep.subr.mxu0 0.0
          %5506 = vmatpush1.msra.mxu0 0.0
          %5507 = vmatprep.subr.mxu0 0.0
          %5508 = vmatpush1.msra.mxu0 0.0
          %5509 = vmatprep.subr.mxu0 0.0
          %5510 = vmatpush1.msra.mxu0 0.0
          %5511 = vmatprep.subr.mxu0 0.0
          %5512 = vmatpush1.msra.mxu0 0.0
          %5513 = vmatprep.subr.mxu0 0.0
          %5514 = vmatpush1.msra.mxu0 0.0
          %5515 = vmatprep.subr.mxu0 0.0
          %5516 = vmatpush1.msra.mxu0 0.0
          %5517 = vmatprep.subr.mxu0 0.0
          %5518 = vmatpush1.msra.mxu0 0.0
          %5519 = vmatprep.subr.mxu0 0.0
          %5520 = vmatpush1.msra.mxu0 0.0
          %5521 = vmatprep.subr.mxu0 0.0
          %5522 = vmatpush1.msra.mxu0 0.0
          %5523 = vmatprep.subr.mxu0 0.0
          %5524 = vmatpush1.msra.mxu0 0.0
          %5525 = vmatprep.subr.mxu0 0.0
          %5526 = vmatpush1.msra.mxu0 0.0
          %5527 = vmatprep.subr.mxu0 0.0
          %5528 = vmatpush1.msra.mxu0 0.0
          %5529 = vmatprep.subr.mxu0 0.0
          %5530 = vmatpush1.msra.mxu0 0.0
          %5531 = vmatprep.subr.mxu0 0.0
          %5532 = vmatpush1.msra.mxu0 0.0
          %5533 = vmatprep.subr.mxu0 0.0
          %5534 = vmatpush1.msra.mxu0 0.0
          %5535 = vmatprep.subr.mxu0 0.0
          %5536 = vmatpush1.msra.mxu0 0.0
          %5537 = vmatprep.subr.mxu0 0.0
          %5538 = vmatpush1.msra.mxu0 0.0
          %5539 = vmatprep.subr.mxu0 0.0
          %5540 = vmatpush1.msra.mxu0 0.0
          %5541 = vmatprep.subr.mxu0 0.0
          %5542 = vmatpush1.msra.mxu0 0.0
          %5543 = vmatprep.subr.mxu0 0.0
          %5544 = vmatpush1.msra.mxu0 0.0
          %5545 = vmatprep.subr.mxu0 0.0
          %5546 = vmatpush1.msra.mxu0 0.0
          %5547 = vmatprep.subr.mxu0 0.0
          %5548 = vmatpush1.msra.mxu0 0.0
          %5549 = vmatprep.subr.mxu0 0.0
          %5550 = vmatpush1.msra.mxu0 0.0
          %5551 = vmatprep.subr.mxu0 0.0
          %5552 = vmatpush1.msra.mxu0 0.0
          %5553 = vmatprep.subr.mxu0 0.0
          %5554 = vmatpush1.msra.mxu0 0.0
          %5555 = vmatprep.subr.mxu0 0.0
          %5556 = vmatpush1.msra.mxu0 0.0
          %5557 = vmatprep.subr.mxu0 0.0
          %5558 = vmatpush1.msra.mxu0 0.0
          %5559 = vmatprep.subr.mxu0 0.0
          %5560 = vmatpush1.msra.mxu0 0.0
          %5561 = vmatprep.subr.mxu0 0.0
          %5562 = vmatpush1.msra.mxu0 0.0
          %5563 = vmatprep.mubr.f32.mxu0 0.0
          %5564 = vmatmul.mubr.f32.gmra.mrb[0].mxu0 %v5408
          %v5565 = vpop.f32.mrb[0].mxu0
          %v5566 = vadd.f32 0.0, %v5565
          %v5567 = vpop.f32.mrb[0].mxu0
          %v5568 = vadd.f32 0.0, %v5567
          %5569 = vdwg.mxu0
          %5570 = vmatprep.subr.mxu0 %v5426
          %5571 = vmatpush1.msra.mxu0 %v5423
          %5572 = vmatprep.subr.mxu0 0.0
          %5573 = vmatpush1.msra.mxu0 0.0
          %5574 = vmatprep.subr.mxu0 0.0
          %5575 = vmatpush1.msra.mxu0 0.0
          %5576 = vmatprep.subr.mxu0 0.0
          %5577 = vmatpush1.msra.mxu0 0.0
          %5578 = vmatprep.subr.mxu0 0.0
          %5579 = vmatpush1.msra.mxu0 0.0
          %5580 = vmatprep.subr.mxu0 0.0
          %5581 = vmatpush1.msra.mxu0 0.0
          %5582 = vmatprep.subr.mxu0 0.0
          %5583 = vmatpush1.msra.mxu0 0.0
          %5584 = vmatprep.subr.mxu0 0.0
          %5585 = vmatpush1.msra.mxu0 0.0
          %5586 = vmatprep.subr.mxu0 0.0
          %5587 = vmatpush1.msra.mxu0 0.0
          %5588 = vmatprep.subr.mxu0 0.0
          %5589 = vmatpush1.msra.mxu0 0.0
          %5590 = vmatprep.subr.mxu0 0.0
          %5591 = vmatpush1.msra.mxu0 0.0
          %5592 = vmatprep.subr.mxu0 0.0
          %5593 = vmatpush1.msra.mxu0 0.0
          %5594 = vmatprep.subr.mxu0 0.0
          %5595 = vmatpush1.msra.mxu0 0.0
          %5596 = vmatprep.subr.mxu0 0.0
          %5597 = vmatpush1.msra.mxu0 0.0
          %5598 = vmatprep.subr.mxu0 0.0
          %5599 = vmatpush1.msra.mxu0 0.0
          %5600 = vmatprep.subr.mxu0 0.0
          %5601 = vmatpush1.msra.mxu0 0.0
          %5602 = vmatprep.subr.mxu0 0.0
          %5603 = vmatpush1.msra.mxu0 0.0
          %5604 = vmatprep.subr.mxu0 0.0
          %5605 = vmatpush1.msra.mxu0 0.0
          %5606 = vmatprep.subr.mxu0 0.0
          %5607 = vmatpush1.msra.mxu0 0.0
          %5608 = vmatprep.subr.mxu0 0.0
          %5609 = vmatpush1.msra.mxu0 0.0
          %5610 = vmatprep.subr.mxu0 0.0
          %5611 = vmatpush1.msra.mxu0 0.0
          %5612 = vmatprep.subr.mxu0 0.0
          %5613 = vmatpush1.msra.mxu0 0.0
          %5614 = vmatprep.subr.mxu0 0.0
          %5615 = vmatpush1.msra.mxu0 0.0
          %5616 = vmatprep.subr.mxu0 0.0
          %5617 = vmatpush1.msra.mxu0 0.0
          %5618 = vmatprep.subr.mxu0 0.0
          %5619 = vmatpush1.msra.mxu0 0.0
          %5620 = vmatprep.subr.mxu0 0.0
          %5621 = vmatpush1.msra.mxu0 0.0
          %5622 = vmatprep.subr.mxu0 0.0
          %5623 = vmatpush1.msra.mxu0 0.0
          %5624 = vmatprep.subr.mxu0 0.0
          %5625 = vmatpush1.msra.mxu0 0.0
          %5626 = vmatprep.subr.mxu0 0.0
          %5627 = vmatpush1.msra.mxu0 0.0
          %5628 = vmatprep.subr.mxu0 0.0
          %5629 = vmatpush1.msra.mxu0 0.0
          %5630 = vmatprep.subr.mxu0 0.0
          %5631 = vmatpush1.msra.mxu0 0.0
          %5632 = vmatprep.subr.mxu0 0.0
          %5633 = vmatpush1.msra.mxu0 0.0
          %5634 = vmatprep.mubr.f32.mxu0 0.0
          %5635 = vmatmul.mubr.f32.gmra.mrb[0].mxu0 %v5408
          %v5636 = vpop.f32.mrb[0].mxu0
          %v5637 = vadd.f32 0.0, %v5636
          %v5638 = vpop.f32.mrb[0].mxu0
          %v5639 = vadd.f32 0.0, %v5638
          %5640 = vdwg.mxu0
          %v5642 = vsel %vm3379, %v2527, 0
          %v5645 = vsel %vm1822, %v5395, 0
          %v5648 = vsel %vm1822, %v5396, 0
          %v5651 = vsel %vm1822, %v5397, 0
          %v5654 = vsel %vm1822, %v5398, 0
          %v5657 = vsel %vm1822, %v5399, 0
          %v5660 = vsel %vm1822, %v5400, 0
          %5662 = vmatprep.subr.mxu0 %v5648
          %5663 = vmatpush1.msra.mxu0 %v5645
          %5664 = vmatprep.subr.mxu0 0.0
          %5665 = vmatpush1.msra.mxu0 0.0
          %5666 = vmatprep.subr.mxu0 0.0
          %5667 = vmatpush1.msra.mxu0 0.0
          %5668 = vmatprep.subr.mxu0 0.0
          %5669 = vmatpush1.msra.mxu0 0.0
          %5670 = vmatprep.subr.mxu0 0.0
          %5671 = vmatpush1.msra.mxu0 0.0
          %5672 = vmatprep.subr.mxu0 0.0
          %5673 = vmatpush1.msra.mxu0 0.0
          %5674 = vmatprep.subr.mxu0 0.0
          %5675 = vmatpush1.msra.mxu0 0.0
          %5676 = vmatprep.subr.mxu0 0.0
          %5677 = vmatpush1.msra.mxu0 0.0
          %5678 = vmatprep.subr.mxu0 0.0
          %5679 = vmatpush1.msra.mxu0 0.0
          %5680 = vmatprep.subr.mxu0 0.0
          %5681 = vmatpush1.msra.mxu0 0.0
          %5682 = vmatprep.subr.mxu0 0.0
          %5683 = vmatpush1.msra.mxu0 0.0
          %5684 = vmatprep.subr.mxu0 0.0
          %5685 = vmatpush1.msra.mxu0 0.0
          %5686 = vmatprep.subr.mxu0 0.0
          %5687 = vmatpush1.msra.mxu0 0.0
          %5688 = vmatprep.subr.mxu0 0.0
          %5689 = vmatpush1.msra.mxu0 0.0
          %5690 = vmatprep.subr.mxu0 0.0
          %5691 = vmatpush1.msra.mxu0 0.0
          %5692 = vmatprep.subr.mxu0 0.0
          %5693 = vmatpush1.msra.mxu0 0.0
          %5694 = vmatprep.subr.mxu0 0.0
          %5695 = vmatpush1.msra.mxu0 0.0
          %5696 = vmatprep.subr.mxu0 0.0
          %5697 = vmatpush1.msra.mxu0 0.0
          %5698 = vmatprep.subr.mxu0 0.0
          %5699 = vmatpush1.msra.mxu0 0.0
          %5700 = vmatprep.subr.mxu0 0.0
          %5701 = vmatpush1.msra.mxu0 0.0
          %5702 = vmatprep.subr.mxu0 0.0
          %5703 = vmatpush1.msra.mxu0 0.0
          %5704 = vmatprep.subr.mxu0 0.0
          %5705 = vmatpush1.msra.mxu0 0.0
          %5706 = vmatprep.subr.mxu0 0.0
          %5707 = vmatpush1.msra.mxu0 0.0
          %5708 = vmatprep.subr.mxu0 0.0
          %5709 = vmatpush1.msra.mxu0 0.0
          %5710 = vmatprep.subr.mxu0 0.0
          %5711 = vmatpush1.msra.mxu0 0.0
          %5712 = vmatprep.subr.mxu0 0.0
          %5713 = vmatpush1.msra.mxu0 0.0
          %5714 = vmatprep.subr.mxu0 0.0
          %5715 = vmatpush1.msra.mxu0 0.0
          %5716 = vmatprep.subr.mxu0 0.0
          %5717 = vmatpush1.msra.mxu0 0.0
          %5718 = vmatprep.subr.mxu0 0.0
          %5719 = vmatpush1.msra.mxu0 0.0
          %5720 = vmatprep.subr.mxu0 0.0
          %5721 = vmatpush1.msra.mxu0 0.0
          %5722 = vmatprep.subr.mxu0 0.0
          %5723 = vmatpush1.msra.mxu0 0.0
          %5724 = vmatprep.subr.mxu0 0.0
          %5725 = vmatpush1.msra.mxu0 0.0
          %5726 = vmatprep.mubr.f32.mxu0 0.0
          %5727 = vmatmul.mubr.f32.gmra.mrb[0].mxu0 %v5642
          %v5728 = vpop.f32.mrb[0].mxu0
          %v5729 = vadd.f32 %v5495, %v5728
          %v5730 = vpop.f32.mrb[0].mxu0
          %v5731 = vadd.f32 %v5497, %v5730
          %5732 = vdwg.mxu0
          %5733 = vmatprep.subr.mxu0 %v5654
          %5734 = vmatpush1.msra.mxu0 %v5651
          %5735 = vmatprep.subr.mxu0 0.0
          %5736 = vmatpush1.msra.mxu0 0.0
          %5737 = vmatprep.subr.mxu0 0.0
          %5738 = vmatpush1.msra.mxu0 0.0
          %5739 = vmatprep.subr.mxu0 0.0
          %5740 = vmatpush1.msra.mxu0 0.0
          %5741 = vmatprep.subr.mxu0 0.0
          %5742 = vmatpush1.msra.mxu0 0.0
          %5743 = vmatprep.subr.mxu0 0.0
          %5744 = vmatpush1.msra.mxu0 0.0
          %5745 = vmatprep.subr.mxu0 0.0
          %5746 = vmatpush1.msra.mxu0 0.0
          %5747 = vmatprep.subr.mxu0 0.0
          %5748 = vmatpush1.msra.mxu0 0.0
          %5749 = vmatprep.subr.mxu0 0.0
          %5750 = vmatpush1.msra.mxu0 0.0
          %5751 = vmatprep.subr.mxu0 0.0
          %5752 = vmatpush1.msra.mxu0 0.0
          %5753 = vmatprep.subr.mxu0 0.0
          %5754 = vmatpush1.msra.mxu0 0.0
          %5755 = vmatprep.subr.mxu0 0.0
          %5756 = vmatpush1.msra.mxu0 0.0
          %5757 = vmatprep.subr.mxu0 0.0
          %5758 = vmatpush1.msra.mxu0 0.0
          %5759 = vmatprep.subr.mxu0 0.0
          %5760 = vmatpush1.msra.mxu0 0.0
          %5761 = vmatprep.subr.mxu0 0.0
          %5762 = vmatpush1.msra.mxu0 0.0
          %5763 = vmatprep.subr.mxu0 0.0
          %5764 = vmatpush1.msra.mxu0 0.0
          %5765 = vmatprep.subr.mxu0 0.0
          %5766 = vmatpush1.msra.mxu0 0.0
          %5767 = vmatprep.subr.mxu0 0.0
          %5768 = vmatpush1.msra.mxu0 0.0
          %5769 = vmatprep.subr.mxu0 0.0
          %5770 = vmatpush1.msra.mxu0 0.0
          %5771 = vmatprep.subr.mxu0 0.0
          %5772 = vmatpush1.msra.mxu0 0.0
          %5773 = vmatprep.subr.mxu0 0.0
          %5774 = vmatpush1.msra.mxu0 0.0
          %5775 = vmatprep.subr.mxu0 0.0
          %5776 = vmatpush1.msra.mxu0 0.0
          %5777 = vmatprep.subr.mxu0 0.0
          %5778 = vmatpush1.msra.mxu0 0.0
          %5779 = vmatprep.subr.mxu0 0.0
          %5780 = vmatpush1.msra.mxu0 0.0
          %5781 = vmatprep.subr.mxu0 0.0
          %5782 = vmatpush1.msra.mxu0 0.0
          %5783 = vmatprep.subr.mxu0 0.0
          %5784 = vmatpush1.msra.mxu0 0.0
          %5785 = vmatprep.subr.mxu0 0.0
          %5786 = vmatpush1.msra.mxu0 0.0
          %5787 = vmatprep.subr.mxu0 0.0
          %5788 = vmatpush1.msra.mxu0 0.0
          %5789 = vmatprep.subr.mxu0 0.0
          %5790 = vmatpush1.msra.mxu0 0.0
          %5791 = vmatprep.subr.mxu0 0.0
          %5792 = vmatpush1.msra.mxu0 0.0
          %5793 = vmatprep.subr.mxu0 0.0
          %5794 = vmatpush1.msra.mxu0 0.0
          %5795 = vmatprep.subr.mxu0 0.0
          %5796 = vmatpush1.msra.mxu0 0.0
          %5797 = vmatprep.mubr.f32.mxu0 0.0
          %5798 = vmatmul.mubr.f32.gmra.mrb[0].mxu0 %v5642
          %v5799 = vpop.f32.mrb[0].mxu0
          %v5800 = vadd.f32 %v5566, %v5799
          %v5801 = vpop.f32.mrb[0].mxu0
          %v5802 = vadd.f32 %v5568, %v5801
          %5803 = vdwg.mxu0
          %5804 = vmatprep.subr.mxu0 %v5660
          %5805 = vmatpush1.msra.mxu0 %v5657
          %5806 = vmatprep.subr.mxu0 0.0
          %5807 = vmatpush1.msra.mxu0 0.0
          %5808 = vmatprep.subr.mxu0 0.0
          %5809 = vmatpush1.msra.mxu0 0.0
          %5810 = vmatprep.subr.mxu0 0.0
          %5811 = vmatpush1.msra.mxu0 0.0
          %5812 = vmatprep.subr.mxu0 0.0
          %5813 = vmatpush1.msra.mxu0 0.0
          %5814 = vmatprep.subr.mxu0 0.0
          %5815 = vmatpush1.msra.mxu0 0.0
          %5816 = vmatprep.subr.mxu0 0.0
          %5817 = vmatpush1.msra.mxu0 0.0
          %5818 = vmatprep.subr.mxu0 0.0
          %5819 = vmatpush1.msra.mxu0 0.0
          %5820 = vmatprep.subr.mxu0 0.0
          %5821 = vmatpush1.msra.mxu0 0.0
          %5822 = vmatprep.subr.mxu0 0.0
          %5823 = vmatpush1.msra.mxu0 0.0
          %5824 = vmatprep.subr.mxu0 0.0
          %5825 = vmatpush1.msra.mxu0 0.0
          %5826 = vmatprep.subr.mxu0 0.0
          %5827 = vmatpush1.msra.mxu0 0.0
          %5828 = vmatprep.subr.mxu0 0.0
          %5829 = vmatpush1.msra.mxu0 0.0
          %5830 = vmatprep.subr.mxu0 0.0
          %5831 = vmatpush1.msra.mxu0 0.0
          %5832 = vmatprep.subr.mxu0 0.0
          %5833 = vmatpush1.msra.mxu0 0.0
          %5834 = vmatprep.subr.mxu0 0.0
          %5835 = vmatpush1.msra.mxu0 0.0
          %5836 = vmatprep.subr.mxu0 0.0
          %5837 = vmatpush1.msra.mxu0 0.0
          %5838 = vmatprep.subr.mxu0 0.0
          %5839 = vmatpush1.msra.mxu0 0.0
          %5840 = vmatprep.subr.mxu0 0.0
          %5841 = vmatpush1.msra.mxu0 0.0
          %5842 = vmatprep.subr.mxu0 0.0
          %5843 = vmatpush1.msra.mxu0 0.0
          %5844 = vmatprep.subr.mxu0 0.0
          %5845 = vmatpush1.msra.mxu0 0.0
          %5846 = vmatprep.subr.mxu0 0.0
          %5847 = vmatpush1.msra.mxu0 0.0
          %5848 = vmatprep.subr.mxu0 0.0
          %5849 = vmatpush1.msra.mxu0 0.0
          %5850 = vmatprep.subr.mxu0 0.0
          %5851 = vmatpush1.msra.mxu0 0.0
          %5852 = vmatprep.subr.mxu0 0.0
          %5853 = vmatpush1.msra.mxu0 0.0
          %5854 = vmatprep.subr.mxu0 0.0
          %5855 = vmatpush1.msra.mxu0 0.0
          %5856 = vmatprep.subr.mxu0 0.0
          %5857 = vmatpush1.msra.mxu0 0.0
          %5858 = vmatprep.subr.mxu0 0.0
          %5859 = vmatpush1.msra.mxu0 0.0
          %5860 = vmatprep.subr.mxu0 0.0
          %5861 = vmatpush1.msra.mxu0 0.0
          %5862 = vmatprep.subr.mxu0 0.0
          %5863 = vmatpush1.msra.mxu0 0.0
          %5864 = vmatprep.subr.mxu0 0.0
          %5865 = vmatpush1.msra.mxu0 0.0
          %5866 = vmatprep.subr.mxu0 0.0
          %5867 = vmatpush1.msra.mxu0 0.0
          %5868 = vmatprep.mubr.f32.mxu0 0.0
          %5869 = vmatmul.mubr.f32.gmra.mrb[0].mxu0 %v5642
          %v5870 = vpop.f32.mrb[0].mxu0
          %v5871 = vadd.f32 %v5637, %v5870
          %v5872 = vpop.f32.mrb[0].mxu0
          %v5873 = vadd.f32 %v5639, %v5872
          %5874 = vdwg.mxu0
          %v5875 = vld [vmem:[%s3848] sm:$0x1f]
          %v5876 = vld [vmem:[%s3848 + $0x8] sm:$0x1f]
          %v5877 = vld [vmem:[%s3848 + $0x10] sm:$0x1f]
          %v5878 = vld [vmem:[%s3848 + $0x18] sm:$0x1f]
          %v5879 = vld [vmem:[%s3848 + $0x20] sm:$0x1f]
          %v5880 = vld [vmem:[%s3848 + $0x28] sm:$0x1f]
          %v5882 = vsel %vm3379, %v2529, 0
          %v5885 = vsel %vm1822, %v5875, 0
          %v5888 = vsel %vm1822, %v5876, 0
          %v5891 = vsel %vm1822, %v5877, 0
          %v5894 = vsel %vm1822, %v5878, 0
          %v5897 = vsel %vm1822, %v5879, 0
          %v5900 = vsel %vm1822, %v5880, 0
          %5902 = vmatprep.subr.mxu0 %v5888
          %5903 = vmatpush1.msra.mxu0 %v5885
          %5904 = vmatprep.subr.mxu0 0.0
          %5905 = vmatpush1.msra.mxu0 0.0
          %5906 = vmatprep.subr.mxu0 0.0
          %5907 = vmatpush1.msra.mxu0 0.0
          %5908 = vmatprep.subr.mxu0 0.0
          %5909 = vmatpush1.msra.mxu0 0.0
          %5910 = vmatprep.subr.mxu0 0.0
          %5911 = vmatpush1.msra.mxu0 0.0
          %5912 = vmatprep.subr.mxu0 0.0
          %5913 = vmatpush1.msra.mxu0 0.0
          %5914 = vmatprep.subr.mxu0 0.0
          %5915 = vmatpush1.msra.mxu0 0.0
          %5916 = vmatprep.subr.mxu0 0.0
          %5917 = vmatpush1.msra.mxu0 0.0
          %5918 = vmatprep.subr.mxu0 0.0
          %5919 = vmatpush1.msra.mxu0 0.0
          %5920 = vmatprep.subr.mxu0 0.0
          %5921 = vmatpush1.msra.mxu0 0.0
          %5922 = vmatprep.subr.mxu0 0.0
          %5923 = vmatpush1.msra.mxu0 0.0
          %5924 = vmatprep.subr.mxu0 0.0
          %5925 = vmatpush1.msra.mxu0 0.0
          %5926 = vmatprep.subr.mxu0 0.0
          %5927 = vmatpush1.msra.mxu0 0.0
          %5928 = vmatprep.subr.mxu0 0.0
          %5929 = vmatpush1.msra.mxu0 0.0
          %5930 = vmatprep.subr.mxu0 0.0
          %5931 = vmatpush1.msra.mxu0 0.0
          %5932 = vmatprep.subr.mxu0 0.0
          %5933 = vmatpush1.msra.mxu0 0.0
          %5934 = vmatprep.subr.mxu0 0.0
          %5935 = vmatpush1.msra.mxu0 0.0
          %5936 = vmatprep.subr.mxu0 0.0
          %5937 = vmatpush1.msra.mxu0 0.0
          %5938 = vmatprep.subr.mxu0 0.0
          %5939 = vmatpush1.msra.mxu0 0.0
          %5940 = vmatprep.subr.mxu0 0.0
          %5941 = vmatpush1.msra.mxu0 0.0
          %5942 = vmatprep.subr.mxu0 0.0
          %5943 = vmatpush1.msra.mxu0 0.0
          %5944 = vmatprep.subr.mxu0 0.0
          %5945 = vmatpush1.msra.mxu0 0.0
          %5946 = vmatprep.subr.mxu0 0.0
          %5947 = vmatpush1.msra.mxu0 0.0
          %5948 = vmatprep.subr.mxu0 0.0
          %5949 = vmatpush1.msra.mxu0 0.0
          %5950 = vmatprep.subr.mxu0 0.0
          %5951 = vmatpush1.msra.mxu0 0.0
          %5952 = vmatprep.subr.mxu0 0.0
          %5953 = vmatpush1.msra.mxu0 0.0
          %5954 = vmatprep.subr.mxu0 0.0
          %5955 = vmatpush1.msra.mxu0 0.0
          %5956 = vmatprep.subr.mxu0 0.0
          %5957 = vmatpush1.msra.mxu0 0.0
          %5958 = vmatprep.subr.mxu0 0.0
          %5959 = vmatpush1.msra.mxu0 0.0
          %5960 = vmatprep.subr.mxu0 0.0
          %5961 = vmatpush1.msra.mxu0 0.0
          %5962 = vmatprep.subr.mxu0 0.0
          %5963 = vmatpush1.msra.mxu0 0.0
          %5964 = vmatprep.subr.mxu0 0.0
          %5965 = vmatpush1.msra.mxu0 0.0
          %5966 = vmatprep.mubr.f32.mxu0 0.0
          %5967 = vmatmul.mubr.f32.gmra.mrb[0].mxu0 %v5882
          %v5968 = vpop.f32.mrb[0].mxu0
          %v5969 = vadd.f32 0.0, %v5968
          %v5970 = vpop.f32.mrb[0].mxu0
          %v5971 = vadd.f32 0.0, %v5970
          %5972 = vdwg.mxu0
          %5973 = vmatprep.subr.mxu0 %v5894
          %5974 = vmatpush1.msra.mxu0 %v5891
          %5975 = vmatprep.subr.mxu0 0.0
          %5976 = vmatpush1.msra.mxu0 0.0
          %5977 = vmatprep.subr.mxu0 0.0
          %5978 = vmatpush1.msra.mxu0 0.0
          %5979 = vmatprep.subr.mxu0 0.0
          %5980 = vmatpush1.msra.mxu0 0.0
          %5981 = vmatprep.subr.mxu0 0.0
          %5982 = vmatpush1.msra.mxu0 0.0
          %5983 = vmatprep.subr.mxu0 0.0
          %5984 = vmatpush1.msra.mxu0 0.0
          %5985 = vmatprep.subr.mxu0 0.0
          %5986 = vmatpush1.msra.mxu0 0.0
          %5987 = vmatprep.subr.mxu0 0.0
          %5988 = vmatpush1.msra.mxu0 0.0
          %5989 = vmatprep.subr.mxu0 0.0
          %5990 = vmatpush1.msra.mxu0 0.0
          %5991 = vmatprep.subr.mxu0 0.0
          %5992 = vmatpush1.msra.mxu0 0.0
          %5993 = vmatprep.subr.mxu0 0.0
          %5994 = vmatpush1.msra.mxu0 0.0
          %5995 = vmatprep.subr.mxu0 0.0
          %5996 = vmatpush1.msra.mxu0 0.0
          %5997 = vmatprep.subr.mxu0 0.0
          %5998 = vmatpush1.msra.mxu0 0.0
          %5999 = vmatprep.subr.mxu0 0.0
          %6000 = vmatpush1.msra.mxu0 0.0
          %6001 = vmatprep.subr.mxu0 0.0
          %6002 = vmatpush1.msra.mxu0 0.0
          %6003 = vmatprep.subr.mxu0 0.0
          %6004 = vmatpush1.msra.mxu0 0.0
          %6005 = vmatprep.subr.mxu0 0.0
          %6006 = vmatpush1.msra.mxu0 0.0
          %6007 = vmatprep.subr.mxu0 0.0
          %6008 = vmatpush1.msra.mxu0 0.0
          %6009 = vmatprep.subr.mxu0 0.0
          %6010 = vmatpush1.msra.mxu0 0.0
          %6011 = vmatprep.subr.mxu0 0.0
          %6012 = vmatpush1.msra.mxu0 0.0
          %6013 = vmatprep.subr.mxu0 0.0
          %6014 = vmatpush1.msra.mxu0 0.0
          %6015 = vmatprep.subr.mxu0 0.0
          %6016 = vmatpush1.msra.mxu0 0.0
          %6017 = vmatprep.subr.mxu0 0.0
          %6018 = vmatpush1.msra.mxu0 0.0
          %6019 = vmatprep.subr.mxu0 0.0
          %6020 = vmatpush1.msra.mxu0 0.0
          %6021 = vmatprep.subr.mxu0 0.0
          %6022 = vmatpush1.msra.mxu0 0.0
          %6023 = vmatprep.subr.mxu0 0.0
          %6024 = vmatpush1.msra.mxu0 0.0
          %6025 = vmatprep.subr.mxu0 0.0
          %6026 = vmatpush1.msra.mxu0 0.0
          %6027 = vmatprep.subr.mxu0 0.0
          %6028 = vmatpush1.msra.mxu0 0.0
          %6029 = vmatprep.subr.mxu0 0.0
          %6030 = vmatpush1.msra.mxu0 0.0
          %6031 = vmatprep.subr.mxu0 0.0
          %6032 = vmatpush1.msra.mxu0 0.0
          %6033 = vmatprep.subr.mxu0 0.0
          %6034 = vmatpush1.msra.mxu0 0.0
          %6035 = vmatprep.subr.mxu0 0.0
          %6036 = vmatpush1.msra.mxu0 0.0
          %6037 = vmatprep.mubr.f32.mxu0 0.0
          %6038 = vmatmul.mubr.f32.gmra.mrb[0].mxu0 %v5882
          %v6039 = vpop.f32.mrb[0].mxu0
          %v6040 = vadd.f32 0.0, %v6039
          %v6041 = vpop.f32.mrb[0].mxu0
          %v6042 = vadd.f32 0.0, %v6041
          %6043 = vdwg.mxu0
          %6044 = vmatprep.subr.mxu0 %v5900
          %6045 = vmatpush1.msra.mxu0 %v5897
          %6046 = vmatprep.subr.mxu0 0.0
          %6047 = vmatpush1.msra.mxu0 0.0
          %6048 = vmatprep.subr.mxu0 0.0
          %6049 = vmatpush1.msra.mxu0 0.0
          %6050 = vmatprep.subr.mxu0 0.0
          %6051 = vmatpush1.msra.mxu0 0.0
          %6052 = vmatprep.subr.mxu0 0.0
          %6053 = vmatpush1.msra.mxu0 0.0
          %6054 = vmatprep.subr.mxu0 0.0
          %6055 = vmatpush1.msra.mxu0 0.0
          %6056 = vmatprep.subr.mxu0 0.0
          %6057 = vmatpush1.msra.mxu0 0.0
          %6058 = vmatprep.subr.mxu0 0.0
          %6059 = vmatpush1.msra.mxu0 0.0
          %6060 = vmatprep.subr.mxu0 0.0
          %6061 = vmatpush1.msra.mxu0 0.0
          %6062 = vmatprep.subr.mxu0 0.0
          %6063 = vmatpush1.msra.mxu0 0.0
          %6064 = vmatprep.subr.mxu0 0.0
          %6065 = vmatpush1.msra.mxu0 0.0
          %6066 = vmatprep.subr.mxu0 0.0
          %6067 = vmatpush1.msra.mxu0 0.0
          %6068 = vmatprep.subr.mxu0 0.0
          %6069 = vmatpush1.msra.mxu0 0.0
          %6070 = vmatprep.subr.mxu0 0.0
          %6071 = vmatpush1.msra.mxu0 0.0
          %6072 = vmatprep.subr.mxu0 0.0
          %6073 = vmatpush1.msra.mxu0 0.0
          %6074 = vmatprep.subr.mxu0 0.0
          %6075 = vmatpush1.msra.mxu0 0.0
          %6076 = vmatprep.subr.mxu0 0.0
          %6077 = vmatpush1.msra.mxu0 0.0
          %6078 = vmatprep.subr.mxu0 0.0
          %6079 = vmatpush1.msra.mxu0 0.0
          %6080 = vmatprep.subr.mxu0 0.0
          %6081 = vmatpush1.msra.mxu0 0.0
          %6082 = vmatprep.subr.mxu0 0.0
          %6083 = vmatpush1.msra.mxu0 0.0
          %6084 = vmatprep.subr.mxu0 0.0
          %6085 = vmatpush1.msra.mxu0 0.0
          %6086 = vmatprep.subr.mxu0 0.0
          %6087 = vmatpush1.msra.mxu0 0.0
          %6088 = vmatprep.subr.mxu0 0.0
          %6089 = vmatpush1.msra.mxu0 0.0
          %6090 = vmatprep.subr.mxu0 0.0
          %6091 = vmatpush1.msra.mxu0 0.0
          %6092 = vmatprep.subr.mxu0 0.0
          %6093 = vmatpush1.msra.mxu0 0.0
          %6094 = vmatprep.subr.mxu0 0.0
          %6095 = vmatpush1.msra.mxu0 0.0
          %6096 = vmatprep.subr.mxu0 0.0
          %6097 = vmatpush1.msra.mxu0 0.0
          %6098 = vmatprep.subr.mxu0 0.0
          %6099 = vmatpush1.msra.mxu0 0.0
          %6100 = vmatprep.subr.mxu0 0.0
          %6101 = vmatpush1.msra.mxu0 0.0
          %6102 = vmatprep.subr.mxu0 0.0
          %6103 = vmatpush1.msra.mxu0 0.0
          %6104 = vmatprep.subr.mxu0 0.0
          %6105 = vmatpush1.msra.mxu0 0.0
          %6106 = vmatprep.subr.mxu0 0.0
          %6107 = vmatpush1.msra.mxu0 0.0
          %6108 = vmatprep.mubr.f32.mxu0 0.0
          %6109 = vmatmul.mubr.f32.gmra.mrb[0].mxu0 %v5882
          %v6110 = vpop.f32.mrb[0].mxu0
          %v6111 = vadd.f32 0.0, %v6110
          %v6112 = vpop.f32.mrb[0].mxu0
          %v6113 = vadd.f32 0.0, %v6112
          %6114 = vdwg.mxu0
          %v6115 = vadd.f32 %v5729, %v5969
          %v6116 = vadd.f32 %v5731, %v5971
          %v6117 = vadd.f32 %v5800, %v6040
          %v6118 = vadd.f32 %v5802, %v6042
          %v6119 = vadd.f32 %v5871, %v6111
          %v6120 = vadd.f32 %v5873, %v6113
          %v6121 = vld [vmem:[%s55] sm:$0xff]
          %v6122 = vld [vmem:[%s55 + $0x8] sm:$0xff]
          %v6123 = vld [vmem:[%s55 + $0x10] sm:$0xff]
          %v6124 = vld [vmem:[%s55 + $0x18] sm:$0xff]
          %v6125 = vld [vmem:[%s55 + $0x20] sm:$0xff]
          %v6126 = vld [vmem:[%s55 + $0x28] sm:$0xff]
          %v6127 = vld [vmem:[%s55 + $0x30] sm:$0xff]
          %v6128 = vld [vmem:[%s55 + $0x38] sm:$0xff]
          %v6129 = vld [vmem:[%s55 + $0x40] sm:$0xff]
          %v6130 = vld [vmem:[%s55 + $0x48] sm:$0xff]
          %v6131 = vld [vmem:[%s55 + $0x50] sm:$0xff]
          %v6132 = vld [vmem:[%s55 + $0x58] sm:$0xff]
          %v6133 = vld [vmem:[%s55 + $0x60] sm:$0xff]
          %v6134 = vld [vmem:[%s55 + $0x68] sm:$0xff]
          %v6135 = vld [vmem:[%s55 + $0x70] sm:$0xff]
          %v6136 = vld [vmem:[%s55 + $0x78] sm:$0xff]
          %v6137 = vld [vmem:[%s55 + $0x80] sm:$0xff]
          %v6138 = vld [vmem:[%s55 + $0x88] sm:$0xff]
          %v6139 = vld [vmem:[%s55 + $0x90] sm:$0xff]
          %v6140 = vld [vmem:[%s55 + $0x98] sm:$0xff]
          %v6141 = vld [vmem:[%s55 + $0xa0] sm:$0xff]
          %v6142 = vld [vmem:[%s55 + $0xa8] sm:$0xff]
          %v6143 = vld [vmem:[%s55 + $0xb0] sm:$0xff]
          %v6144 = vld [vmem:[%s55 + $0xb8] sm:$0xff]
          %v6145 = vld [vmem:[%s55 + $0xc0] sm:$0xff]
          %v6146 = vld [vmem:[%s55 + $0xc8] sm:$0xff]
          %v6147 = vld [vmem:[%s55 + $0xd0] sm:$0xff]
          %v6148 = vld [vmem:[%s55 + $0xd8] sm:$0xff]
          %v6149 = vld [vmem:[%s55 + $0xe0] sm:$0xff]
          %v6150 = vld [vmem:[%s55 + $0xe8] sm:$0xff]
          %v6151 = vld [vmem:[%s55 + $0xf0] sm:$0xff]
          %v6152 = vld [vmem:[%s55 + $0xf8] sm:$0xff]
          %v6153 = vld [vmem:[%s55 + $0x100] sm:$0xff]
          %v6154 = vld [vmem:[%s55 + $0x108] sm:$0xff]
          %v6155 = vld [vmem:[%s55 + $0x110] sm:$0xff]
          %v6156 = vld [vmem:[%s55 + $0x118] sm:$0xff]
          %v6157 = vld [vmem:[%s55 + $0x120] sm:$0xff]
          %v6158 = vld [vmem:[%s55 + $0x128] sm:$0xff]
          %v6159 = vld [vmem:[%s55 + $0x130] sm:$0xff]
          %v6160 = vld [vmem:[%s55 + $0x138] sm:$0xff]
          %v6161 = vld [vmem:[%s55 + $0x140] sm:$0xff]
          %v6162 = vld [vmem:[%s55 + $0x148] sm:$0xff]
          %v6163 = vld [vmem:[%s55 + $0x150] sm:$0xff]
          %v6164 = vld [vmem:[%s55 + $0x158] sm:$0xff]
          %v6165 = vld [vmem:[%s55 + $0x160] sm:$0xff]
          %v6166 = vld [vmem:[%s55 + $0x168] sm:$0xff]
          %v6167 = vld [vmem:[%s55 + $0x170] sm:$0xff]
          %v6168 = vld [vmem:[%s55 + $0x178] sm:$0xff]
          %v6169 = vld [vmem:[%s55 + $0x180] sm:$0xff]
          %v6170 = vld [vmem:[%s55 + $0x188] sm:$0xff]
          %v6171 = vld [vmem:[%s55 + $0x190] sm:$0xff]
          %v6172 = vld [vmem:[%s55 + $0x198] sm:$0xff]
          %v6173 = vld [vmem:[%s55 + $0x1a0] sm:$0xff]
          %v6174 = vld [vmem:[%s55 + $0x1a8] sm:$0xff]
          %v6175 = vld [vmem:[%s55 + $0x1b0] sm:$0xff]
          %v6176 = vld [vmem:[%s55 + $0x1b8] sm:$0xff]
          %v6177 = vld [vmem:[%s55 + $0x1c0] sm:$0xff]
          %v6178 = vld [vmem:[%s55 + $0x1c8] sm:$0xff]
          %v6179 = vld [vmem:[%s55 + $0x1d0] sm:$0xff]
          %v6180 = vld [vmem:[%s55 + $0x1d8] sm:$0xff]
          %v6181 = vld [vmem:[%s55 + $0x1e0] sm:$0xff]
          %v6182 = vld [vmem:[%s55 + $0x1e8] sm:$0xff]
          %v6183 = vld [vmem:[%s55 + $0x1f0] sm:$0xff]
          %v6184 = vld [vmem:[%s55 + $0x1f8] sm:$0xff]
          %v6185 = vld [vmem:[%s55 + $0x200] sm:$0xff]
          %v6186 = vld [vmem:[%s55 + $0x208] sm:$0xff]
          %v6187 = vld [vmem:[%s55 + $0x210] sm:$0xff]
          %v6188 = vld [vmem:[%s55 + $0x218] sm:$0xff]
          %v6189 = vld [vmem:[%s55 + $0x220] sm:$0xff]
          %v6190 = vld [vmem:[%s55 + $0x228] sm:$0xff]
          %v6191 = vld [vmem:[%s55 + $0x230] sm:$0xff]
          %v6192 = vld [vmem:[%s55 + $0x238] sm:$0xff]
          %v6193 = vld [vmem:[%s55 + $0x240] sm:$0xff]
          %v6194 = vld [vmem:[%s55 + $0x248] sm:$0xff]
          %v6195 = vld [vmem:[%s55 + $0x250] sm:$0xff]
          %v6196 = vld [vmem:[%s55 + $0x258] sm:$0xff]
          %v6197 = vld [vmem:[%s55 + $0x260] sm:$0xff]
          %v6198 = vld [vmem:[%s55 + $0x268] sm:$0xff]
          %v6199 = vld [vmem:[%s55 + $0x270] sm:$0xff]
          %v6200 = vld [vmem:[%s55 + $0x278] sm:$0xff]
          %v6201 = vld [vmem:[%s55 + $0x280] sm:$0xff]
          %v6202 = vld [vmem:[%s55 + $0x288] sm:$0xff]
          %v6203 = vld [vmem:[%s55 + $0x290] sm:$0xff]
          %v6204 = vld [vmem:[%s55 + $0x298] sm:$0xff]
          %v6205 = vld [vmem:[%s55 + $0x2a0] sm:$0xff]
          %v6206 = vld [vmem:[%s55 + $0x2a8] sm:$0xff]
          %v6207 = vld [vmem:[%s55 + $0x2b0] sm:$0xff]
          %v6208 = vld [vmem:[%s55 + $0x2b8] sm:$0xff]
          %v6209 = vld [vmem:[%s55 + $0x2c0] sm:$0xff]
          %v6210 = vld [vmem:[%s55 + $0x2c8] sm:$0xff]
          %v6211 = vld [vmem:[%s55 + $0x2d0] sm:$0xff]
          %v6212 = vld [vmem:[%s55 + $0x2d8] sm:$0xff]
          %v6213 = vld [vmem:[%s55 + $0x2e0] sm:$0xff]
          %v6214 = vld [vmem:[%s55 + $0x2e8] sm:$0xff]
          %v6215 = vld [vmem:[%s55 + $0x2f0] sm:$0xff]
          %v6216 = vld [vmem:[%s55 + $0x2f8] sm:$0xff]
          %v6217 = vld [vmem:[%s55 + $0x300] sm:$0xff]
          %v6218 = vld [vmem:[%s55 + $0x308] sm:$0xff]
          %v6219 = vld [vmem:[%s55 + $0x310] sm:$0xff]
          %v6220 = vld [vmem:[%s55 + $0x318] sm:$0xff]
          %v6221 = vld [vmem:[%s55 + $0x320] sm:$0xff]
          %v6222 = vld [vmem:[%s55 + $0x328] sm:$0xff]
          %v6223 = vld [vmem:[%s55 + $0x330] sm:$0xff]
          %v6224 = vld [vmem:[%s55 + $0x338] sm:$0xff]
          %v6225 = vld [vmem:[%s55 + $0x340] sm:$0xff]
          %v6226 = vld [vmem:[%s55 + $0x348] sm:$0xff]
          %v6227 = vld [vmem:[%s55 + $0x350] sm:$0xff]
          %v6228 = vld [vmem:[%s55 + $0x358] sm:$0xff]
          %v6229 = vld [vmem:[%s55 + $0x360] sm:$0xff]
          %v6230 = vld [vmem:[%s55 + $0x368] sm:$0xff]
          %v6231 = vld [vmem:[%s55 + $0x370] sm:$0xff]
          %v6232 = vld [vmem:[%s55 + $0x378] sm:$0xff]
          %v6233 = vld [vmem:[%s55 + $0x380] sm:$0xff]
          %v6234 = vld [vmem:[%s55 + $0x388] sm:$0xff]
          %v6235 = vld [vmem:[%s55 + $0x390] sm:$0xff]
          %v6236 = vld [vmem:[%s55 + $0x398] sm:$0xff]
          %v6237 = vld [vmem:[%s55 + $0x3a0] sm:$0xff]
          %v6238 = vld [vmem:[%s55 + $0x3a8] sm:$0xff]
          %v6239 = vld [vmem:[%s55 + $0x3b0] sm:$0xff]
          %v6240 = vld [vmem:[%s55 + $0x3b8] sm:$0xff]
          %v6241 = vld [vmem:[%s55 + $0x3c0] sm:$0xff]
          %v6242 = vld [vmem:[%s55 + $0x3c8] sm:$0xff]
          %v6243 = vld [vmem:[%s55 + $0x3d0] sm:$0xff]
          %v6244 = vld [vmem:[%s55 + $0x3d8] sm:$0xff]
          %v6245 = vld [vmem:[%s55 + $0x3e0] sm:$0xff]
          %v6246 = vld [vmem:[%s55 + $0x3e8] sm:$0xff]
          %v6247 = vld [vmem:[%s55 + $0x3f0] sm:$0xff]
          %v6248 = vld [vmem:[%s55 + $0x3f8] sm:$0xff]
          %v6249 = vld [vmem:[%s55 + $0x400] sm:$0xff]
          %v6250 = vld [vmem:[%s55 + $0x408] sm:$0xff]
          %v6251 = vld [vmem:[%s55 + $0x410] sm:$0xff]
          %v6252 = vld [vmem:[%s55 + $0x418] sm:$0xff]
          %v6253 = vld [vmem:[%s55 + $0x420] sm:$0xff]
          %v6254 = vld [vmem:[%s55 + $0x428] sm:$0xff]
          %v6255 = vld [vmem:[%s55 + $0x430] sm:$0xff]
          %v6256 = vld [vmem:[%s55 + $0x438] sm:$0xff]
          %v6257 = vld [vmem:[%s55 + $0x440] sm:$0xff]
          %v6258 = vld [vmem:[%s55 + $0x448] sm:$0xff]
          %v6259 = vld [vmem:[%s55 + $0x450] sm:$0xff]
          %v6260 = vld [vmem:[%s55 + $0x458] sm:$0xff]
          %v6261 = vld [vmem:[%s55 + $0x460] sm:$0xff]
          %v6262 = vld [vmem:[%s55 + $0x468] sm:$0xff]
          %v6263 = vld [vmem:[%s55 + $0x470] sm:$0xff]
          %v6264 = vld [vmem:[%s55 + $0x478] sm:$0xff]
          %v6265 = vsel %vm1253, %v4557, 0
          %6267 = vmatprep.subr.mxu0 %v6122
          %6268 = vmatpush1.msra.mxu0 %v6121
          %6269 = vmatprep.subr.mxu0 %v6128
          %6270 = vmatpush1.msra.mxu0 %v6127
          %6271 = vmatprep.subr.mxu0 %v6134
          %6272 = vmatpush1.msra.mxu0 %v6133
          %6273 = vmatprep.subr.mxu0 %v6140
          %6274 = vmatpush1.msra.mxu0 %v6139
          %6275 = vmatprep.subr.mxu0 %v6146
          %6276 = vmatpush1.msra.mxu0 %v6145
          %6277 = vmatprep.subr.mxu0 %v6152
          %6278 = vmatpush1.msra.mxu0 %v6151
          %6279 = vmatprep.subr.mxu0 %v6158
          %6280 = vmatpush1.msra.mxu0 %v6157
          %6281 = vmatprep.subr.mxu0 %v6164
          %6282 = vmatpush1.msra.mxu0 %v6163
          %6283 = vmatprep.subr.mxu0 %v6170
          %6284 = vmatpush1.msra.mxu0 %v6169
          %6285 = vmatprep.subr.mxu0 %v6176
          %6286 = vmatpush1.msra.mxu0 %v6175
          %6287 = vmatprep.subr.mxu0 %v6182
          %6288 = vmatpush1.msra.mxu0 %v6181
          %6289 = vmatprep.subr.mxu0 %v6188
          %6290 = vmatpush1.msra.mxu0 %v6187
          %6291 = vmatprep.subr.mxu0 %v6194
          %6292 = vmatpush1.msra.mxu0 %v6193
          %6293 = vmatprep.subr.mxu0 %v6200
          %6294 = vmatpush1.msra.mxu0 %v6199
          %6295 = vmatprep.subr.mxu0 %v6206
          %6296 = vmatpush1.msra.mxu0 %v6205
          %6297 = vmatprep.subr.mxu0 %v6212
          %6298 = vmatpush1.msra.mxu0 %v6211
          %6299 = vmatprep.subr.mxu0 %v6218
          %6300 = vmatpush1.msra.mxu0 %v6217
          %6301 = vmatprep.subr.mxu0 %v6224
          %6302 = vmatpush1.msra.mxu0 %v6223
          %6303 = vmatprep.subr.mxu0 %v6230
          %6304 = vmatpush1.msra.mxu0 %v6229
          %6305 = vmatprep.subr.mxu0 %v6236
          %6306 = vmatpush1.msra.mxu0 %v6235
          %6307 = vmatprep.subr.mxu0 %v6242
          %6308 = vmatpush1.msra.mxu0 %v6241
          %6309 = vmatprep.subr.mxu0 %v6248
          %6310 = vmatpush1.msra.mxu0 %v6247
          %6311 = vmatprep.subr.mxu0 %v6254
          %6312 = vmatpush1.msra.mxu0 %v6253
          %6313 = vmatprep.subr.mxu0 %v6260
          %6314 = vmatpush1.msra.mxu0 %v6259
          %6315 = vmatprep.subr.mxu0 0.0
          %6316 = vmatpush1.msra.mxu0 0.0
          %6317 = vmatprep.subr.mxu0 0.0
          %6318 = vmatpush1.msra.mxu0 0.0
          %6319 = vmatprep.subr.mxu0 0.0
          %6320 = vmatpush1.msra.mxu0 0.0
          %6321 = vmatprep.subr.mxu0 0.0
          %6322 = vmatpush1.msra.mxu0 0.0
          %6323 = vmatprep.subr.mxu0 0.0
          %6324 = vmatpush1.msra.mxu0 0.0
          %6325 = vmatprep.subr.mxu0 0.0
          %6326 = vmatpush1.msra.mxu0 0.0
          %6327 = vmatprep.subr.mxu0 0.0
          %6328 = vmatpush1.msra.mxu0 0.0
          %6329 = vmatprep.subr.mxu0 0.0
          %6330 = vmatpush1.msra.mxu0 0.0
          %6331 = vmatprep.mubr.f32.mxu0 %v6265
          %6332 = vmatmul.mubr.f32.gmra.mrb[0].mxu0 %v4558
          %v6333 = vpop.f32.mrb[0].mxu0
          %v6334 = vadd.f32 0.0, %v6333
          %v6335 = vpop.f32.mrb[0].mxu0
          %v6336 = vadd.f32 0.0, %v6335
          %6337 = vdwg.mxu0
          %6338 = vmatprep.subr.mxu0 %v6124
          %6339 = vmatpush1.msra.mxu0 %v6123
          %6340 = vmatprep.subr.mxu0 %v6130
          %6341 = vmatpush1.msra.mxu0 %v6129
          %6342 = vmatprep.subr.mxu0 %v6136
          %6343 = vmatpush1.msra.mxu0 %v6135
          %6344 = vmatprep.subr.mxu0 %v6142
          %6345 = vmatpush1.msra.mxu0 %v6141
          %6346 = vmatprep.subr.mxu0 %v6148
          %6347 = vmatpush1.msra.mxu0 %v6147
          %6348 = vmatprep.subr.mxu0 %v6154
          %6349 = vmatpush1.msra.mxu0 %v6153
          %6350 = vmatprep.subr.mxu0 %v6160
          %6351 = vmatpush1.msra.mxu0 %v6159
          %6352 = vmatprep.subr.mxu0 %v6166
          %6353 = vmatpush1.msra.mxu0 %v6165
          %6354 = vmatprep.subr.mxu0 %v6172
          %6355 = vmatpush1.msra.mxu0 %v6171
          %6356 = vmatprep.subr.mxu0 %v6178
          %6357 = vmatpush1.msra.mxu0 %v6177
          %6358 = vmatprep.subr.mxu0 %v6184
          %6359 = vmatpush1.msra.mxu0 %v6183
          %6360 = vmatprep.subr.mxu0 %v6190
          %6361 = vmatpush1.msra.mxu0 %v6189
          %6362 = vmatprep.subr.mxu0 %v6196
          %6363 = vmatpush1.msra.mxu0 %v6195
          %6364 = vmatprep.subr.mxu0 %v6202
          %6365 = vmatpush1.msra.mxu0 %v6201
          %6366 = vmatprep.subr.mxu0 %v6208
          %6367 = vmatpush1.msra.mxu0 %v6207
          %6368 = vmatprep.subr.mxu0 %v6214
          %6369 = vmatpush1.msra.mxu0 %v6213
          %6370 = vmatprep.subr.mxu0 %v6220
          %6371 = vmatpush1.msra.mxu0 %v6219
          %6372 = vmatprep.subr.mxu0 %v6226
          %6373 = vmatpush1.msra.mxu0 %v6225
          %6374 = vmatprep.subr.mxu0 %v6232
          %6375 = vmatpush1.msra.mxu0 %v6231
          %6376 = vmatprep.subr.mxu0 %v6238
          %6377 = vmatpush1.msra.mxu0 %v6237
          %6378 = vmatprep.subr.mxu0 %v6244
          %6379 = vmatpush1.msra.mxu0 %v6243
          %6380 = vmatprep.subr.mxu0 %v6250
          %6381 = vmatpush1.msra.mxu0 %v6249
          %6382 = vmatprep.subr.mxu0 %v6256
          %6383 = vmatpush1.msra.mxu0 %v6255
          %6384 = vmatprep.subr.mxu0 %v6262
          %6385 = vmatpush1.msra.mxu0 %v6261
          %6386 = vmatprep.subr.mxu0 0.0
          %6387 = vmatpush1.msra.mxu0 0.0
          %6388 = vmatprep.subr.mxu0 0.0
          %6389 = vmatpush1.msra.mxu0 0.0
          %6390 = vmatprep.subr.mxu0 0.0
          %6391 = vmatpush1.msra.mxu0 0.0
          %6392 = vmatprep.subr.mxu0 0.0
          %6393 = vmatpush1.msra.mxu0 0.0
          %6394 = vmatprep.subr.mxu0 0.0
          %6395 = vmatpush1.msra.mxu0 0.0
          %6396 = vmatprep.subr.mxu0 0.0
          %6397 = vmatpush1.msra.mxu0 0.0
          %6398 = vmatprep.subr.mxu0 0.0
          %6399 = vmatpush1.msra.mxu0 0.0
          %6400 = vmatprep.subr.mxu0 0.0
          %6401 = vmatpush1.msra.mxu0 0.0
          %6402 = vmatprep.mubr.f32.mxu0 %v6265
          %6403 = vmatmul.mubr.f32.gmra.mrb[0].mxu0 %v4558
          %v6404 = vpop.f32.mrb[0].mxu0
          %v6405 = vadd.f32 0.0, %v6404
          %v6406 = vpop.f32.mrb[0].mxu0
          %v6407 = vadd.f32 0.0, %v6406
          %6408 = vdwg.mxu0
          %6409 = vmatprep.subr.mxu0 %v6126
          %6410 = vmatpush1.msra.mxu0 %v6125
          %6411 = vmatprep.subr.mxu0 %v6132
          %6412 = vmatpush1.msra.mxu0 %v6131
          %6413 = vmatprep.subr.mxu0 %v6138
          %6414 = vmatpush1.msra.mxu0 %v6137
          %6415 = vmatprep.subr.mxu0 %v6144
          %6416 = vmatpush1.msra.mxu0 %v6143
          %6417 = vmatprep.subr.mxu0 %v6150
          %6418 = vmatpush1.msra.mxu0 %v6149
          %6419 = vmatprep.subr.mxu0 %v6156
          %6420 = vmatpush1.msra.mxu0 %v6155
          %6421 = vmatprep.subr.mxu0 %v6162
          %6422 = vmatpush1.msra.mxu0 %v6161
          %6423 = vmatprep.subr.mxu0 %v6168
          %6424 = vmatpush1.msra.mxu0 %v6167
          %6425 = vmatprep.subr.mxu0 %v6174
          %6426 = vmatpush1.msra.mxu0 %v6173
          %6427 = vmatprep.subr.mxu0 %v6180
          %6428 = vmatpush1.msra.mxu0 %v6179
          %6429 = vmatprep.subr.mxu0 %v6186
          %6430 = vmatpush1.msra.mxu0 %v6185
          %6431 = vmatprep.subr.mxu0 %v6192
          %6432 = vmatpush1.msra.mxu0 %v6191
          %6433 = vmatprep.subr.mxu0 %v6198
          %6434 = vmatpush1.msra.mxu0 %v6197
          %6435 = vmatprep.subr.mxu0 %v6204
          %6436 = vmatpush1.msra.mxu0 %v6203
          %6437 = vmatprep.subr.mxu0 %v6210
          %6438 = vmatpush1.msra.mxu0 %v6209
          %6439 = vmatprep.subr.mxu0 %v6216
          %6440 = vmatpush1.msra.mxu0 %v6215
          %6441 = vmatprep.subr.mxu0 %v6222
          %6442 = vmatpush1.msra.mxu0 %v6221
          %6443 = vmatprep.subr.mxu0 %v6228
          %6444 = vmatpush1.msra.mxu0 %v6227
          %6445 = vmatprep.subr.mxu0 %v6234
          %6446 = vmatpush1.msra.mxu0 %v6233
          %6447 = vmatprep.subr.mxu0 %v6240
          %6448 = vmatpush1.msra.mxu0 %v6239
          %6449 = vmatprep.subr.mxu0 %v6246
          %6450 = vmatpush1.msra.mxu0 %v6245
          %6451 = vmatprep.subr.mxu0 %v6252
          %6452 = vmatpush1.msra.mxu0 %v6251
          %6453 = vmatprep.subr.mxu0 %v6258
          %6454 = vmatpush1.msra.mxu0 %v6257
          %6455 = vmatprep.subr.mxu0 %v6264
          %6456 = vmatpush1.msra.mxu0 %v6263
          %6457 = vmatprep.subr.mxu0 0.0
          %6458 = vmatpush1.msra.mxu0 0.0
          %6459 = vmatprep.subr.mxu0 0.0
          %6460 = vmatpush1.msra.mxu0 0.0
          %6461 = vmatprep.subr.mxu0 0.0
          %6462 = vmatpush1.msra.mxu0 0.0
          %6463 = vmatprep.subr.mxu0 0.0
          %6464 = vmatpush1.msra.mxu0 0.0
          %6465 = vmatprep.subr.mxu0 0.0
          %6466 = vmatpush1.msra.mxu0 0.0
          %6467 = vmatprep.subr.mxu0 0.0
          %6468 = vmatpush1.msra.mxu0 0.0
          %6469 = vmatprep.subr.mxu0 0.0
          %6470 = vmatpush1.msra.mxu0 0.0
          %6471 = vmatprep.subr.mxu0 0.0
          %6472 = vmatpush1.msra.mxu0 0.0
          %6473 = vmatprep.mubr.f32.mxu0 %v6265
          %6474 = vmatmul.mubr.f32.gmra.mrb[0].mxu0 %v4558
          %v6475 = vpop.f32.mrb[0].mxu0
          %v6476 = vadd.f32 0.0, %v6475
          %v6477 = vpop.f32.mrb[0].mxu0
          %v6478 = vadd.f32 0.0, %v6477
          %6479 = vdwg.mxu0
          %v6480 = vadd.f32 %v6115, %v6334
          %v6481 = vadd.f32 %v6116, %v6336
          %v6482 = vadd.f32 %v6117, %v6405
          %v6483 = vadd.f32 %v6118, %v6407
          %v6484 = vadd.f32 %v6119, %v6476
          %v6485 = vadd.f32 %v6120, %v6478
          %v6486 = vld [vmem:[%s57] sm:$0x3f]
          %v6488 = vlaneseq
          %v6489 = vshrl.u32 %v6488, 7
          %v6490 = vsub.s32 0, %v6489
          %v6491 = vrot.slane %v6486, %v6490
          %v6492 = vlaneseq
          %v6493 = vshrl.u32 %v6492, 7
          %v6494 = vsub.s32 1, %v6493
          %v6495 = vrot.slane %v6486, %v6494
          %v6496 = vlaneseq
          %v6497 = vshrl.u32 %v6496, 7
          %v6498 = vsub.s32 2, %v6497
          %v6499 = vrot.slane %v6486, %v6498
          %v6500 = vlaneseq
          %v6501 = vshrl.u32 %v6500, 7
          %v6502 = vsub.s32 3, %v6501
          %v6503 = vrot.slane %v6486, %v6502
          %v6504 = vlaneseq
          %v6505 = vshrl.u32 %v6504, 7
          %v6506 = vsub.s32 4, %v6505
          %v6507 = vrot.slane %v6486, %v6506
          %v6508 = vlaneseq
          %v6509 = vshrl.u32 %v6508, 7
          %v6510 = vsub.s32 5, %v6509
          %v6511 = vrot.slane %v6486, %v6510
          %v6518 = vadd.f32 %v6480, %v6491
          %v6519 = vadd.f32 %v6481, %v6495
          %v6520 = vadd.f32 %v6482, %v6499
          %v6521 = vadd.f32 %v6483, %v6503
          %v6522 = vadd.f32 %v6484, %v6507
          %v6523 = vadd.f32 %v6485, %v6511
          %v6524 = vxor.u32 %v6518, 2147483648
          %v6525 = vxor.u32 %v6519, 2147483648
          %v6526 = vmul.f32 %v6524, 1.442695
          %v6527 = vpow.pop %v6526
          %v6528 = vmul.f32 %v6525, 1.442695
          %v6529 = vpow.pop %v6528
          %v6530 = vadd.f32 %v6527, 1.0
          %v6531 = vadd.f32 %v6529, 1.0
          %v6532 = vrcp.pop %v6530
          %v6533 = vmul.f32 1.0, %v6532
          %v6534 = vrcp.pop %v6531
          %v6535 = vmul.f32 1.0, %v6534
          %v6536 = vxor.u32 %v6520, 2147483648
          %v6537 = vmul.f32 %v6536, 1.442695
          %v6538 = vpow.pop %v6537
          %v6539 = vadd.f32 %v6538, 1.0
          %v6540 = vrcp.pop %v6539
          %v6541 = vmul.f32 1.0, %v6540
          %v6542 = vtanh.pop %v6521
          %v6543 = vtanh.pop %v6522
          %v6544 = vxor.u32 %v6522, 2147483648
          %v6545 = vxor.u32 %v6523, 2147483648
          %v6546 = vmul.f32 %v6544, 1.442695
          %v6547 = vpow.pop %v6546
          %v6548 = vmul.f32 %v6545, 1.442695
          %v6549 = vpow.pop %v6548
          %v6550 = vadd.f32 %v6547, 1.0
          %v6551 = vadd.f32 %v6549, 1.0
          %v6552 = vrcp.pop %v6550
          %v6553 = vmul.f32 1.0, %v6552
          %v6554 = vrcp.pop %v6551
          %v6555 = vmul.f32 1.0, %v6554
          %v6556 = vmul.f32 %v6535, %v4544
          %v6557 = vmul.f32 %v6541, %v4545
          %v6558 = vmul.f32 %v6533, %v6542
          %v6559 = vmul.f32 %v6535, %v6543
          %6562 = vrot.lane.b32.xlu0 %v6558, 64
          %v6563 = vpop.permute.xlu0 %6562
          %6564 = vrot.lane.b32.xlu0 %v6559, 64
          %v6565 = vpop.permute.xlu0 %6564
          %v6566 = vsel %vm1253, %v6563, %v6565
          %v6569 = vadd.f32 %v6556, %v6563
          %v6570 = vadd.f32 %v6557, %v6566
          %v6571 = vtanh.pop %v6569
          %v6572 = vtanh.pop %v6570
          %v6573 = vmul.f32 %v6553, %v6571
          %v6574 = vmul.f32 %v6555, %v6572
          %6575 = vst [vmem:[#allocation3] sm:$0xff] %v4979
          %6576 = vst [vmem:[#allocation3 + $0x8] sm:$0xff] %v5394
          %6579 = vrot.lane.b32.xlu0 %v6573, 64
          %v6580 = vpop.permute.xlu0 %6579
          %6581 = vrot.lane.b32.xlu0 %v6574, 64
          %v6582 = vpop.permute.xlu0 %6581
          %v6583 = vsel %vm1253, %v6580, %v6582
          %6586 = vst [vmem:[#allocation3 + $0x10] sm:$0xff] %v6583
          %6587 = vst.msk [vmem:[#allocation3 + $0x18] sm:$0xff] %vm1253, %v6582
        $region176: #{_lambda_.1} parent=171 // pred_fallthru
          _
        %s6588 = sshra.s32 %s91, 3
        %s6589 = sand.u32 %s91, 7
        %s6590 = sshra.s32 %s91, 3
        %s6591 = sand.u32 %s91, 7
        %s6592 = smul.u32 %s6588, 4
        %s6593 = smul.u32 %s6592, 8
        %s6594 = sadd.s32 %s6593, %s6591
        %s6595 = scalar_lea.vmem [#allocation2], %s6594
        %v6596 = vld [vmem:[%s6595] ss:$8 sm:$0xf]
        %s6597 = scalar_lea.vmem [#allocation3], %s6594
        %v6598 = vld [vmem:[%s6597] ss:$8 sm:$0xf]
        %v6600 = vlaneseq
        %v6601 = vshrl.u32 %v6600, 7
        %v6602 = vsub.s32 0, %v6601
        %v6603 = vrot.slane %v6596, %v6602
        %v6604 = vlaneseq
        %v6605 = vshrl.u32 %v6604, 7
        %v6606 = vsub.s32 1, %v6605
        %v6607 = vrot.slane %v6596, %v6606
        %v6608 = vlaneseq
        %v6609 = vshrl.u32 %v6608, 7
        %v6610 = vsub.s32 2, %v6609
        %v6611 = vrot.slane %v6596, %v6610
        %v6612 = vlaneseq
        %v6613 = vshrl.u32 %v6612, 7
        %v6614 = vsub.s32 3, %v6613
        %v6615 = vrot.slane %v6596, %v6614
        %v6621 = vlaneseq
        %v6622 = vshrl.u32 %v6621, 7
        %v6623 = vsub.s32 0, %v6622
        %v6624 = vrot.slane %v6598, %v6623
        %v6625 = vlaneseq
        %v6626 = vshrl.u32 %v6625, 7
        %v6627 = vsub.s32 1, %v6626
        %v6628 = vrot.slane %v6598, %v6627
        %v6629 = vlaneseq
        %v6630 = vshrl.u32 %v6629, 7
        %v6631 = vsub.s32 2, %v6630
        %v6632 = vrot.slane %v6598, %v6631
        %v6633 = vlaneseq
        %v6634 = vshrl.u32 %v6633, 7
        %v6635 = vsub.s32 3, %v6634
        %v6636 = vrot.slane %v6598, %v6635
        %vm6641 = vcmask 1040384
        %v6642 = vsel %vm6641, %v6603, %v6624
        %v6643 = vsel %vm6641, %v6607, %v6628
        %v6644 = vsel %vm6641, %v6611, %v6632
        %v6645 = vsel %vm6641, %v6615, %v6636
        %v6646 = vld [vmem:[#allocation4] sm:$0xff]
        %v6647 = vld [vmem:[#allocation4 + $0x8] sm:$0xff]
        %v6648 = vpack.c.bf16 %v6642, %v6642
        %v6649 = vpack.c.bf16 %v6643, %v6643
        %v6650 = vpack.c.bf16 %v6644, %v6644
        %v6651 = vpack.c.bf16 %v6645, %v6645
        %v6652 = vld [vmem:[%s1146] sm:$0xff]
        %v6653 = vld [vmem:[%s1146 + $0x8] sm:$0xff]
        %v6654 = vld [vmem:[%s1146 + $0x10] sm:$0xff]
        %v6655 = vld [vmem:[%s1146 + $0x18] sm:$0xff]
        %v6656 = vld [vmem:[%s1146 + $0x20] sm:$0xff]
        %v6657 = vld [vmem:[%s1146 + $0x28] sm:$0xff]
        %v6658 = vld [vmem:[%s1146 + $0x30] sm:$0xff]
        %v6659 = vld [vmem:[%s1146 + $0x38] sm:$0xff]
        %v6660 = vld [vmem:[%s1146 + $0x40] sm:$0xff]
        %v6661 = vld [vmem:[%s1146 + $0x48] sm:$0xff]
        %v6662 = vld [vmem:[%s1146 + $0x50] sm:$0xff]
        %v6663 = vld [vmem:[%s1146 + $0x58] sm:$0xff]
        %v6664 = vld [vmem:[%s1146 + $0x60] sm:$0xff]
        %v6665 = vld [vmem:[%s1146 + $0x68] sm:$0xff]
        %v6666 = vld [vmem:[%s1146 + $0x70] sm:$0xff]
        %v6667 = vld [vmem:[%s1146 + $0x78] sm:$0xff]
        %v6668 = vld [vmem:[%s1146 + $0x80] sm:$0xff]
        %v6669 = vld [vmem:[%s1146 + $0x88] sm:$0xff]
        %v6670 = vld [vmem:[%s1146 + $0x90] sm:$0xff]
        %v6671 = vld [vmem:[%s1146 + $0x98] sm:$0xff]
        %v6672 = vld [vmem:[%s1146 + $0xa0] sm:$0xff]
        %v6673 = vld [vmem:[%s1146 + $0xa8] sm:$0xff]
        %v6674 = vld [vmem:[%s1146 + $0xb0] sm:$0xff]
        %v6675 = vld [vmem:[%s1146 + $0xb8] sm:$0xff]
        %v6676 = vld [vmem:[%s1146 + $0xc0] sm:$0xff]
        %v6677 = vld [vmem:[%s1146 + $0xc8] sm:$0xff]
        %v6678 = vld [vmem:[%s1146 + $0xd0] sm:$0xff]
        %v6679 = vld [vmem:[%s1146 + $0xd8] sm:$0xff]
        %v6680 = vld [vmem:[%s1146 + $0xe0] sm:$0xff]
        %v6681 = vld [vmem:[%s1146 + $0xe8] sm:$0xff]
        %v6682 = vld [vmem:[%s1146 + $0xf0] sm:$0xff]
        %v6683 = vld [vmem:[%s1146 + $0xf8] sm:$0xff]
        %v6684 = vld [vmem:[%s1146 + $0x100] sm:$0xff]
        %v6685 = vld [vmem:[%s1146 + $0x108] sm:$0xff]
        %v6686 = vld [vmem:[%s1146 + $0x110] sm:$0xff]
        %v6687 = vld [vmem:[%s1146 + $0x118] sm:$0xff]
        %v6688 = vld [vmem:[%s1146 + $0x120] sm:$0xff]
        %v6689 = vld [vmem:[%s1146 + $0x128] sm:$0xff]
        %v6690 = vld [vmem:[%s1146 + $0x130] sm:$0xff]
        %v6691 = vld [vmem:[%s1146 + $0x138] sm:$0xff]
        %v6692 = vld [vmem:[%s1146 + $0x140] sm:$0xff]
        %v6693 = vld [vmem:[%s1146 + $0x148] sm:$0xff]
        %v6694 = vld [vmem:[%s1146 + $0x150] sm:$0xff]
        %v6695 = vld [vmem:[%s1146 + $0x158] sm:$0xff]
        %v6696 = vld [vmem:[%s1146 + $0x160] sm:$0xff]
        %v6697 = vld [vmem:[%s1146 + $0x168] sm:$0xff]
        %v6698 = vld [vmem:[%s1146 + $0x170] sm:$0xff]
        %v6699 = vld [vmem:[%s1146 + $0x178] sm:$0xff]
        %v6700 = vld [vmem:[%s1146 + $0x180] sm:$0xff]
        %v6701 = vld [vmem:[%s1146 + $0x188] sm:$0xff]
        %v6702 = vld [vmem:[%s1146 + $0x190] sm:$0xff]
        %v6703 = vld [vmem:[%s1146 + $0x198] sm:$0xff]
        %v6704 = vld [vmem:[%s1146 + $0x1a0] sm:$0xff]
        %v6705 = vld [vmem:[%s1146 + $0x1a8] sm:$0xff]
        %v6706 = vld [vmem:[%s1146 + $0x1b0] sm:$0xff]
        %v6707 = vld [vmem:[%s1146 + $0x1b8] sm:$0xff]
        %v6708 = vld [vmem:[%s1146 + $0x1c0] sm:$0xff]
        %v6709 = vld [vmem:[%s1146 + $0x1c8] sm:$0xff]
        %v6710 = vld [vmem:[%s1146 + $0x1d0] sm:$0xff]
        %v6711 = vld [vmem:[%s1146 + $0x1d8] sm:$0xff]
        %v6712 = vld [vmem:[%s1146 + $0x1e0] sm:$0xff]
        %v6713 = vld [vmem:[%s1146 + $0x1e8] sm:$0xff]
        %v6714 = vld [vmem:[%s1146 + $0x1f0] sm:$0xff]
        %v6715 = vld [vmem:[%s1146 + $0x1f8] sm:$0xff]
        %v6716 = vld [vmem:[%s1146 + $0x200] sm:$0xff]
        %v6717 = vld [vmem:[%s1146 + $0x208] sm:$0xff]
        %v6718 = vld [vmem:[%s1146 + $0x210] sm:$0xff]
        %v6719 = vld [vmem:[%s1146 + $0x218] sm:$0xff]
        %v6720 = vld [vmem:[%s1146 + $0x220] sm:$0xff]
        %v6721 = vld [vmem:[%s1146 + $0x228] sm:$0xff]
        %v6722 = vld [vmem:[%s1146 + $0x230] sm:$0xff]
        %v6723 = vld [vmem:[%s1146 + $0x238] sm:$0xff]
        %v6724 = vld [vmem:[%s1146 + $0x240] sm:$0xff]
        %v6725 = vld [vmem:[%s1146 + $0x248] sm:$0xff]
        %v6726 = vld [vmem:[%s1146 + $0x250] sm:$0xff]
        %v6727 = vld [vmem:[%s1146 + $0x258] sm:$0xff]
        %v6728 = vld [vmem:[%s1146 + $0x260] sm:$0xff]
        %v6729 = vld [vmem:[%s1146 + $0x268] sm:$0xff]
        %v6730 = vld [vmem:[%s1146 + $0x270] sm:$0xff]
        %v6731 = vld [vmem:[%s1146 + $0x278] sm:$0xff]
        %v6732 = vld [vmem:[%s1146 + $0x280] sm:$0xff]
        %v6733 = vld [vmem:[%s1146 + $0x288] sm:$0xff]
        %v6734 = vld [vmem:[%s1146 + $0x290] sm:$0xff]
        %v6735 = vld [vmem:[%s1146 + $0x298] sm:$0xff]
        %v6736 = vld [vmem:[%s1146 + $0x2a0] sm:$0xff]
        %v6737 = vld [vmem:[%s1146 + $0x2a8] sm:$0xff]
        %v6738 = vld [vmem:[%s1146 + $0x2b0] sm:$0xff]
        %v6739 = vld [vmem:[%s1146 + $0x2b8] sm:$0xff]
        %v6740 = vld [vmem:[%s1146 + $0x2c0] sm:$0xff]
        %v6741 = vld [vmem:[%s1146 + $0x2c8] sm:$0xff]
        %v6742 = vld [vmem:[%s1146 + $0x2d0] sm:$0xff]
        %v6743 = vld [vmem:[%s1146 + $0x2d8] sm:$0xff]
        %v6744 = vld [vmem:[%s1146 + $0x2e0] sm:$0xff]
        %v6745 = vld [vmem:[%s1146 + $0x2e8] sm:$0xff]
        %v6746 = vld [vmem:[%s1146 + $0x2f0] sm:$0xff]
        %v6747 = vld [vmem:[%s1146 + $0x2f8] sm:$0xff]
        %v6748 = vld [vmem:[%s1146 + $0x300] sm:$0xff]
        %v6749 = vld [vmem:[%s1146 + $0x308] sm:$0xff]
        %v6750 = vld [vmem:[%s1146 + $0x310] sm:$0xff]
        %v6751 = vld [vmem:[%s1146 + $0x318] sm:$0xff]
        %v6752 = vld [vmem:[%s1146 + $0x320] sm:$0xff]
        %v6753 = vld [vmem:[%s1146 + $0x328] sm:$0xff]
        %v6754 = vld [vmem:[%s1146 + $0x330] sm:$0xff]
        %v6755 = vld [vmem:[%s1146 + $0x338] sm:$0xff]
        %v6756 = vld [vmem:[%s1146 + $0x340] sm:$0xff]
        %v6757 = vld [vmem:[%s1146 + $0x348] sm:$0xff]
        %v6758 = vld [vmem:[%s1146 + $0x350] sm:$0xff]
        %v6759 = vld [vmem:[%s1146 + $0x358] sm:$0xff]
        %v6760 = vld [vmem:[%s1146 + $0x360] sm:$0xff]
        %v6761 = vld [vmem:[%s1146 + $0x368] sm:$0xff]
        %v6762 = vld [vmem:[%s1146 + $0x370] sm:$0xff]
        %v6763 = vld [vmem:[%s1146 + $0x378] sm:$0xff]
        %v6764 = vld [vmem:[%s1146 + $0x380] sm:$0xff]
        %v6765 = vld [vmem:[%s1146 + $0x388] sm:$0xff]
        %v6766 = vld [vmem:[%s1146 + $0x390] sm:$0xff]
        %v6767 = vld [vmem:[%s1146 + $0x398] sm:$0xff]
        %v6768 = vld [vmem:[%s1146 + $0x3a0] sm:$0xff]
        %v6769 = vld [vmem:[%s1146 + $0x3a8] sm:$0xff]
        %v6770 = vld [vmem:[%s1146 + $0x3b0] sm:$0xff]
        %v6771 = vld [vmem:[%s1146 + $0x3b8] sm:$0xff]
        %v6772 = vld [vmem:[%s1146 + $0x3c0] sm:$0xff]
        %v6773 = vld [vmem:[%s1146 + $0x3c8] sm:$0xff]
        %v6774 = vld [vmem:[%s1146 + $0x3d0] sm:$0xff]
        %v6775 = vld [vmem:[%s1146 + $0x3d8] sm:$0xff]
        %v6776 = vld [vmem:[%s1146 + $0x3e0] sm:$0xff]
        %v6777 = vld [vmem:[%s1146 + $0x3e8] sm:$0xff]
        %v6778 = vld [vmem:[%s1146 + $0x3f0] sm:$0xff]
        %v6779 = vld [vmem:[%s1146 + $0x3f8] sm:$0xff]
        %v6780 = vld [vmem:[%s1146 + $0x400] sm:$0xff]
        %v6781 = vld [vmem:[%s1146 + $0x408] sm:$0xff]
        %v6782 = vld [vmem:[%s1146 + $0x410] sm:$0xff]
        %v6783 = vld [vmem:[%s1146 + $0x418] sm:$0xff]
        %v6784 = vld [vmem:[%s1146 + $0x420] sm:$0xff]
        %v6785 = vld [vmem:[%s1146 + $0x428] sm:$0xff]
        %v6786 = vld [vmem:[%s1146 + $0x430] sm:$0xff]
        %v6787 = vld [vmem:[%s1146 + $0x438] sm:$0xff]
        %v6788 = vld [vmem:[%s1146 + $0x440] sm:$0xff]
        %v6789 = vld [vmem:[%s1146 + $0x448] sm:$0xff]
        %v6790 = vld [vmem:[%s1146 + $0x450] sm:$0xff]
        %v6791 = vld [vmem:[%s1146 + $0x458] sm:$0xff]
        %v6792 = vld [vmem:[%s1146 + $0x460] sm:$0xff]
        %v6793 = vld [vmem:[%s1146 + $0x468] sm:$0xff]
        %v6794 = vld [vmem:[%s1146 + $0x470] sm:$0xff]
        %v6795 = vld [vmem:[%s1146 + $0x478] sm:$0xff]
        %v6796 = vld [vmem:[%s1146 + $0x480] sm:$0xff]
        %v6797 = vld [vmem:[%s1146 + $0x488] sm:$0xff]
        %v6798 = vld [vmem:[%s1146 + $0x490] sm:$0xff]
        %v6799 = vld [vmem:[%s1146 + $0x498] sm:$0xff]
        %v6800 = vld [vmem:[%s1146 + $0x4a0] sm:$0xff]
        %v6801 = vld [vmem:[%s1146 + $0x4a8] sm:$0xff]
        %v6802 = vld [vmem:[%s1146 + $0x4b0] sm:$0xff]
        %v6803 = vld [vmem:[%s1146 + $0x4b8] sm:$0xff]
        %v6804 = vld [vmem:[%s1146 + $0x4c0] sm:$0xff]
        %v6805 = vld [vmem:[%s1146 + $0x4c8] sm:$0xff]
        %v6806 = vld [vmem:[%s1146 + $0x4d0] sm:$0xff]
        %v6807 = vld [vmem:[%s1146 + $0x4d8] sm:$0xff]
        %v6808 = vld [vmem:[%s1146 + $0x4e0] sm:$0xff]
        %v6809 = vld [vmem:[%s1146 + $0x4e8] sm:$0xff]
        %v6810 = vld [vmem:[%s1146 + $0x4f0] sm:$0xff]
        %v6811 = vld [vmem:[%s1146 + $0x4f8] sm:$0xff]
        %v6812 = vld [vmem:[%s1146 + $0x500] sm:$0xff]
        %v6813 = vld [vmem:[%s1146 + $0x508] sm:$0xff]
        %v6814 = vld [vmem:[%s1146 + $0x510] sm:$0xff]
        %v6815 = vld [vmem:[%s1146 + $0x518] sm:$0xff]
        %v6816 = vld [vmem:[%s1146 + $0x520] sm:$0xff]
        %v6817 = vld [vmem:[%s1146 + $0x528] sm:$0xff]
        %v6818 = vld [vmem:[%s1146 + $0x530] sm:$0xff]
        %v6819 = vld [vmem:[%s1146 + $0x538] sm:$0xff]
        %v6820 = vld [vmem:[%s1146 + $0x540] sm:$0xff]
        %v6821 = vld [vmem:[%s1146 + $0x548] sm:$0xff]
        %v6822 = vld [vmem:[%s1146 + $0x550] sm:$0xff]
        %v6823 = vld [vmem:[%s1146 + $0x558] sm:$0xff]
        %v6824 = vld [vmem:[%s1146 + $0x560] sm:$0xff]
        %v6825 = vld [vmem:[%s1146 + $0x568] sm:$0xff]
        %v6826 = vld [vmem:[%s1146 + $0x570] sm:$0xff]
        %v6827 = vld [vmem:[%s1146 + $0x578] sm:$0xff]
        %v6828 = vld [vmem:[%s1146 + $0x580] sm:$0xff]
        %v6829 = vld [vmem:[%s1146 + $0x588] sm:$0xff]
        %v6830 = vld [vmem:[%s1146 + $0x590] sm:$0xff]
        %v6831 = vld [vmem:[%s1146 + $0x598] sm:$0xff]
        %v6832 = vld [vmem:[%s1146 + $0x5a0] sm:$0xff]
        %v6833 = vld [vmem:[%s1146 + $0x5a8] sm:$0xff]
        %v6834 = vld [vmem:[%s1146 + $0x5b0] sm:$0xff]
        %v6835 = vld [vmem:[%s1146 + $0x5b8] sm:$0xff]
        %v6836 = vld [vmem:[%s1146 + $0x5c0] sm:$0xff]
        %v6837 = vld [vmem:[%s1146 + $0x5c8] sm:$0xff]
        %v6838 = vld [vmem:[%s1146 + $0x5d0] sm:$0xff]
        %v6839 = vld [vmem:[%s1146 + $0x5d8] sm:$0xff]
        %v6840 = vld [vmem:[%s1146 + $0x5e0] sm:$0xff]
        %v6841 = vld [vmem:[%s1146 + $0x5e8] sm:$0xff]
        %v6842 = vld [vmem:[%s1146 + $0x5f0] sm:$0xff]
        %v6843 = vld [vmem:[%s1146 + $0x5f8] sm:$0xff]
        %v6844 = vld [vmem:[%s1146 + $0x600] sm:$0xff]
        %v6845 = vld [vmem:[%s1146 + $0x608] sm:$0xff]
        %v6846 = vld [vmem:[%s1146 + $0x610] sm:$0xff]
        %v6847 = vld [vmem:[%s1146 + $0x618] sm:$0xff]
        %v6848 = vld [vmem:[%s1146 + $0x620] sm:$0xff]
        %v6849 = vld [vmem:[%s1146 + $0x628] sm:$0xff]
        %v6850 = vld [vmem:[%s1146 + $0x630] sm:$0xff]
        %v6851 = vld [vmem:[%s1146 + $0x638] sm:$0xff]
        %v6852 = vld [vmem:[%s1146 + $0x640] sm:$0xff]
        %v6853 = vld [vmem:[%s1146 + $0x648] sm:$0xff]
        %v6854 = vld [vmem:[%s1146 + $0x650] sm:$0xff]
        %v6855 = vld [vmem:[%s1146 + $0x658] sm:$0xff]
        %v6856 = vld [vmem:[%s1146 + $0x660] sm:$0xff]
        %v6857 = vld [vmem:[%s1146 + $0x668] sm:$0xff]
        %v6858 = vld [vmem:[%s1146 + $0x670] sm:$0xff]
        %v6859 = vld [vmem:[%s1146 + $0x678] sm:$0xff]
        %v6860 = vld [vmem:[%s1146 + $0x680] sm:$0xff]
        %v6861 = vld [vmem:[%s1146 + $0x688] sm:$0xff]
        %v6862 = vld [vmem:[%s1146 + $0x690] sm:$0xff]
        %v6863 = vld [vmem:[%s1146 + $0x698] sm:$0xff]
        %v6864 = vld [vmem:[%s1146 + $0x6a0] sm:$0xff]
        %v6865 = vld [vmem:[%s1146 + $0x6a8] sm:$0xff]
        %v6866 = vld [vmem:[%s1146 + $0x6b0] sm:$0xff]
        %v6867 = vld [vmem:[%s1146 + $0x6b8] sm:$0xff]
        %v6868 = vld [vmem:[%s1146 + $0x6c0] sm:$0xff]
        %v6869 = vld [vmem:[%s1146 + $0x6c8] sm:$0xff]
        %v6870 = vld [vmem:[%s1146 + $0x6d0] sm:$0xff]
        %v6871 = vld [vmem:[%s1146 + $0x6d8] sm:$0xff]
        %v6872 = vld [vmem:[%s1146 + $0x6e0] sm:$0xff]
        %v6873 = vld [vmem:[%s1146 + $0x6e8] sm:$0xff]
        %v6874 = vld [vmem:[%s1146 + $0x6f0] sm:$0xff]
        %v6875 = vld [vmem:[%s1146 + $0x6f8] sm:$0xff]
        %v7100 = vunpack.c.l.b16 %v6652
        %v7101 = vunpack.c.h.b16 %v6652
        %v7102 = vunpack.c.l.b16 %v6653
        %v7103 = vunpack.c.h.b16 %v6653
        %v7104 = vunpack.c.l.b16 %v6654
        %v7105 = vunpack.c.h.b16 %v6654
        %v7106 = vunpack.c.l.b16 %v6655
        %v7107 = vunpack.c.h.b16 %v6655
        %v7108 = vunpack.c.l.b16 %v6656
        %v7109 = vunpack.c.h.b16 %v6656
        %v7110 = vunpack.c.l.b16 %v6657
        %v7111 = vunpack.c.h.b16 %v6657
        %v7112 = vunpack.c.l.b16 %v6658
        %v7113 = vunpack.c.h.b16 %v6658
        %v7114 = vunpack.c.l.b16 %v6659
        %v7115 = vunpack.c.h.b16 %v6659
        %v7116 = vunpack.c.l.b16 %v6660
        %v7117 = vunpack.c.h.b16 %v6660
        %v7118 = vunpack.c.l.b16 %v6661
        %v7119 = vunpack.c.h.b16 %v6661
        %v7120 = vunpack.c.l.b16 %v6662
        %v7121 = vunpack.c.h.b16 %v6662
        %v7122 = vunpack.c.l.b16 %v6663
        %v7123 = vunpack.c.h.b16 %v6663
        %v7124 = vunpack.c.l.b16 %v6664
        %v7125 = vunpack.c.h.b16 %v6664
        %v7126 = vunpack.c.l.b16 %v6665
        %v7127 = vunpack.c.h.b16 %v6665
        %v7128 = vunpack.c.l.b16 %v6666
        %v7129 = vunpack.c.h.b16 %v6666
        %v7130 = vunpack.c.l.b16 %v6667
        %v7131 = vunpack.c.h.b16 %v6667
        %v7132 = vunpack.c.l.b16 %v6668
        %v7133 = vunpack.c.h.b16 %v6668
        %v7134 = vunpack.c.l.b16 %v6669
        %v7135 = vunpack.c.h.b16 %v6669
        %v7136 = vunpack.c.l.b16 %v6670
        %v7137 = vunpack.c.h.b16 %v6670
        %v7138 = vunpack.c.l.b16 %v6671
        %v7139 = vunpack.c.h.b16 %v6671
        %v7140 = vunpack.c.l.b16 %v6672
        %v7141 = vunpack.c.h.b16 %v6672
        %v7142 = vunpack.c.l.b16 %v6673
        %v7143 = vunpack.c.h.b16 %v6673
        %v7144 = vunpack.c.l.b16 %v6674
        %v7145 = vunpack.c.h.b16 %v6674
        %v7146 = vunpack.c.l.b16 %v6675
        %v7147 = vunpack.c.h.b16 %v6675
        %v7148 = vunpack.c.l.b16 %v6676
        %v7149 = vunpack.c.h.b16 %v6676
        %v7150 = vunpack.c.l.b16 %v6677
        %v7151 = vunpack.c.h.b16 %v6677
        %v7152 = vunpack.c.l.b16 %v6678
        %v7153 = vunpack.c.h.b16 %v6678
        %v7154 = vunpack.c.l.b16 %v6679
        %v7155 = vunpack.c.h.b16 %v6679
        %v7156 = vunpack.c.l.b16 %v6680
        %v7157 = vunpack.c.h.b16 %v6680
        %v7158 = vunpack.c.l.b16 %v6681
        %v7159 = vunpack.c.h.b16 %v6681
        %v7160 = vunpack.c.l.b16 %v6682
        %v7161 = vunpack.c.h.b16 %v6682
        %v7162 = vunpack.c.l.b16 %v6683
        %v7163 = vunpack.c.h.b16 %v6683
        %v7164 = vunpack.c.l.b16 %v6684
        %v7165 = vunpack.c.h.b16 %v6684
        %v7166 = vunpack.c.l.b16 %v6685
        %v7167 = vunpack.c.h.b16 %v6685
        %v7168 = vunpack.c.l.b16 %v6686
        %v7169 = vunpack.c.h.b16 %v6686
        %v7170 = vunpack.c.l.b16 %v6687
        %v7171 = vunpack.c.h.b16 %v6687
        %v7172 = vunpack.c.l.b16 %v6688
        %v7173 = vunpack.c.h.b16 %v6688
        %v7174 = vunpack.c.l.b16 %v6689
        %v7175 = vunpack.c.h.b16 %v6689
        %v7176 = vunpack.c.l.b16 %v6690
        %v7177 = vunpack.c.h.b16 %v6690
        %v7178 = vunpack.c.l.b16 %v6691
        %v7179 = vunpack.c.h.b16 %v6691
        %v7180 = vunpack.c.l.b16 %v6692
        %v7181 = vunpack.c.h.b16 %v6692
        %v7182 = vunpack.c.l.b16 %v6693
        %v7183 = vunpack.c.h.b16 %v6693
        %v7184 = vunpack.c.l.b16 %v6694
        %v7185 = vunpack.c.h.b16 %v6694
        %v7186 = vunpack.c.l.b16 %v6695
        %v7187 = vunpack.c.h.b16 %v6695
        %v7188 = vunpack.c.l.b16 %v6696
        %v7189 = vunpack.c.h.b16 %v6696
        %v7190 = vunpack.c.l.b16 %v6697
        %v7191 = vunpack.c.h.b16 %v6697
        %v7192 = vunpack.c.l.b16 %v6698
        %v7193 = vunpack.c.h.b16 %v6698
        %v7194 = vunpack.c.l.b16 %v6699
        %v7195 = vunpack.c.h.b16 %v6699
        %v7196 = vunpack.c.l.b16 %v6700
        %v7197 = vunpack.c.h.b16 %v6700
        %v7198 = vunpack.c.l.b16 %v6701
        %v7199 = vunpack.c.h.b16 %v6701
        %v7200 = vunpack.c.l.b16 %v6702
        %v7201 = vunpack.c.h.b16 %v6702
        %v7202 = vunpack.c.l.b16 %v6703
        %v7203 = vunpack.c.h.b16 %v6703
        %v7204 = vunpack.c.l.b16 %v6704
        %v7205 = vunpack.c.h.b16 %v6704
        %v7206 = vunpack.c.l.b16 %v6705
        %v7207 = vunpack.c.h.b16 %v6705
        %v7208 = vunpack.c.l.b16 %v6706
        %v7209 = vunpack.c.h.b16 %v6706
        %v7210 = vunpack.c.l.b16 %v6707
        %v7211 = vunpack.c.h.b16 %v6707
        %v7212 = vunpack.c.l.b16 %v6708
        %v7213 = vunpack.c.h.b16 %v6708
        %v7214 = vunpack.c.l.b16 %v6709
        %v7215 = vunpack.c.h.b16 %v6709
        %v7216 = vunpack.c.l.b16 %v6710
        %v7217 = vunpack.c.h.b16 %v6710
        %v7218 = vunpack.c.l.b16 %v6711
        %v7219 = vunpack.c.h.b16 %v6711
        %v7220 = vunpack.c.l.b16 %v6712
        %v7221 = vunpack.c.h.b16 %v6712
        %v7222 = vunpack.c.l.b16 %v6713
        %v7223 = vunpack.c.h.b16 %v6713
        %v7224 = vunpack.c.l.b16 %v6714
        %v7225 = vunpack.c.h.b16 %v6714
        %v7226 = vunpack.c.l.b16 %v6715
        %v7227 = vunpack.c.h.b16 %v6715
        %v7228 = vunpack.c.l.b16 %v6716
        %v7229 = vunpack.c.h.b16 %v6716
        %v7230 = vunpack.c.l.b16 %v6717
        %v7231 = vunpack.c.h.b16 %v6717
        %v7232 = vunpack.c.l.b16 %v6718
        %v7233 = vunpack.c.h.b16 %v6718
        %v7234 = vunpack.c.l.b16 %v6719
        %v7235 = vunpack.c.h.b16 %v6719
        %v7236 = vunpack.c.l.b16 %v6720
        %v7237 = vunpack.c.h.b16 %v6720
        %v7238 = vunpack.c.l.b16 %v6721
        %v7239 = vunpack.c.h.b16 %v6721
        %v7240 = vunpack.c.l.b16 %v6722
        %v7241 = vunpack.c.h.b16 %v6722
        %v7242 = vunpack.c.l.b16 %v6723
        %v7243 = vunpack.c.h.b16 %v6723
        %v7244 = vunpack.c.l.b16 %v6724
        %v7245 = vunpack.c.h.b16 %v6724
        %v7246 = vunpack.c.l.b16 %v6725
        %v7247 = vunpack.c.h.b16 %v6725
        %v7248 = vunpack.c.l.b16 %v6726
        %v7249 = vunpack.c.h.b16 %v6726
        %v7250 = vunpack.c.l.b16 %v6727
        %v7251 = vunpack.c.h.b16 %v6727
        %v7252 = vunpack.c.l.b16 %v6728
        %v7253 = vunpack.c.h.b16 %v6728
        %v7254 = vunpack.c.l.b16 %v6729
        %v7255 = vunpack.c.h.b16 %v6729
        %v7256 = vunpack.c.l.b16 %v6730
        %v7257 = vunpack.c.h.b16 %v6730
        %v7258 = vunpack.c.l.b16 %v6731
        %v7259 = vunpack.c.h.b16 %v6731
        %v7260 = vunpack.c.l.b16 %v6732
        %v7261 = vunpack.c.h.b16 %v6732
        %v7262 = vunpack.c.l.b16 %v6733
        %v7263 = vunpack.c.h.b16 %v6733
        %v7264 = vunpack.c.l.b16 %v6734
        %v7265 = vunpack.c.h.b16 %v6734
        %v7266 = vunpack.c.l.b16 %v6735
        %v7267 = vunpack.c.h.b16 %v6735
        %v7268 = vunpack.c.l.b16 %v6736
        %v7269 = vunpack.c.h.b16 %v6736
        %v7270 = vunpack.c.l.b16 %v6737
        %v7271 = vunpack.c.h.b16 %v6737
        %v7272 = vunpack.c.l.b16 %v6738
        %v7273 = vunpack.c.h.b16 %v6738
        %v7274 = vunpack.c.l.b16 %v6739
        %v7275 = vunpack.c.h.b16 %v6739
        %v7276 = vunpack.c.l.b16 %v6740
        %v7277 = vunpack.c.h.b16 %v6740
        %v7278 = vunpack.c.l.b16 %v6741
        %v7279 = vunpack.c.h.b16 %v6741
        %v7280 = vunpack.c.l.b16 %v6742
        %v7281 = vunpack.c.h.b16 %v6742
        %v7282 = vunpack.c.l.b16 %v6743
        %v7283 = vunpack.c.h.b16 %v6743
        %v7284 = vunpack.c.l.b16 %v6744
        %v7285 = vunpack.c.h.b16 %v6744
        %v7286 = vunpack.c.l.b16 %v6745
        %v7287 = vunpack.c.h.b16 %v6745
        %v7288 = vunpack.c.l.b16 %v6746
        %v7289 = vunpack.c.h.b16 %v6746
        %v7290 = vunpack.c.l.b16 %v6747
        %v7291 = vunpack.c.h.b16 %v6747
        %v7292 = vunpack.c.l.b16 %v6748
        %v7293 = vunpack.c.h.b16 %v6748
        %v7294 = vunpack.c.l.b16 %v6749
        %v7295 = vunpack.c.h.b16 %v6749
        %v7296 = vunpack.c.l.b16 %v6750
        %v7297 = vunpack.c.h.b16 %v6750
        %v7298 = vunpack.c.l.b16 %v6751
        %v7299 = vunpack.c.h.b16 %v6751
        %v7300 = vunpack.c.l.b16 %v6752
        %v7301 = vunpack.c.h.b16 %v6752
        %v7302 = vunpack.c.l.b16 %v6753
        %v7303 = vunpack.c.h.b16 %v6753
        %v7304 = vunpack.c.l.b16 %v6754
        %v7305 = vunpack.c.h.b16 %v6754
        %v7306 = vunpack.c.l.b16 %v6755
        %v7307 = vunpack.c.h.b16 %v6755
        %v7308 = vunpack.c.l.b16 %v6756
        %v7309 = vunpack.c.h.b16 %v6756
        %v7310 = vunpack.c.l.b16 %v6757
        %v7311 = vunpack.c.h.b16 %v6757
        %v7312 = vunpack.c.l.b16 %v6758
        %v7313 = vunpack.c.h.b16 %v6758
        %v7314 = vunpack.c.l.b16 %v6759
        %v7315 = vunpack.c.h.b16 %v6759
        %v7316 = vunpack.c.l.b16 %v6760
        %v7317 = vunpack.c.h.b16 %v6760
        %v7318 = vunpack.c.l.b16 %v6761
        %v7319 = vunpack.c.h.b16 %v6761
        %v7320 = vunpack.c.l.b16 %v6762
        %v7321 = vunpack.c.h.b16 %v6762
        %v7322 = vunpack.c.l.b16 %v6763
        %v7323 = vunpack.c.h.b16 %v6763
        %v7324 = vunpack.c.l.b16 %v6764
        %v7325 = vunpack.c.h.b16 %v6764
        %v7326 = vunpack.c.l.b16 %v6765
        %v7327 = vunpack.c.h.b16 %v6765
        %v7328 = vunpack.c.l.b16 %v6766
        %v7329 = vunpack.c.h.b16 %v6766
        %v7330 = vunpack.c.l.b16 %v6767
        %v7331 = vunpack.c.h.b16 %v6767
        %v7332 = vunpack.c.l.b16 %v6768
        %v7333 = vunpack.c.h.b16 %v6768
        %v7334 = vunpack.c.l.b16 %v6769
        %v7335 = vunpack.c.h.b16 %v6769
        %v7336 = vunpack.c.l.b16 %v6770
        %v7337 = vunpack.c.h.b16 %v6770
        %v7338 = vunpack.c.l.b16 %v6771
        %v7339 = vunpack.c.h.b16 %v6771
        %v7340 = vunpack.c.l.b16 %v6772
        %v7341 = vunpack.c.h.b16 %v6772
        %v7342 = vunpack.c.l.b16 %v6773
        %v7343 = vunpack.c.h.b16 %v6773
        %v7344 = vunpack.c.l.b16 %v6774
        %v7345 = vunpack.c.h.b16 %v6774
        %v7346 = vunpack.c.l.b16 %v6775
        %v7347 = vunpack.c.h.b16 %v6775
        %v7348 = vunpack.c.l.b16 %v6776
        %v7349 = vunpack.c.h.b16 %v6776
        %v7350 = vunpack.c.l.b16 %v6777
        %v7351 = vunpack.c.h.b16 %v6777
        %v7352 = vunpack.c.l.b16 %v6778
        %v7353 = vunpack.c.h.b16 %v6778
        %v7354 = vunpack.c.l.b16 %v6779
        %v7355 = vunpack.c.h.b16 %v6779
        %v7356 = vunpack.c.l.b16 %v6780
        %v7357 = vunpack.c.h.b16 %v6780
        %v7358 = vunpack.c.l.b16 %v6781
        %v7359 = vunpack.c.h.b16 %v6781
        %v7360 = vunpack.c.l.b16 %v6782
        %v7361 = vunpack.c.h.b16 %v6782
        %v7362 = vunpack.c.l.b16 %v6783
        %v7363 = vunpack.c.h.b16 %v6783
        %v7364 = vunpack.c.l.b16 %v6784
        %v7365 = vunpack.c.h.b16 %v6784
        %v7366 = vunpack.c.l.b16 %v6785
        %v7367 = vunpack.c.h.b16 %v6785
        %v7368 = vunpack.c.l.b16 %v6786
        %v7369 = vunpack.c.h.b16 %v6786
        %v7370 = vunpack.c.l.b16 %v6787
        %v7371 = vunpack.c.h.b16 %v6787
        %v7372 = vunpack.c.l.b16 %v6788
        %v7373 = vunpack.c.h.b16 %v6788
        %v7374 = vunpack.c.l.b16 %v6789
        %v7375 = vunpack.c.h.b16 %v6789
        %v7376 = vunpack.c.l.b16 %v6790
        %v7377 = vunpack.c.h.b16 %v6790
        %v7378 = vunpack.c.l.b16 %v6791
        %v7379 = vunpack.c.h.b16 %v6791
        %v7380 = vunpack.c.l.b16 %v6792
        %v7381 = vunpack.c.h.b16 %v6792
        %v7382 = vunpack.c.l.b16 %v6793
        %v7383 = vunpack.c.h.b16 %v6793
        %v7384 = vunpack.c.l.b16 %v6794
        %v7385 = vunpack.c.h.b16 %v6794
        %v7386 = vunpack.c.l.b16 %v6795
        %v7387 = vunpack.c.h.b16 %v6795
        %v7388 = vunpack.c.l.b16 %v6796
        %v7389 = vunpack.c.h.b16 %v6796
        %v7390 = vunpack.c.l.b16 %v6797
        %v7391 = vunpack.c.h.b16 %v6797
        %v7392 = vunpack.c.l.b16 %v6798
        %v7393 = vunpack.c.h.b16 %v6798
        %v7394 = vunpack.c.l.b16 %v6799
        %v7395 = vunpack.c.h.b16 %v6799
        %v7396 = vunpack.c.l.b16 %v6800
        %v7397 = vunpack.c.h.b16 %v6800
        %v7398 = vunpack.c.l.b16 %v6801
        %v7399 = vunpack.c.h.b16 %v6801
        %v7400 = vunpack.c.l.b16 %v6802
        %v7401 = vunpack.c.h.b16 %v6802
        %v7402 = vunpack.c.l.b16 %v6803
        %v7403 = vunpack.c.h.b16 %v6803
        %v7404 = vunpack.c.l.b16 %v6804
        %v7405 = vunpack.c.h.b16 %v6804
        %v7406 = vunpack.c.l.b16 %v6805
        %v7407 = vunpack.c.h.b16 %v6805
        %v7408 = vunpack.c.l.b16 %v6806
        %v7409 = vunpack.c.h.b16 %v6806
        %v7410 = vunpack.c.l.b16 %v6807
        %v7411 = vunpack.c.h.b16 %v6807
        %v7412 = vunpack.c.l.b16 %v6808
        %v7413 = vunpack.c.h.b16 %v6808
        %v7414 = vunpack.c.l.b16 %v6809
        %v7415 = vunpack.c.h.b16 %v6809
        %v7416 = vunpack.c.l.b16 %v6810
        %v7417 = vunpack.c.h.b16 %v6810
        %v7418 = vunpack.c.l.b16 %v6811
        %v7419 = vunpack.c.h.b16 %v6811
        %v7420 = vunpack.c.l.b16 %v6812
        %v7421 = vunpack.c.h.b16 %v6812
        %v7422 = vunpack.c.l.b16 %v6813
        %v7423 = vunpack.c.h.b16 %v6813
        %v7424 = vunpack.c.l.b16 %v6814
        %v7425 = vunpack.c.h.b16 %v6814
        %v7426 = vunpack.c.l.b16 %v6815
        %v7427 = vunpack.c.h.b16 %v6815
        %v7428 = vunpack.c.l.b16 %v6816
        %v7429 = vunpack.c.h.b16 %v6816
        %v7430 = vunpack.c.l.b16 %v6817
        %v7431 = vunpack.c.h.b16 %v6817
        %v7432 = vunpack.c.l.b16 %v6818
        %v7433 = vunpack.c.h.b16 %v6818
        %v7434 = vunpack.c.l.b16 %v6819
        %v7435 = vunpack.c.h.b16 %v6819
        %v7436 = vunpack.c.l.b16 %v6820
        %v7437 = vunpack.c.h.b16 %v6820
        %v7438 = vunpack.c.l.b16 %v6821
        %v7439 = vunpack.c.h.b16 %v6821
        %v7440 = vunpack.c.l.b16 %v6822
        %v7441 = vunpack.c.h.b16 %v6822
        %v7442 = vunpack.c.l.b16 %v6823
        %v7443 = vunpack.c.h.b16 %v6823
        %v7444 = vunpack.c.l.b16 %v6824
        %v7445 = vunpack.c.h.b16 %v6824
        %v7446 = vunpack.c.l.b16 %v6825
        %v7447 = vunpack.c.h.b16 %v6825
        %v7448 = vunpack.c.l.b16 %v6826
        %v7449 = vunpack.c.h.b16 %v6826
        %v7450 = vunpack.c.l.b16 %v6827
        %v7451 = vunpack.c.h.b16 %v6827
        %v7452 = vunpack.c.l.b16 %v6828
        %v7453 = vunpack.c.h.b16 %v6828
        %v7454 = vunpack.c.l.b16 %v6829
        %v7455 = vunpack.c.h.b16 %v6829
        %v7456 = vunpack.c.l.b16 %v6830
        %v7457 = vunpack.c.h.b16 %v6830
        %v7458 = vunpack.c.l.b16 %v6831
        %v7459 = vunpack.c.h.b16 %v6831
        %v7460 = vunpack.c.l.b16 %v6832
        %v7461 = vunpack.c.h.b16 %v6832
        %v7462 = vunpack.c.l.b16 %v6833
        %v7463 = vunpack.c.h.b16 %v6833
        %v7464 = vunpack.c.l.b16 %v6834
        %v7465 = vunpack.c.h.b16 %v6834
        %v7466 = vunpack.c.l.b16 %v6835
        %v7467 = vunpack.c.h.b16 %v6835
        %v7468 = vunpack.c.l.b16 %v6836
        %v7469 = vunpack.c.h.b16 %v6836
        %v7470 = vunpack.c.l.b16 %v6837
        %v7471 = vunpack.c.h.b16 %v6837
        %v7472 = vunpack.c.l.b16 %v6838
        %v7473 = vunpack.c.h.b16 %v6838
        %v7474 = vunpack.c.l.b16 %v6839
        %v7475 = vunpack.c.h.b16 %v6839
        %v7476 = vunpack.c.l.b16 %v6840
        %v7477 = vunpack.c.h.b16 %v6840
        %v7478 = vunpack.c.l.b16 %v6841
        %v7479 = vunpack.c.h.b16 %v6841
        %v7480 = vunpack.c.l.b16 %v6842
        %v7481 = vunpack.c.h.b16 %v6842
        %v7482 = vunpack.c.l.b16 %v6843
        %v7483 = vunpack.c.h.b16 %v6843
        %v7484 = vunpack.c.l.b16 %v6844
        %v7485 = vunpack.c.h.b16 %v6844
        %v7486 = vunpack.c.l.b16 %v6845
        %v7487 = vunpack.c.h.b16 %v6845
        %v7488 = vunpack.c.l.b16 %v6846
        %v7489 = vunpack.c.h.b16 %v6846
        %v7490 = vunpack.c.l.b16 %v6847
        %v7491 = vunpack.c.h.b16 %v6847
        %v7492 = vunpack.c.l.b16 %v6848
        %v7493 = vunpack.c.h.b16 %v6848
        %v7494 = vunpack.c.l.b16 %v6849
        %v7495 = vunpack.c.h.b16 %v6849
        %v7496 = vunpack.c.l.b16 %v6850
        %v7497 = vunpack.c.h.b16 %v6850
        %v7498 = vunpack.c.l.b16 %v6851
        %v7499 = vunpack.c.h.b16 %v6851
        %v7500 = vunpack.c.l.b16 %v6852
        %v7501 = vunpack.c.h.b16 %v6852
        %v7502 = vunpack.c.l.b16 %v6853
        %v7503 = vunpack.c.h.b16 %v6853
        %v7504 = vunpack.c.l.b16 %v6854
        %v7505 = vunpack.c.h.b16 %v6854
        %v7506 = vunpack.c.l.b16 %v6855
        %v7507 = vunpack.c.h.b16 %v6855
        %v7508 = vunpack.c.l.b16 %v6856
        %v7509 = vunpack.c.h.b16 %v6856
        %v7510 = vunpack.c.l.b16 %v6857
        %v7511 = vunpack.c.h.b16 %v6857
        %v7512 = vunpack.c.l.b16 %v6858
        %v7513 = vunpack.c.h.b16 %v6858
        %v7514 = vunpack.c.l.b16 %v6859
        %v7515 = vunpack.c.h.b16 %v6859
        %v7516 = vunpack.c.l.b16 %v6860
        %v7517 = vunpack.c.h.b16 %v6860
        %v7518 = vunpack.c.l.b16 %v6861
        %v7519 = vunpack.c.h.b16 %v6861
        %v7520 = vunpack.c.l.b16 %v6862
        %v7521 = vunpack.c.h.b16 %v6862
        %v7522 = vunpack.c.l.b16 %v6863
        %v7523 = vunpack.c.h.b16 %v6863
        %v7524 = vunpack.c.l.b16 %v6864
        %v7525 = vunpack.c.h.b16 %v6864
        %v7526 = vunpack.c.l.b16 %v6865
        %v7527 = vunpack.c.h.b16 %v6865
        %v7528 = vunpack.c.l.b16 %v6866
        %v7529 = vunpack.c.h.b16 %v6866
        %v7530 = vunpack.c.l.b16 %v6867
        %v7531 = vunpack.c.h.b16 %v6867
        %v7532 = vunpack.c.l.b16 %v6868
        %v7533 = vunpack.c.h.b16 %v6868
        %v7534 = vunpack.c.l.b16 %v6869
        %v7535 = vunpack.c.h.b16 %v6869
        %v7536 = vunpack.c.l.b16 %v6870
        %v7537 = vunpack.c.h.b16 %v6870
        %v7538 = vunpack.c.l.b16 %v6871
        %v7539 = vunpack.c.h.b16 %v6871
        %v7540 = vunpack.c.l.b16 %v6872
        %v7541 = vunpack.c.h.b16 %v6872
        %v7542 = vunpack.c.l.b16 %v6873
        %v7543 = vunpack.c.h.b16 %v6873
        %v7544 = vunpack.c.l.b16 %v6874
        %v7545 = vunpack.c.h.b16 %v6874
        %v7546 = vunpack.c.l.b16 %v6875
        %v7547 = vunpack.c.h.b16 %v6875
        %v7548 = vpack.c.b16 %v7108, %v7100
        %v7549 = vpack.c.b16 %v7109, %v7101
        %v7550 = vpack.c.b16 %v7110, %v7102
        %v7551 = vpack.c.b16 %v7111, %v7103
        %v7552 = vpack.c.b16 %v7112, %v7104
        %v7553 = vpack.c.b16 %v7113, %v7105
        %v7554 = vpack.c.b16 %v7114, %v7106
        %v7555 = vpack.c.b16 %v7115, %v7107
        %v7556 = vpack.c.b16 %v7124, %v7116
        %v7557 = vpack.c.b16 %v7125, %v7117
        %v7558 = vpack.c.b16 %v7126, %v7118
        %v7559 = vpack.c.b16 %v7127, %v7119
        %v7560 = vpack.c.b16 %v7128, %v7120
        %v7561 = vpack.c.b16 %v7129, %v7121
        %v7562 = vpack.c.b16 %v7130, %v7122
        %v7563 = vpack.c.b16 %v7131, %v7123
        %v7564 = vpack.c.b16 %v7140, %v7132
        %v7565 = vpack.c.b16 %v7141, %v7133
        %v7566 = vpack.c.b16 %v7142, %v7134
        %v7567 = vpack.c.b16 %v7143, %v7135
        %v7568 = vpack.c.b16 %v7144, %v7136
        %v7569 = vpack.c.b16 %v7145, %v7137
        %v7570 = vpack.c.b16 %v7146, %v7138
        %v7571 = vpack.c.b16 %v7147, %v7139
        %v7572 = vpack.c.b16 %v7156, %v7148
        %v7573 = vpack.c.b16 %v7157, %v7149
        %v7574 = vpack.c.b16 %v7158, %v7150
        %v7575 = vpack.c.b16 %v7159, %v7151
        %v7576 = vpack.c.b16 %v7160, %v7152
        %v7577 = vpack.c.b16 %v7161, %v7153
        %v7578 = vpack.c.b16 %v7162, %v7154
        %v7579 = vpack.c.b16 %v7163, %v7155
        %v7580 = vpack.c.b16 %v7172, %v7164
        %v7581 = vpack.c.b16 %v7173, %v7165
        %v7582 = vpack.c.b16 %v7174, %v7166
        %v7583 = vpack.c.b16 %v7175, %v7167
        %v7584 = vpack.c.b16 %v7176, %v7168
        %v7585 = vpack.c.b16 %v7177, %v7169
        %v7586 = vpack.c.b16 %v7178, %v7170
        %v7587 = vpack.c.b16 %v7179, %v7171
        %v7588 = vpack.c.b16 %v7188, %v7180
        %v7589 = vpack.c.b16 %v7189, %v7181
        %v7590 = vpack.c.b16 %v7190, %v7182
        %v7591 = vpack.c.b16 %v7191, %v7183
        %v7592 = vpack.c.b16 %v7192, %v7184
        %v7593 = vpack.c.b16 %v7193, %v7185
        %v7594 = vpack.c.b16 %v7194, %v7186
        %v7595 = vpack.c.b16 %v7195, %v7187
        %v7596 = vpack.c.b16 %v7204, %v7196
        %v7597 = vpack.c.b16 %v7205, %v7197
        %v7598 = vpack.c.b16 %v7206, %v7198
        %v7599 = vpack.c.b16 %v7207, %v7199
        %v7600 = vpack.c.b16 %v7208, %v7200
        %v7601 = vpack.c.b16 %v7209, %v7201
        %v7602 = vpack.c.b16 %v7210, %v7202
        %v7603 = vpack.c.b16 %v7211, %v7203
        %v7604 = vpack.c.b16 %v7220, %v7212
        %v7605 = vpack.c.b16 %v7221, %v7213
        %v7606 = vpack.c.b16 %v7222, %v7214
        %v7607 = vpack.c.b16 %v7223, %v7215
        %v7608 = vpack.c.b16 %v7224, %v7216
        %v7609 = vpack.c.b16 %v7225, %v7217
        %v7610 = vpack.c.b16 %v7226, %v7218
        %v7611 = vpack.c.b16 %v7227, %v7219
        %v7612 = vpack.c.b16 %v7236, %v7228
        %v7613 = vpack.c.b16 %v7237, %v7229
        %v7614 = vpack.c.b16 %v7238, %v7230
        %v7615 = vpack.c.b16 %v7239, %v7231
        %v7616 = vpack.c.b16 %v7240, %v7232
        %v7617 = vpack.c.b16 %v7241, %v7233
        %v7618 = vpack.c.b16 %v7242, %v7234
        %v7619 = vpack.c.b16 %v7243, %v7235
        %v7620 = vpack.c.b16 %v7252, %v7244
        %v7621 = vpack.c.b16 %v7253, %v7245
        %v7622 = vpack.c.b16 %v7254, %v7246
        %v7623 = vpack.c.b16 %v7255, %v7247
        %v7624 = vpack.c.b16 %v7256, %v7248
        %v7625 = vpack.c.b16 %v7257, %v7249
        %v7626 = vpack.c.b16 %v7258, %v7250
        %v7627 = vpack.c.b16 %v7259, %v7251
        %v7628 = vpack.c.b16 %v7268, %v7260
        %v7629 = vpack.c.b16 %v7269, %v7261
        %v7630 = vpack.c.b16 %v7270, %v7262
        %v7631 = vpack.c.b16 %v7271, %v7263
        %v7632 = vpack.c.b16 %v7272, %v7264
        %v7633 = vpack.c.b16 %v7273, %v7265
        %v7634 = vpack.c.b16 %v7274, %v7266
        %v7635 = vpack.c.b16 %v7275, %v7267
        %v7636 = vpack.c.b16 %v7284, %v7276
        %v7637 = vpack.c.b16 %v7285, %v7277
        %v7638 = vpack.c.b16 %v7286, %v7278
        %v7639 = vpack.c.b16 %v7287, %v7279
        %v7640 = vpack.c.b16 %v7288, %v7280
        %v7641 = vpack.c.b16 %v7289, %v7281
        %v7642 = vpack.c.b16 %v7290, %v7282
        %v7643 = vpack.c.b16 %v7291, %v7283
        %v7644 = vpack.c.b16 %v7300, %v7292
        %v7645 = vpack.c.b16 %v7301, %v7293
        %v7646 = vpack.c.b16 %v7302, %v7294
        %v7647 = vpack.c.b16 %v7303, %v7295
        %v7648 = vpack.c.b16 %v7304, %v7296
        %v7649 = vpack.c.b16 %v7305, %v7297
        %v7650 = vpack.c.b16 %v7306, %v7298
        %v7651 = vpack.c.b16 %v7307, %v7299
        %v7652 = vpack.c.b16 %v7316, %v7308
        %v7653 = vpack.c.b16 %v7317, %v7309
        %v7654 = vpack.c.b16 %v7318, %v7310
        %v7655 = vpack.c.b16 %v7319, %v7311
        %v7656 = vpack.c.b16 %v7320, %v7312
        %v7657 = vpack.c.b16 %v7321, %v7313
        %v7658 = vpack.c.b16 %v7322, %v7314
        %v7659 = vpack.c.b16 %v7323, %v7315
        %v7660 = vpack.c.b16 %v7332, %v7324
        %v7661 = vpack.c.b16 %v7333, %v7325
        %v7662 = vpack.c.b16 %v7334, %v7326
        %v7663 = vpack.c.b16 %v7335, %v7327
        %v7664 = vpack.c.b16 %v7336, %v7328
        %v7665 = vpack.c.b16 %v7337, %v7329
        %v7666 = vpack.c.b16 %v7338, %v7330
        %v7667 = vpack.c.b16 %v7339, %v7331
        %v7668 = vpack.c.b16 %v7348, %v7340
        %v7669 = vpack.c.b16 %v7349, %v7341
        %v7670 = vpack.c.b16 %v7350, %v7342
        %v7671 = vpack.c.b16 %v7351, %v7343
        %v7672 = vpack.c.b16 %v7352, %v7344
        %v7673 = vpack.c.b16 %v7353, %v7345
        %v7674 = vpack.c.b16 %v7354, %v7346
        %v7675 = vpack.c.b16 %v7355, %v7347
        %v7676 = vpack.c.b16 %v7364, %v7356
        %v7677 = vpack.c.b16 %v7365, %v7357
        %v7678 = vpack.c.b16 %v7366, %v7358
        %v7679 = vpack.c.b16 %v7367, %v7359
        %v7680 = vpack.c.b16 %v7368, %v7360
        %v7681 = vpack.c.b16 %v7369, %v7361
        %v7682 = vpack.c.b16 %v7370, %v7362
        %v7683 = vpack.c.b16 %v7371, %v7363
        %v7684 = vpack.c.b16 %v7380, %v7372
        %v7685 = vpack.c.b16 %v7381, %v7373
        %v7686 = vpack.c.b16 %v7382, %v7374
        %v7687 = vpack.c.b16 %v7383, %v7375
        %v7688 = vpack.c.b16 %v7384, %v7376
        %v7689 = vpack.c.b16 %v7385, %v7377
        %v7690 = vpack.c.b16 %v7386, %v7378
        %v7691 = vpack.c.b16 %v7387, %v7379
        %v7692 = vpack.c.b16 %v7396, %v7388
        %v7693 = vpack.c.b16 %v7397, %v7389
        %v7694 = vpack.c.b16 %v7398, %v7390
        %v7695 = vpack.c.b16 %v7399, %v7391
        %v7696 = vpack.c.b16 %v7400, %v7392
        %v7697 = vpack.c.b16 %v7401, %v7393
        %v7698 = vpack.c.b16 %v7402, %v7394
        %v7699 = vpack.c.b16 %v7403, %v7395
        %v7700 = vpack.c.b16 %v7412, %v7404
        %v7701 = vpack.c.b16 %v7413, %v7405
        %v7702 = vpack.c.b16 %v7414, %v7406
        %v7703 = vpack.c.b16 %v7415, %v7407
        %v7704 = vpack.c.b16 %v7416, %v7408
        %v7705 = vpack.c.b16 %v7417, %v7409
        %v7706 = vpack.c.b16 %v7418, %v7410
        %v7707 = vpack.c.b16 %v7419, %v7411
        %v7708 = vpack.c.b16 %v7428, %v7420
        %v7709 = vpack.c.b16 %v7429, %v7421
        %v7710 = vpack.c.b16 %v7430, %v7422
        %v7711 = vpack.c.b16 %v7431, %v7423
        %v7712 = vpack.c.b16 %v7432, %v7424
        %v7713 = vpack.c.b16 %v7433, %v7425
        %v7714 = vpack.c.b16 %v7434, %v7426
        %v7715 = vpack.c.b16 %v7435, %v7427
        %v7716 = vpack.c.b16 %v7444, %v7436
        %v7717 = vpack.c.b16 %v7445, %v7437
        %v7718 = vpack.c.b16 %v7446, %v7438
        %v7719 = vpack.c.b16 %v7447, %v7439
        %v7720 = vpack.c.b16 %v7448, %v7440
        %v7721 = vpack.c.b16 %v7449, %v7441
        %v7722 = vpack.c.b16 %v7450, %v7442
        %v7723 = vpack.c.b16 %v7451, %v7443
        %v7724 = vpack.c.b16 %v7460, %v7452
        %v7725 = vpack.c.b16 %v7461, %v7453
        %v7726 = vpack.c.b16 %v7462, %v7454
        %v7727 = vpack.c.b16 %v7463, %v7455
        %v7728 = vpack.c.b16 %v7464, %v7456
        %v7729 = vpack.c.b16 %v7465, %v7457
        %v7730 = vpack.c.b16 %v7466, %v7458
        %v7731 = vpack.c.b16 %v7467, %v7459
        %v7732 = vpack.c.b16 %v7476, %v7468
        %v7733 = vpack.c.b16 %v7477, %v7469
        %v7734 = vpack.c.b16 %v7478, %v7470
        %v7735 = vpack.c.b16 %v7479, %v7471
        %v7736 = vpack.c.b16 %v7480, %v7472
        %v7737 = vpack.c.b16 %v7481, %v7473
        %v7738 = vpack.c.b16 %v7482, %v7474
        %v7739 = vpack.c.b16 %v7483, %v7475
        %v7740 = vpack.c.b16 %v7492, %v7484
        %v7741 = vpack.c.b16 %v7493, %v7485
        %v7742 = vpack.c.b16 %v7494, %v7486
        %v7743 = vpack.c.b16 %v7495, %v7487
        %v7744 = vpack.c.b16 %v7496, %v7488
        %v7745 = vpack.c.b16 %v7497, %v7489
        %v7746 = vpack.c.b16 %v7498, %v7490
        %v7747 = vpack.c.b16 %v7499, %v7491
        %v7748 = vpack.c.b16 %v7508, %v7500
        %v7749 = vpack.c.b16 %v7509, %v7501
        %v7750 = vpack.c.b16 %v7510, %v7502
        %v7751 = vpack.c.b16 %v7511, %v7503
        %v7752 = vpack.c.b16 %v7512, %v7504
        %v7753 = vpack.c.b16 %v7513, %v7505
        %v7754 = vpack.c.b16 %v7514, %v7506
        %v7755 = vpack.c.b16 %v7515, %v7507
        %v7756 = vpack.c.b16 %v7524, %v7516
        %v7757 = vpack.c.b16 %v7525, %v7517
        %v7758 = vpack.c.b16 %v7526, %v7518
        %v7759 = vpack.c.b16 %v7527, %v7519
        %v7760 = vpack.c.b16 %v7528, %v7520
        %v7761 = vpack.c.b16 %v7529, %v7521
        %v7762 = vpack.c.b16 %v7530, %v7522
        %v7763 = vpack.c.b16 %v7531, %v7523
        %v7764 = vpack.c.b16 %v7540, %v7532
        %v7765 = vpack.c.b16 %v7541, %v7533
        %v7766 = vpack.c.b16 %v7542, %v7534
        %v7767 = vpack.c.b16 %v7543, %v7535
        %v7768 = vpack.c.b16 %v7544, %v7536
        %v7769 = vpack.c.b16 %v7545, %v7537
        %v7770 = vpack.c.b16 %v7546, %v7538
        %v7771 = vpack.c.b16 %v7547, %v7539
        %vm7996 = vcmask 523264
        %v7998 = vsel %vm7996, %v6651, 0
        %8000 = vmatprep.subr.bf16.mxu0 %v7549
        %8001 = vmatpush1.bf16.msra.mxu0 %v7548
        %8002 = vmatprep.subr.bf16.mxu0 %v7557
        %8003 = vmatpush1.bf16.msra.mxu0 %v7556
        %8004 = vmatprep.subr.bf16.mxu0 %v7565
        %8005 = vmatpush1.bf16.msra.mxu0 %v7564
        %8006 = vmatprep.subr.bf16.mxu0 %v7573
        %8007 = vmatpush1.bf16.msra.mxu0 %v7572
        %8008 = vmatprep.subr.bf16.mxu0 %v7581
        %8009 = vmatpush1.bf16.msra.mxu0 %v7580
        %8010 = vmatprep.subr.bf16.mxu0 %v7589
        %8011 = vmatpush1.bf16.msra.mxu0 %v7588
        %8012 = vmatprep.subr.bf16.mxu0 %v7597
        %8013 = vmatpush1.bf16.msra.mxu0 %v7596
        %8014 = vmatprep.subr.bf16.mxu0 %v7605
        %8015 = vmatpush1.bf16.msra.mxu0 %v7604
        %8016 = vmatprep.subr.bf16.mxu0 %v7613
        %8017 = vmatpush1.bf16.msra.mxu0 %v7612
        %8018 = vmatprep.subr.bf16.mxu0 %v7621
        %8019 = vmatpush1.bf16.msra.mxu0 %v7620
        %8020 = vmatprep.subr.bf16.mxu0 %v7629
        %8021 = vmatpush1.bf16.msra.mxu0 %v7628
        %8022 = vmatprep.subr.bf16.mxu0 %v7637
        %8023 = vmatpush1.bf16.msra.mxu0 %v7636
        %8024 = vmatprep.subr.bf16.mxu0 %v7645
        %8025 = vmatpush1.bf16.msra.mxu0 %v7644
        %8026 = vmatprep.subr.bf16.mxu0 %v7653
        %8027 = vmatpush1.bf16.msra.mxu0 %v7652
        %8028 = vmatprep.subr.bf16.mxu0 %v7661
        %8029 = vmatpush1.bf16.msra.mxu0 %v7660
        %8030 = vmatprep.subr.bf16.mxu0 %v7669
        %8031 = vmatpush1.bf16.msra.mxu0 %v7668
        %8032 = vmatprep.mubr.bf16.mxu0 %v6649
        %8033 = vmatmul.mubr.bf16.gmra.mrb[0].mxu0 %v6648
        %v8034 = vpop.f32.mrb[0].mxu0
        %v8035 = vadd.f32 0.0, %v8034
        %v8036 = vpop.f32.mrb[0].mxu0
        %v8037 = vadd.f32 0.0, %v8036
        %v8038 = vpop.f32.mrb[0].mxu0
        %v8039 = vpop.f32.mrb[0].mxu0
        %8040 = vdwg.mxu0
        %8041 = vmatprep.subr.bf16.mxu0 %v7677
        %8042 = vmatpush1.bf16.msra.mxu0 %v7676
        %8043 = vmatprep.subr.bf16.mxu0 %v7685
        %8044 = vmatpush1.bf16.msra.mxu0 %v7684
        %8045 = vmatprep.subr.bf16.mxu0 %v7693
        %8046 = vmatpush1.bf16.msra.mxu0 %v7692
        %8047 = vmatprep.subr.bf16.mxu0 %v7701
        %8048 = vmatpush1.bf16.msra.mxu0 %v7700
        %8049 = vmatprep.subr.bf16.mxu0 %v7709
        %8050 = vmatpush1.bf16.msra.mxu0 %v7708
        %8051 = vmatprep.subr.bf16.mxu0 %v7717
        %8052 = vmatpush1.bf16.msra.mxu0 %v7716
        %8053 = vmatprep.subr.bf16.mxu0 %v7725
        %8054 = vmatpush1.bf16.msra.mxu0 %v7724
        %8055 = vmatprep.subr.bf16.mxu0 %v7733
        %8056 = vmatpush1.bf16.msra.mxu0 %v7732
        %8057 = vmatprep.subr.bf16.mxu0 %v7741
        %8058 = vmatpush1.bf16.msra.mxu0 %v7740
        %8059 = vmatprep.subr.bf16.mxu0 %v7749
        %8060 = vmatpush1.bf16.msra.mxu0 %v7748
        %8061 = vmatprep.subr.bf16.mxu0 %v7757
        %8062 = vmatpush1.bf16.msra.mxu0 %v7756
        %8063 = vmatprep.subr.bf16.mxu0 %v7765
        %8064 = vmatpush1.bf16.msra.mxu0 %v7764
        %8065 = vmatprep.subr.bf16.mxu0 0
        %8066 = vmatpush1.bf16.msra.mxu0 0
        %8067 = vmatprep.subr.bf16.mxu0 0
        %8068 = vmatpush1.bf16.msra.mxu0 0
        %8069 = vmatprep.subr.bf16.mxu0 0
        %8070 = vmatpush1.bf16.msra.mxu0 0
        %8071 = vmatprep.subr.bf16.mxu0 0
        %8072 = vmatpush1.bf16.msra.mxu0 0
        %8073 = vmatprep.mubr.bf16.mxu0 %v7998
        %8074 = vmatmul.mubr.bf16.gmra.mrb[0].mxu0 %v6650
        %v8075 = vpop.f32.mrb[0].mxu0
        %v8076 = vadd.f32 %v8035, %v8075
        %v8077 = vpop.f32.mrb[0].mxu0
        %v8078 = vadd.f32 %v8037, %v8077
        %v8079 = vpop.f32.mrb[0].mxu0
        %v8080 = vpop.f32.mrb[0].mxu0
        %8081 = vdwg.mxu0
        %8082 = vmatprep.subr.bf16.mxu0 %v7551
        %8083 = vmatpush1.bf16.msra.mxu0 %v7550
        %8084 = vmatprep.subr.bf16.mxu0 %v7559
        %8085 = vmatpush1.bf16.msra.mxu0 %v7558
        %8086 = vmatprep.subr.bf16.mxu0 %v7567
        %8087 = vmatpush1.bf16.msra.mxu0 %v7566
        %8088 = vmatprep.subr.bf16.mxu0 %v7575
        %8089 = vmatpush1.bf16.msra.mxu0 %v7574
        %8090 = vmatprep.subr.bf16.mxu0 %v7583
        %8091 = vmatpush1.bf16.msra.mxu0 %v7582
        %8092 = vmatprep.subr.bf16.mxu0 %v7591
        %8093 = vmatpush1.bf16.msra.mxu0 %v7590
        %8094 = vmatprep.subr.bf16.mxu0 %v7599
        %8095 = vmatpush1.bf16.msra.mxu0 %v7598
        %8096 = vmatprep.subr.bf16.mxu0 %v7607
        %8097 = vmatpush1.bf16.msra.mxu0 %v7606
        %8098 = vmatprep.subr.bf16.mxu0 %v7615
        %8099 = vmatpush1.bf16.msra.mxu0 %v7614
        %8100 = vmatprep.subr.bf16.mxu0 %v7623
        %8101 = vmatpush1.bf16.msra.mxu0 %v7622
        %8102 = vmatprep.subr.bf16.mxu0 %v7631
        %8103 = vmatpush1.bf16.msra.mxu0 %v7630
        %8104 = vmatprep.subr.bf16.mxu0 %v7639
        %8105 = vmatpush1.bf16.msra.mxu0 %v7638
        %8106 = vmatprep.subr.bf16.mxu0 %v7647
        %8107 = vmatpush1.bf16.msra.mxu0 %v7646
        %8108 = vmatprep.subr.bf16.mxu0 %v7655
        %8109 = vmatpush1.bf16.msra.mxu0 %v7654
        %8110 = vmatprep.subr.bf16.mxu0 %v7663
        %8111 = vmatpush1.bf16.msra.mxu0 %v7662
        %8112 = vmatprep.subr.bf16.mxu0 %v7671
        %8113 = vmatpush1.bf16.msra.mxu0 %v7670
        %8114 = vmatprep.mubr.bf16.mxu0 %v6649
        %8115 = vmatmul.mubr.bf16.gmra.mrb[0].mxu0 %v6648
        %v8116 = vpop.f32.mrb[0].mxu0
        %v8117 = vadd.f32 0.0, %v8116
        %v8118 = vpop.f32.mrb[0].mxu0
        %v8119 = vadd.f32 0.0, %v8118
        %v8120 = vpop.f32.mrb[0].mxu0
        %v8121 = vpop.f32.mrb[0].mxu0
        %8122 = vdwg.mxu0
        %8123 = vmatprep.subr.bf16.mxu0 %v7679
        %8124 = vmatpush1.bf16.msra.mxu0 %v7678
        %8125 = vmatprep.subr.bf16.mxu0 %v7687
        %8126 = vmatpush1.bf16.msra.mxu0 %v7686
        %8127 = vmatprep.subr.bf16.mxu0 %v7695
        %8128 = vmatpush1.bf16.msra.mxu0 %v7694
        %8129 = vmatprep.subr.bf16.mxu0 %v7703
        %8130 = vmatpush1.bf16.msra.mxu0 %v7702
        %8131 = vmatprep.subr.bf16.mxu0 %v7711
        %8132 = vmatpush1.bf16.msra.mxu0 %v7710
        %8133 = vmatprep.subr.bf16.mxu0 %v7719
        %8134 = vmatpush1.bf16.msra.mxu0 %v7718
        %8135 = vmatprep.subr.bf16.mxu0 %v7727
        %8136 = vmatpush1.bf16.msra.mxu0 %v7726
        %8137 = vmatprep.subr.bf16.mxu0 %v7735
        %8138 = vmatpush1.bf16.msra.mxu0 %v7734
        %8139 = vmatprep.subr.bf16.mxu0 %v7743
        %8140 = vmatpush1.bf16.msra.mxu0 %v7742
        %8141 = vmatprep.subr.bf16.mxu0 %v7751
        %8142 = vmatpush1.bf16.msra.mxu0 %v7750
        %8143 = vmatprep.subr.bf16.mxu0 %v7759
        %8144 = vmatpush1.bf16.msra.mxu0 %v7758
        %8145 = vmatprep.subr.bf16.mxu0 %v7767
        %8146 = vmatpush1.bf16.msra.mxu0 %v7766
        %8147 = vmatprep.subr.bf16.mxu0 0
        %8148 = vmatpush1.bf16.msra.mxu0 0
        %8149 = vmatprep.subr.bf16.mxu0 0
        %8150 = vmatpush1.bf16.msra.mxu0 0
        %8151 = vmatprep.subr.bf16.mxu0 0
        %8152 = vmatpush1.bf16.msra.mxu0 0
        %8153 = vmatprep.subr.bf16.mxu0 0
        %8154 = vmatpush1.bf16.msra.mxu0 0
        %8155 = vmatprep.mubr.bf16.mxu0 %v7998
        %8156 = vmatmul.mubr.bf16.gmra.mrb[0].mxu0 %v6650
        %v8157 = vpop.f32.mrb[0].mxu0
        %v8158 = vadd.f32 %v8117, %v8157
        %v8159 = vpop.f32.mrb[0].mxu0
        %v8160 = vadd.f32 %v8119, %v8159
        %v8161 = vpop.f32.mrb[0].mxu0
        %v8162 = vpop.f32.mrb[0].mxu0
        %8163 = vdwg.mxu0
        %8164 = vmatprep.subr.bf16.mxu0 %v7553
        %8165 = vmatpush1.bf16.msra.mxu0 %v7552
        %8166 = vmatprep.subr.bf16.mxu0 %v7561
        %8167 = vmatpush1.bf16.msra.mxu0 %v7560
        %8168 = vmatprep.subr.bf16.mxu0 %v7569
        %8169 = vmatpush1.bf16.msra.mxu0 %v7568
        %8170 = vmatprep.subr.bf16.mxu0 %v7577
        %8171 = vmatpush1.bf16.msra.mxu0 %v7576
        %8172 = vmatprep.subr.bf16.mxu0 %v7585
        %8173 = vmatpush1.bf16.msra.mxu0 %v7584
        %8174 = vmatprep.subr.bf16.mxu0 %v7593
        %8175 = vmatpush1.bf16.msra.mxu0 %v7592
        %8176 = vmatprep.subr.bf16.mxu0 %v7601
        %8177 = vmatpush1.bf16.msra.mxu0 %v7600
        %8178 = vmatprep.subr.bf16.mxu0 %v7609
        %8179 = vmatpush1.bf16.msra.mxu0 %v7608
        %8180 = vmatprep.subr.bf16.mxu0 %v7617
        %8181 = vmatpush1.bf16.msra.mxu0 %v7616
        %8182 = vmatprep.subr.bf16.mxu0 %v7625
        %8183 = vmatpush1.bf16.msra.mxu0 %v7624
        %8184 = vmatprep.subr.bf16.mxu0 %v7633
        %8185 = vmatpush1.bf16.msra.mxu0 %v7632
        %8186 = vmatprep.subr.bf16.mxu0 %v7641
        %8187 = vmatpush1.bf16.msra.mxu0 %v7640
        %8188 = vmatprep.subr.bf16.mxu0 %v7649
        %8189 = vmatpush1.bf16.msra.mxu0 %v7648
        %8190 = vmatprep.subr.bf16.mxu0 %v7657
        %8191 = vmatpush1.bf16.msra.mxu0 %v7656
        %8192 = vmatprep.subr.bf16.mxu0 %v7665
        %8193 = vmatpush1.bf16.msra.mxu0 %v7664
        %8194 = vmatprep.subr.bf16.mxu0 %v7673
        %8195 = vmatpush1.bf16.msra.mxu0 %v7672
        %8196 = vmatprep.mubr.bf16.mxu0 %v6649
        %8197 = vmatmul.mubr.bf16.gmra.mrb[0].mxu0 %v6648
        %v8198 = vpop.f32.mrb[0].mxu0
        %v8199 = vadd.f32 0.0, %v8198
        %v8200 = vpop.f32.mrb[0].mxu0
        %v8201 = vadd.f32 0.0, %v8200
        %v8202 = vpop.f32.mrb[0].mxu0
        %v8203 = vpop.f32.mrb[0].mxu0
        %8204 = vdwg.mxu0
        %8205 = vmatprep.subr.bf16.mxu0 %v7681
        %8206 = vmatpush1.bf16.msra.mxu0 %v7680
        %8207 = vmatprep.subr.bf16.mxu0 %v7689
        %8208 = vmatpush1.bf16.msra.mxu0 %v7688
        %8209 = vmatprep.subr.bf16.mxu0 %v7697
        %8210 = vmatpush1.bf16.msra.mxu0 %v7696
        %8211 = vmatprep.subr.bf16.mxu0 %v7705
        %8212 = vmatpush1.bf16.msra.mxu0 %v7704
        %8213 = vmatprep.subr.bf16.mxu0 %v7713
        %8214 = vmatpush1.bf16.msra.mxu0 %v7712
        %8215 = vmatprep.subr.bf16.mxu0 %v7721
        %8216 = vmatpush1.bf16.msra.mxu0 %v7720
        %8217 = vmatprep.subr.bf16.mxu0 %v7729
        %8218 = vmatpush1.bf16.msra.mxu0 %v7728
        %8219 = vmatprep.subr.bf16.mxu0 %v7737
        %8220 = vmatpush1.bf16.msra.mxu0 %v7736
        %8221 = vmatprep.subr.bf16.mxu0 %v7745
        %8222 = vmatpush1.bf16.msra.mxu0 %v7744
        %8223 = vmatprep.subr.bf16.mxu0 %v7753
        %8224 = vmatpush1.bf16.msra.mxu0 %v7752
        %8225 = vmatprep.subr.bf16.mxu0 %v7761
        %8226 = vmatpush1.bf16.msra.mxu0 %v7760
        %8227 = vmatprep.subr.bf16.mxu0 %v7769
        %8228 = vmatpush1.bf16.msra.mxu0 %v7768
        %8229 = vmatprep.subr.bf16.mxu0 0
        %8230 = vmatpush1.bf16.msra.mxu0 0
        %8231 = vmatprep.subr.bf16.mxu0 0
        %8232 = vmatpush1.bf16.msra.mxu0 0
        %8233 = vmatprep.subr.bf16.mxu0 0
        %8234 = vmatpush1.bf16.msra.mxu0 0
        %8235 = vmatprep.subr.bf16.mxu0 0
        %8236 = vmatpush1.bf16.msra.mxu0 0
        %8237 = vmatprep.mubr.bf16.mxu0 %v7998
        %8238 = vmatmul.mubr.bf16.gmra.mrb[0].mxu0 %v6650
        %v8239 = vpop.f32.mrb[0].mxu0
        %v8240 = vadd.f32 %v8199, %v8239
        %v8241 = vpop.f32.mrb[0].mxu0
        %v8242 = vadd.f32 %v8201, %v8241
        %v8243 = vpop.f32.mrb[0].mxu0
        %v8244 = vpop.f32.mrb[0].mxu0
        %8245 = vdwg.mxu0
        %8246 = vmatprep.subr.bf16.mxu0 %v7555
        %8247 = vmatpush1.bf16.msra.mxu0 %v7554
        %8248 = vmatprep.subr.bf16.mxu0 %v7563
        %8249 = vmatpush1.bf16.msra.mxu0 %v7562
        %8250 = vmatprep.subr.bf16.mxu0 %v7571
        %8251 = vmatpush1.bf16.msra.mxu0 %v7570
        %8252 = vmatprep.subr.bf16.mxu0 %v7579
        %8253 = vmatpush1.bf16.msra.mxu0 %v7578
        %8254 = vmatprep.subr.bf16.mxu0 %v7587
        %8255 = vmatpush1.bf16.msra.mxu0 %v7586
        %8256 = vmatprep.subr.bf16.mxu0 %v7595
        %8257 = vmatpush1.bf16.msra.mxu0 %v7594
        %8258 = vmatprep.subr.bf16.mxu0 %v7603
        %8259 = vmatpush1.bf16.msra.mxu0 %v7602
        %8260 = vmatprep.subr.bf16.mxu0 %v7611
        %8261 = vmatpush1.bf16.msra.mxu0 %v7610
        %8262 = vmatprep.subr.bf16.mxu0 %v7619
        %8263 = vmatpush1.bf16.msra.mxu0 %v7618
        %8264 = vmatprep.subr.bf16.mxu0 %v7627
        %8265 = vmatpush1.bf16.msra.mxu0 %v7626
        %8266 = vmatprep.subr.bf16.mxu0 %v7635
        %8267 = vmatpush1.bf16.msra.mxu0 %v7634
        %8268 = vmatprep.subr.bf16.mxu0 %v7643
        %8269 = vmatpush1.bf16.msra.mxu0 %v7642
        %8270 = vmatprep.subr.bf16.mxu0 %v7651
        %8271 = vmatpush1.bf16.msra.mxu0 %v7650
        %8272 = vmatprep.subr.bf16.mxu0 %v7659
        %8273 = vmatpush1.bf16.msra.mxu0 %v7658
        %8274 = vmatprep.subr.bf16.mxu0 %v7667
        %8275 = vmatpush1.bf16.msra.mxu0 %v7666
        %8276 = vmatprep.subr.bf16.mxu0 %v7675
        %8277 = vmatpush1.bf16.msra.mxu0 %v7674
        %8278 = vmatprep.mubr.bf16.mxu0 %v6649
        %8279 = vmatmul.mubr.bf16.gmra.mrb[0].mxu0 %v6648
        %v8280 = vpop.f32.mrb[0].mxu0
        %v8281 = vadd.f32 0.0, %v8280
        %v8282 = vpop.f32.mrb[0].mxu0
        %v8283 = vadd.f32 0.0, %v8282
        %v8284 = vpop.f32.mrb[0].mxu0
        %v8285 = vpop.f32.mrb[0].mxu0
        %8286 = vdwg.mxu0
        %8287 = vmatprep.subr.bf16.mxu0 %v7683
        %8288 = vmatpush1.bf16.msra.mxu0 %v7682
        %8289 = vmatprep.subr.bf16.mxu0 %v7691
        %8290 = vmatpush1.bf16.msra.mxu0 %v7690
        %8291 = vmatprep.subr.bf16.mxu0 %v7699
        %8292 = vmatpush1.bf16.msra.mxu0 %v7698
        %8293 = vmatprep.subr.bf16.mxu0 %v7707
        %8294 = vmatpush1.bf16.msra.mxu0 %v7706
        %8295 = vmatprep.subr.bf16.mxu0 %v7715
        %8296 = vmatpush1.bf16.msra.mxu0 %v7714
        %8297 = vmatprep.subr.bf16.mxu0 %v7723
        %8298 = vmatpush1.bf16.msra.mxu0 %v7722
        %8299 = vmatprep.subr.bf16.mxu0 %v7731
        %8300 = vmatpush1.bf16.msra.mxu0 %v7730
        %8301 = vmatprep.subr.bf16.mxu0 %v7739
        %8302 = vmatpush1.bf16.msra.mxu0 %v7738
        %8303 = vmatprep.subr.bf16.mxu0 %v7747
        %8304 = vmatpush1.bf16.msra.mxu0 %v7746
        %8305 = vmatprep.subr.bf16.mxu0 %v7755
        %8306 = vmatpush1.bf16.msra.mxu0 %v7754
        %8307 = vmatprep.subr.bf16.mxu0 %v7763
        %8308 = vmatpush1.bf16.msra.mxu0 %v7762
        %8309 = vmatprep.subr.bf16.mxu0 %v7771
        %8310 = vmatpush1.bf16.msra.mxu0 %v7770
        %8311 = vmatprep.subr.bf16.mxu0 0
        %8312 = vmatpush1.bf16.msra.mxu0 0
        %8313 = vmatprep.subr.bf16.mxu0 0
        %8314 = vmatpush1.bf16.msra.mxu0 0
        %8315 = vmatprep.subr.bf16.mxu0 0
        %8316 = vmatpush1.bf16.msra.mxu0 0
        %8317 = vmatprep.subr.bf16.mxu0 0
        %8318 = vmatpush1.bf16.msra.mxu0 0
        %8319 = vmatprep.mubr.bf16.mxu0 %v7998
        %8320 = vmatmul.mubr.bf16.gmra.mrb[0].mxu0 %v6650
        %v8321 = vpop.f32.mrb[0].mxu0
        %v8322 = vadd.f32 %v8281, %v8321
        %v8323 = vpop.f32.mrb[0].mxu0
        %v8324 = vadd.f32 %v8283, %v8323
        %v8325 = vpop.f32.mrb[0].mxu0
        %v8326 = vpop.f32.mrb[0].mxu0
        %8327 = vdwg.mxu0
        %v8336 = vcombine.low %v8076, %v8078
        %v8337 = vcombine.low %v8158, %v8160
        %v8339 = vunpack.c.l.s4 1983009808
        %v8340 = vunpack.c.0.s8 %v8339
        %v8341 = vlaneseq
        %v8342 = vshrl.u32 %v8341, 7
        %v8343 = vsub.s32 %v8340, %v8342
        %v8344 = vrot.slane %v8336, %v8343
        %v8346 = vunpack.c.l.s4 1983009808
        %v8347 = vunpack.c.0.s8 %v8346
        %v8348 = vlaneseq
        %v8349 = vshrl.u32 %v8348, 7
        %v8350 = vsub.s32 %v8347, %v8349
        %v8351 = vrot.slane %v8337, %v8350
        %v8352 = vcombine.low %v8344, %v8351
        %v8353 = vcombine.low %v8240, %v8242
        %v8354 = vcombine.low %v8322, %v8324
        %v8356 = vunpack.c.l.s4 1983009808
        %v8357 = vunpack.c.0.s8 %v8356
        %v8358 = vlaneseq
        %v8359 = vshrl.u32 %v8358, 7
        %v8360 = vsub.s32 %v8357, %v8359
        %v8361 = vrot.slane %v8353, %v8360
        %v8363 = vunpack.c.l.s4 1983009808
        %v8364 = vunpack.c.0.s8 %v8363
        %v8365 = vlaneseq
        %v8366 = vshrl.u32 %v8365, 7
        %v8367 = vsub.s32 %v8364, %v8366
        %v8368 = vrot.slane %v8354, %v8367
        %v8369 = vcombine.low %v8361, %v8368
        %v8372 = vadd.f32 %v6646, %v8352
        %v8373 = vadd.f32 %v6647, %v8369
        %8374 = vst [vmem:[#allocation4] sm:$0xff] %v8372
        %8375 = vst [vmem:[#allocation4 + $0x8] sm:$0xff] %v8373
        %p8376 = scmp.eq.s32.totalorder %s91, 7
        // Predicated region
        $region177: #{_lambda_.1} parent=171 // pred_check
          %p8377 = pneg %p8376
        $region178: #{_lambda_.1} parent=171 // pred_check_branch
          %8379 = sbr.rel (%p8377) target = $region180
        $region179: #{_lambda_.1} parent=171 // pred_region
          %v8380 = vld [vmem:[#allocation4] sm:$0xff]
          %v8381 = vld [vmem:[#allocation4 + $0x8] sm:$0xff]
          %v8382 = vld [vmem:[%s67] sm:$0xff]
          %v8384 = vlaneseq
          %v8385 = vshrl.u32 %v8384, 7
          %v8386 = vsub.s32 0, %v8385
          %v8387 = vrot.slane %v8382, %v8386
          %v8388 = vlaneseq
          %v8389 = vshrl.u32 %v8388, 7
          %v8390 = vsub.s32 1, %v8389
          %v8391 = vrot.slane %v8382, %v8390
          %v8392 = vlaneseq
          %v8393 = vshrl.u32 %v8392, 7
          %v8394 = vsub.s32 2, %v8393
          %v8395 = vrot.slane %v8382, %v8394
          %v8396 = vlaneseq
          %v8397 = vshrl.u32 %v8396, 7
          %v8398 = vsub.s32 3, %v8397
          %v8399 = vrot.slane %v8382, %v8398
          %v8400 = vlaneseq
          %v8401 = vshrl.u32 %v8400, 7
          %v8402 = vsub.s32 4, %v8401
          %v8403 = vrot.slane %v8382, %v8402
          %v8404 = vlaneseq
          %v8405 = vshrl.u32 %v8404, 7
          %v8406 = vsub.s32 5, %v8405
          %v8407 = vrot.slane %v8382, %v8406
          %v8408 = vlaneseq
          %v8409 = vshrl.u32 %v8408, 7
          %v8410 = vsub.s32 6, %v8409
          %v8411 = vrot.slane %v8382, %v8410
          %v8412 = vlaneseq
          %v8413 = vshrl.u32 %v8412, 7
          %v8414 = vsub.s32 7, %v8413
          %v8415 = vrot.slane %v8382, %v8414
          %v8416 = vcombine.low %v8387, %v8391
          %v8417 = vcombine.low %v8395, %v8399
          %v8419 = vunpack.c.l.s4 1983009808
          %v8420 = vunpack.c.0.s8 %v8419
          %v8421 = vlaneseq
          %v8422 = vshrl.u32 %v8421, 7
          %v8423 = vsub.s32 %v8420, %v8422
          %v8424 = vrot.slane %v8416, %v8423
          %v8426 = vunpack.c.l.s4 1983009808
          %v8427 = vunpack.c.0.s8 %v8426
          %v8428 = vlaneseq
          %v8429 = vshrl.u32 %v8428, 7
          %v8430 = vsub.s32 %v8427, %v8429
          %v8431 = vrot.slane %v8417, %v8430
          %v8432 = vcombine.low %v8424, %v8431
          %v8433 = vcombine.low %v8403, %v8407
          %v8434 = vcombine.low %v8411, %v8415
          %v8436 = vunpack.c.l.s4 1983009808
          %v8437 = vunpack.c.0.s8 %v8436
          %v8438 = vlaneseq
          %v8439 = vshrl.u32 %v8438, 7
          %v8440 = vsub.s32 %v8437, %v8439
          %v8441 = vrot.slane %v8433, %v8440
          %v8443 = vunpack.c.l.s4 1983009808
          %v8444 = vunpack.c.0.s8 %v8443
          %v8445 = vlaneseq
          %v8446 = vshrl.u32 %v8445, 7
          %v8447 = vsub.s32 %v8444, %v8446
          %v8448 = vrot.slane %v8434, %v8447
          %v8449 = vcombine.low %v8441, %v8448
          %v8452 = vadd.f32 %v8380, %v8432
          %v8453 = vadd.f32 %v8381, %v8449
          %v8454 = vmax.f32 %v8452, 0.0
          %v8455 = vmax.f32 %v8453, 0.0
          %v8456 = vld [vmem:[%s69] sm:$0xff]
          %v8457 = vld [vmem:[%s69 + $0x8] sm:$0xff]
          %v8458 = vld [vmem:[%s69 + $0x10] sm:$0xff]
          %v8459 = vld [vmem:[%s69 + $0x18] sm:$0xff]
          %v8460 = vld [vmem:[%s69 + $0x20] sm:$0xff]
          %v8461 = vld [vmem:[%s69 + $0x28] sm:$0xff]
          %v8462 = vld [vmem:[%s69 + $0x30] sm:$0xff]
          %v8463 = vld [vmem:[%s69 + $0x38] sm:$0xff]
          %v8464 = vld [vmem:[%s69 + $0x40] sm:$0xff]
          %v8465 = vld [vmem:[%s69 + $0x48] sm:$0xff]
          %v8466 = vld [vmem:[%s69 + $0x50] sm:$0xff]
          %v8467 = vld [vmem:[%s69 + $0x58] sm:$0xff]
          %v8468 = vld [vmem:[%s69 + $0x60] sm:$0xff]
          %v8469 = vld [vmem:[%s69 + $0x68] sm:$0xff]
          %v8470 = vld [vmem:[%s69 + $0x70] sm:$0xff]
          %v8471 = vld [vmem:[%s69 + $0x78] sm:$0xff]
          %v8472 = vld [vmem:[%s69 + $0x80] sm:$0xff]
          %v8473 = vld [vmem:[%s69 + $0x88] sm:$0xff]
          %v8474 = vld [vmem:[%s69 + $0x90] sm:$0xff]
          %v8475 = vld [vmem:[%s69 + $0x98] sm:$0xff]
          %v8476 = vld [vmem:[%s69 + $0xa0] sm:$0xff]
          %v8477 = vld [vmem:[%s69 + $0xa8] sm:$0xff]
          %v8478 = vld [vmem:[%s69 + $0xb0] sm:$0xff]
          %v8479 = vld [vmem:[%s69 + $0xb8] sm:$0xff]
          %v8480 = vld [vmem:[%s69 + $0xc0] sm:$0xff]
          %v8481 = vld [vmem:[%s69 + $0xc8] sm:$0xff]
          %v8482 = vld [vmem:[%s69 + $0xd0] sm:$0xff]
          %v8483 = vld [vmem:[%s69 + $0xd8] sm:$0xff]
          %v8484 = vld [vmem:[%s69 + $0xe0] sm:$0xff]
          %v8485 = vld [vmem:[%s69 + $0xe8] sm:$0xff]
          %v8486 = vld [vmem:[%s69 + $0xf0] sm:$0xff]
          %v8487 = vld [vmem:[%s69 + $0xf8] sm:$0xff]
          %v8488 = vld [vmem:[%s69 + $0x100] sm:$0xff]
          %v8489 = vld [vmem:[%s69 + $0x108] sm:$0xff]
          %v8490 = vld [vmem:[%s69 + $0x110] sm:$0xff]
          %v8491 = vld [vmem:[%s69 + $0x118] sm:$0xff]
          %v8492 = vld [vmem:[%s69 + $0x120] sm:$0xff]
          %v8493 = vld [vmem:[%s69 + $0x128] sm:$0xff]
          %v8494 = vld [vmem:[%s69 + $0x130] sm:$0xff]
          %v8495 = vld [vmem:[%s69 + $0x138] sm:$0xff]
          %v8496 = vld [vmem:[%s69 + $0x140] sm:$0xff]
          %v8497 = vld [vmem:[%s69 + $0x148] sm:$0xff]
          %v8498 = vld [vmem:[%s69 + $0x150] sm:$0xff]
          %v8499 = vld [vmem:[%s69 + $0x158] sm:$0xff]
          %v8500 = vld [vmem:[%s69 + $0x160] sm:$0xff]
          %v8501 = vld [vmem:[%s69 + $0x168] sm:$0xff]
          %v8502 = vld [vmem:[%s69 + $0x170] sm:$0xff]
          %v8503 = vld [vmem:[%s69 + $0x178] sm:$0xff]
          %v8504 = vld [vmem:[%s69 + $0x180] sm:$0xff]
          %v8505 = vld [vmem:[%s69 + $0x188] sm:$0xff]
          %v8506 = vld [vmem:[%s69 + $0x190] sm:$0xff]
          %v8507 = vld [vmem:[%s69 + $0x198] sm:$0xff]
          %v8508 = vld [vmem:[%s69 + $0x1a0] sm:$0xff]
          %v8509 = vld [vmem:[%s69 + $0x1a8] sm:$0xff]
          %v8510 = vld [vmem:[%s69 + $0x1b0] sm:$0xff]
          %v8511 = vld [vmem:[%s69 + $0x1b8] sm:$0xff]
          %v8512 = vld [vmem:[%s69 + $0x1c0] sm:$0xff]
          %v8513 = vld [vmem:[%s69 + $0x1c8] sm:$0xff]
          %v8514 = vld [vmem:[%s69 + $0x1d0] sm:$0xff]
          %v8515 = vld [vmem:[%s69 + $0x1d8] sm:$0xff]
          %v8516 = vld [vmem:[%s69 + $0x1e0] sm:$0xff]
          %v8517 = vld [vmem:[%s69 + $0x1e8] sm:$0xff]
          %v8518 = vld [vmem:[%s69 + $0x1f0] sm:$0xff]
          %v8519 = vld [vmem:[%s69 + $0x1f8] sm:$0xff]
          %v8520 = vld [vmem:[#allocation5] sm:$0x1]
          %v8522 = vlaneseq
          %v8523 = vshrl.u32 %v8522, 7
          %v8524 = vsub.s32 0, %v8523
          %v8525 = vrot.slane %v8520, %v8524
          %v8528 = vcombine.high %v8454, %v8454
          %v8530 = vunpack.c.l.s4 1983009808
          %v8531 = vunpack.c.0.s8 %v8530
          %v8532 = vlaneseq
          %v8533 = vshrl.u32 %v8532, 7
          %v8534 = vsub.s32 %v8531, %v8533
          %v8535 = vrot.slane %v8454, %v8534
          %v8537 = vunpack.c.l.s4 1983009808
          %v8538 = vunpack.c.0.s8 %v8537
          %v8539 = vlaneseq
          %v8540 = vshrl.u32 %v8539, 7
          %v8541 = vsub.s32 %v8538, %v8540
          %v8542 = vrot.slane %v8528, %v8541
          %v8543 = vcombine.high %v8535, %v8535
          %v8544 = vcombine.high %v8542, %v8542
          %8549 = vmatprep.subr.mxu0 0.0
          %8550 = vmatpush1.msra.mxu0 %v8456
          %8551 = vmatprep.subr.mxu0 0.0
          %8552 = vmatpush1.msra.mxu0 %v8457
          %8553 = vmatprep.subr.mxu0 0.0
          %8554 = vmatpush1.msra.mxu0 %v8458
          %8555 = vmatprep.subr.mxu0 0.0
          %8556 = vmatpush1.msra.mxu0 %v8459
          %8557 = vmatprep.subr.mxu0 0.0
          %8558 = vmatpush1.msra.mxu0 %v8460
          %8559 = vmatprep.subr.mxu0 0.0
          %8560 = vmatpush1.msra.mxu0 %v8461
          %8561 = vmatprep.subr.mxu0 0.0
          %8562 = vmatpush1.msra.mxu0 %v8462
          %8563 = vmatprep.subr.mxu0 0.0
          %8564 = vmatpush1.msra.mxu0 %v8463
          %8565 = vmatprep.subr.mxu0 0.0
          %8566 = vmatpush1.msra.mxu0 %v8464
          %8567 = vmatprep.subr.mxu0 0.0
          %8568 = vmatpush1.msra.mxu0 %v8465
          %8569 = vmatprep.subr.mxu0 0.0
          %8570 = vmatpush1.msra.mxu0 %v8466
          %8571 = vmatprep.subr.mxu0 0.0
          %8572 = vmatpush1.msra.mxu0 %v8467
          %8573 = vmatprep.subr.mxu0 0.0
          %8574 = vmatpush1.msra.mxu0 %v8468
          %8575 = vmatprep.subr.mxu0 0.0
          %8576 = vmatpush1.msra.mxu0 %v8469
          %8577 = vmatprep.subr.mxu0 0.0
          %8578 = vmatpush1.msra.mxu0 %v8470
          %8579 = vmatprep.subr.mxu0 0.0
          %8580 = vmatpush1.msra.mxu0 %v8471
          %8581 = vmatprep.subr.mxu0 0.0
          %8582 = vmatpush1.msra.mxu0 %v8472
          %8583 = vmatprep.subr.mxu0 0.0
          %8584 = vmatpush1.msra.mxu0 %v8473
          %8585 = vmatprep.subr.mxu0 0.0
          %8586 = vmatpush1.msra.mxu0 %v8474
          %8587 = vmatprep.subr.mxu0 0.0
          %8588 = vmatpush1.msra.mxu0 %v8475
          %8589 = vmatprep.subr.mxu0 0.0
          %8590 = vmatpush1.msra.mxu0 %v8476
          %8591 = vmatprep.subr.mxu0 0.0
          %8592 = vmatpush1.msra.mxu0 %v8477
          %8593 = vmatprep.subr.mxu0 0.0
          %8594 = vmatpush1.msra.mxu0 %v8478
          %8595 = vmatprep.subr.mxu0 0.0
          %8596 = vmatpush1.msra.mxu0 %v8479
          %8597 = vmatprep.subr.mxu0 0.0
          %8598 = vmatpush1.msra.mxu0 %v8480
          %8599 = vmatprep.subr.mxu0 0.0
          %8600 = vmatpush1.msra.mxu0 %v8481
          %8601 = vmatprep.subr.mxu0 0.0
          %8602 = vmatpush1.msra.mxu0 %v8482
          %8603 = vmatprep.subr.mxu0 0.0
          %8604 = vmatpush1.msra.mxu0 %v8483
          %8605 = vmatprep.subr.mxu0 0.0
          %8606 = vmatpush1.msra.mxu0 %v8484
          %8607 = vmatprep.subr.mxu0 0.0
          %8608 = vmatpush1.msra.mxu0 %v8485
          %8609 = vmatprep.subr.mxu0 0.0
          %8610 = vmatpush1.msra.mxu0 %v8486
          %8611 = vmatprep.subr.mxu0 0.0
          %8612 = vmatpush1.msra.mxu0 %v8487
          %8613 = vmatprep.mubr.f32.mxu0 %v8543
          %8614 = vmatmul.mubr.f32.gmra.mrb[0].mxu0 %v8535
          %v8615 = vpop.f32.mrb[0].mxu0
          %v8616 = vadd.f32 %v8525, %v8615
          %v8617 = vpop.f32.mrb[0].mxu0
          %8618 = vdwg.mxu0
          %8619 = vmatprep.subr.mxu0 0.0
          %8620 = vmatpush1.msra.mxu0 %v8488
          %8621 = vmatprep.subr.mxu0 0.0
          %8622 = vmatpush1.msra.mxu0 %v8489
          %8623 = vmatprep.subr.mxu0 0.0
          %8624 = vmatpush1.msra.mxu0 %v8490
          %8625 = vmatprep.subr.mxu0 0.0
          %8626 = vmatpush1.msra.mxu0 %v8491
          %8627 = vmatprep.subr.mxu0 0.0
          %8628 = vmatpush1.msra.mxu0 %v8492
          %8629 = vmatprep.subr.mxu0 0.0
          %8630 = vmatpush1.msra.mxu0 %v8493
          %8631 = vmatprep.subr.mxu0 0.0
          %8632 = vmatpush1.msra.mxu0 %v8494
          %8633 = vmatprep.subr.mxu0 0.0
          %8634 = vmatpush1.msra.mxu0 %v8495
          %8635 = vmatprep.subr.mxu0 0.0
          %8636 = vmatpush1.msra.mxu0 %v8496
          %8637 = vmatprep.subr.mxu0 0.0
          %8638 = vmatpush1.msra.mxu0 %v8497
          %8639 = vmatprep.subr.mxu0 0.0
          %8640 = vmatpush1.msra.mxu0 %v8498
          %8641 = vmatprep.subr.mxu0 0.0
          %8642 = vmatpush1.msra.mxu0 %v8499
          %8643 = vmatprep.subr.mxu0 0.0
          %8644 = vmatpush1.msra.mxu0 %v8500
          %8645 = vmatprep.subr.mxu0 0.0
          %8646 = vmatpush1.msra.mxu0 %v8501
          %8647 = vmatprep.subr.mxu0 0.0
          %8648 = vmatpush1.msra.mxu0 %v8502
          %8649 = vmatprep.subr.mxu0 0.0
          %8650 = vmatpush1.msra.mxu0 %v8503
          %8651 = vmatprep.subr.mxu0 0.0
          %8652 = vmatpush1.msra.mxu0 %v8504
          %8653 = vmatprep.subr.mxu0 0.0
          %8654 = vmatpush1.msra.mxu0 %v8505
          %8655 = vmatprep.subr.mxu0 0.0
          %8656 = vmatpush1.msra.mxu0 %v8506
          %8657 = vmatprep.subr.mxu0 0.0
          %8658 = vmatpush1.msra.mxu0 %v8507
          %8659 = vmatprep.subr.mxu0 0.0
          %8660 = vmatpush1.msra.mxu0 %v8508
          %8661 = vmatprep.subr.mxu0 0.0
          %8662 = vmatpush1.msra.mxu0 %v8509
          %8663 = vmatprep.subr.mxu0 0.0
          %8664 = vmatpush1.msra.mxu0 %v8510
          %8665 = vmatprep.subr.mxu0 0.0
          %8666 = vmatpush1.msra.mxu0 %v8511
          %8667 = vmatprep.subr.mxu0 0.0
          %8668 = vmatpush1.msra.mxu0 %v8512
          %8669 = vmatprep.subr.mxu0 0.0
          %8670 = vmatpush1.msra.mxu0 %v8513
          %8671 = vmatprep.subr.mxu0 0.0
          %8672 = vmatpush1.msra.mxu0 %v8514
          %8673 = vmatprep.subr.mxu0 0.0
          %8674 = vmatpush1.msra.mxu0 %v8515
          %8675 = vmatprep.subr.mxu0 0.0
          %8676 = vmatpush1.msra.mxu0 %v8516
          %8677 = vmatprep.subr.mxu0 0.0
          %8678 = vmatpush1.msra.mxu0 %v8517
          %8679 = vmatprep.subr.mxu0 0.0
          %8680 = vmatpush1.msra.mxu0 %v8518
          %8681 = vmatprep.subr.mxu0 0.0
          %8682 = vmatpush1.msra.mxu0 %v8519
          %8683 = vmatprep.mubr.f32.mxu0 %v8544
          %8684 = vmatmul.mubr.f32.gmra.mrb[0].mxu0 %v8542
          %v8685 = vpop.f32.mrb[0].mxu0
          %v8686 = vadd.f32 %v8616, %v8685
          %v8687 = vpop.f32.mrb[0].mxu0
          %8688 = vdwg.mxu0
          %v8689 = vld [vmem:[%s73] sm:$0xff]
          %v8690 = vld [vmem:[%s73 + $0x8] sm:$0xff]
          %v8691 = vld [vmem:[%s73 + $0x10] sm:$0xff]
          %v8692 = vld [vmem:[%s73 + $0x18] sm:$0xff]
          %v8693 = vld [vmem:[%s73 + $0x20] sm:$0xff]
          %v8694 = vld [vmem:[%s73 + $0x28] sm:$0xff]
          %v8695 = vld [vmem:[%s73 + $0x30] sm:$0xff]
          %v8696 = vld [vmem:[%s73 + $0x38] sm:$0xff]
          %v8697 = vld [vmem:[%s73 + $0x40] sm:$0xff]
          %v8698 = vld [vmem:[%s73 + $0x48] sm:$0xff]
          %v8699 = vld [vmem:[%s73 + $0x50] sm:$0xff]
          %v8700 = vld [vmem:[%s73 + $0x58] sm:$0xff]
          %v8701 = vld [vmem:[%s73 + $0x60] sm:$0xff]
          %v8702 = vld [vmem:[%s73 + $0x68] sm:$0xff]
          %v8703 = vld [vmem:[%s73 + $0x70] sm:$0xff]
          %v8704 = vld [vmem:[%s73 + $0x78] sm:$0xff]
          %v8705 = vld [vmem:[%s73 + $0x80] sm:$0xff]
          %v8706 = vld [vmem:[%s73 + $0x88] sm:$0xff]
          %v8707 = vld [vmem:[%s73 + $0x90] sm:$0xff]
          %v8708 = vld [vmem:[%s73 + $0x98] sm:$0xff]
          %v8709 = vld [vmem:[%s73 + $0xa0] sm:$0xff]
          %v8710 = vld [vmem:[%s73 + $0xa8] sm:$0xff]
          %v8711 = vld [vmem:[%s73 + $0xb0] sm:$0xff]
          %v8712 = vld [vmem:[%s73 + $0xb8] sm:$0xff]
          %v8713 = vld [vmem:[%s73 + $0xc0] sm:$0xff]
          %v8714 = vld [vmem:[%s73 + $0xc8] sm:$0xff]
          %v8715 = vld [vmem:[%s73 + $0xd0] sm:$0xff]
          %v8716 = vld [vmem:[%s73 + $0xd8] sm:$0xff]
          %v8717 = vld [vmem:[%s73 + $0xe0] sm:$0xff]
          %v8718 = vld [vmem:[%s73 + $0xe8] sm:$0xff]
          %v8719 = vld [vmem:[%s73 + $0xf0] sm:$0xff]
          %v8720 = vld [vmem:[%s73 + $0xf8] sm:$0xff]
          %v8721 = vld [vmem:[%s73 + $0x100] sm:$0xff]
          %v8722 = vld [vmem:[%s73 + $0x108] sm:$0xff]
          %v8723 = vld [vmem:[%s73 + $0x110] sm:$0xff]
          %v8724 = vld [vmem:[%s73 + $0x118] sm:$0xff]
          %v8725 = vld [vmem:[%s73 + $0x120] sm:$0xff]
          %v8726 = vld [vmem:[%s73 + $0x128] sm:$0xff]
          %v8727 = vld [vmem:[%s73 + $0x130] sm:$0xff]
          %v8728 = vld [vmem:[%s73 + $0x138] sm:$0xff]
          %v8729 = vld [vmem:[%s73 + $0x140] sm:$0xff]
          %v8730 = vld [vmem:[%s73 + $0x148] sm:$0xff]
          %v8731 = vld [vmem:[%s73 + $0x150] sm:$0xff]
          %v8732 = vld [vmem:[%s73 + $0x158] sm:$0xff]
          %v8733 = vld [vmem:[%s73 + $0x160] sm:$0xff]
          %v8734 = vld [vmem:[%s73 + $0x168] sm:$0xff]
          %v8735 = vld [vmem:[%s73 + $0x170] sm:$0xff]
          %v8736 = vld [vmem:[%s73 + $0x178] sm:$0xff]
          %v8737 = vld [vmem:[%s73 + $0x180] sm:$0xff]
          %v8738 = vld [vmem:[%s73 + $0x188] sm:$0xff]
          %v8739 = vld [vmem:[%s73 + $0x190] sm:$0xff]
          %v8740 = vld [vmem:[%s73 + $0x198] sm:$0xff]
          %v8741 = vld [vmem:[%s73 + $0x1a0] sm:$0xff]
          %v8742 = vld [vmem:[%s73 + $0x1a8] sm:$0xff]
          %v8743 = vld [vmem:[%s73 + $0x1b0] sm:$0xff]
          %v8744 = vld [vmem:[%s73 + $0x1b8] sm:$0xff]
          %v8745 = vld [vmem:[%s73 + $0x1c0] sm:$0xff]
          %v8746 = vld [vmem:[%s73 + $0x1c8] sm:$0xff]
          %v8747 = vld [vmem:[%s73 + $0x1d0] sm:$0xff]
          %v8748 = vld [vmem:[%s73 + $0x1d8] sm:$0xff]
          %v8749 = vld [vmem:[%s73 + $0x1e0] sm:$0xff]
          %v8750 = vld [vmem:[%s73 + $0x1e8] sm:$0xff]
          %v8751 = vld [vmem:[%s73 + $0x1f0] sm:$0xff]
          %v8752 = vld [vmem:[%s73 + $0x1f8] sm:$0xff]
          %v8753 = vld [vmem:[%s75] sm:$0x1]
          %v8755 = vlaneseq
          %v8756 = vshrl.u32 %v8755, 7
          %v8757 = vsub.s32 0, %v8756
          %v8758 = vrot.slane %v8753, %v8757
          %v8761 = vcombine.high %v8455, %v8455
          %v8763 = vunpack.c.l.s4 1983009808
          %v8764 = vunpack.c.0.s8 %v8763
          %v8765 = vlaneseq
          %v8766 = vshrl.u32 %v8765, 7
          %v8767 = vsub.s32 %v8764, %v8766
          %v8768 = vrot.slane %v8455, %v8767
          %v8770 = vunpack.c.l.s4 1983009808
          %v8771 = vunpack.c.0.s8 %v8770
          %v8772 = vlaneseq
          %v8773 = vshrl.u32 %v8772, 7
          %v8774 = vsub.s32 %v8771, %v8773
          %v8775 = vrot.slane %v8761, %v8774
          %v8776 = vcombine.high %v8768, %v8768
          %v8777 = vcombine.high %v8775, %v8775
          %8782 = vmatprep.subr.mxu0 0.0
          %8783 = vmatpush1.msra.mxu0 %v8689
          %8784 = vmatprep.subr.mxu0 0.0
          %8785 = vmatpush1.msra.mxu0 %v8690
          %8786 = vmatprep.subr.mxu0 0.0
          %8787 = vmatpush1.msra.mxu0 %v8691
          %8788 = vmatprep.subr.mxu0 0.0
          %8789 = vmatpush1.msra.mxu0 %v8692
          %8790 = vmatprep.subr.mxu0 0.0
          %8791 = vmatpush1.msra.mxu0 %v8693
          %8792 = vmatprep.subr.mxu0 0.0
          %8793 = vmatpush1.msra.mxu0 %v8694
          %8794 = vmatprep.subr.mxu0 0.0
          %8795 = vmatpush1.msra.mxu0 %v8695
          %8796 = vmatprep.subr.mxu0 0.0
          %8797 = vmatpush1.msra.mxu0 %v8696
          %8798 = vmatprep.subr.mxu0 0.0
          %8799 = vmatpush1.msra.mxu0 %v8697
          %8800 = vmatprep.subr.mxu0 0.0
          %8801 = vmatpush1.msra.mxu0 %v8698
          %8802 = vmatprep.subr.mxu0 0.0
          %8803 = vmatpush1.msra.mxu0 %v8699
          %8804 = vmatprep.subr.mxu0 0.0
          %8805 = vmatpush1.msra.mxu0 %v8700
          %8806 = vmatprep.subr.mxu0 0.0
          %8807 = vmatpush1.msra.mxu0 %v8701
          %8808 = vmatprep.subr.mxu0 0.0
          %8809 = vmatpush1.msra.mxu0 %v8702
          %8810 = vmatprep.subr.mxu0 0.0
          %8811 = vmatpush1.msra.mxu0 %v8703
          %8812 = vmatprep.subr.mxu0 0.0
          %8813 = vmatpush1.msra.mxu0 %v8704
          %8814 = vmatprep.subr.mxu0 0.0
          %8815 = vmatpush1.msra.mxu0 %v8705
          %8816 = vmatprep.subr.mxu0 0.0
          %8817 = vmatpush1.msra.mxu0 %v8706
          %8818 = vmatprep.subr.mxu0 0.0
          %8819 = vmatpush1.msra.mxu0 %v8707
          %8820 = vmatprep.subr.mxu0 0.0
          %8821 = vmatpush1.msra.mxu0 %v8708
          %8822 = vmatprep.subr.mxu0 0.0
          %8823 = vmatpush1.msra.mxu0 %v8709
          %8824 = vmatprep.subr.mxu0 0.0
          %8825 = vmatpush1.msra.mxu0 %v8710
          %8826 = vmatprep.subr.mxu0 0.0
          %8827 = vmatpush1.msra.mxu0 %v8711
          %8828 = vmatprep.subr.mxu0 0.0
          %8829 = vmatpush1.msra.mxu0 %v8712
          %8830 = vmatprep.subr.mxu0 0.0
          %8831 = vmatpush1.msra.mxu0 %v8713
          %8832 = vmatprep.subr.mxu0 0.0
          %8833 = vmatpush1.msra.mxu0 %v8714
          %8834 = vmatprep.subr.mxu0 0.0
          %8835 = vmatpush1.msra.mxu0 %v8715
          %8836 = vmatprep.subr.mxu0 0.0
          %8837 = vmatpush1.msra.mxu0 %v8716
          %8838 = vmatprep.subr.mxu0 0.0
          %8839 = vmatpush1.msra.mxu0 %v8717
          %8840 = vmatprep.subr.mxu0 0.0
          %8841 = vmatpush1.msra.mxu0 %v8718
          %8842 = vmatprep.subr.mxu0 0.0
          %8843 = vmatpush1.msra.mxu0 %v8719
          %8844 = vmatprep.subr.mxu0 0.0
          %8845 = vmatpush1.msra.mxu0 %v8720
          %8846 = vmatprep.mubr.f32.mxu0 %v8776
          %8847 = vmatmul.mubr.f32.gmra.mrb[0].mxu0 %v8768
          %v8848 = vpop.f32.mrb[0].mxu0
          %v8849 = vadd.f32 %v8758, %v8848
          %v8850 = vpop.f32.mrb[0].mxu0
          %8851 = vdwg.mxu0
          %8852 = vmatprep.subr.mxu0 0.0
          %8853 = vmatpush1.msra.mxu0 %v8721
          %8854 = vmatprep.subr.mxu0 0.0
          %8855 = vmatpush1.msra.mxu0 %v8722
          %8856 = vmatprep.subr.mxu0 0.0
          %8857 = vmatpush1.msra.mxu0 %v8723
          %8858 = vmatprep.subr.mxu0 0.0
          %8859 = vmatpush1.msra.mxu0 %v8724
          %8860 = vmatprep.subr.mxu0 0.0
          %8861 = vmatpush1.msra.mxu0 %v8725
          %8862 = vmatprep.subr.mxu0 0.0
          %8863 = vmatpush1.msra.mxu0 %v8726
          %8864 = vmatprep.subr.mxu0 0.0
          %8865 = vmatpush1.msra.mxu0 %v8727
          %8866 = vmatprep.subr.mxu0 0.0
          %8867 = vmatpush1.msra.mxu0 %v8728
          %8868 = vmatprep.subr.mxu0 0.0
          %8869 = vmatpush1.msra.mxu0 %v8729
          %8870 = vmatprep.subr.mxu0 0.0
          %8871 = vmatpush1.msra.mxu0 %v8730
          %8872 = vmatprep.subr.mxu0 0.0
          %8873 = vmatpush1.msra.mxu0 %v8731
          %8874 = vmatprep.subr.mxu0 0.0
          %8875 = vmatpush1.msra.mxu0 %v8732
          %8876 = vmatprep.subr.mxu0 0.0
          %8877 = vmatpush1.msra.mxu0 %v8733
          %8878 = vmatprep.subr.mxu0 0.0
          %8879 = vmatpush1.msra.mxu0 %v8734
          %8880 = vmatprep.subr.mxu0 0.0
          %8881 = vmatpush1.msra.mxu0 %v8735
          %8882 = vmatprep.subr.mxu0 0.0
          %8883 = vmatpush1.msra.mxu0 %v8736
          %8884 = vmatprep.subr.mxu0 0.0
          %8885 = vmatpush1.msra.mxu0 %v8737
          %8886 = vmatprep.subr.mxu0 0.0
          %8887 = vmatpush1.msra.mxu0 %v8738
          %8888 = vmatprep.subr.mxu0 0.0
          %8889 = vmatpush1.msra.mxu0 %v8739
          %8890 = vmatprep.subr.mxu0 0.0
          %8891 = vmatpush1.msra.mxu0 %v8740
          %8892 = vmatprep.subr.mxu0 0.0
          %8893 = vmatpush1.msra.mxu0 %v8741
          %8894 = vmatprep.subr.mxu0 0.0
          %8895 = vmatpush1.msra.mxu0 %v8742
          %8896 = vmatprep.subr.mxu0 0.0
          %8897 = vmatpush1.msra.mxu0 %v8743
          %8898 = vmatprep.subr.mxu0 0.0
          %8899 = vmatpush1.msra.mxu0 %v8744
          %8900 = vmatprep.subr.mxu0 0.0
          %8901 = vmatpush1.msra.mxu0 %v8745
          %8902 = vmatprep.subr.mxu0 0.0
          %8903 = vmatpush1.msra.mxu0 %v8746
          %8904 = vmatprep.subr.mxu0 0.0
          %8905 = vmatpush1.msra.mxu0 %v8747
          %8906 = vmatprep.subr.mxu0 0.0
          %8907 = vmatpush1.msra.mxu0 %v8748
          %8908 = vmatprep.subr.mxu0 0.0
          %8909 = vmatpush1.msra.mxu0 %v8749
          %8910 = vmatprep.subr.mxu0 0.0
          %8911 = vmatpush1.msra.mxu0 %v8750
          %8912 = vmatprep.subr.mxu0 0.0
          %8913 = vmatpush1.msra.mxu0 %v8751
          %8914 = vmatprep.subr.mxu0 0.0
          %8915 = vmatpush1.msra.mxu0 %v8752
          %8916 = vmatprep.mubr.f32.mxu0 %v8777
          %8917 = vmatmul.mubr.f32.gmra.mrb[0].mxu0 %v8775
          %v8918 = vpop.f32.mrb[0].mxu0
          %v8919 = vadd.f32 %v8849, %v8918
          %v8920 = vpop.f32.mrb[0].mxu0
          %8921 = vdwg.mxu0
          %8923 = vset.pattern.permute.xlu0 0
          %8924 = vperm.xlu0 %8923, %v8686
          %v8925 = vpop.permute.xlu0 %8924
          %v8927 = vadd.f32 %v8925, %v8919
          %vm8928 = vcmask 25600
          %v8929 = vsel %vm8928, %v8919, 0.0
          %8930 = vadd.xlane.f32.xlu0 %v8929
          %v8931 = vpop.xlane.xlu0 %8930
          %v8932 = vrcp.pop 4.0
          %v8933 = vmul.f32 %v8931, %v8932
          %v8934 = vsub.f32 %v8927, %v8933
          %8935 = vst.msk [vmem:[#allocation6] sm:$0x3] %vm8928, %v8934
        $region180: #{_lambda_.1} parent=171 // pred_fallthru
          _
        // Predicated region
        $region181: #{_lambda_.1} parent=171 // pred_check
          %p8936 = pneg %p907
        $region182: #{_lambda_.1} parent=171 // pred_check_branch
          %8938 = sbr.rel (%p8936) target = $region184
        $region183: #{_lambda_.1} parent=171 // pred_region
          %s8940 = ssub.s32 32, 32
          %8941 = vsyncadd [#allocation7], %s8940
          %s8943 = sshll.u32 [#allocation6], 4
          %s8944 = int_to_ptr.vmem [resolvable:$true] %s8943
          %8946 = dma.vmem_to_hbm [thread:$0]  %s8944, 32, %s77, [#allocation7]
        $region184: #{_lambda_.1} parent=171 // pred_fallthru
          _
        // Predicated region
        $region185: #{_lambda_.1} parent=171 // pred_check
          %p8947 = pneg %p907
        $region186: #{_lambda_.1} parent=171 // pred_check_branch
          %8949 = sbr.rel (%p8947) target = $region188
        $region187: #{_lambda_.1} parent=171 // pred_region
          %8950 = dma.done [#allocation7], 32
        $region188: #{_lambda_.1} parent=171 // pred_fallthru
          _
      $region172: #{_lambda_.1} parent=5 // pred_fallthru
        _
      %p8951 = scmp.le.s32.totalorder 2, %s86
      // Predicated region
      $region189: #{_lambda_.1} parent=5 // pred_check
        %p8952 = pneg %p8951
      $region190: #{_lambda_.1} parent=5 // pred_check_branch
        %8954 = sbr.rel (%p8952) target = $region192
      $region191: #{_lambda_.1} parent=5 // pred_region
        %s8955 = ssub.s32 %s86, 2
      $region192: #{_lambda_.1} parent=5 // pred_fallthru
        _
    $region6: #{_lambda_.1} parent=1 // loop_footer
      %s90 = sadd.s32 1, %s86
    $region7: #{_lambda_.1} parent=1 // loop_footer_branch
      %85 = sbr.rel target = $region3
    $region8: #{_lambda_.1} parent=1 // loop_exit
      _
    %8956 = vsyncpa [#allocation7], 1
    %s8957 = scalar_lea.sflag [#allocation7], 1
    %8958 = vsyncpa %s8957, 1

</llo_original>
